<compile_context>
chip_gen: v5e
topology: v5e:2x2
jax: 0.10.0
libtpu: 0.0.40
codegen_flags: <defaults>
</compile_context>

<pallas_src>
import functools

import jax
import jax.numpy as jnp
from jax.experimental import pallas as pl
from jax.experimental.pallas import tpu as pltpu

# bf16 MXU inputs + f32 accumulation. Set to None for exact f32 parity with PyTorch.
_MXU_DTYPE = jnp.bfloat16


def _ceil_to(x, m):
    return ((x + m - 1) // m) * m


def _pick_tile(dim, pref):
    """Largest divisor of `dim` that is a multiple of 128 and <= pref, else the full dim."""
    if dim % 128 != 0:
        return dim
    t = max(128, (min(pref, dim) // 128) * 128)
    while dim % t != 0:
        t -= 128
    return t


def _attn_tiles(T):
    """(padded T, q tile, kv tile). Full-T single tile for small T; 256/512 for large T."""
    Tp8 = _ceil_to(T, 8)
    if Tp8 <= 512:
        return Tp8, Tp8, Tp8
    Tp = _ceil_to(T, 512)
    return Tp, 256, 512


# ----------------------------- LayerNorm (row-tiled) -----------------------------

def _ln_kernel(x_ref, g_ref, b_ref, o_ref, *, eps):
    x = x_ref[...].astype(jnp.float32)                              # (tm, C)
    mu = jnp.mean(x, axis=-1, keepdims=True)
    var = jnp.mean(jnp.square(x - mu), axis=-1, keepdims=True)      # biased var (PyTorch)
    xn = (x - mu) * jax.lax.rsqrt(var + eps)
    o_ref[...] = (xn * g_ref[...].astype(jnp.float32)
                  + b_ref[...].astype(jnp.float32)).astype(o_ref.dtype)


def layernorm_rows(x2d, gamma, beta, eps=1e-5, row_tile=512):
    M, C = x2d.shape
    tm = min(row_tile, _ceil_to(M, 8))
    Mp = _ceil_to(M, tm)
    xp = x2d if Mp == M else jnp.pad(x2d, ((0, Mp - M), (0, 0)))
    out = pl.pallas_call(
        functools.partial(_ln_kernel, eps=eps),
        out_shape=jax.ShapeDtypeStruct((Mp, C), x2d.dtype),
        grid=(Mp // tm,),
        in_specs=[pl.BlockSpec((tm, C), lambda i: (i, 0)),
                  pl.BlockSpec((1, C), lambda i: (0, 0)),
                  pl.BlockSpec((1, C), lambda i: (0, 0))],
        out_specs=pl.BlockSpec((tm, C), lambda i: (i, 0)),
        compiler_params=pltpu.CompilerParams(dimension_semantics=("parallel",)),
    )(xp, gamma.reshape(1, C), beta.reshape(1, C))
    return out[:M]


# --------------- fused q/k/v depthwise 3x3 conv + folded BatchNorm (one launch) ---------------

def _dwconv3_kernel(xp_ref, w_ref, s_ref, t_ref, o_ref, *, H, W):
    xp = xp_ref[0].astype(jnp.float32)            # (H+2, W+2, C), read once, shared by branches
    for g in range(3):                            # q, k, v depthwise branches
        acc = None
        for kh in range(3):
            for kw in range(3):
                term = xp[kh:kh + H, kw:kw + W, :] * w_ref[g * 9 + kh * 3 + kw].astype(jnp.float32)
                acc = term if acc is None else acc + term
        o_ref[g, 0] = (acc * s_ref[g].astype(jnp.float32)
                       + t_ref[g].astype(jnp.float32)).astype(o_ref.dtype)   # folded BN (eval)


def dwconv3_bn(img, w3, bn_scale3, bn_shift3, out_dtype=None):
    """Three depthwise 3x3 conv (+BN) branches, one launch. img (B,H,W,C) -> (3,B,H,W,C)."""
    B, H, W, C = img.shape
    out_dtype = img.dtype if out_dtype is None else out_dtype
    img_p = jnp.pad(img, ((0, 0), (1, 1), (1, 1), (0, 0)))     # padded once, read once
    return pl.pallas_call(
        functools.partial(_dwconv3_kernel, H=H, W=W),
        out_shape=jax.ShapeDtypeStruct((3, B, H, W, C), out_dtype),
        grid=(B,),
        in_specs=[pl.BlockSpec((1, H + 2, W + 2, C), lambda b: (b, 0, 0, 0)),
                  pl.BlockSpec((27, 1, C), lambda b: (0, 0, 0)),
                  pl.BlockSpec((3, 1, C), lambda b: (0, 0, 0)),
                  pl.BlockSpec((3, 1, C), lambda b: (0, 0, 0))],
        out_specs=pl.BlockSpec((3, 1, H, W, C), lambda b: (0, b, 0, 0, 0)),
        compiler_params=pltpu.CompilerParams(dimension_semantics=("parallel",)),
    )(img_p, w3, bn_scale3, bn_shift3)


# --------------- q/k/v linear projections, head-split output layout (one launch) ---------------

def _qkv_headsplit_kernel(tok_ref, w_ref, q_ref, k_ref, v_ref, *, num_heads, head_dim):
    out_refs = (q_ref, k_ref, v_ref)
    for g in range(3):
        x = tok_ref[g, 0]                          # (tt, C)
        w = w_ref[g]                               # (C, C)
        if _MXU_DTYPE is not None:
            x = x.astype(_MXU_DTYPE)
            w = w.astype(_MXU_DTYPE)
        y = jnp.dot(x, w, preferred_element_type=jnp.float32)     # (tt, C) f32
        o = out_refs[g]
        for hh in range(num_heads):                # head split fused into the store (no XLA transpose)
            o[0, hh] = y[:, hh * head_dim:(hh + 1) * head_dim].astype(o.dtype)


def qkv_project_headsplit(tok, w3, num_heads, row_tile, out_dtype):
    """(3,B,Tp,C) x (3,C,C) -> three (B,H,Tp,hd) arrays in head-split layout."""
    _, B, Tp, C = tok.shape
    hd = C // num_heads
    tt = row_tile                                   # divides Tp by construction
    out_sd = jax.ShapeDtypeStruct((B, num_heads, Tp, hd), out_dtype)
    out_spec = pl.BlockSpec((1, num_heads, tt, hd), lambda b, ti: (b, 0, ti, 0))
    return pl.pallas_call(
        functools.partial(_qkv_headsplit_kernel, num_heads=num_heads, head_dim=hd),
        out_shape=(out_sd, out_sd, out_sd),
        grid=(B, Tp // tt),
        in_specs=[pl.BlockSpec((3, 1, tt, C), lambda b, ti: (0, b, ti, 0)),
                  pl.BlockSpec((3, C, C), lambda b, ti: (0, 0, 0))],
        out_specs=(out_spec, out_spec, out_spec),
        compiler_params=pltpu.CompilerParams(dimension_semantics=("parallel", "parallel")),
        cost_estimate=pl.CostEstimate(
            flops=2 * 3 * B * Tp * C * C, transcendentals=0,
            bytes_accessed=(tok.dtype.itemsize * 3 * B * Tp * C
                            + w3.dtype.itemsize * 3 * C * C
                            + 3 * jnp.dtype(out_dtype).itemsize * B * Tp * C)),
    )(tok, w3)


# ----------------------------- flash-style attention -----------------------------

def _flash_attn_kernel(*refs, masked):
    if masked:
        q_ref, k_ref, v_ref, bias_ref, o_ref, m_ref, l_ref, acc_ref = refs
    else:
        q_ref, k_ref, v_ref, o_ref, m_ref, l_ref, acc_ref = refs
    kv_i = pl.program_id(3)

    @pl.when(kv_i == 0)
    def _():
        m_ref[...] = jnp.full(m_ref.shape, -jnp.inf, jnp.float32)
        l_ref[...] = jnp.zeros(l_ref.shape, jnp.float32)
        acc_ref[...] = jnp.zeros(acc_ref.shape, jnp.float32)

    q = q_ref[0, 0]                                 # (tq, hd), stays bf16 in MXU mode
    kk = k_ref[0, 0]                                # (tkv, hd)
    v = v_ref[0, 0]                                 # (tkv, hd)

    s = jax.lax.dot_general(q, kk, (((1,), (1,)), ((), ())),
                            preferred_element_type=jnp.float32)          # (tq, tkv) f32
    if masked:
        s = s + bias_ref[...]                       # (1, tkv) additive bias: 0 valid, -1e30 pad

    m_prev = m_ref[...]
    m_new = jnp.maximum(m_prev, jnp.max(s, axis=-1, keepdims=True))
    alpha = jnp.exp(m_prev - m_new)
    p = jnp.exp(s - m_new)
    l_ref[...] = alpha * l_ref[...] + jnp.sum(p, axis=-1, keepdims=True)
    acc_ref[...] = alpha * acc_ref[...] + jax.lax.dot_general(
        p.astype(v.dtype), v, (((1,), (0,)), ((), ())), preferred_element_type=jnp.float32)
    m_ref[...] = m_new

    @pl.when(kv_i == pl.num_programs(3) - 1)
    def _():
        inv_l = pl.reciprocal(l_ref[...], approx=_MXU_DTYPE is not None)
        o_ref[0, 0] = (acc_ref[...] * inv_l).astype(o_ref.dtype)


def flash_attention(q, k, v, *, tq, tkv, kv_bias=None):
    """Streaming-softmax attention over (B, H, Tp, hd) — never materializes (T,T) scores."""
    B, H, Tp, hd = q.shape
    nq, nkv = Tp // tq, Tp // tkv
    masked = kv_bias is not None
    inputs = [q, k, v]
    in_specs = [pl.BlockSpec((1, 1, tq, hd), lambda b, h_, qi, ki: (b, h_, qi, 0)),
                pl.BlockSpec((1, 1, tkv, hd), lambda b, h_, qi, ki: (b, h_, ki, 0)),
                pl.BlockSpec((1, 1, tkv, hd), lambda b, h_, qi, ki: (b, h_, ki, 0))]
    if masked:
        inputs.append(kv_bias)
        in_specs.append(pl.BlockSpec((1, tkv), lambda b, h_, qi, ki: (0, ki)))
    return pl.pallas_call(
        functools.partial(_flash_attn_kernel, masked=masked),
        out_shape=jax.ShapeDtypeStruct((B, H, Tp, hd), q.dtype),
        grid=(B, H, nq, nkv),
        in_specs=in_specs,
        out_specs=pl.BlockSpec((1, 1, tq, hd), lambda b, h_, qi, ki: (b, h_, qi, 0)),
        scratch_shapes=[pltpu.VMEM((tq, 1), jnp.float32),
                        pltpu.VMEM((tq, 1), jnp.float32),
                        pltpu.VMEM((tq, hd), jnp.float32)],
        compiler_params=pltpu.CompilerParams(
            dimension_semantics=("parallel", "parallel", "parallel", "arbitrary")),
        cost_estimate=pl.CostEstimate(
            flops=4 * B * H * Tp * Tp * hd, transcendentals=B * H * Tp * Tp,
            bytes_accessed=q.dtype.itemsize * B * H * Tp * hd * (2 + 2 * nq)),
    )(*inputs)


# ------------- attention output projection: head merge fused into the reduction -------------

def _attn_proj_kernel(a_ref, w_ref, b_ref, r_ref, o_ref, acc_ref, *, nh):
    hh = pl.program_id(2)

    @pl.when(hh == 0)
    def _():
        acc_ref[...] = jnp.zeros_like(acc_ref)

    a = a_ref[0, 0]                                  # (tt, hd) of head hh
    w = w_ref[0]                                     # (hd, C)
    if _MXU_DTYPE is not None:
        a = a.astype(_MXU_DTYPE)
        w = w.astype(_MXU_DTYPE)
    acc_ref[...] += jnp.dot(a, w, preferred_element_type=jnp.float32)

    @pl.when(hh == nh - 1)
    def _():
        y = acc_ref[...] + b_ref[...].astype(jnp.float32) + r_ref[0].astype(jnp.float32)
        o_ref[0] = y.astype(o_ref.dtype)


def attn_out_proj(attn, w_hdc, bias, residual, *, row_tile):
    """(B,H,Tp,hd) x (H,hd,C) -> (B,Tp,C), reducing over heads; bias + residual fused."""
    B, H, Tp, hd = attn.shape
    C = w_hdc.shape[-1]
    tt = row_tile
    return pl.pallas_call(
        functools.partial(_attn_proj_kernel, nh=H),
        out_shape=jax.ShapeDtypeStruct((B, Tp, C), residual.dtype),
        grid=(B, Tp // tt, H),
        in_specs=[pl.BlockSpec((1, 1, tt, hd), lambda b, ti, hh: (b, hh, ti, 0)),
                  pl.BlockSpec((1, hd, C), lambda b, ti, hh: (hh, 0, 0)),
                  pl.BlockSpec((1, C), lambda b, ti, hh: (0, 0)),
                  pl.BlockSpec((1, tt, C), lambda b, ti, hh: (b, ti, 0))],
        out_specs=pl.BlockSpec((1, tt, C), lambda b, ti, hh: (b, ti, 0)),
        scratch_shapes=[pltpu.VMEM((tt, C), jnp.float32)],
        compiler_params=pltpu.CompilerParams(
            dimension_semantics=("parallel", "parallel", "arbitrary")),
        cost_estimate=pl.CostEstimate(
            flops=2 * B * Tp * H * hd * C, transcendentals=0,
            bytes_accessed=(attn.dtype.itemsize * B * H * Tp * hd
                            + 4 * (2 * B * Tp * C + H * hd * C))),
    )(attn, w_hdc, bias.reshape(1, C), residual)


# ------------------ tiled matmul with fused LN / bias / GELU / residual ------------------

def _erf(x):
    # Abramowitz & Stegun 7.1.26 rational approximation; |abs err| <= 1.5e-7 (~f32 eps).
    a1, a2, a3, a4, a5 = 0.254829592, -0.284496736, 1.421413741, -1.453152027, 1.061405429
    pp = 0.3275911
    sgn = jnp.where(x >= 0.0, 1.0, -1.0)
    z = jnp.abs(x)
    tt = 1.0 / (1.0 + pp * z)
    poly = ((((a5 * tt + a4) * tt + a3) * tt + a2) * tt + a1) * tt
    return sgn * (1.0 - poly * jnp.exp(-z * z))


def _fused_linear_kernel(*args, nk, has_ln, has_bias, has_res, act, eps):
    use_acc = nk > 1
    idx = 0
    x_ref = args[idx]; idx += 1
    w_ref = args[idx]; idx += 1
    if has_ln:
        g_ref = args[idx]; idx += 1
        be_ref = args[idx]; idx += 1
    if has_bias:
        bias_ref = args[idx]; idx += 1
    if has_res:
        res_ref = args[idx]; idx += 1
    o_ref = args[idx]; idx += 1
    acc_ref = args[idx] if use_acc else None

    x = x_ref[...]
    if has_ln:                                     # fused pre-LayerNorm (tk == K enforced)
        xf = x.astype(jnp.float32)
        mu = jnp.mean(xf, axis=-1, keepdims=True)
        var = jnp.mean(jnp.square(xf - mu), axis=-1, keepdims=True)
        xf = (xf - mu) * jax.lax.rsqrt(var + eps)
        x = xf * g_ref[...].astype(jnp.float32) + be_ref[...].astype(jnp.float32)
    w = w_ref[...]
    if _MXU_DTYPE is not None:
        x = x.astype(_MXU_DTYPE)
        w = w.astype(_MXU_DTYPE)
    elif has_ln:
        x = x.astype(x_ref.dtype)
    part = jnp.dot(x, w, preferred_element_type=jnp.float32)

    def epilogue(y):
        if has_bias:
            y = y + bias_ref[...].astype(jnp.float32)
        if act == "gelu":                          # exact (erf) GELU fused into the epilogue
            y = 0.5 * y * (1.0 + _erf(y * 0.7071067811865476))
        if has_res:
            y = y + res_ref[...].astype(jnp.float32)
        o_ref[...] = y.astype(o_ref.dtype)

    if use_acc:
        k = pl.program_id(2)

        @pl.when(k == 0)
        def _():
            acc_ref[...] = jnp.zeros_like(acc_ref)

        acc_ref[...] += part

        @pl.when(k == nk - 1)
        def _():
            epilogue(acc_ref[...])
    else:                                          # nk==1: no accumulator scratch, direct store
        epilogue(part)


def fused_linear(x2d, w, bias=None, residual=None, act=None, ln=None, eps=1e-5,
                 tm=256, tn=512, tk=512, out_dtype=None):
    """y = [LN](x) @ w (+bias) (+GELU) (+residual), tiled over (M, N, K)."""
    M, K = x2d.shape
    _, N = w.shape
    out_dtype = x2d.dtype if out_dtype is None else out_dtype
    tm_ = min(tm, _ceil_to(M, 8))
    Mp = _ceil_to(M, tm_)
    tk_ = K if ln is not None else _pick_tile(K, tk)    # fused LN needs the full feature row
    tn_ = _pick_tile(N, tn)
    nk = K // tk_

    if _MXU_DTYPE is not None:
        w = w.astype(_MXU_DTYPE)
    xp = x2d if Mp == M else jnp.pad(x2d, ((0, Mp - M), (0, 0)))
    inputs = [xp, w]
    in_specs = [pl.BlockSpec((tm_, tk_), lambda i, j, k: (i, k)),
                pl.BlockSpec((tk_, tn_), lambda i, j, k: (k, j))]
    if ln is not None:
        g, b = ln
        inputs += [g.reshape(1, K), b.reshape(1, K)]
        in_specs += [pl.BlockSpec((1, K), lambda i, j, k: (0, 0)),
                     pl.BlockSpec((1, K), lambda i, j, k: (0, 0))]
    if bias is not None:
        inputs.append(bias.reshape(1, N))
        in_specs.append(pl.BlockSpec((1, tn_), lambda i, j, k: (0, j)))
    if residual is not None:
        rp = residual if Mp == M else jnp.pad(residual, ((0, Mp - M), (0, 0)))
        inputs.append(rp)
        in_specs.append(pl.BlockSpec((tm_, tn_), lambda i, j, k: (i, j)))

    out = pl.pallas_call(
        functools.partial(_fused_linear_kernel, nk=nk, has_ln=ln is not None,
                          has_bias=bias is not None, has_res=residual is not None,
                          act=act, eps=eps),
        out_shape=jax.ShapeDtypeStruct((Mp, N), out_dtype),
        grid=(Mp // tm_, N // tn_, nk),
        in_specs=in_specs,
        out_specs=pl.BlockSpec((tm_, tn_), lambda i, j, k: (i, j)),
        scratch_shapes=([pltpu.VMEM((tm_, tn_), jnp.float32)] if nk > 1 else []),
        compiler_params=pltpu.CompilerParams(
            dimension_semantics=("parallel", "parallel", "arbitrary")),
        cost_estimate=pl.CostEstimate(
            flops=2 * M * K * N,
            transcendentals=(M * N if act == "gelu" else 0),
            bytes_accessed=4 * (M * K + K * N + 2 * M * N)),
    )(*inputs)
    return out[:M]


# ----------------------------- CvT forward -----------------------------

@functools.partial(jax.jit, static_argnames=("h", "w", "num_heads"))
def cvt_forward(x, params, *, h, w, num_heads):
    B, T, C = x.shape
    hd = C // num_heads
    scale = float(C) ** (-0.5)        # PyTorch: self.scale = dim_out ** -0.5 (NOT per-head)
    p = params
    cdt = _MXU_DTYPE if _MXU_DTYPE is not None else x.dtype   # attention-path activation dtype

    Tp, tq, tkv = _attn_tiles(T)
    Mp = B * Tp

    # pad the token axis ONCE; everything downstream runs on Tp rows, sliced at the end.
    xp = x if Tp == T else jnp.pad(x, ((0, 0), (0, Tp - T), (0, 0)))
    x2d = xp.reshape(Mp, C)

    # ---- norm1 (row-tiled Pallas LayerNorm) ----
    xn = layernorm_rows(x2d, p['ln1_g'], p['ln1_b']).reshape(B, Tp, C)

    # ---- Attention.forward_conv (with_cls_token=True): 3 dwconv+BN branches, 1 launch ----
    img = xn[:, 1:1 + h * w, :].reshape(B, h, w, C)                             # NHWC
    conv = dwconv3_bn(img, p['conv_w3'], p['bn_scale3'], p['bn_shift3'],
                      out_dtype=cdt)                                            # (3,B,h,w,C)
    conv_tok = conv.reshape(3, B, h * w, C)
    cls3 = jnp.broadcast_to(xn[None, :, :1, :], (3, B, 1, C)).astype(cdt)
    parts = [cls3, conv_tok]
    if Tp > T:                                     # token pad folded into the concat (no jnp.pad)
        parts.append(jnp.zeros((3, B, Tp - T, C), cdt))
    tok = jnp.concatenate(parts, axis=2)           # (3, B, Tp, C)

    # ---- q/k/v linear projections (qkv_bias=False), head-split output; scale folded into Wq ----
    w_qkv = jnp.stack([p['wq'] * scale, p['wk'], p['wv']], axis=0)              # (3, C, C)
    if _MXU_DTYPE is not None:
        w_qkv = w_qkv.astype(_MXU_DTYPE)
    q, k, v = qkv_project_headsplit(tok, w_qkv, num_heads, row_tile=tkv,
                                    out_dtype=cdt)                              # (B,H,Tp,hd) x3

    # ---- flash attention (online softmax, no (T,T) score tensor) ----
    kv_bias = None
    if Tp > T:
        kv_bias = jnp.where(jnp.arange(Tp) < T, 0.0, -1e30).astype(jnp.float32).reshape(1, Tp)
    attn = flash_attention(q, k, v, tq=tq, tkv=tkv, kv_bias=kv_bias)            # (B,H,Tp,hd)

    # ---- output projection + bias + residual; head merge fused into the reduction axis ----
    w_proj = p['w_proj'].reshape(num_heads, hd, C)
    if _MXU_DTYPE is not None:
        w_proj = w_proj.astype(_MXU_DTYPE)
    x1 = attn_out_proj(attn, w_proj, p['b_proj'], xp, row_tile=tq)              # (B, Tp, C) f32
    x1_2d = x1.reshape(Mp, C)

    # ---- MLP: norm2 fused into fc1 (+bias +exact GELU), fc2 (+bias +residual) ----
    h1 = fused_linear(x1_2d, p['w_fc1'], bias=p['b_fc1'], act="gelu",
                      ln=(p['ln2_g'], p['ln2_b']), out_dtype=cdt)
    out = fused_linear(h1, p['w_fc2'], bias=p['b_fc2'], residual=x1_2d, out_dtype=x.dtype)
    return out.reshape(B, Tp, C)[:, :T, :]


# ----------------------------- param init -----------------------------

def init_params(key, C, mlp_hidden):
    ks = iter(jax.random.split(key, 48))
    nrm = lambda shape, s=0.1: s * jax.random.normal(next(ks), shape, jnp.float32)
    uni = lambda shape: jax.random.uniform(next(ks), shape, jnp.float32, minval=0.5, maxval=1.5)
    eps = 1e-5
    p = {}
    p['ln1_g'] = 1.0 + nrm((C,)); p['ln1_b'] = nrm((C,))
    p['ln2_g'] = 1.0 + nrm((C,)); p['ln2_b'] = nrm((C,))
    conv_w, bn_s, bn_t = [], [], []
    for _ in range(3):                      # q, k, v depthwise-conv branches
        conv_w.append(nrm((3, 3, 1, C), 0.3))      # depthwise weight, channel-last
        g, b = uni((C,)), nrm((C,))
        rm, rv = nrm((C,)), uni((C,))
        sc = g * jax.lax.rsqrt(rv + eps)    # fold BatchNorm (eval mode)
        bn_s.append(sc)
        bn_t.append(b - rm * sc)
    p['conv_w3'] = jnp.stack(conv_w, axis=0).reshape(27, 1, C)   # (branch, kh, kw) flattened
    p['bn_scale3'] = jnp.stack(bn_s)[:, None, :]                 # (3, 1, C)
    p['bn_shift3'] = jnp.stack(bn_t)[:, None, :]                 # (3, 1, C)
    p['wq'] = nrm((C, C)); p['wk'] = nrm((C, C)); p['wv'] = nrm((C, C))
    p['w_proj'] = nrm((C, C)); p['b_proj'] = nrm((C,))
    p['w_fc1'] = nrm((C, mlp_hidden)); p['b_fc1'] = nrm((mlp_hidden,))
    p['w_fc2'] = nrm((mlp_hidden, C)); p['b_fc2'] = nrm((C,))
    return p


# ----------------------------- main -----------------------------

if __name__ == "__main__":
    B, C, num_heads, h, w = 2, 32, 4, 8, 8
    mlp_hidden = int(C * 4.0)
    T = 1 + h * w                                              # with_cls_token=True

    key = jax.random.PRNGKey(0)
    kx, kp = jax.random.split(key)
    x = jax.random.normal(kx, (B, T, C), jnp.float32)
    params = init_params(kp, C, mlp_hidden)

    out = cvt_forward(x, params, h=h, w=w, num_heads=num_heads)
    out = jax.block_until_ready(out)
    assert out.shape == (B, T, C)
    assert bool(jnp.all(jnp.isfinite(out)))
    print("KERNEL_OK")
</pallas_src>

<mosaic_0001>
module attributes {stable_mosaic.version = 11 : i64} {
  func.func @_ln_kernel(%arg0: i32, %arg1: memref<144x32xf32, #tpu.memory_space<vmem>>, %arg2: memref<1x32xf32, #tpu.memory_space<vmem>>, %arg3: memref<1x32xf32, #tpu.memory_space<vmem>>, %arg4: memref<144x32xf32, #tpu.memory_space<vmem>>) attributes {dimension_semantics = [#tpu.dimension_semantics<parallel>], iteration_bounds = array<i64: 1>, scalar_prefetch = 0 : i64, scratch_operands = 0 : i64, tpu.core_type = #tpu.core_type<tc>, window_params = [{transform_indices = @transform_0, window_bounds = array<i64: 144, 32>}, {pipeline_mode = #tpu.pipeline_mode<synchronous>, transform_indices = @transform_1, window_bounds = array<i64: 1, 32>}, {pipeline_mode = #tpu.pipeline_mode<synchronous>, transform_indices = @transform_2, window_bounds = array<i64: 1, 32>}, {transform_indices = @transform_3, window_bounds = array<i64: 144, 32>}]} {
    %c0 = arith.constant 0 : index
    %c0_0 = arith.constant 0 : index
    %0 = vector.load %arg1[%c0, %c0_0] : memref<144x32xf32, #tpu.memory_space<vmem>>, vector<144x32xf32>
    %cst = arith.constant dense<0.000000e+00> : vector<144xf32>
    %1 = vector.multi_reduction <add>, %0, %cst [1] : vector<144x32xf32> to vector<144xf32>
    %2 = vector.shape_cast %1 : vector<144xf32> to vector<144x1xf32>
    %cst_1 = arith.constant 3.200000e+01 : f32
    %3 = vector.broadcast %cst_1 : f32 to vector<144x1xf32>
    %4 = arith.divf %2, %3 : vector<144x1xf32>
    %5 = vector.broadcast %4 : vector<144x1xf32> to vector<144x32xf32>
    %6 = arith.subf %0, %5 : vector<144x32xf32>
    %7 = arith.mulf %6, %6 : vector<144x32xf32>
    %cst_2 = arith.constant dense<0.000000e+00> : vector<144xf32>
    %8 = vector.multi_reduction <add>, %7, %cst_2 [1] : vector<144x32xf32> to vector<144xf32>
    %9 = vector.shape_cast %8 : vector<144xf32> to vector<144x1xf32>
    %cst_3 = arith.constant 3.200000e+01 : f32
    %10 = vector.broadcast %cst_3 : f32 to vector<144x1xf32>
    %11 = arith.divf %9, %10 : vector<144x1xf32>
    %12 = vector.broadcast %4 : vector<144x1xf32> to vector<144x32xf32>
    %13 = arith.subf %0, %12 : vector<144x32xf32>
    %cst_4 = arith.constant 9.99999974E-6 : f32
    %14 = vector.broadcast %cst_4 : f32 to vector<144x1xf32>
    %15 = arith.addf %11, %14 : vector<144x1xf32>
    %16 = math.rsqrt %15 : vector<144x1xf32>
    %17 = vector.broadcast %16 : vector<144x1xf32> to vector<144x32xf32>
    %18 = arith.mulf %13, %17 : vector<144x32xf32>
    %c0_5 = arith.constant 0 : index
    %c0_6 = arith.constant 0 : index
    %19 = vector.load %arg2[%c0_5, %c0_6] : memref<1x32xf32, #tpu.memory_space<vmem>>, vector<1x32xf32>
    %20 = vector.broadcast %19 : vector<1x32xf32> to vector<144x32xf32>
    %21 = arith.mulf %18, %20 : vector<144x32xf32>
    %c0_7 = arith.constant 0 : index
    %c0_8 = arith.constant 0 : index
    %22 = vector.load %arg3[%c0_7, %c0_8] : memref<1x32xf32, #tpu.memory_space<vmem>>, vector<1x32xf32>
    %23 = vector.broadcast %22 : vector<1x32xf32> to vector<144x32xf32>
    %24 = arith.addf %21, %23 : vector<144x32xf32>
    %c0_9 = arith.constant 0 : index
    %c0_10 = arith.constant 0 : index
    %25 = vector.load %arg4[%c0_9, %c0_10] : memref<144x32xf32, #tpu.memory_space<vmem>>, vector<144x32xf32>
    tpu.vector_store %arg4[%c0_9, %c0_10], %24 {strides = array<i32>} : memref<144x32xf32, #tpu.memory_space<vmem>>, vector<144x32xf32>,
    return
  }
  func.func @transform_0(%arg0: i32) -> (i32, i32) {
    %c0_i32 = arith.constant 0 : i32
    %c0_i32_0 = arith.constant 0 : i32
    return %arg0, %c0_i32 : i32, i32
  }
  func.func @transform_1(%arg0: i32) -> (i32, i32) {
    %c0_i32 = arith.constant 0 : i32
    %c0_i32_0 = arith.constant 0 : i32
    %c0_i32_1 = arith.constant 0 : i32
    return %c0_i32, %c0_i32_0 : i32, i32
  }
  func.func @transform_2(%arg0: i32) -> (i32, i32) {
    %c0_i32 = arith.constant 0 : i32
    %c0_i32_0 = arith.constant 0 : i32
    %c0_i32_1 = arith.constant 0 : i32
    return %c0_i32, %c0_i32_0 : i32, i32
  }
  func.func @transform_3(%arg0: i32) -> (i32, i32) {
    %c0_i32 = arith.constant 0 : i32
    %c0_i32_0 = arith.constant 0 : i32
    return %arg0, %c0_i32 : i32, i32
  }
}

module attributes {stable_mosaic.version = 11 : i64} {
  func.func @_dwconv3_kernel(%arg0: i32, %arg1: memref<1x10x10x32xf32, #tpu.memory_space<vmem>>, %arg2: memref<27x1x32xf32, #tpu.memory_space<vmem>>, %arg3: memref<3x1x32xf32, #tpu.memory_space<vmem>>, %arg4: memref<3x1x32xf32, #tpu.memory_space<vmem>>, %arg5: memref<3x1x8x8x32xbf16, #tpu.memory_space<vmem>>) attributes {dimension_semantics = [#tpu.dimension_semantics<parallel>], iteration_bounds = array<i64: 2>, scalar_prefetch = 0 : i64, scratch_operands = 0 : i64, tpu.core_type = #tpu.core_type<tc>, window_params = [{transform_indices = @transform_0, window_bounds = array<i64: 1, 10, 10, 32>}, {pipeline_mode = #tpu.pipeline_mode<synchronous>, transform_indices = @transform_1, window_bounds = array<i64: 27, 1, 32>}, {pipeline_mode = #tpu.pipeline_mode<synchronous>, transform_indices = @transform_2, window_bounds = array<i64: 3, 1, 32>}, {pipeline_mode = #tpu.pipeline_mode<synchronous>, transform_indices = @transform_3, window_bounds = array<i64: 3, 1, 32>}, {transform_indices = @transform_4, window_bounds = array<i64: 3, 1, 8, 8, 32>}]} {
    %c0 = arith.constant 0 : index
    %c0_0 = arith.constant 0 : index
    %c0_1 = arith.constant 0 : index
    %c0_2 = arith.constant 0 : index
    %0 = vector.load %arg1[%c0, %c0_0, %c0_1, %c0_2] : memref<1x10x10x32xf32, #tpu.memory_space<vmem>>, vector<1x10x10x32xf32>
    %1 = vector.shape_cast %0 : vector<1x10x10x32xf32> to vector<10x10x32xf32>
    %2 = vector.extract_strided_slice %1 {offsets = [0, 0, 0], sizes = [8, 8, 32], strides = [1, 1, 1]} : vector<10x10x32xf32> to vector<8x8x32xf32>
    %c0_3 = arith.constant 0 : index
    %c0_4 = arith.constant 0 : index
    %c0_5 = arith.constant 0 : index
    %3 = vector.load %arg2[%c0_3, %c0_4, %c0_5] : memref<27x1x32xf32, #tpu.memory_space<vmem>>, vector<1x1x32xf32>
    %4 = vector.shape_cast %3 : vector<1x1x32xf32> to vector<1x32xf32>
    %5 = vector.shape_cast %4 : vector<1x32xf32> to vector<1x1x32xf32>
    %6 = vector.broadcast %5 : vector<1x1x32xf32> to vector<8x8x32xf32>
    %7 = arith.mulf %2, %6 : vector<8x8x32xf32>
    %8 = vector.extract_strided_slice %1 {offsets = [0, 1, 0], sizes = [8, 8, 32], strides = [1, 1, 1]} : vector<10x10x32xf32> to vector<8x8x32xf32>
    %c1 = arith.constant 1 : index
    %c0_6 = arith.constant 0 : index
    %c0_7 = arith.constant 0 : index
    %9 = vector.load %arg2[%c1, %c0_6, %c0_7] : memref<27x1x32xf32, #tpu.memory_space<vmem>>, vector<1x1x32xf32>
    %10 = vector.shape_cast %9 : vector<1x1x32xf32> to vector<1x32xf32>
    %11 = vector.shape_cast %10 : vector<1x32xf32> to vector<1x1x32xf32>
    %12 = vector.broadcast %11 : vector<1x1x32xf32> to vector<8x8x32xf32>
    %13 = arith.mulf %8, %12 : vector<8x8x32xf32>
    %14 = arith.addf %7, %13 : vector<8x8x32xf32>
    %15 = vector.extract_strided_slice %1 {offsets = [0, 2, 0], sizes = [8, 8, 32], strides = [1, 1, 1]} : vector<10x10x32xf32> to vector<8x8x32xf32>
    %c2 = arith.constant 2 : index
    %c0_8 = arith.constant 0 : index
    %c0_9 = arith.constant 0 : index
    %16 = vector.load %arg2[%c2, %c0_8, %c0_9] : memref<27x1x32xf32, #tpu.memory_space<vmem>>, vector<1x1x32xf32>
    %17 = vector.shape_cast %16 : vector<1x1x32xf32> to vector<1x32xf32>
    %18 = vector.shape_cast %17 : vector<1x32xf32> to vector<1x1x32xf32>
    %19 = vector.broadcast %18 : vector<1x1x32xf32> to vector<8x8x32xf32>
    %20 = arith.mulf %15, %19 : vector<8x8x32xf32>
    %21 = arith.addf %14, %20 : vector<8x8x32xf32>
    %22 = vector.extract_strided_slice %1 {offsets = [1, 0, 0], sizes = [8, 8, 32], strides = [1, 1, 1]} : vector<10x10x32xf32> to vector<8x8x32xf32>
    %c3 = arith.constant 3 : index
    %c0_10 = arith.constant 0 : index
    %c0_11 = arith.constant 0 : index
    %23 = vector.load %arg2[%c3, %c0_10, %c0_11] : memref<27x1x32xf32, #tpu.memory_space<vmem>>, vector<1x1x32xf32>
    %24 = vector.shape_cast %23 : vector<1x1x32xf32> to vector<1x32xf32>
    %25 = vector.shape_cast %24 : vector<1x32xf32> to vector<1x1x32xf32>
    %26 = vector.broadcast %25 : vector<1x1x32xf32> to vector<8x8x32xf32>
    %27 = arith.mulf %22, %26 : vector<8x8x32xf32>
    %28 = arith.addf %21, %27 : vector<8x8x32xf32>
    %29 = vector.extract_strided_slice %1 {offsets = [1, 1, 0], sizes = [8, 8, 32], strides = [1, 1, 1]} : vector<10x10x32xf32> to vector<8x8x32xf32>
    %c4 = arith.constant 4 : index
    %c0_12 = arith.constant 0 : index
    %c0_13 = arith.constant 0 : index
    %30 = vector.load %arg2[%c4, %c0_12, %c0_13] : memref<27x1x32xf32, #tpu.memory_space<vmem>>, vector<1x1x32xf32>
    %31 = vector.shape_cast %30 : vector<1x1x32xf32> to vector<1x32xf32>
    %32 = vector.shape_cast %31 : vector<1x32xf32> to vector<1x1x32xf32>
    %33 = vector.broadcast %32 : vector<1x1x32xf32> to vector<8x8x32xf32>
    %34 = arith.mulf %29, %33 : vector<8x8x32xf32>
    %35 = arith.addf %28, %34 : vector<8x8x32xf32>
    %36 = vector.extract_strided_slice %1 {offsets = [1, 2, 0], sizes = [8, 8, 32], strides = [1, 1, 1]} : vector<10x10x32xf32> to vector<8x8x32xf32>
    %c5 = arith.constant 5 : index
    %c0_14 = arith.constant 0 : index
    %c0_15 = arith.constant 0 : index
    %37 = vector.load %arg2[%c5, %c0_14, %c0_15] : memref<27x1x32xf32, #tpu.memory_space<vmem>>, vector<1x1x32xf32>
    %38 = vector.shape_cast %37 : vector<1x1x32xf32> to vector<1x32xf32>
    %39 = vector.shape_cast %38 : vector<1x32xf32> to vector<1x1x32xf32>
    %40 = vector.broadcast %39 : vector<1x1x32xf32> to vector<8x8x32xf32>
    %41 = arith.mulf %36, %40 : vector<8x8x32xf32>
    %42 = arith.addf %35, %41 : vector<8x8x32xf32>
    %43 = vector.extract_strided_slice %1 {offsets = [2, 0, 0], sizes = [8, 8, 32], strides = [1, 1, 1]} : vector<10x10x32xf32> to vector<8x8x32xf32>
    %c6 = arith.constant 6 : index
    %c0_16 = arith.constant 0 : index
    %c0_17 = arith.constant 0 : index
    %44 = vector.load %arg2[%c6, %c0_16, %c0_17] : memref<27x1x32xf32, #tpu.memory_space<vmem>>, vector<1x1x32xf32>
    %45 = vector.shape_cast %44 : vector<1x1x32xf32> to vector<1x32xf32>
    %46 = vector.shape_cast %45 : vector<1x32xf32> to vector<1x1x32xf32>
    %47 = vector.broadcast %46 : vector<1x1x32xf32> to vector<8x8x32xf32>
    %48 = arith.mulf %43, %47 : vector<8x8x32xf32>
    %49 = arith.addf %42, %48 : vector<8x8x32xf32>
    %50 = vector.extract_strided_slice %1 {offsets = [2, 1, 0], sizes = [8, 8, 32], strides = [1, 1, 1]} : vector<10x10x32xf32> to vector<8x8x32xf32>
    %c7 = arith.constant 7 : index
    %c0_18 = arith.constant 0 : index
    %c0_19 = arith.constant 0 : index
    %51 = vector.load %arg2[%c7, %c0_18, %c0_19] : memref<27x1x32xf32, #tpu.memory_space<vmem>>, vector<1x1x32xf32>
    %52 = vector.shape_cast %51 : vector<1x1x32xf32> to vector<1x32xf32>
    %53 = vector.shape_cast %52 : vector<1x32xf32> to vector<1x1x32xf32>
    %54 = vector.broadcast %53 : vector<1x1x32xf32> to vector<8x8x32xf32>
    %55 = arith.mulf %50, %54 : vector<8x8x32xf32>
    %56 = arith.addf %49, %55 : vector<8x8x32xf32>
    %57 = vector.extract_strided_slice %1 {offsets = [2, 2, 0], sizes = [8, 8, 32], strides = [1, 1, 1]} : vector<10x10x32xf32> to vector<8x8x32xf32>
    %c8 = arith.constant 8 : index
    %c0_20 = arith.constant 0 : index
    %c0_21 = arith.constant 0 : index
    %58 = vector.load %arg2[%c8, %c0_20, %c0_21] : memref<27x1x32xf32, #tpu.memory_space<vmem>>, vector<1x1x32xf32>
    %59 = vector.shape_cast %58 : vector<1x1x32xf32> to vector<1x32xf32>
    %60 = vector.shape_cast %59 : vector<1x32xf32> to vector<1x1x32xf32>
    %61 = vector.broadcast %60 : vector<1x1x32xf32> to vector<8x8x32xf32>
    %62 = arith.mulf %57, %61 : vector<8x8x32xf32>
    %63 = arith.addf %56, %62 : vector<8x8x32xf32>
    %c0_22 = arith.constant 0 : index
    %c0_23 = arith.constant 0 : index
    %c0_24 = arith.constant 0 : index
    %64 = vector.load %arg3[%c0_22, %c0_23, %c0_24] : memref<3x1x32xf32, #tpu.memory_space<vmem>>, vector<1x1x32xf32>
    %65 = vector.shape_cast %64 : vector<1x1x32xf32> to vector<1x32xf32>
    %66 = vector.shape_cast %65 : vector<1x32xf32> to vector<1x1x32xf32>
    %67 = vector.broadcast %66 : vector<1x1x32xf32> to vector<8x8x32xf32>
    %68 = arith.mulf %63, %67 : vector<8x8x32xf32>
    %c0_25 = arith.constant 0 : index
    %c0_26 = arith.constant 0 : index
    %c0_27 = arith.constant 0 : index
    %69 = vector.load %arg4[%c0_25, %c0_26, %c0_27] : memref<3x1x32xf32, #tpu.memory_space<vmem>>, vector<1x1x32xf32>
    %70 = vector.shape_cast %69 : vector<1x1x32xf32> to vector<1x32xf32>
    %71 = vector.shape_cast %70 : vector<1x32xf32> to vector<1x1x32xf32>
    %72 = vector.broadcast %71 : vector<1x1x32xf32> to vector<8x8x32xf32>
    %73 = arith.addf %68, %72 : vector<8x8x32xf32>
    %74 = arith.truncf %73 : vector<8x8x32xf32> to vector<8x8x32xbf16>
    %c0_28 = arith.constant 0 : index
    %c0_29 = arith.constant 0 : index
    %c0_30 = arith.constant 0 : index
    %c0_31 = arith.constant 0 : index
    %c0_32 = arith.constant 0 : index
    %75 = vector.load %arg5[%c0_28, %c0_29, %c0_30, %c0_31, %c0_32] : memref<3x1x8x8x32xbf16, #tpu.memory_space<vmem>>, vector<1x1x8x8x32xbf16>
    %76 = vector.shape_cast %75 : vector<1x1x8x8x32xbf16> to vector<8x8x32xbf16>
    %77 = vector.shape_cast %74 : vector<8x8x32xbf16> to vector<1x1x8x8x32xbf16>
    tpu.vector_store %arg5[%c0_28, %c0_29, %c0_30, %c0_31, %c0_32], %77 {strides = array<i32>} : memref<3x1x8x8x32xbf16, #tpu.memory_space<vmem>>, vector<1x1x8x8x32xbf16>,
    %78 = vector.extract_strided_slice %1 {offsets = [0, 0, 0], sizes = [8, 8, 32], strides = [1, 1, 1]} : vector<10x10x32xf32> to vector<8x8x32xf32>
    %c9 = arith.constant 9 : index
    %c0_33 = arith.constant 0 : index
    %c0_34 = arith.constant 0 : index
    %79 = vector.load %arg2[%c9, %c0_33, %c0_34] : memref<27x1x32xf32, #tpu.memory_space<vmem>>, vector<1x1x32xf32>
    %80 = vector.shape_cast %79 : vector<1x1x32xf32> to vector<1x32xf32>
    %81 = vector.shape_cast %80 : vector<1x32xf32> to vector<1x1x32xf32>
    %82 = vector.broadcast %81 : vector<1x1x32xf32> to vector<8x8x32xf32>
    %83 = arith.mulf %78, %82 : vector<8x8x32xf32>
    %84 = vector.extract_strided_slice %1 {offsets = [0, 1, 0], sizes = [8, 8, 32], strides = [1, 1, 1]} : vector<10x10x32xf32> to vector<8x8x32xf32>
    %c10 = arith.constant 10 : index
    %c0_35 = arith.constant 0 : index
    %c0_36 = arith.constant 0 : index
    %85 = vector.load %arg2[%c10, %c0_35, %c0_36] : memref<27x1x32xf32, #tpu.memory_space<vmem>>, vector<1x1x32xf32>
    %86 = vector.shape_cast %85 : vector<1x1x32xf32> to vector<1x32xf32>
    %87 = vector.shape_cast %86 : vector<1x32xf32> to vector<1x1x32xf32>
    %88 = vector.broadcast %87 : vector<1x1x32xf32> to vector<8x8x32xf32>
    %89 = arith.mulf %84, %88 : vector<8x8x32xf32>
    %90 = arith.addf %83, %89 : vector<8x8x32xf32>
    %91 = vector.extract_strided_slice %1 {offsets = [0, 2, 0], sizes = [8, 8, 32], strides = [1, 1, 1]} : vector<10x10x32xf32> to vector<8x8x32xf32>
    %c11 = arith.constant 11 : index
    %c0_37 = arith.constant 0 : index
    %c0_38 = arith.constant 0 : index
    %92 = vector.load %arg2[%c11, %c0_37, %c0_38] : memref<27x1x32xf32, #tpu.memory_space<vmem>>, vector<1x1x32xf32>
    %93 = vector.shape_cast %92 : vector<1x1x32xf32> to vector<1x32xf32>
    %94 = vector.shape_cast %93 : vector<1x32xf32> to vector<1x1x32xf32>
    %95 = vector.broadcast %94 : vector<1x1x32xf32> to vector<8x8x32xf32>
    %96 = arith.mulf %91, %95 : vector<8x8x32xf32>
    %97 = arith.addf %90, %96 : vector<8x8x32xf32>
    %98 = vector.extract_strided_slice %1 {offsets = [1, 0, 0], sizes = [8, 8, 32], strides = [1, 1, 1]} : vector<10x10x32xf32> to vector<8x8x32xf32>
    %c12 = arith.constant 12 : index
    %c0_39 = arith.constant 0 : index
    %c0_40 = arith.constant 0 : index
    %99 = vector.load %arg2[%c12, %c0_39, %c0_40] : memref<27x1x32xf32, #tpu.memory_space<vmem>>, vector<1x1x32xf32>
    %100 = vector.shape_cast %99 : vector<1x1x32xf32> to vector<1x32xf32>
    %101 = vector.shape_cast %100 : vector<1x32xf32> to vector<1x1x32xf32>
    %102 = vector.broadcast %101 : vector<1x1x32xf32> to vector<8x8x32xf32>
    %103 = arith.mulf %98, %102 : vector<8x8x32xf32>
    %104 = arith.addf %97, %103 : vector<8x8x32xf32>
    %105 = vector.extract_strided_slice %1 {offsets = [1, 1, 0], sizes = [8, 8, 32], strides = [1, 1, 1]} : vector<10x10x32xf32> to vector<8x8x32xf32>
    %c13 = arith.constant 13 : index
    %c0_41 = arith.constant 0 : index
    %c0_42 = arith.constant 0 : index
    %106 = vector.load %arg2[%c13, %c0_41, %c0_42] : memref<27x1x32xf32, #tpu.memory_space<vmem>>, vector<1x1x32xf32>
    %107 = vector.shape_cast %106 : vector<1x1x32xf32> to vector<1x32xf32>
    %108 = vector.shape_cast %107 : vector<1x32xf32> to vector<1x1x32xf32>
    %109 = vector.broadcast %108 : vector<1x1x32xf32> to vector<8x8x32xf32>
    %110 = arith.mulf %105, %109 : vector<8x8x32xf32>
    %111 = arith.addf %104, %110 : vector<8x8x32xf32>
    %112 = vector.extract_strided_slice %1 {offsets = [1, 2, 0], sizes = [8, 8, 32], strides = [1, 1, 1]} : vector<10x10x32xf32> to vector<8x8x32xf32>
    %c14 = arith.constant 14 : index
    %c0_43 = arith.constant 0 : index
    %c0_44 = arith.constant 0 : index
    %113 = vector.load %arg2[%c14, %c0_43, %c0_44] : memref<27x1x32xf32, #tpu.memory_space<vmem>>, vector<1x1x32xf32>
    %114 = vector.shape_cast %113 : vector<1x1x32xf32> to vector<1x32xf32>
    %115 = vector.shape_cast %114 : vector<1x32xf32> to vector<1x1x32xf32>
    %116 = vector.broadcast %115 : vector<1x1x32xf32> to vector<8x8x32xf32>
    %117 = arith.mulf %112, %116 : vector<8x8x32xf32>
    %118 = arith.addf %111, %117 : vector<8x8x32xf32>
    %119 = vector.extract_strided_slice %1 {offsets = [2, 0, 0], sizes = [8, 8, 32], strides = [1, 1, 1]} : vector<10x10x32xf32> to vector<8x8x32xf32>
    %c15 = arith.constant 15 : index
    %c0_45 = arith.constant 0 : index
    %c0_46 = arith.constant 0 : index
    %120 = vector.load %arg2[%c15, %c0_45, %c0_46] : memref<27x1x32xf32, #tpu.memory_space<vmem>>, vector<1x1x32xf32>
    %121 = vector.shape_cast %120 : vector<1x1x32xf32> to vector<1x32xf32>
    %122 = vector.shape_cast %121 : vector<1x32xf32> to vector<1x1x32xf32>
    %123 = vector.broadcast %122 : vector<1x1x32xf32> to vector<8x8x32xf32>
    %124 = arith.mulf %119, %123 : vector<8x8x32xf32>
    %125 = arith.addf %118, %124 : vector<8x8x32xf32>
    %126 = vector.extract_strided_slice %1 {offsets = [2, 1, 0], sizes = [8, 8, 32], strides = [1, 1, 1]} : vector<10x10x32xf32> to vector<8x8x32xf32>
    %c16 = arith.constant 16 : index
    %c0_47 = arith.constant 0 : index
    %c0_48 = arith.constant 0 : index
    %127 = vector.load %arg2[%c16, %c0_47, %c0_48] : memref<27x1x32xf32, #tpu.memory_space<vmem>>, vector<1x1x32xf32>
    %128 = vector.shape_cast %127 : vector<1x1x32xf32> to vector<1x32xf32>
    %129 = vector.shape_cast %128 : vector<1x32xf32> to vector<1x1x32xf32>
    %130 = vector.broadcast %129 : vector<1x1x32xf32> to vector<8x8x32xf32>
    %131 = arith.mulf %126, %130 : vector<8x8x32xf32>
    %132 = arith.addf %125, %131 : vector<8x8x32xf32>
    %133 = vector.extract_strided_slice %1 {offsets = [2, 2, 0], sizes = [8, 8, 32], strides = [1, 1, 1]} : vector<10x10x32xf32> to vector<8x8x32xf32>
    %c17 = arith.constant 17 : index
    %c0_49 = arith.constant 0 : index
    %c0_50 = arith.constant 0 : index
    %134 = vector.load %arg2[%c17, %c0_49, %c0_50] : memref<27x1x32xf32, #tpu.memory_space<vmem>>, vector<1x1x32xf32>
    %135 = vector.shape_cast %134 : vector<1x1x32xf32> to vector<1x32xf32>
    %136 = vector.shape_cast %135 : vector<1x32xf32> to vector<1x1x32xf32>
    %137 = vector.broadcast %136 : vector<1x1x32xf32> to vector<8x8x32xf32>
    %138 = arith.mulf %133, %137 : vector<8x8x32xf32>
    %139 = arith.addf %132, %138 : vector<8x8x32xf32>
    %c1_51 = arith.constant 1 : index
    %c0_52 = arith.constant 0 : index
    %c0_53 = arith.constant 0 : index
    %140 = vector.load %arg3[%c1_51, %c0_52, %c0_53] : memref<3x1x32xf32, #tpu.memory_space<vmem>>, vector<1x1x32xf32>
    %141 = vector.shape_cast %140 : vector<1x1x32xf32> to vector<1x32xf32>
    %142 = vector.shape_cast %141 : vector<1x32xf32> to vector<1x1x32xf32>
    %143 = vector.broadcast %142 : vector<1x1x32xf32> to vector<8x8x32xf32>
    %144 = arith.mulf %139, %143 : vector<8x8x32xf32>
    %c1_54 = arith.constant 1 : index
    %c0_55 = arith.constant 0 : index
    %c0_56 = arith.constant 0 : index
    %145 = vector.load %arg4[%c1_54, %c0_55, %c0_56] : memref<3x1x32xf32, #tpu.memory_space<vmem>>, vector<1x1x32xf32>
    %146 = vector.shape_cast %145 : vector<1x1x32xf32> to vector<1x32xf32>
    %147 = vector.shape_cast %146 : vector<1x32xf32> to vector<1x1x32xf32>
    %148 = vector.broadcast %147 : vector<1x1x32xf32> to vector<8x8x32xf32>
    %149 = arith.addf %144, %148 : vector<8x8x32xf32>
    %150 = arith.truncf %149 : vector<8x8x32xf32> to vector<8x8x32xbf16>
    %c1_57 = arith.constant 1 : index
    %c0_58 = arith.constant 0 : index
    %c0_59 = arith.constant 0 : index
    %c0_60 = arith.constant 0 : index
    %c0_61 = arith.constant 0 : index
    %151 = vector.load %arg5[%c1_57, %c0_58, %c0_59, %c0_60, %c0_61] : memref<3x1x8x8x32xbf16, #tpu.memory_space<vmem>>, vector<1x1x8x8x32xbf16>
    %152 = vector.shape_cast %151 : vector<1x1x8x8x32xbf16> to vector<8x8x32xbf16>
    %153 = vector.shape_cast %150 : vector<8x8x32xbf16> to vector<1x1x8x8x32xbf16>
    tpu.vector_store %arg5[%c1_57, %c0_58, %c0_59, %c0_60, %c0_61], %153 {strides = array<i32>} : memref<3x1x8x8x32xbf16, #tpu.memory_space<vmem>>, vector<1x1x8x8x32xbf16>,
    %154 = vector.extract_strided_slice %1 {offsets = [0, 0, 0], sizes = [8, 8, 32], strides = [1, 1, 1]} : vector<10x10x32xf32> to vector<8x8x32xf32>
    %c18 = arith.constant 18 : index
    %c0_62 = arith.constant 0 : index
    %c0_63 = arith.constant 0 : index
    %155 = vector.load %arg2[%c18, %c0_62, %c0_63] : memref<27x1x32xf32, #tpu.memory_space<vmem>>, vector<1x1x32xf32>
    %156 = vector.shape_cast %155 : vector<1x1x32xf32> to vector<1x32xf32>
    %157 = vector.shape_cast %156 : vector<1x32xf32> to vector<1x1x32xf32>
    %158 = vector.broadcast %157 : vector<1x1x32xf32> to vector<8x8x32xf32>
    %159 = arith.mulf %154, %158 : vector<8x8x32xf32>
    %160 = vector.extract_strided_slice %1 {offsets = [0, 1, 0], sizes = [8, 8, 32], strides = [1, 1, 1]} : vector<10x10x32xf32> to vector<8x8x32xf32>
    %c19 = arith.constant 19 : index
    %c0_64 = arith.constant 0 : index
    %c0_65 = arith.constant 0 : index
    %161 = vector.load %arg2[%c19, %c0_64, %c0_65] : memref<27x1x32xf32, #tpu.memory_space<vmem>>, vector<1x1x32xf32>
    %162 = vector.shape_cast %161 : vector<1x1x32xf32> to vector<1x32xf32>
    %163 = vector.shape_cast %162 : vector<1x32xf32> to vector<1x1x32xf32>
    %164 = vector.broadcast %163 : vector<1x1x32xf32> to vector<8x8x32xf32>
    %165 = arith.mulf %160, %164 : vector<8x8x32xf32>
    %166 = arith.addf %159, %165 : vector<8x8x32xf32>
    %167 = vector.extract_strided_slice %1 {offsets = [0, 2, 0], sizes = [8, 8, 32], strides = [1, 1, 1]} : vector<10x10x32xf32> to vector<8x8x32xf32>
    %c20 = arith.constant 20 : index
    %c0_66 = arith.constant 0 : index
    %c0_67 = arith.constant 0 : index
    %168 = vector.load %arg2[%c20, %c0_66, %c0_67] : memref<27x1x32xf32, #tpu.memory_space<vmem>>, vector<1x1x32xf32>
    %169 = vector.shape_cast %168 : vector<1x1x32xf32> to vector<1x32xf32>
    %170 = vector.shape_cast %169 : vector<1x32xf32> to vector<1x1x32xf32>
    %171 = vector.broadcast %170 : vector<1x1x32xf32> to vector<8x8x32xf32>
    %172 = arith.mulf %167, %171 : vector<8x8x32xf32>
    %173 = arith.addf %166, %172 : vector<8x8x32xf32>
    %174 = vector.extract_strided_slice %1 {offsets = [1, 0, 0], sizes = [8, 8, 32], strides = [1, 1, 1]} : vector<10x10x32xf32> to vector<8x8x32xf32>
    %c21 = arith.constant 21 : index
    %c0_68 = arith.constant 0 : index
    %c0_69 = arith.constant 0 : index
    %175 = vector.load %arg2[%c21, %c0_68, %c0_69] : memref<27x1x32xf32, #tpu.memory_space<vmem>>, vector<1x1x32xf32>
    %176 = vector.shape_cast %175 : vector<1x1x32xf32> to vector<1x32xf32>
    %177 = vector.shape_cast %176 : vector<1x32xf32> to vector<1x1x32xf32>
    %178 = vector.broadcast %177 : vector<1x1x32xf32> to vector<8x8x32xf32>
    %179 = arith.mulf %174, %178 : vector<8x8x32xf32>
    %180 = arith.addf %173, %179 : vector<8x8x32xf32>
    %181 = vector.extract_strided_slice %1 {offsets = [1, 1, 0], sizes = [8, 8, 32], strides = [1, 1, 1]} : vector<10x10x32xf32> to vector<8x8x32xf32>
    %c22 = arith.constant 22 : index
    %c0_70 = arith.constant 0 : index
    %c0_71 = arith.constant 0 : index
    %182 = vector.load %arg2[%c22, %c0_70, %c0_71] : memref<27x1x32xf32, #tpu.memory_space<vmem>>, vector<1x1x32xf32>
    %183 = vector.shape_cast %182 : vector<1x1x32xf32> to vector<1x32xf32>
    %184 = vector.shape_cast %183 : vector<1x32xf32> to vector<1x1x32xf32>
    %185 = vector.broadcast %184 : vector<1x1x32xf32> to vector<8x8x32xf32>
    %186 = arith.mulf %181, %185 : vector<8x8x32xf32>
    %187 = arith.addf %180, %186 : vector<8x8x32xf32>
    %188 = vector.extract_strided_slice %1 {offsets = [1, 2, 0], sizes = [8, 8, 32], strides = [1, 1, 1]} : vector<10x10x32xf32> to vector<8x8x32xf32>
    %c23 = arith.constant 23 : index
    %c0_72 = arith.constant 0 : index
    %c0_73 = arith.constant 0 : index
    %189 = vector.load %arg2[%c23, %c0_72, %c0_73] : memref<27x1x32xf32, #tpu.memory_space<vmem>>, vector<1x1x32xf32>
    %190 = vector.shape_cast %189 : vector<1x1x32xf32> to vector<1x32xf32>
    %191 = vector.shape_cast %190 : vector<1x32xf32> to vector<1x1x32xf32>
    %192 = vector.broadcast %191 : vector<1x1x32xf32> to vector<8x8x32xf32>
    %193 = arith.mulf %188, %192 : vector<8x8x32xf32>
    %194 = arith.addf %187, %193 : vector<8x8x32xf32>
    %195 = vector.extract_strided_slice %1 {offsets = [2, 0, 0], sizes = [8, 8, 32], strides = [1, 1, 1]} : vector<10x10x32xf32> to vector<8x8x32xf32>
    %c24 = arith.constant 24 : index
    %c0_74 = arith.constant 0 : index
    %c0_75 = arith.constant 0 : index
    %196 = vector.load %arg2[%c24, %c0_74, %c0_75] : memref<27x1x32xf32, #tpu.memory_space<vmem>>, vector<1x1x32xf32>
    %197 = vector.shape_cast %196 : vector<1x1x32xf32> to vector<1x32xf32>
    %198 = vector.shape_cast %197 : vector<1x32xf32> to vector<1x1x32xf32>
    %199 = vector.broadcast %198 : vector<1x1x32xf32> to vector<8x8x32xf32>
    %200 = arith.mulf %195, %199 : vector<8x8x32xf32>
    %201 = arith.addf %194, %200 : vector<8x8x32xf32>
    %202 = vector.extract_strided_slice %1 {offsets = [2, 1, 0], sizes = [8, 8, 32], strides = [1, 1, 1]} : vector<10x10x32xf32> to vector<8x8x32xf32>
    %c25 = arith.constant 25 : index
    %c0_76 = arith.constant 0 : index
    %c0_77 = arith.constant 0 : index
    %203 = vector.load %arg2[%c25, %c0_76, %c0_77] : memref<27x1x32xf32, #tpu.memory_space<vmem>>, vector<1x1x32xf32>
    %204 = vector.shape_cast %203 : vector<1x1x32xf32> to vector<1x32xf32>
    %205 = vector.shape_cast %204 : vector<1x32xf32> to vector<1x1x32xf32>
    %206 = vector.broadcast %205 : vector<1x1x32xf32> to vector<8x8x32xf32>
    %207 = arith.mulf %202, %206 : vector<8x8x32xf32>
    %208 = arith.addf %201, %207 : vector<8x8x32xf32>
    %209 = vector.extract_strided_slice %1 {offsets = [2, 2, 0], sizes = [8, 8, 32], strides = [1, 1, 1]} : vector<10x10x32xf32> to vector<8x8x32xf32>
    %c26 = arith.constant 26 : index
    %c0_78 = arith.constant 0 : index
    %c0_79 = arith.constant 0 : index
    %210 = vector.load %arg2[%c26, %c0_78, %c0_79] : memref<27x1x32xf32, #tpu.memory_space<vmem>>, vector<1x1x32xf32>
    %211 = vector.shape_cast %210 : vector<1x1x32xf32> to vector<1x32xf32>
    %212 = vector.shape_cast %211 : vector<1x32xf32> to vector<1x1x32xf32>
    %213 = vector.broadcast %212 : vector<1x1x32xf32> to vector<8x8x32xf32>
    %214 = arith.mulf %209, %213 : vector<8x8x32xf32>
    %215 = arith.addf %208, %214 : vector<8x8x32xf32>
    %c2_80 = arith.constant 2 : index
    %c0_81 = arith.constant 0 : index
    %c0_82 = arith.constant 0 : index
    %216 = vector.load %arg3[%c2_80, %c0_81, %c0_82] : memref<3x1x32xf32, #tpu.memory_space<vmem>>, vector<1x1x32xf32>
    %217 = vector.shape_cast %216 : vector<1x1x32xf32> to vector<1x32xf32>
    %218 = vector.shape_cast %217 : vector<1x32xf32> to vector<1x1x32xf32>
    %219 = vector.broadcast %218 : vector<1x1x32xf32> to vector<8x8x32xf32>
    %220 = arith.mulf %215, %219 : vector<8x8x32xf32>
    %c2_83 = arith.constant 2 : index
    %c0_84 = arith.constant 0 : index
    %c0_85 = arith.constant 0 : index
    %221 = vector.load %arg4[%c2_83, %c0_84, %c0_85] : memref<3x1x32xf32, #tpu.memory_space<vmem>>, vector<1x1x32xf32>
    %222 = vector.shape_cast %221 : vector<1x1x32xf32> to vector<1x32xf32>
    %223 = vector.shape_cast %222 : vector<1x32xf32> to vector<1x1x32xf32>
    %224 = vector.broadcast %223 : vector<1x1x32xf32> to vector<8x8x32xf32>
    %225 = arith.addf %220, %224 : vector<8x8x32xf32>
    %226 = arith.truncf %225 : vector<8x8x32xf32> to vector<8x8x32xbf16>
    %c2_86 = arith.constant 2 : index
    %c0_87 = arith.constant 0 : index
    %c0_88 = arith.constant 0 : index
    %c0_89 = arith.constant 0 : index
    %c0_90 = arith.constant 0 : index
    %227 = vector.load %arg5[%c2_86, %c0_87, %c0_88, %c0_89, %c0_90] : memref<3x1x8x8x32xbf16, #tpu.memory_space<vmem>>, vector<1x1x8x8x32xbf16>
    %228 = vector.shape_cast %227 : vector<1x1x8x8x32xbf16> to vector<8x8x32xbf16>
    %229 = vector.shape_cast %226 : vector<8x8x32xbf16> to vector<1x1x8x8x32xbf16>
    tpu.vector_store %arg5[%c2_86, %c0_87, %c0_88, %c0_89, %c0_90], %229 {strides = array<i32>} : memref<3x1x8x8x32xbf16, #tpu.memory_space<vmem>>, vector<1x1x8x8x32xbf16>,
    return
  }
  func.func @transform_0(%arg0: i32) -> (i32, i32, i32, i32) {
    %c0_i32 = arith.constant 0 : i32
    %c0_i32_0 = arith.constant 0 : i32
    %c0_i32_1 = arith.constant 0 : i32
    %c0_i32_2 = arith.constant 0 : i32
    return %arg0, %c0_i32, %c0_i32_0, %c0_i32_1 : i32, i32, i32, i32
  }
  func.func @transform_1(%arg0: i32) -> (i32, i32, i32) {
    %c0_i32 = arith.constant 0 : i32
    %c0_i32_0 = arith.constant 0 : i32
    %c0_i32_1 = arith.constant 0 : i32
    %c0_i32_2 = arith.constant 0 : i32
    return %c0_i32, %c0_i32_0, %c0_i32_1 : i32, i32, i32
  }
  func.func @transform_2(%arg0: i32) -> (i32, i32, i32) {
    %c0_i32 = arith.constant 0 : i32
    %c0_i32_0 = arith.constant 0 : i32
    %c0_i32_1 = arith.constant 0 : i32
    %c0_i32_2 = arith.constant 0 : i32
    return %c0_i32, %c0_i32_0, %c0_i32_1 : i32, i32, i32
  }
  func.func @transform_3(%arg0: i32) -> (i32, i32, i32) {
    %c0_i32 = arith.constant 0 : i32
    %c0_i32_0 = arith.constant 0 : i32
    %c0_i32_1 = arith.constant 0 : i32
    %c0_i32_2 = arith.constant 0 : i32
    return %c0_i32, %c0_i32_0, %c0_i32_1 : i32, i32, i32
  }
  func.func @transform_4(%arg0: i32) -> (i32, i32, i32, i32, i32) {
    %c0_i32 = arith.constant 0 : i32
    %c0_i32_0 = arith.constant 0 : i32
    %c0_i32_1 = arith.constant 0 : i32
    %c0_i32_2 = arith.constant 0 : i32
    %c0_i32_3 = arith.constant 0 : i32
    return %c0_i32, %arg0, %c0_i32_0, %c0_i32_1, %c0_i32_2 : i32, i32, i32, i32, i32
  }
}

module attributes {stable_mosaic.version = 11 : i64} {
  func.func @_qkv_headsplit_kernel(%arg0: i32, %arg1: i32, %arg2: memref<3x1x72x32xbf16, #tpu.memory_space<vmem>>, %arg3: memref<3x32x32xbf16, #tpu.memory_space<vmem>>, %arg4: memref<1x4x72x8xbf16, #tpu.memory_space<vmem>>, %arg5: memref<1x4x72x8xbf16, #tpu.memory_space<vmem>>, %arg6: memref<1x4x72x8xbf16, #tpu.memory_space<vmem>>) attributes {dimension_semantics = [#tpu.dimension_semantics<parallel>, #tpu.dimension_semantics<parallel>], iteration_bounds = array<i64: 2, 1>, scalar_prefetch = 0 : i64, scratch_operands = 0 : i64, tpu.core_type = #tpu.core_type<tc>, window_params = [{transform_indices = @transform_0, window_bounds = array<i64: 3, 1, 72, 32>}, {pipeline_mode = #tpu.pipeline_mode<synchronous>, transform_indices = @transform_1, window_bounds = array<i64: 3, 32, 32>}, {transform_indices = @transform_2, window_bounds = array<i64: 1, 4, 72, 8>}, {transform_indices = @transform_3, window_bounds = array<i64: 1, 4, 72, 8>}, {transform_indices = @transform_4, window_bounds = array<i64: 1, 4, 72, 8>}]} {
    %c0 = arith.constant 0 : index
    %c0_0 = arith.constant 0 : index
    %c0_1 = arith.constant 0 : index
    %c0_2 = arith.constant 0 : index
    %0 = vector.load %arg2[%c0, %c0_0, %c0_1, %c0_2] : memref<3x1x72x32xbf16, #tpu.memory_space<vmem>>, vector<1x1x72x32xbf16>
    %1 = vector.shape_cast %0 : vector<1x1x72x32xbf16> to vector<72x32xbf16>
    %c0_3 = arith.constant 0 : index
    %c0_4 = arith.constant 0 : index
    %c0_5 = arith.constant 0 : index
    %2 = vector.load %arg3[%c0_3, %c0_4, %c0_5] : memref<3x32x32xbf16, #tpu.memory_space<vmem>>, vector<1x32x32xbf16>
    %3 = vector.shape_cast %2 : vector<1x32x32xbf16> to vector<32x32xbf16>
    %cst = arith.constant dense<0.000000e+00> : vector<72x32xf32>
    %4 = tpu.matmul %1, %3, %cst {dimension_numbers = #tpu.dot_dimension_numbers<[1], [0], [0], [1], [0, 0, 1, 1], [], []>} : vector<72x32xbf16>, vector<32x32xbf16>, vector<72x32xf32> -> vector<72x32xf32>
    %5 = vector.extract_strided_slice %4 {offsets = [0, 0], sizes = [72, 8], strides = [1, 1]} : vector<72x32xf32> to vector<72x8xf32>
    %6 = arith.truncf %5 : vector<72x8xf32> to vector<72x8xbf16>
    %c0_6 = arith.constant 0 : index
    %c0_7 = arith.constant 0 : index
    %c0_8 = arith.constant 0 : index
    %c0_9 = arith.constant 0 : index
    %7 = vector.load %arg4[%c0_6, %c0_7, %c0_8, %c0_9] : memref<1x4x72x8xbf16, #tpu.memory_space<vmem>>, vector<1x1x72x8xbf16>
    %8 = vector.shape_cast %7 : vector<1x1x72x8xbf16> to vector<72x8xbf16>
    %9 = vector.shape_cast %6 : vector<72x8xbf16> to vector<1x1x72x8xbf16>
    tpu.vector_store %arg4[%c0_6, %c0_7, %c0_8, %c0_9], %9 {strides = array<i32>} : memref<1x4x72x8xbf16, #tpu.memory_space<vmem>>, vector<1x1x72x8xbf16>,
    %10 = vector.extract_strided_slice %4 {offsets = [0, 8], sizes = [72, 8], strides = [1, 1]} : vector<72x32xf32> to vector<72x8xf32>
    %11 = arith.truncf %10 : vector<72x8xf32> to vector<72x8xbf16>
    %c0_10 = arith.constant 0 : index
    %c1 = arith.constant 1 : index
    %c0_11 = arith.constant 0 : index
    %c0_12 = arith.constant 0 : index
    %12 = vector.load %arg4[%c0_10, %c1, %c0_11, %c0_12] : memref<1x4x72x8xbf16, #tpu.memory_space<vmem>>, vector<1x1x72x8xbf16>
    %13 = vector.shape_cast %12 : vector<1x1x72x8xbf16> to vector<72x8xbf16>
    %14 = vector.shape_cast %11 : vector<72x8xbf16> to vector<1x1x72x8xbf16>
    tpu.vector_store %arg4[%c0_10, %c1, %c0_11, %c0_12], %14 {strides = array<i32>} : memref<1x4x72x8xbf16, #tpu.memory_space<vmem>>, vector<1x1x72x8xbf16>,
    %15 = vector.extract_strided_slice %4 {offsets = [0, 16], sizes = [72, 8], strides = [1, 1]} : vector<72x32xf32> to vector<72x8xf32>
    %16 = arith.truncf %15 : vector<72x8xf32> to vector<72x8xbf16>
    %c0_13 = arith.constant 0 : index
    %c2 = arith.constant 2 : index
    %c0_14 = arith.constant 0 : index
    %c0_15 = arith.constant 0 : index
    %17 = vector.load %arg4[%c0_13, %c2, %c0_14, %c0_15] : memref<1x4x72x8xbf16, #tpu.memory_space<vmem>>, vector<1x1x72x8xbf16>
    %18 = vector.shape_cast %17 : vector<1x1x72x8xbf16> to vector<72x8xbf16>
    %19 = vector.shape_cast %16 : vector<72x8xbf16> to vector<1x1x72x8xbf16>
    tpu.vector_store %arg4[%c0_13, %c2, %c0_14, %c0_15], %19 {strides = array<i32>} : memref<1x4x72x8xbf16, #tpu.memory_space<vmem>>, vector<1x1x72x8xbf16>,
    %20 = vector.extract_strided_slice %4 {offsets = [0, 24], sizes = [72, 8], strides = [1, 1]} : vector<72x32xf32> to vector<72x8xf32>
    %21 = arith.truncf %20 : vector<72x8xf32> to vector<72x8xbf16>
    %c0_16 = arith.constant 0 : index
    %c3 = arith.constant 3 : index
    %c0_17 = arith.constant 0 : index
    %c0_18 = arith.constant 0 : index
    %22 = vector.load %arg4[%c0_16, %c3, %c0_17, %c0_18] : memref<1x4x72x8xbf16, #tpu.memory_space<vmem>>, vector<1x1x72x8xbf16>
    %23 = vector.shape_cast %22 : vector<1x1x72x8xbf16> to vector<72x8xbf16>
    %24 = vector.shape_cast %21 : vector<72x8xbf16> to vector<1x1x72x8xbf16>
    tpu.vector_store %arg4[%c0_16, %c3, %c0_17, %c0_18], %24 {strides = array<i32>} : memref<1x4x72x8xbf16, #tpu.memory_space<vmem>>, vector<1x1x72x8xbf16>,
    %c1_19 = arith.constant 1 : index
    %c0_20 = arith.constant 0 : index
    %c0_21 = arith.constant 0 : index
    %c0_22 = arith.constant 0 : index
    %25 = vector.load %arg2[%c1_19, %c0_20, %c0_21, %c0_22] : memref<3x1x72x32xbf16, #tpu.memory_space<vmem>>, vector<1x1x72x32xbf16>
    %26 = vector.shape_cast %25 : vector<1x1x72x32xbf16> to vector<72x32xbf16>
    %c1_23 = arith.constant 1 : index
    %c0_24 = arith.constant 0 : index
    %c0_25 = arith.constant 0 : index
    %27 = vector.load %arg3[%c1_23, %c0_24, %c0_25] : memref<3x32x32xbf16, #tpu.memory_space<vmem>>, vector<1x32x32xbf16>
    %28 = vector.shape_cast %27 : vector<1x32x32xbf16> to vector<32x32xbf16>
    %cst_26 = arith.constant dense<0.000000e+00> : vector<72x32xf32>
    %29 = tpu.matmul %26, %28, %cst_26 {dimension_numbers = #tpu.dot_dimension_numbers<[1], [0], [0], [1], [0, 0, 1, 1], [], []>} : vector<72x32xbf16>, vector<32x32xbf16>, vector<72x32xf32> -> vector<72x32xf32>
    %30 = vector.extract_strided_slice %29 {offsets = [0, 0], sizes = [72, 8], strides = [1, 1]} : vector<72x32xf32> to vector<72x8xf32>
    %31 = arith.truncf %30 : vector<72x8xf32> to vector<72x8xbf16>
    %c0_27 = arith.constant 0 : index
    %c0_28 = arith.constant 0 : index
    %c0_29 = arith.constant 0 : index
    %c0_30 = arith.constant 0 : index
    %32 = vector.load %arg5[%c0_27, %c0_28, %c0_29, %c0_30] : memref<1x4x72x8xbf16, #tpu.memory_space<vmem>>, vector<1x1x72x8xbf16>
    %33 = vector.shape_cast %32 : vector<1x1x72x8xbf16> to vector<72x8xbf16>
    %34 = vector.shape_cast %31 : vector<72x8xbf16> to vector<1x1x72x8xbf16>
    tpu.vector_store %arg5[%c0_27, %c0_28, %c0_29, %c0_30], %34 {strides = array<i32>} : memref<1x4x72x8xbf16, #tpu.memory_space<vmem>>, vector<1x1x72x8xbf16>,
    %35 = vector.extract_strided_slice %29 {offsets = [0, 8], sizes = [72, 8], strides = [1, 1]} : vector<72x32xf32> to vector<72x8xf32>
    %36 = arith.truncf %35 : vector<72x8xf32> to vector<72x8xbf16>
    %c0_31 = arith.constant 0 : index
    %c1_32 = arith.constant 1 : index
    %c0_33 = arith.constant 0 : index
    %c0_34 = arith.constant 0 : index
    %37 = vector.load %arg5[%c0_31, %c1_32, %c0_33, %c0_34] : memref<1x4x72x8xbf16, #tpu.memory_space<vmem>>, vector<1x1x72x8xbf16>
    %38 = vector.shape_cast %37 : vector<1x1x72x8xbf16> to vector<72x8xbf16>
    %39 = vector.shape_cast %36 : vector<72x8xbf16> to vector<1x1x72x8xbf16>
    tpu.vector_store %arg5[%c0_31, %c1_32, %c0_33, %c0_34], %39 {strides = array<i32>} : memref<1x4x72x8xbf16, #tpu.memory_space<vmem>>, vector<1x1x72x8xbf16>,
    %40 = vector.extract_strided_slice %29 {offsets = [0, 16], sizes = [72, 8], strides = [1, 1]} : vector<72x32xf32> to vector<72x8xf32>
    %41 = arith.truncf %40 : vector<72x8xf32> to vector<72x8xbf16>
    %c0_35 = arith.constant 0 : index
    %c2_36 = arith.constant 2 : index
    %c0_37 = arith.constant 0 : index
    %c0_38 = arith.constant 0 : index
    %42 = vector.load %arg5[%c0_35, %c2_36, %c0_37, %c0_38] : memref<1x4x72x8xbf16, #tpu.memory_space<vmem>>, vector<1x1x72x8xbf16>
    %43 = vector.shape_cast %42 : vector<1x1x72x8xbf16> to vector<72x8xbf16>
    %44 = vector.shape_cast %41 : vector<72x8xbf16> to vector<1x1x72x8xbf16>
    tpu.vector_store %arg5[%c0_35, %c2_36, %c0_37, %c0_38], %44 {strides = array<i32>} : memref<1x4x72x8xbf16, #tpu.memory_space<vmem>>, vector<1x1x72x8xbf16>,
    %45 = vector.extract_strided_slice %29 {offsets = [0, 24], sizes = [72, 8], strides = [1, 1]} : vector<72x32xf32> to vector<72x8xf32>
    %46 = arith.truncf %45 : vector<72x8xf32> to vector<72x8xbf16>
    %c0_39 = arith.constant 0 : index
    %c3_40 = arith.constant 3 : index
    %c0_41 = arith.constant 0 : index
    %c0_42 = arith.constant 0 : index
    %47 = vector.load %arg5[%c0_39, %c3_40, %c0_41, %c0_42] : memref<1x4x72x8xbf16, #tpu.memory_space<vmem>>, vector<1x1x72x8xbf16>
    %48 = vector.shape_cast %47 : vector<1x1x72x8xbf16> to vector<72x8xbf16>
    %49 = vector.shape_cast %46 : vector<72x8xbf16> to vector<1x1x72x8xbf16>
    tpu.vector_store %arg5[%c0_39, %c3_40, %c0_41, %c0_42], %49 {strides = array<i32>} : memref<1x4x72x8xbf16, #tpu.memory_space<vmem>>, vector<1x1x72x8xbf16>,
    %c2_43 = arith.constant 2 : index
    %c0_44 = arith.constant 0 : index
    %c0_45 = arith.constant 0 : index
    %c0_46 = arith.constant 0 : index
    %50 = vector.load %arg2[%c2_43, %c0_44, %c0_45, %c0_46] : memref<3x1x72x32xbf16, #tpu.memory_space<vmem>>, vector<1x1x72x32xbf16>
    %51 = vector.shape_cast %50 : vector<1x1x72x32xbf16> to vector<72x32xbf16>
    %c2_47 = arith.constant 2 : index
    %c0_48 = arith.constant 0 : index
    %c0_49 = arith.constant 0 : index
    %52 = vector.load %arg3[%c2_47, %c0_48, %c0_49] : memref<3x32x32xbf16, #tpu.memory_space<vmem>>, vector<1x32x32xbf16>
    %53 = vector.shape_cast %52 : vector<1x32x32xbf16> to vector<32x32xbf16>
    %cst_50 = arith.constant dense<0.000000e+00> : vector<72x32xf32>
    %54 = tpu.matmul %51, %53, %cst_50 {dimension_numbers = #tpu.dot_dimension_numbers<[1], [0], [0], [1], [0, 0, 1, 1], [], []>} : vector<72x32xbf16>, vector<32x32xbf16>, vector<72x32xf32> -> vector<72x32xf32>
    %55 = vector.extract_strided_slice %54 {offsets = [0, 0], sizes = [72, 8], strides = [1, 1]} : vector<72x32xf32> to vector<72x8xf32>
    %56 = arith.truncf %55 : vector<72x8xf32> to vector<72x8xbf16>
    %c0_51 = arith.constant 0 : index
    %c0_52 = arith.constant 0 : index
    %c0_53 = arith.constant 0 : index
    %c0_54 = arith.constant 0 : index
    %57 = vector.load %arg6[%c0_51, %c0_52, %c0_53, %c0_54] : memref<1x4x72x8xbf16, #tpu.memory_space<vmem>>, vector<1x1x72x8xbf16>
    %58 = vector.shape_cast %57 : vector<1x1x72x8xbf16> to vector<72x8xbf16>
    %59 = vector.shape_cast %56 : vector<72x8xbf16> to vector<1x1x72x8xbf16>
    tpu.vector_store %arg6[%c0_51, %c0_52, %c0_53, %c0_54], %59 {strides = array<i32>} : memref<1x4x72x8xbf16, #tpu.memory_space<vmem>>, vector<1x1x72x8xbf16>,
    %60 = vector.extract_strided_slice %54 {offsets = [0, 8], sizes = [72, 8], strides = [1, 1]} : vector<72x32xf32> to vector<72x8xf32>
    %61 = arith.truncf %60 : vector<72x8xf32> to vector<72x8xbf16>
    %c0_55 = arith.constant 0 : index
    %c1_56 = arith.constant 1 : index
    %c0_57 = arith.constant 0 : index
    %c0_58 = arith.constant 0 : index
    %62 = vector.load %arg6[%c0_55, %c1_56, %c0_57, %c0_58] : memref<1x4x72x8xbf16, #tpu.memory_space<vmem>>, vector<1x1x72x8xbf16>
    %63 = vector.shape_cast %62 : vector<1x1x72x8xbf16> to vector<72x8xbf16>
    %64 = vector.shape_cast %61 : vector<72x8xbf16> to vector<1x1x72x8xbf16>
    tpu.vector_store %arg6[%c0_55, %c1_56, %c0_57, %c0_58], %64 {strides = array<i32>} : memref<1x4x72x8xbf16, #tpu.memory_space<vmem>>, vector<1x1x72x8xbf16>,
    %65 = vector.extract_strided_slice %54 {offsets = [0, 16], sizes = [72, 8], strides = [1, 1]} : vector<72x32xf32> to vector<72x8xf32>
    %66 = arith.truncf %65 : vector<72x8xf32> to vector<72x8xbf16>
    %c0_59 = arith.constant 0 : index
    %c2_60 = arith.constant 2 : index
    %c0_61 = arith.constant 0 : index
    %c0_62 = arith.constant 0 : index
    %67 = vector.load %arg6[%c0_59, %c2_60, %c0_61, %c0_62] : memref<1x4x72x8xbf16, #tpu.memory_space<vmem>>, vector<1x1x72x8xbf16>
    %68 = vector.shape_cast %67 : vector<1x1x72x8xbf16> to vector<72x8xbf16>
    %69 = vector.shape_cast %66 : vector<72x8xbf16> to vector<1x1x72x8xbf16>
    tpu.vector_store %arg6[%c0_59, %c2_60, %c0_61, %c0_62], %69 {strides = array<i32>} : memref<1x4x72x8xbf16, #tpu.memory_space<vmem>>, vector<1x1x72x8xbf16>,
    %70 = vector.extract_strided_slice %54 {offsets = [0, 24], sizes = [72, 8], strides = [1, 1]} : vector<72x32xf32> to vector<72x8xf32>
    %71 = arith.truncf %70 : vector<72x8xf32> to vector<72x8xbf16>
    %c0_63 = arith.constant 0 : index
    %c3_64 = arith.constant 3 : index
    %c0_65 = arith.constant 0 : index
    %c0_66 = arith.constant 0 : index
    %72 = vector.load %arg6[%c0_63, %c3_64, %c0_65, %c0_66] : memref<1x4x72x8xbf16, #tpu.memory_space<vmem>>, vector<1x1x72x8xbf16>
    %73 = vector.shape_cast %72 : vector<1x1x72x8xbf16> to vector<72x8xbf16>
    %74 = vector.shape_cast %71 : vector<72x8xbf16> to vector<1x1x72x8xbf16>
    tpu.vector_store %arg6[%c0_63, %c3_64, %c0_65, %c0_66], %74 {strides = array<i32>} : memref<1x4x72x8xbf16, #tpu.memory_space<vmem>>, vector<1x1x72x8xbf16>,
    return
  }
  func.func @transform_0(%arg0: i32, %arg1: i32) -> (i32, i32, i32, i32) {
    %c0_i32 = arith.constant 0 : i32
    %c0_i32_0 = arith.constant 0 : i32
    %c0_i32_1 = arith.constant 0 : i32
    return %c0_i32, %arg0, %arg1, %c0_i32_0 : i32, i32, i32, i32
  }
  func.func @transform_1(%arg0: i32, %arg1: i32) -> (i32, i32, i32) {
    %c0_i32 = arith.constant 0 : i32
    %c0_i32_0 = arith.constant 0 : i32
    %c0_i32_1 = arith.constant 0 : i32
    %c0_i32_2 = arith.constant 0 : i32
    return %c0_i32, %c0_i32_0, %c0_i32_1 : i32, i32, i32
  }
  func.func @transform_2(%arg0: i32, %arg1: i32) -> (i32, i32, i32, i32) {
    %c0_i32 = arith.constant 0 : i32
    %c0_i32_0 = arith.constant 0 : i32
    %c0_i32_1 = arith.constant 0 : i32
    return %arg0, %c0_i32, %arg1, %c0_i32_0 : i32, i32, i32, i32
  }
  func.func @transform_3(%arg0: i32, %arg1: i32) -> (i32, i32, i32, i32) {
    %c0_i32 = arith.constant 0 : i32
    %c0_i32_0 = arith.constant 0 : i32
    %c0_i32_1 = arith.constant 0 : i32
    return %arg0, %c0_i32, %arg1, %c0_i32_0 : i32, i32, i32, i32
  }
  func.func @transform_4(%arg0: i32, %arg1: i32) -> (i32, i32, i32, i32) {
    %c0_i32 = arith.constant 0 : i32
    %c0_i32_0 = arith.constant 0 : i32
    %c0_i32_1 = arith.constant 0 : i32
    return %arg0, %c0_i32, %arg1, %c0_i32_0 : i32, i32, i32, i32
  }
}

module attributes {stable_mosaic.version = 11 : i64} {
  func.func @_flash_attn_kernel(%arg0: i32, %arg1: i32, %arg2: i32, %arg3: i32, %arg4: memref<1x1x72x8xbf16, #tpu.memory_space<vmem>>, %arg5: memref<1x1x72x8xbf16, #tpu.memory_space<vmem>>, %arg6: memref<1x1x72x8xbf16, #tpu.memory_space<vmem>>, %arg7: memref<1x72xf32, #tpu.memory_space<vmem>>, %arg8: memref<1x1x72x8xbf16, #tpu.memory_space<vmem>>, %arg9: memref<72x1xf32, #tpu.memory_space<vmem>>, %arg10: memref<72x1xf32, #tpu.memory_space<vmem>>, %arg11: memref<72x8xf32, #tpu.memory_space<vmem>>) attributes {dimension_semantics = [#tpu.dimension_semantics<parallel>, #tpu.dimension_semantics<parallel>, #tpu.dimension_semantics<parallel>, #tpu.dimension_semantics<arbitrary>], iteration_bounds = array<i64: 2, 4, 1, 1>, scalar_prefetch = 0 : i64, scratch_operands = 3 : i64, tpu.core_type = #tpu.core_type<tc>, window_params = [{transform_indices = @transform_0, window_bounds = array<i64: 1, 1, 72, 8>}, {transform_indices = @transform_1, window_bounds = array<i64: 1, 1, 72, 8>}, {transform_indices = @transform_2, window_bounds = array<i64: 1, 1, 72, 8>}, {transform_indices = @transform_3, window_bounds = array<i64: 1, 72>}, {transform_indices = @transform_4, window_bounds = array<i64: 1, 1, 72, 8>}]} {
    %c0_i32 = arith.constant 0 : i32
    %0 = arith.cmpi eq, %arg3, %c0_i32 : i32
    %1 = arith.extui %0 : i1 to i32
    %c0_i32_0 = arith.constant 0 : i32
    %2 = arith.cmpi ne, %1, %c0_i32_0 : i32
    scf.if %2 {
      %cst_31 = arith.constant 0xFF800000 : f32
      %39 = vector.broadcast %cst_31 : f32 to vector<72x1xf32>
      %c0_32 = arith.constant 0 : index
      %c0_33 = arith.constant 0 : index
      %40 = vector.load %arg9[%c0_32, %c0_33] : memref<72x1xf32, #tpu.memory_space<vmem>>, vector<72x1xf32>
      tpu.vector_store %arg9[%c0_32, %c0_33], %39 {strides = array<i32>} : memref<72x1xf32, #tpu.memory_space<vmem>>, vector<72x1xf32>,
      %cst_34 = arith.constant 0.000000e+00 : f32
      %41 = vector.broadcast %cst_34 : f32 to vector<72x1xf32>
      %c0_35 = arith.constant 0 : index
      %c0_36 = arith.constant 0 : index
      %42 = vector.load %arg10[%c0_35, %c0_36] : memref<72x1xf32, #tpu.memory_space<vmem>>, vector<72x1xf32>
      tpu.vector_store %arg10[%c0_35, %c0_36], %41 {strides = array<i32>} : memref<72x1xf32, #tpu.memory_space<vmem>>, vector<72x1xf32>,
      %cst_37 = arith.constant 0.000000e+00 : f32
      %43 = vector.broadcast %cst_37 : f32 to vector<72x8xf32>
      %c0_38 = arith.constant 0 : index
      %c0_39 = arith.constant 0 : index
      %44 = vector.load %arg11[%c0_38, %c0_39] : memref<72x8xf32, #tpu.memory_space<vmem>>, vector<72x8xf32>
      tpu.vector_store %arg11[%c0_38, %c0_39], %43 {strides = array<i32>} : memref<72x8xf32, #tpu.memory_space<vmem>>, vector<72x8xf32>,
    } else {
    }
    %c0 = arith.constant 0 : index
    %c0_1 = arith.constant 0 : index
    %c0_2 = arith.constant 0 : index
    %c0_3 = arith.constant 0 : index
    %3 = vector.load %arg4[%c0, %c0_1, %c0_2, %c0_3] : memref<1x1x72x8xbf16, #tpu.memory_space<vmem>>, vector<1x1x72x8xbf16>
    %4 = vector.shape_cast %3 : vector<1x1x72x8xbf16> to vector<72x8xbf16>
    %c0_4 = arith.constant 0 : index
    %c0_5 = arith.constant 0 : index
    %c0_6 = arith.constant 0 : index
    %c0_7 = arith.constant 0 : index
    %5 = vector.load %arg5[%c0_4, %c0_5, %c0_6, %c0_7] : memref<1x1x72x8xbf16, #tpu.memory_space<vmem>>, vector<1x1x72x8xbf16>
    %6 = vector.shape_cast %5 : vector<1x1x72x8xbf16> to vector<72x8xbf16>
    %c0_8 = arith.constant 0 : index
    %c0_9 = arith.constant 0 : index
    %c0_10 = arith.constant 0 : index
    %c0_11 = arith.constant 0 : index
    %7 = vector.load %arg6[%c0_8, %c0_9, %c0_10, %c0_11] : memref<1x1x72x8xbf16, #tpu.memory_space<vmem>>, vector<1x1x72x8xbf16>
    %8 = vector.shape_cast %7 : vector<1x1x72x8xbf16> to vector<72x8xbf16>
    %cst = arith.constant dense<0.000000e+00> : vector<72x72xf32>
    %9 = tpu.matmul %4, %6, %cst {dimension_numbers = #tpu.dot_dimension_numbers<[1], [1], [0], [0], [0, 0, 1, 0], [], []>} : vector<72x8xbf16>, vector<72x8xbf16>, vector<72x72xf32> -> vector<72x72xf32>
    %c0_12 = arith.constant 0 : index
    %c0_13 = arith.constant 0 : index
    %10 = vector.load %arg7[%c0_12, %c0_13] : memref<1x72xf32, #tpu.memory_space<vmem>>, vector<1x72xf32>
    %11 = vector.broadcast %10 : vector<1x72xf32> to vector<72x72xf32>
    %12 = arith.addf %9, %11 : vector<72x72xf32>
    %c0_14 = arith.constant 0 : index
    %c0_15 = arith.constant 0 : index
    %13 = vector.load %arg9[%c0_14, %c0_15] : memref<72x1xf32, #tpu.memory_space<vmem>>, vector<72x1xf32>
    %cst_16 = arith.constant dense<0xFF800000> : vector<72xf32>
    %14 = vector.multi_reduction <maximumf>, %12, %cst_16 [1] : vector<72x72xf32> to vector<72xf32>
    %15 = vector.shape_cast %14 : vector<72xf32> to vector<72x1xf32>
    %16 = arith.maximumf %13, %15 : vector<72x1xf32>
    %17 = arith.subf %13, %16 : vector<72x1xf32>
    %18 = math.exp %17 : vector<72x1xf32>
    %19 = vector.broadcast %16 : vector<72x1xf32> to vector<72x72xf32>
    %20 = arith.subf %12, %19 : vector<72x72xf32>
    %21 = math.exp %20 : vector<72x72xf32>
    %c0_17 = arith.constant 0 : index
    %c0_18 = arith.constant 0 : index
    %22 = vector.load %arg10[%c0_17, %c0_18] : memref<72x1xf32, #tpu.memory_space<vmem>>, vector<72x1xf32>
    %23 = arith.mulf %18, %22 : vector<72x1xf32>
    %cst_19 = arith.constant dense<0.000000e+00> : vector<72xf32>
    %24 = vector.multi_reduction <add>, %21, %cst_19 [1] : vector<72x72xf32> to vector<72xf32>
    %25 = vector.shape_cast %24 : vector<72xf32> to vector<72x1xf32>
    %26 = arith.addf %23, %25 : vector<72x1xf32>
    %c0_20 = arith.constant 0 : index
    %c0_21 = arith.constant 0 : index
    %27 = vector.load %arg10[%c0_20, %c0_21] : memref<72x1xf32, #tpu.memory_space<vmem>>, vector<72x1xf32>
    tpu.vector_store %arg10[%c0_20, %c0_21], %26 {strides = array<i32>} : memref<72x1xf32, #tpu.memory_space<vmem>>, vector<72x1xf32>,
    %c0_22 = arith.constant 0 : index
    %c0_23 = arith.constant 0 : index
    %28 = vector.load %arg11[%c0_22, %c0_23] : memref<72x8xf32, #tpu.memory_space<vmem>>, vector<72x8xf32>
    %29 = vector.broadcast %18 : vector<72x1xf32> to vector<72x8xf32>
    %30 = arith.mulf %29, %28 : vector<72x8xf32>
    %31 = arith.truncf %21 : vector<72x72xf32> to vector<72x72xbf16>
    %cst_24 = arith.constant dense<0.000000e+00> : vector<72x8xf32>
    %32 = tpu.matmul %31, %8, %cst_24 {dimension_numbers = #tpu.dot_dimension_numbers<[1], [0], [0], [1], [0, 0, 1, 1], [], []>} : vector<72x72xbf16>, vector<72x8xbf16>, vector<72x8xf32> -> vector<72x8xf32>
    %33 = arith.addf %30, %32 : vector<72x8xf32>
    %c0_25 = arith.constant 0 : index
    %c0_26 = arith.constant 0 : index
    %34 = vector.load %arg11[%c0_25, %c0_26] : memref<72x8xf32, #tpu.memory_space<vmem>>, vector<72x8xf32>
    tpu.vector_store %arg11[%c0_25, %c0_26], %33 {strides = array<i32>} : memref<72x8xf32, #tpu.memory_space<vmem>>, vector<72x8xf32>,
    %c0_27 = arith.constant 0 : index
    %c0_28 = arith.constant 0 : index
    %35 = vector.load %arg9[%c0_27, %c0_28] : memref<72x1xf32, #tpu.memory_space<vmem>>, vector<72x1xf32>
    tpu.vector_store %arg9[%c0_27, %c0_28], %16 {strides = array<i32>} : memref<72x1xf32, #tpu.memory_space<vmem>>, vector<72x1xf32>,
    %c0_i32_29 = arith.constant 0 : i32
    %36 = arith.cmpi eq, %arg3, %c0_i32_29 : i32
    %37 = arith.extui %36 : i1 to i32
    %c0_i32_30 = arith.constant 0 : i32
    %38 = arith.cmpi ne, %37, %c0_i32_30 : i32
    scf.if %38 {
      %c0_31 = arith.constant 0 : index
      %c0_32 = arith.constant 0 : index
      %39 = vector.load %arg10[%c0_31, %c0_32] : memref<72x1xf32, #tpu.memory_space<vmem>>, vector<72x1xf32>
      %40 = tpu.reciprocal %39 {approx = true} : vector<72x1xf32> -> vector<72x1xf32>
      %c0_33 = arith.constant 0 : index
      %c0_34 = arith.constant 0 : index
      %41 = vector.load %arg11[%c0_33, %c0_34] : memref<72x8xf32, #tpu.memory_space<vmem>>, vector<72x8xf32>
      %42 = vector.broadcast %40 : vector<72x1xf32> to vector<72x8xf32>
      %43 = arith.mulf %41, %42 : vector<72x8xf32>
      %44 = arith.truncf %43 : vector<72x8xf32> to vector<72x8xbf16>
      %c0_35 = arith.constant 0 : index
      %c0_36 = arith.constant 0 : index
      %c0_37 = arith.constant 0 : index
      %c0_38 = arith.constant 0 : index
      %45 = vector.load %arg8[%c0_35, %c0_36, %c0_37, %c0_38] : memref<1x1x72x8xbf16, #tpu.memory_space<vmem>>, vector<1x1x72x8xbf16>
      %46 = vector.shape_cast %45 : vector<1x1x72x8xbf16> to vector<72x8xbf16>
      %47 = vector.shape_cast %44 : vector<72x8xbf16> to vector<1x1x72x8xbf16>
      tpu.vector_store %arg8[%c0_35, %c0_36, %c0_37, %c0_38], %47 {strides = array<i32>} : memref<1x1x72x8xbf16, #tpu.memory_space<vmem>>, vector<1x1x72x8xbf16>,
    } else {
    }
    return
  }
  func.func @transform_0(%arg0: i32, %arg1: i32, %arg2: i32, %arg3: i32) -> (i32, i32, i32, i32) {
    %c0_i32 = arith.constant 0 : i32
    %c0_i32_0 = arith.constant 0 : i32
    return %arg0, %arg1, %arg2, %c0_i32 : i32, i32, i32, i32
  }
  func.func @transform_1(%arg0: i32, %arg1: i32, %arg2: i32, %arg3: i32) -> (i32, i32, i32, i32) {
    %c0_i32 = arith.constant 0 : i32
    %c0_i32_0 = arith.constant 0 : i32
    return %arg0, %arg1, %arg3, %c0_i32 : i32, i32, i32, i32
  }
  func.func @transform_2(%arg0: i32, %arg1: i32, %arg2: i32, %arg3: i32) -> (i32, i32, i32, i32) {
    %c0_i32 = arith.constant 0 : i32
    %c0_i32_0 = arith.constant 0 : i32
    return %arg0, %arg1, %arg3, %c0_i32 : i32, i32, i32, i32
  }
  func.func @transform_3(%arg0: i32, %arg1: i32, %arg2: i32, %arg3: i32) -> (i32, i32) {
    %c0_i32 = arith.constant 0 : i32
    %c0_i32_0 = arith.constant 0 : i32
    return %c0_i32, %arg3 : i32, i32
  }
  func.func @transform_4(%arg0: i32, %arg1: i32, %arg2: i32, %arg3: i32) -> (i32, i32, i32, i32) {
    %c0_i32 = arith.constant 0 : i32
    %c0_i32_0 = arith.constant 0 : i32
    return %arg0, %arg1, %arg2, %c0_i32 : i32, i32, i32, i32
  }
}

module attributes {stable_mosaic.version = 11 : i64} {
  func.func @_attn_proj_kernel(%arg0: i32, %arg1: i32, %arg2: i32, %arg3: memref<1x1x72x8xbf16, #tpu.memory_space<vmem>>, %arg4: memref<1x8x32xbf16, #tpu.memory_space<vmem>>, %arg5: memref<1x32xf32, #tpu.memory_space<vmem>>, %arg6: memref<1x72x32xf32, #tpu.memory_space<vmem>>, %arg7: memref<1x72x32xf32, #tpu.memory_space<vmem>>, %arg8: memref<72x32xf32, #tpu.memory_space<vmem>>) attributes {dimension_semantics = [#tpu.dimension_semantics<parallel>, #tpu.dimension_semantics<parallel>, #tpu.dimension_semantics<arbitrary>], iteration_bounds = array<i64: 2, 1, 4>, scalar_prefetch = 0 : i64, scratch_operands = 1 : i64, tpu.core_type = #tpu.core_type<tc>, window_params = [{transform_indices = @transform_0, window_bounds = array<i64: 1, 1, 72, 8>}, {transform_indices = @transform_1, window_bounds = array<i64: 1, 8, 32>}, {pipeline_mode = #tpu.pipeline_mode<synchronous>, transform_indices = @transform_2, window_bounds = array<i64: 1, 32>}, {transform_indices = @transform_3, window_bounds = array<i64: 1, 72, 32>}, {transform_indices = @transform_4, window_bounds = array<i64: 1, 72, 32>}]} {
    %c0_i32 = arith.constant 0 : i32
    %0 = arith.cmpi eq, %arg2, %c0_i32 : i32
    %1 = arith.extui %0 : i1 to i32
    %c0_i32_0 = arith.constant 0 : i32
    %2 = arith.cmpi ne, %1, %c0_i32_0 : i32
    scf.if %2 {
      %cst_12 = arith.constant 0.000000e+00 : f32
      %14 = vector.broadcast %cst_12 : f32 to vector<72x32xf32>
      %c0_13 = arith.constant 0 : index
      %c0_14 = arith.constant 0 : index
      %15 = vector.load %arg8[%c0_13, %c0_14] : memref<72x32xf32, #tpu.memory_space<vmem>>, vector<72x32xf32>
      tpu.vector_store %arg8[%c0_13, %c0_14], %14 {strides = array<i32>} : memref<72x32xf32, #tpu.memory_space<vmem>>, vector<72x32xf32>,
    } else {
    }
    %c0 = arith.constant 0 : index
    %c0_1 = arith.constant 0 : index
    %c0_2 = arith.constant 0 : index
    %c0_3 = arith.constant 0 : index
    %3 = vector.load %arg3[%c0, %c0_1, %c0_2, %c0_3] : memref<1x1x72x8xbf16, #tpu.memory_space<vmem>>, vector<1x1x72x8xbf16>
    %4 = vector.shape_cast %3 : vector<1x1x72x8xbf16> to vector<72x8xbf16>
    %c0_4 = arith.constant 0 : index
    %c0_5 = arith.constant 0 : index
    %c0_6 = arith.constant 0 : index
    %5 = vector.load %arg4[%c0_4, %c0_5, %c0_6] : memref<1x8x32xbf16, #tpu.memory_space<vmem>>, vector<1x8x32xbf16>
    %6 = vector.shape_cast %5 : vector<1x8x32xbf16> to vector<8x32xbf16>
    %c0_7 = arith.constant 0 : index
    %c0_8 = arith.constant 0 : index
    %7 = vector.load %arg8[%c0_7, %c0_8] : memref<72x32xf32, #tpu.memory_space<vmem>>, vector<72x32xf32>
    %cst = arith.constant dense<0.000000e+00> : vector<72x32xf32>
    %8 = tpu.matmul %4, %6, %cst {dimension_numbers = #tpu.dot_dimension_numbers<[1], [0], [0], [1], [0, 0, 1, 1], [], []>} : vector<72x8xbf16>, vector<8x32xbf16>, vector<72x32xf32> -> vector<72x32xf32>
    %9 = arith.addf %7, %8 : vector<72x32xf32>
    %c0_9 = arith.constant 0 : index
    %c0_10 = arith.constant 0 : index
    %10 = vector.load %arg8[%c0_9, %c0_10] : memref<72x32xf32, #tpu.memory_space<vmem>>, vector<72x32xf32>
    tpu.vector_store %arg8[%c0_9, %c0_10], %9 {strides = array<i32>} : memref<72x32xf32, #tpu.memory_space<vmem>>, vector<72x32xf32>,
    %c3_i32 = arith.constant 3 : i32
    %11 = arith.cmpi eq, %arg2, %c3_i32 : i32
    %12 = arith.extui %11 : i1 to i32
    %c0_i32_11 = arith.constant 0 : i32
    %13 = arith.cmpi ne, %12, %c0_i32_11 : i32
    scf.if %13 {
      %c0_12 = arith.constant 0 : index
      %c0_13 = arith.constant 0 : index
      %14 = vector.load %arg8[%c0_12, %c0_13] : memref<72x32xf32, #tpu.memory_space<vmem>>, vector<72x32xf32>
      %c0_14 = arith.constant 0 : index
      %c0_15 = arith.constant 0 : index
      %15 = vector.load %arg5[%c0_14, %c0_15] : memref<1x32xf32, #tpu.memory_space<vmem>>, vector<1x32xf32>
      %16 = vector.broadcast %15 : vector<1x32xf32> to vector<72x32xf32>
      %17 = arith.addf %14, %16 : vector<72x32xf32>
      %c0_16 = arith.constant 0 : index
      %c0_17 = arith.constant 0 : index
      %c0_18 = arith.constant 0 : index
      %18 = vector.load %arg6[%c0_16, %c0_17, %c0_18] : memref<1x72x32xf32, #tpu.memory_space<vmem>>, vector<1x72x32xf32>
      %19 = vector.shape_cast %18 : vector<1x72x32xf32> to vector<72x32xf32>
      %20 = arith.addf %17, %19 : vector<72x32xf32>
      %c0_19 = arith.constant 0 : index
      %c0_20 = arith.constant 0 : index
      %c0_21 = arith.constant 0 : index
      %21 = vector.load %arg7[%c0_19, %c0_20, %c0_21] : memref<1x72x32xf32, #tpu.memory_space<vmem>>, vector<1x72x32xf32>
      %22 = vector.shape_cast %21 : vector<1x72x32xf32> to vector<72x32xf32>
      %23 = vector.shape_cast %20 : vector<72x32xf32> to vector<1x72x32xf32>
      tpu.vector_store %arg7[%c0_19, %c0_20, %c0_21], %23 {strides = array<i32>} : memref<1x72x32xf32, #tpu.memory_space<vmem>>, vector<1x72x32xf32>,
    } else {
    }
    return
  }
  func.func @transform_0(%arg0: i32, %arg1: i32, %arg2: i32) -> (i32, i32, i32, i32) {
    %c0_i32 = arith.constant 0 : i32
    %c0_i32_0 = arith.constant 0 : i32
    return %arg0, %arg2, %arg1, %c0_i32 : i32, i32, i32, i32
  }
  func.func @transform_1(%arg0: i32, %arg1: i32, %arg2: i32) -> (i32, i32, i32) {
    %c0_i32 = arith.constant 0 : i32
    %c0_i32_0 = arith.constant 0 : i32
    %c0_i32_1 = arith.constant 0 : i32
    return %arg2, %c0_i32, %c0_i32_0 : i32, i32, i32
  }
  func.func @transform_2(%arg0: i32, %arg1: i32, %arg2: i32) -> (i32, i32) {
    %c0_i32 = arith.constant 0 : i32
    %c0_i32_0 = arith.constant 0 : i32
    %c0_i32_1 = arith.constant 0 : i32
    return %c0_i32, %c0_i32_0 : i32, i32
  }
  func.func @transform_3(%arg0: i32, %arg1: i32, %arg2: i32) -> (i32, i32, i32) {
    %c0_i32 = arith.constant 0 : i32
    %c0_i32_0 = arith.constant 0 : i32
    return %arg0, %arg1, %c0_i32 : i32, i32, i32
  }
  func.func @transform_4(%arg0: i32, %arg1: i32, %arg2: i32) -> (i32, i32, i32) {
    %c0_i32 = arith.constant 0 : i32
    %c0_i32_0 = arith.constant 0 : i32
    return %arg0, %arg1, %c0_i32 : i32, i32, i32
  }
}

module attributes {stable_mosaic.version = 11 : i64} {
  func.func @_fused_linear_kernel(%arg0: i32, %arg1: i32, %arg2: i32, %arg3: memref<144x32xf32, #tpu.memory_space<vmem>>, %arg4: memref<32x128xbf16, #tpu.memory_space<vmem>>, %arg5: memref<1x32xf32, #tpu.memory_space<vmem>>, %arg6: memref<1x32xf32, #tpu.memory_space<vmem>>, %arg7: memref<1x128xf32, #tpu.memory_space<vmem>>, %arg8: memref<144x128xbf16, #tpu.memory_space<vmem>>) attributes {dimension_semantics = [#tpu.dimension_semantics<parallel>, #tpu.dimension_semantics<parallel>, #tpu.dimension_semantics<arbitrary>], iteration_bounds = array<i64: 1, 1, 1>, scalar_prefetch = 0 : i64, scratch_operands = 0 : i64, tpu.core_type = #tpu.core_type<tc>, window_params = [{transform_indices = @transform_0, window_bounds = array<i64: 144, 32>}, {transform_indices = @transform_1, window_bounds = array<i64: 32, 128>}, {pipeline_mode = #tpu.pipeline_mode<synchronous>, transform_indices = @transform_2, window_bounds = array<i64: 1, 32>}, {pipeline_mode = #tpu.pipeline_mode<synchronous>, transform_indices = @transform_3, window_bounds = array<i64: 1, 32>}, {transform_indices = @transform_4, window_bounds = array<i64: 1, 128>}, {transform_indices = @transform_5, window_bounds = array<i64: 144, 128>}]} {
    %c0 = arith.constant 0 : index
    %c0_0 = arith.constant 0 : index
    %0 = vector.load %arg3[%c0, %c0_0] : memref<144x32xf32, #tpu.memory_space<vmem>>, vector<144x32xf32>
    %cst = arith.constant dense<0.000000e+00> : vector<144xf32>
    %1 = vector.multi_reduction <add>, %0, %cst [1] : vector<144x32xf32> to vector<144xf32>
    %2 = vector.shape_cast %1 : vector<144xf32> to vector<144x1xf32>
    %cst_1 = arith.constant 3.200000e+01 : f32
    %3 = vector.broadcast %cst_1 : f32 to vector<144x1xf32>
    %4 = arith.divf %2, %3 : vector<144x1xf32>
    %5 = vector.broadcast %4 : vector<144x1xf32> to vector<144x32xf32>
    %6 = arith.subf %0, %5 : vector<144x32xf32>
    %7 = arith.mulf %6, %6 : vector<144x32xf32>
    %cst_2 = arith.constant dense<0.000000e+00> : vector<144xf32>
    %8 = vector.multi_reduction <add>, %7, %cst_2 [1] : vector<144x32xf32> to vector<144xf32>
    %9 = vector.shape_cast %8 : vector<144xf32> to vector<144x1xf32>
    %cst_3 = arith.constant 3.200000e+01 : f32
    %10 = vector.broadcast %cst_3 : f32 to vector<144x1xf32>
    %11 = arith.divf %9, %10 : vector<144x1xf32>
    %12 = vector.broadcast %4 : vector<144x1xf32> to vector<144x32xf32>
    %13 = arith.subf %0, %12 : vector<144x32xf32>
    %cst_4 = arith.constant 9.99999974E-6 : f32
    %14 = vector.broadcast %cst_4 : f32 to vector<144x1xf32>
    %15 = arith.addf %11, %14 : vector<144x1xf32>
    %16 = math.rsqrt %15 : vector<144x1xf32>
    %17 = vector.broadcast %16 : vector<144x1xf32> to vector<144x32xf32>
    %18 = arith.mulf %13, %17 : vector<144x32xf32>
    %c0_5 = arith.constant 0 : index
    %c0_6 = arith.constant 0 : index
    %19 = vector.load %arg5[%c0_5, %c0_6] : memref<1x32xf32, #tpu.memory_space<vmem>>, vector<1x32xf32>
    %20 = vector.broadcast %19 : vector<1x32xf32> to vector<144x32xf32>
    %21 = arith.mulf %18, %20 : vector<144x32xf32>
    %c0_7 = arith.constant 0 : index
    %c0_8 = arith.constant 0 : index
    %22 = vector.load %arg6[%c0_7, %c0_8] : memref<1x32xf32, #tpu.memory_space<vmem>>, vector<1x32xf32>
    %23 = vector.broadcast %22 : vector<1x32xf32> to vector<144x32xf32>
    %24 = arith.addf %21, %23 : vector<144x32xf32>
    %c0_9 = arith.constant 0 : index
    %c0_10 = arith.constant 0 : index
    %25 = vector.load %arg4[%c0_9, %c0_10] : memref<32x128xbf16, #tpu.memory_space<vmem>>, vector<32x128xbf16>
    %26 = arith.truncf %24 : vector<144x32xf32> to vector<144x32xbf16>
    %cst_11 = arith.constant dense<0.000000e+00> : vector<144x128xf32>
    %27 = tpu.matmul %26, %25, %cst_11 {dimension_numbers = #tpu.dot_dimension_numbers<[1], [0], [0], [1], [0, 0, 1, 1], [], []>} : vector<144x32xbf16>, vector<32x128xbf16>, vector<144x128xf32> -> vector<144x128xf32>
    %c0_12 = arith.constant 0 : index
    %c0_13 = arith.constant 0 : index
    %28 = vector.load %arg7[%c0_12, %c0_13] : memref<1x128xf32, #tpu.memory_space<vmem>>, vector<1x128xf32>
    %29 = vector.broadcast %28 : vector<1x128xf32> to vector<144x128xf32>
    %30 = arith.addf %27, %29 : vector<144x128xf32>
    %cst_14 = arith.constant 5.000000e-01 : f32
    %31 = vector.broadcast %cst_14 : f32 to vector<144x128xf32>
    %32 = arith.mulf %31, %30 : vector<144x128xf32>
    %cst_15 = arith.constant 0.707106769 : f32
    %33 = vector.broadcast %cst_15 : f32 to vector<144x128xf32>
    %34 = arith.mulf %30, %33 : vector<144x128xf32>
    %cst_16 = arith.constant 0.000000e+00 : f32
    %35 = vector.broadcast %cst_16 : f32 to vector<144x128xf32>
    %36 = arith.cmpf oge, %34, %35 : vector<144x128xf32>
    %cst_17 = arith.constant 1.000000e+00 : f32
    %cst_18 = arith.constant -1.000000e+00 : f32
    %37 = vector.broadcast %cst_17 : f32 to vector<144x128xf32>
    %38 = vector.broadcast %cst_18 : f32 to vector<144x128xf32>
    %39 = arith.select %36, %37, %38 : vector<144x128xi1>, vector<144x128xf32>
    %40 = math.absf %34 : vector<144x128xf32>
    %cst_19 = arith.constant 0.327591091 : f32
    %41 = vector.broadcast %cst_19 : f32 to vector<144x128xf32>
    %42 = arith.mulf %41, %40 : vector<144x128xf32>
    %cst_20 = arith.constant 1.000000e+00 : f32
    %43 = vector.broadcast %cst_20 : f32 to vector<144x128xf32>
    %44 = arith.addf %43, %42 : vector<144x128xf32>
    %cst_21 = arith.constant 1.000000e+00 : f32
    %45 = vector.broadcast %cst_21 : f32 to vector<144x128xf32>
    %46 = arith.divf %45, %44 : vector<144x128xf32>
    %cst_22 = arith.constant 1.06140542 : f32
    %47 = vector.broadcast %cst_22 : f32 to vector<144x128xf32>
    %48 = arith.mulf %47, %46 : vector<144x128xf32>
    %cst_23 = arith.constant -1.45315206 : f32
    %49 = vector.broadcast %cst_23 : f32 to vector<144x128xf32>
    %50 = arith.addf %48, %49 : vector<144x128xf32>
    %51 = arith.mulf %50, %46 : vector<144x128xf32>
    %cst_24 = arith.constant 1.42141378 : f32
    %52 = vector.broadcast %cst_24 : f32 to vector<144x128xf32>
    %53 = arith.addf %51, %52 : vector<144x128xf32>
    %54 = arith.mulf %53, %46 : vector<144x128xf32>
    %cst_25 = arith.constant -0.284496725 : f32
    %55 = vector.broadcast %cst_25 : f32 to vector<144x128xf32>
    %56 = arith.addf %54, %55 : vector<144x128xf32>
    %57 = arith.mulf %56, %46 : vector<144x128xf32>
    %cst_26 = arith.constant 0.254829586 : f32
    %58 = vector.broadcast %cst_26 : f32 to vector<144x128xf32>
    %59 = arith.addf %57, %58 : vector<144x128xf32>
    %60 = arith.mulf %59, %46 : vector<144x128xf32>
    %cst_27 = arith.constant 0.000000e+00 : f32
    %61 = vector.broadcast %cst_27 : f32 to vector<144x128xf32>
    %62 = arith.subf %61, %40 : vector<144x128xf32>
    %63 = arith.mulf %62, %40 : vector<144x128xf32>
    %64 = math.exp %63 : vector<144x128xf32>
    %65 = arith.mulf %60, %64 : vector<144x128xf32>
    %cst_28 = arith.constant 1.000000e+00 : f32
    %66 = vector.broadcast %cst_28 : f32 to vector<144x128xf32>
    %67 = arith.subf %66, %65 : vector<144x128xf32>
    %68 = arith.mulf %39, %67 : vector<144x128xf32>
    %cst_29 = arith.constant 1.000000e+00 : f32
    %69 = vector.broadcast %cst_29 : f32 to vector<144x128xf32>
    %70 = arith.addf %69, %68 : vector<144x128xf32>
    %71 = arith.mulf %32, %70 : vector<144x128xf32>
    %72 = arith.truncf %71 : vector<144x128xf32> to vector<144x128xbf16>
    %c0_30 = arith.constant 0 : index
    %c0_31 = arith.constant 0 : index
    %73 = vector.load %arg8[%c0_30, %c0_31] : memref<144x128xbf16, #tpu.memory_space<vmem>>, vector<144x128xbf16>
    tpu.vector_store %arg8[%c0_30, %c0_31], %72 {strides = array<i32>} : memref<144x128xbf16, #tpu.memory_space<vmem>>, vector<144x128xbf16>,
    return
  }
  func.func @transform_0(%arg0: i32, %arg1: i32, %arg2: i32) -> (i32, i32) {
    %c0_i32 = arith.constant 0 : i32
    return %arg0, %arg2 : i32, i32
  }
  func.func @transform_1(%arg0: i32, %arg1: i32, %arg2: i32) -> (i32, i32) {
    %c0_i32 = arith.constant 0 : i32
    return %arg2, %arg1 : i32, i32
  }
  func.func @transform_2(%arg0: i32, %arg1: i32, %arg2: i32) -> (i32, i32) {
    %c0_i32 = arith.constant 0 : i32
    %c0_i32_0 = arith.constant 0 : i32
    %c0_i32_1 = arith.constant 0 : i32
    return %c0_i32, %c0_i32_0 : i32, i32
  }
  func.func @transform_3(%arg0: i32, %arg1: i32, %arg2: i32) -> (i32, i32) {
    %c0_i32 = arith.constant 0 : i32
    %c0_i32_0 = arith.constant 0 : i32
    %c0_i32_1 = arith.constant 0 : i32
    return %c0_i32, %c0_i32_0 : i32, i32
  }
  func.func @transform_4(%arg0: i32, %arg1: i32, %arg2: i32) -> (i32, i32) {
    %c0_i32 = arith.constant 0 : i32
    %c0_i32_0 = arith.constant 0 : i32
    return %c0_i32, %arg1 : i32, i32
  }
  func.func @transform_5(%arg0: i32, %arg1: i32, %arg2: i32) -> (i32, i32) {
    %c0_i32 = arith.constant 0 : i32
    return %arg0, %arg1 : i32, i32
  }
}

module attributes {stable_mosaic.version = 11 : i64} {
  func.func @_fused_linear_kernel(%arg0: i32, %arg1: i32, %arg2: i32, %arg3: memref<144x128xbf16, #tpu.memory_space<vmem>>, %arg4: memref<128x32xbf16, #tpu.memory_space<vmem>>, %arg5: memref<1x32xf32, #tpu.memory_space<vmem>>, %arg6: memref<144x32xf32, #tpu.memory_space<vmem>>, %arg7: memref<144x32xf32, #tpu.memory_space<vmem>>) attributes {dimension_semantics = [#tpu.dimension_semantics<parallel>, #tpu.dimension_semantics<parallel>, #tpu.dimension_semantics<arbitrary>], iteration_bounds = array<i64: 1, 1, 1>, scalar_prefetch = 0 : i64, scratch_operands = 0 : i64, tpu.core_type = #tpu.core_type<tc>, window_params = [{transform_indices = @transform_0, window_bounds = array<i64: 144, 128>}, {transform_indices = @transform_1, window_bounds = array<i64: 128, 32>}, {transform_indices = @transform_2, window_bounds = array<i64: 1, 32>}, {transform_indices = @transform_3, window_bounds = array<i64: 144, 32>}, {transform_indices = @transform_4, window_bounds = array<i64: 144, 32>}]} {
    %c0 = arith.constant 0 : index
    %c0_0 = arith.constant 0 : index
    %0 = vector.load %arg3[%c0, %c0_0] : memref<144x128xbf16, #tpu.memory_space<vmem>>, vector<144x128xbf16>
    %c0_1 = arith.constant 0 : index
    %c0_2 = arith.constant 0 : index
    %1 = vector.load %arg4[%c0_1, %c0_2] : memref<128x32xbf16, #tpu.memory_space<vmem>>, vector<128x32xbf16>
    %cst = arith.constant dense<0.000000e+00> : vector<144x32xf32>
    %2 = tpu.matmul %0, %1, %cst {dimension_numbers = #tpu.dot_dimension_numbers<[1], [0], [0], [1], [0, 0, 1, 1], [], []>} : vector<144x128xbf16>, vector<128x32xbf16>, vector<144x32xf32> -> vector<144x32xf32>
    %c0_3 = arith.constant 0 : index
    %c0_4 = arith.constant 0 : index
    %3 = vector.load %arg5[%c0_3, %c0_4] : memref<1x32xf32, #tpu.memory_space<vmem>>, vector<1x32xf32>
    %4 = vector.broadcast %3 : vector<1x32xf32> to vector<144x32xf32>
    %5 = arith.addf %2, %4 : vector<144x32xf32>
    %c0_5 = arith.constant 0 : index
    %c0_6 = arith.constant 0 : index
    %6 = vector.load %arg6[%c0_5, %c0_6] : memref<144x32xf32, #tpu.memory_space<vmem>>, vector<144x32xf32>
    %7 = arith.addf %5, %6 : vector<144x32xf32>
    %c0_7 = arith.constant 0 : index
    %c0_8 = arith.constant 0 : index
    %8 = vector.load %arg7[%c0_7, %c0_8] : memref<144x32xf32, #tpu.memory_space<vmem>>, vector<144x32xf32>
    tpu.vector_store %arg7[%c0_7, %c0_8], %7 {strides = array<i32>} : memref<144x32xf32, #tpu.memory_space<vmem>>, vector<144x32xf32>,
    return
  }
  func.func @transform_0(%arg0: i32, %arg1: i32, %arg2: i32) -> (i32, i32) {
    %c0_i32 = arith.constant 0 : i32
    return %arg0, %arg2 : i32, i32
  }
  func.func @transform_1(%arg0: i32, %arg1: i32, %arg2: i32) -> (i32, i32) {
    %c0_i32 = arith.constant 0 : i32
    return %arg2, %arg1 : i32, i32
  }
  func.func @transform_2(%arg0: i32, %arg1: i32, %arg2: i32) -> (i32, i32) {
    %c0_i32 = arith.constant 0 : i32
    %c0_i32_0 = arith.constant 0 : i32
    return %c0_i32, %arg1 : i32, i32
  }
  func.func @transform_3(%arg0: i32, %arg1: i32, %arg2: i32) -> (i32, i32) {
    %c0_i32 = arith.constant 0 : i32
    return %arg0, %arg1 : i32, i32
  }
  func.func @transform_4(%arg0: i32, %arg1: i32, %arg2: i32) -> (i32, i32) {
    %c0_i32 = arith.constant 0 : i32
    return %arg0, %arg1 : i32, i32
  }
}

</mosaic_0001>

<llo_original>
// kernel: cvt_forward.7
$region0: #{cvt_forward.7}
  #allocation0 [shape = 'u32[]', space=smem, size = 0x4, offset = 0x4, fixed_abs, tag = 'smem constant byte address 0x4 - core index']
  #allocation1 [shape = 'u32[72,128]{1,0:T(1,128)}', space=vmem, size = 0x9000, scoped, tag = 'internal scratch']
  %s0 = inlined_call_operand.vmem [shape: f32[144,32], index: 0, kind: input, shape index: {}]
  %s1 = inlined_call_operand.vmem [shape: f32[1,32], index: 1, kind: input, shape index: {}]
  %s2 = inlined_call_operand.vmem [shape: f32[1,32], index: 2, kind: input, shape index: {}]
  %s3 = inlined_call_operand.vmem [shape: f32[144,32], index: 3, kind: output, shape index: {}]
  %s4 = sld [smem:[#allocation0]]
  $region22: #{cvt_forward.7} parent=0
    _
  %s6 = ssub.s32 1, %s4
  %s7 = scalar_select 0, %s6, %s4
  // Predicated region
  $region2: #{cvt_forward.7} parent=0 // pred_check
    _
  $region3: #{cvt_forward.7} parent=0 // pred_check_branch
    %9 = sbr.rel (0) target = $region5
  $region4: #{cvt_forward.7} parent=0 // pred_region
    _
  $region5: #{cvt_forward.7} parent=0 // pred_fallthru
    _
  // Predicated region
  $region6: #{cvt_forward.7} parent=0 // pred_check
    _
  $region7: #{cvt_forward.7} parent=0 // pred_check_branch
    %11 = sbr.rel (0) target = $region9
  $region8: #{cvt_forward.7} parent=0 // pred_region
    _
  $region9: #{cvt_forward.7} parent=0 // pred_fallthru
    _
  // Predicated region
  $region10: #{cvt_forward.7} parent=0 // pred_check
    _
  $region11: #{cvt_forward.7} parent=0 // pred_check_branch
    %13 = sbr.rel (0) target = $region13
  $region12: #{cvt_forward.7} parent=0 // pred_region
    _
  $region13: #{cvt_forward.7} parent=0 // pred_fallthru
    _
  %v14 = vld [vmem:[%s0] sm:$0xff]
  %v15 = vld [vmem:[%s0 + $0x8] sm:$0xff]
  %v16 = vld [vmem:[%s0 + $0x10] sm:$0xff]
  %v17 = vld [vmem:[%s0 + $0x18] sm:$0xff]
  %v18 = vld [vmem:[%s0 + $0x20] sm:$0xff]
  %v19 = vld [vmem:[%s0 + $0x28] sm:$0xff]
  %v20 = vld [vmem:[%s0 + $0x30] sm:$0xff]
  %v21 = vld [vmem:[%s0 + $0x38] sm:$0xff]
  %v22 = vld [vmem:[%s0 + $0x40] sm:$0xff]
  %v23 = vld [vmem:[%s0 + $0x48] sm:$0xff]
  %v24 = vld [vmem:[%s0 + $0x50] sm:$0xff]
  %v25 = vld [vmem:[%s0 + $0x58] sm:$0xff]
  %v26 = vld [vmem:[%s0 + $0x60] sm:$0xff]
  %v27 = vld [vmem:[%s0 + $0x68] sm:$0xff]
  %v28 = vld [vmem:[%s0 + $0x70] sm:$0xff]
  %v29 = vld [vmem:[%s0 + $0x78] sm:$0xff]
  %v30 = vld [vmem:[%s0 + $0x80] sm:$0xff]
  %v31 = vld [vmem:[%s0 + $0x88] sm:$0xff]
  %vm32 = vcmask 261120
  %v33 = vsel %vm32, %v14, 0.0
  %34 = vadd.xlane.f32.xlu0 %v33
  %v35 = vpop.xlane.xlu0 %34
  %v36 = vsel %vm32, %v15, 0.0
  %37 = vadd.xlane.f32.xlu0 %v36
  %v38 = vpop.xlane.xlu0 %37
  %v39 = vsel %vm32, %v16, 0.0
  %40 = vadd.xlane.f32.xlu0 %v39
  %v41 = vpop.xlane.xlu0 %40
  %v42 = vsel %vm32, %v17, 0.0
  %43 = vadd.xlane.f32.xlu0 %v42
  %v44 = vpop.xlane.xlu0 %43
  %v45 = vsel %vm32, %v18, 0.0
  %46 = vadd.xlane.f32.xlu0 %v45
  %v47 = vpop.xlane.xlu0 %46
  %v48 = vsel %vm32, %v19, 0.0
  %49 = vadd.xlane.f32.xlu0 %v48
  %v50 = vpop.xlane.xlu0 %49
  %v51 = vsel %vm32, %v20, 0.0
  %52 = vadd.xlane.f32.xlu0 %v51
  %v53 = vpop.xlane.xlu0 %52
  %v54 = vsel %vm32, %v21, 0.0
  %55 = vadd.xlane.f32.xlu0 %v54
  %v56 = vpop.xlane.xlu0 %55
  %v57 = vsel %vm32, %v22, 0.0
  %58 = vadd.xlane.f32.xlu0 %v57
  %v59 = vpop.xlane.xlu0 %58
  %v60 = vsel %vm32, %v23, 0.0
  %61 = vadd.xlane.f32.xlu0 %v60
  %v62 = vpop.xlane.xlu0 %61
  %v63 = vsel %vm32, %v24, 0.0
  %64 = vadd.xlane.f32.xlu0 %v63
  %v65 = vpop.xlane.xlu0 %64
  %v66 = vsel %vm32, %v25, 0.0
  %67 = vadd.xlane.f32.xlu0 %v66
  %v68 = vpop.xlane.xlu0 %67
  %v69 = vsel %vm32, %v26, 0.0
  %70 = vadd.xlane.f32.xlu0 %v69
  %v71 = vpop.xlane.xlu0 %70
  %v72 = vsel %vm32, %v27, 0.0
  %73 = vadd.xlane.f32.xlu0 %v72
  %v74 = vpop.xlane.xlu0 %73
  %v75 = vsel %vm32, %v28, 0.0
  %76 = vadd.xlane.f32.xlu0 %v75
  %v77 = vpop.xlane.xlu0 %76
  %v78 = vsel %vm32, %v29, 0.0
  %79 = vadd.xlane.f32.xlu0 %v78
  %v80 = vpop.xlane.xlu0 %79
  %v81 = vsel %vm32, %v30, 0.0
  %82 = vadd.xlane.f32.xlu0 %v81
  %v83 = vpop.xlane.xlu0 %82
  %v84 = vsel %vm32, %v31, 0.0
  %85 = vadd.xlane.f32.xlu0 %v84
  %v86 = vpop.xlane.xlu0 %85
  %v87 = vrcp.pop 32.0
  %v88 = vmul.f32 32.0, %v87
  %v89 = vsub.f32 1.0, %v88
  %v90 = vmul.f32 %v87, %v89
  %v91 = vadd.f32 %v87, %v90
  %vm92 = vweird.f32 %v87
  %v93 = vsel %vm92, %v87, %v91
  %v94 = vmul.f32 %v35, %v93
  %v95 = vmul.f32 %v38, %v93
  %v96 = vmul.f32 %v41, %v93
  %v97 = vmul.f32 %v44, %v93
  %v98 = vmul.f32 %v47, %v93
  %v99 = vmul.f32 %v50, %v93
  %v100 = vmul.f32 %v53, %v93
  %v101 = vmul.f32 %v56, %v93
  %v102 = vmul.f32 %v59, %v93
  %v103 = vmul.f32 %v62, %v93
  %v104 = vmul.f32 %v65, %v93
  %v105 = vmul.f32 %v68, %v93
  %v106 = vmul.f32 %v71, %v93
  %v107 = vmul.f32 %v74, %v93
  %v108 = vmul.f32 %v77, %v93
  %v109 = vmul.f32 %v80, %v93
  %v110 = vmul.f32 %v83, %v93
  %v111 = vmul.f32 %v86, %v93
  %v112 = vsub.f32 %v14, %v94
  %v113 = vsub.f32 %v15, %v95
  %v114 = vsub.f32 %v16, %v96
  %v115 = vsub.f32 %v17, %v97
  %v116 = vsub.f32 %v18, %v98
  %v117 = vsub.f32 %v19, %v99
  %v118 = vsub.f32 %v20, %v100
  %v119 = vsub.f32 %v21, %v101
  %v120 = vsub.f32 %v22, %v102
  %v121 = vsub.f32 %v23, %v103
  %v122 = vsub.f32 %v24, %v104
  %v123 = vsub.f32 %v25, %v105
  %v124 = vsub.f32 %v26, %v106
  %v125 = vsub.f32 %v27, %v107
  %v126 = vsub.f32 %v28, %v108
  %v127 = vsub.f32 %v29, %v109
  %v128 = vsub.f32 %v30, %v110
  %v129 = vsub.f32 %v31, %v111
  %v130 = vmul.f32 %v112, %v112
  %v131 = vmul.f32 %v113, %v113
  %v132 = vmul.f32 %v114, %v114
  %v133 = vmul.f32 %v115, %v115
  %v134 = vmul.f32 %v116, %v116
  %v135 = vmul.f32 %v117, %v117
  %v136 = vmul.f32 %v118, %v118
  %v137 = vmul.f32 %v119, %v119
  %v138 = vmul.f32 %v120, %v120
  %v139 = vmul.f32 %v121, %v121
  %v140 = vmul.f32 %v122, %v122
  %v141 = vmul.f32 %v123, %v123
  %v142 = vmul.f32 %v124, %v124
  %v143 = vmul.f32 %v125, %v125
  %v144 = vmul.f32 %v126, %v126
  %v145 = vmul.f32 %v127, %v127
  %v146 = vmul.f32 %v128, %v128
  %v147 = vmul.f32 %v129, %v129
  %v148 = vsel %vm32, %v130, 0.0
  %149 = vadd.xlane.f32.xlu0 %v148
  %v150 = vpop.xlane.xlu0 %149
  %v151 = vsel %vm32, %v131, 0.0
  %152 = vadd.xlane.f32.xlu0 %v151
  %v153 = vpop.xlane.xlu0 %152
  %v154 = vsel %vm32, %v132, 0.0
  %155 = vadd.xlane.f32.xlu0 %v154
  %v156 = vpop.xlane.xlu0 %155
  %v157 = vsel %vm32, %v133, 0.0
  %158 = vadd.xlane.f32.xlu0 %v157
  %v159 = vpop.xlane.xlu0 %158
  %v160 = vsel %vm32, %v134, 0.0
  %161 = vadd.xlane.f32.xlu0 %v160
  %v162 = vpop.xlane.xlu0 %161
  %v163 = vsel %vm32, %v135, 0.0
  %164 = vadd.xlane.f32.xlu0 %v163
  %v165 = vpop.xlane.xlu0 %164
  %v166 = vsel %vm32, %v136, 0.0
  %167 = vadd.xlane.f32.xlu0 %v166
  %v168 = vpop.xlane.xlu0 %167
  %v169 = vsel %vm32, %v137, 0.0
  %170 = vadd.xlane.f32.xlu0 %v169
  %v171 = vpop.xlane.xlu0 %170
  %v172 = vsel %vm32, %v138, 0.0
  %173 = vadd.xlane.f32.xlu0 %v172
  %v174 = vpop.xlane.xlu0 %173
  %v175 = vsel %vm32, %v139, 0.0
  %176 = vadd.xlane.f32.xlu0 %v175
  %v177 = vpop.xlane.xlu0 %176
  %v178 = vsel %vm32, %v140, 0.0
  %179 = vadd.xlane.f32.xlu0 %v178
  %v180 = vpop.xlane.xlu0 %179
  %v181 = vsel %vm32, %v141, 0.0
  %182 = vadd.xlane.f32.xlu0 %v181
  %v183 = vpop.xlane.xlu0 %182
  %v184 = vsel %vm32, %v142, 0.0
  %185 = vadd.xlane.f32.xlu0 %v184
  %v186 = vpop.xlane.xlu0 %185
  %v187 = vsel %vm32, %v143, 0.0
  %188 = vadd.xlane.f32.xlu0 %v187
  %v189 = vpop.xlane.xlu0 %188
  %v190 = vsel %vm32, %v144, 0.0
  %191 = vadd.xlane.f32.xlu0 %v190
  %v192 = vpop.xlane.xlu0 %191
  %v193 = vsel %vm32, %v145, 0.0
  %194 = vadd.xlane.f32.xlu0 %v193
  %v195 = vpop.xlane.xlu0 %194
  %v196 = vsel %vm32, %v146, 0.0
  %197 = vadd.xlane.f32.xlu0 %v196
  %v198 = vpop.xlane.xlu0 %197
  %v199 = vsel %vm32, %v147, 0.0
  %200 = vadd.xlane.f32.xlu0 %v199
  %v201 = vpop.xlane.xlu0 %200
  %v202 = vmul.f32 %v150, %v93
  %v203 = vmul.f32 %v153, %v93
  %v204 = vmul.f32 %v156, %v93
  %v205 = vmul.f32 %v159, %v93
  %v206 = vmul.f32 %v162, %v93
  %v207 = vmul.f32 %v165, %v93
  %v208 = vmul.f32 %v168, %v93
  %v209 = vmul.f32 %v171, %v93
  %v210 = vmul.f32 %v174, %v93
  %v211 = vmul.f32 %v177, %v93
  %v212 = vmul.f32 %v180, %v93
  %v213 = vmul.f32 %v183, %v93
  %v214 = vmul.f32 %v186, %v93
  %v215 = vmul.f32 %v189, %v93
  %v216 = vmul.f32 %v192, %v93
  %v217 = vmul.f32 %v195, %v93
  %v218 = vmul.f32 %v198, %v93
  %v219 = vmul.f32 %v201, %v93
  %v220 = vadd.f32 %v202, 1e-05
  %v221 = vadd.f32 %v203, 1e-05
  %v222 = vadd.f32 %v204, 1e-05
  %v223 = vadd.f32 %v205, 1e-05
  %v224 = vadd.f32 %v206, 1e-05
  %v225 = vadd.f32 %v207, 1e-05
  %v226 = vadd.f32 %v208, 1e-05
  %v227 = vadd.f32 %v209, 1e-05
  %v228 = vadd.f32 %v210, 1e-05
  %v229 = vadd.f32 %v211, 1e-05
  %v230 = vadd.f32 %v212, 1e-05
  %v231 = vadd.f32 %v213, 1e-05
  %v232 = vadd.f32 %v214, 1e-05
  %v233 = vadd.f32 %v215, 1e-05
  %v234 = vadd.f32 %v216, 1e-05
  %v235 = vadd.f32 %v217, 1e-05
  %v236 = vadd.f32 %v218, 1e-05
  %v237 = vadd.f32 %v219, 1e-05
  %v238 = vrsqrt.pop %v220
  %v239 = vmul.f32 %v238, %v220
  %v240 = vmul.f32 %v239, %v238
  %v241 = vmul.f32 0.5, %v240
  %v242 = vsub.f32 1.5, %v241
  %v243 = vmul.f32 %v238, %v242
  %vm244 = vweird.f32 %v220
  %vm245 = vweird.f32 %v238
  %vm246 = vmor %vm244, %vm245
  %v247 = vsel %vm246, %v238, %v243
  %v248 = vrsqrt.pop %v221
  %v249 = vmul.f32 %v248, %v221
  %v250 = vmul.f32 %v249, %v248
  %v251 = vmul.f32 0.5, %v250
  %v252 = vsub.f32 1.5, %v251
  %v253 = vmul.f32 %v248, %v252
  %vm254 = vweird.f32 %v221
  %vm255 = vweird.f32 %v248
  %vm256 = vmor %vm254, %vm255
  %v257 = vsel %vm256, %v248, %v253
  %v258 = vrsqrt.pop %v222
  %v259 = vmul.f32 %v258, %v222
  %v260 = vmul.f32 %v259, %v258
  %v261 = vmul.f32 0.5, %v260
  %v262 = vsub.f32 1.5, %v261
  %v263 = vmul.f32 %v258, %v262
  %vm264 = vweird.f32 %v222
  %vm265 = vweird.f32 %v258
  %vm266 = vmor %vm264, %vm265
  %v267 = vsel %vm266, %v258, %v263
  %v268 = vrsqrt.pop %v223
  %v269 = vmul.f32 %v268, %v223
  %v270 = vmul.f32 %v269, %v268
  %v271 = vmul.f32 0.5, %v270
  %v272 = vsub.f32 1.5, %v271
  %v273 = vmul.f32 %v268, %v272
  %vm274 = vweird.f32 %v223
  %vm275 = vweird.f32 %v268
  %vm276 = vmor %vm274, %vm275
  %v277 = vsel %vm276, %v268, %v273
  %v278 = vrsqrt.pop %v224
  %v279 = vmul.f32 %v278, %v224
  %v280 = vmul.f32 %v279, %v278
  %v281 = vmul.f32 0.5, %v280
  %v282 = vsub.f32 1.5, %v281
  %v283 = vmul.f32 %v278, %v282
  %vm284 = vweird.f32 %v224
  %vm285 = vweird.f32 %v278
  %vm286 = vmor %vm284, %vm285
  %v287 = vsel %vm286, %v278, %v283
  %v288 = vrsqrt.pop %v225
  %v289 = vmul.f32 %v288, %v225
  %v290 = vmul.f32 %v289, %v288
  %v291 = vmul.f32 0.5, %v290
  %v292 = vsub.f32 1.5, %v291
  %v293 = vmul.f32 %v288, %v292
  %vm294 = vweird.f32 %v225
  %vm295 = vweird.f32 %v288
  %vm296 = vmor %vm294, %vm295
  %v297 = vsel %vm296, %v288, %v293
  %v298 = vrsqrt.pop %v226
  %v299 = vmul.f32 %v298, %v226
  %v300 = vmul.f32 %v299, %v298
  %v301 = vmul.f32 0.5, %v300
  %v302 = vsub.f32 1.5, %v301
  %v303 = vmul.f32 %v298, %v302
  %vm304 = vweird.f32 %v226
  %vm305 = vweird.f32 %v298
  %vm306 = vmor %vm304, %vm305
  %v307 = vsel %vm306, %v298, %v303
  %v308 = vrsqrt.pop %v227
  %v309 = vmul.f32 %v308, %v227
  %v310 = vmul.f32 %v309, %v308
  %v311 = vmul.f32 0.5, %v310
  %v312 = vsub.f32 1.5, %v311
  %v313 = vmul.f32 %v308, %v312
  %vm314 = vweird.f32 %v227
  %vm315 = vweird.f32 %v308
  %vm316 = vmor %vm314, %vm315
  %v317 = vsel %vm316, %v308, %v313
  %v318 = vrsqrt.pop %v228
  %v319 = vmul.f32 %v318, %v228
  %v320 = vmul.f32 %v319, %v318
  %v321 = vmul.f32 0.5, %v320
  %v322 = vsub.f32 1.5, %v321
  %v323 = vmul.f32 %v318, %v322
  %vm324 = vweird.f32 %v228
  %vm325 = vweird.f32 %v318
  %vm326 = vmor %vm324, %vm325
  %v327 = vsel %vm326, %v318, %v323
  %v328 = vrsqrt.pop %v229
  %v329 = vmul.f32 %v328, %v229
  %v330 = vmul.f32 %v329, %v328
  %v331 = vmul.f32 0.5, %v330
  %v332 = vsub.f32 1.5, %v331
  %v333 = vmul.f32 %v328, %v332
  %vm334 = vweird.f32 %v229
  %vm335 = vweird.f32 %v328
  %vm336 = vmor %vm334, %vm335
  %v337 = vsel %vm336, %v328, %v333
  %v338 = vrsqrt.pop %v230
  %v339 = vmul.f32 %v338, %v230
  %v340 = vmul.f32 %v339, %v338
  %v341 = vmul.f32 0.5, %v340
  %v342 = vsub.f32 1.5, %v341
  %v343 = vmul.f32 %v338, %v342
  %vm344 = vweird.f32 %v230
  %vm345 = vweird.f32 %v338
  %vm346 = vmor %vm344, %vm345
  %v347 = vsel %vm346, %v338, %v343
  %v348 = vrsqrt.pop %v231
  %v349 = vmul.f32 %v348, %v231
  %v350 = vmul.f32 %v349, %v348
  %v351 = vmul.f32 0.5, %v350
  %v352 = vsub.f32 1.5, %v351
  %v353 = vmul.f32 %v348, %v352
  %vm354 = vweird.f32 %v231
  %vm355 = vweird.f32 %v348
  %vm356 = vmor %vm354, %vm355
  %v357 = vsel %vm356, %v348, %v353
  %v358 = vrsqrt.pop %v232
  %v359 = vmul.f32 %v358, %v232
  %v360 = vmul.f32 %v359, %v358
  %v361 = vmul.f32 0.5, %v360
  %v362 = vsub.f32 1.5, %v361
  %v363 = vmul.f32 %v358, %v362
  %vm364 = vweird.f32 %v232
  %vm365 = vweird.f32 %v358
  %vm366 = vmor %vm364, %vm365
  %v367 = vsel %vm366, %v358, %v363
  %v368 = vrsqrt.pop %v233
  %v369 = vmul.f32 %v368, %v233
  %v370 = vmul.f32 %v369, %v368
  %v371 = vmul.f32 0.5, %v370
  %v372 = vsub.f32 1.5, %v371
  %v373 = vmul.f32 %v368, %v372
  %vm374 = vweird.f32 %v233
  %vm375 = vweird.f32 %v368
  %vm376 = vmor %vm374, %vm375
  %v377 = vsel %vm376, %v368, %v373
  %v378 = vrsqrt.pop %v234
  %v379 = vmul.f32 %v378, %v234
  %v380 = vmul.f32 %v379, %v378
  %v381 = vmul.f32 0.5, %v380
  %v382 = vsub.f32 1.5, %v381
  %v383 = vmul.f32 %v378, %v382
  %vm384 = vweird.f32 %v234
  %vm385 = vweird.f32 %v378
  %vm386 = vmor %vm384, %vm385
  %v387 = vsel %vm386, %v378, %v383
  %v388 = vrsqrt.pop %v235
  %v389 = vmul.f32 %v388, %v235
  %v390 = vmul.f32 %v389, %v388
  %v391 = vmul.f32 0.5, %v390
  %v392 = vsub.f32 1.5, %v391
  %v393 = vmul.f32 %v388, %v392
  %vm394 = vweird.f32 %v235
  %vm395 = vweird.f32 %v388
  %vm396 = vmor %vm394, %vm395
  %v397 = vsel %vm396, %v388, %v393
  %v398 = vrsqrt.pop %v236
  %v399 = vmul.f32 %v398, %v236
  %v400 = vmul.f32 %v399, %v398
  %v401 = vmul.f32 0.5, %v400
  %v402 = vsub.f32 1.5, %v401
  %v403 = vmul.f32 %v398, %v402
  %vm404 = vweird.f32 %v236
  %vm405 = vweird.f32 %v398
  %vm406 = vmor %vm404, %vm405
  %v407 = vsel %vm406, %v398, %v403
  %v408 = vrsqrt.pop %v237
  %v409 = vmul.f32 %v408, %v237
  %v410 = vmul.f32 %v409, %v408
  %v411 = vmul.f32 0.5, %v410
  %v412 = vsub.f32 1.5, %v411
  %v413 = vmul.f32 %v408, %v412
  %vm414 = vweird.f32 %v237
  %vm415 = vweird.f32 %v408
  %vm416 = vmor %vm414, %vm415
  %v417 = vsel %vm416, %v408, %v413
  %v418 = vmul.f32 %v112, %v247
  %v419 = vmul.f32 %v113, %v257
  %v420 = vmul.f32 %v114, %v267
  %v421 = vmul.f32 %v115, %v277
  %v422 = vmul.f32 %v116, %v287
  %v423 = vmul.f32 %v117, %v297
  %v424 = vmul.f32 %v118, %v307
  %v425 = vmul.f32 %v119, %v317
  %v426 = vmul.f32 %v120, %v327
  %v427 = vmul.f32 %v121, %v337
  %v428 = vmul.f32 %v122, %v347
  %v429 = vmul.f32 %v123, %v357
  %v430 = vmul.f32 %v124, %v367
  %v431 = vmul.f32 %v125, %v377
  %v432 = vmul.f32 %v126, %v387
  %v433 = vmul.f32 %v127, %v397
  %v434 = vmul.f32 %v128, %v407
  %v435 = vmul.f32 %v129, %v417
  %v436 = vld [vmem:[%s1] sm:$0x1]
  %v438 = vperm.slane %v436, 0
  %v440 = vmul.f32 %v418, %v438
  %v441 = vmul.f32 %v419, %v438
  %v442 = vmul.f32 %v420, %v438
  %v443 = vmul.f32 %v421, %v438
  %v444 = vmul.f32 %v422, %v438
  %v445 = vmul.f32 %v423, %v438
  %v446 = vmul.f32 %v424, %v438
  %v447 = vmul.f32 %v425, %v438
  %v448 = vmul.f32 %v426, %v438
  %v449 = vmul.f32 %v427, %v438
  %v450 = vmul.f32 %v428, %v438
  %v451 = vmul.f32 %v429, %v438
  %v452 = vmul.f32 %v430, %v438
  %v453 = vmul.f32 %v431, %v438
  %v454 = vmul.f32 %v432, %v438
  %v455 = vmul.f32 %v433, %v438
  %v456 = vmul.f32 %v434, %v438
  %v457 = vmul.f32 %v435, %v438
  %v458 = vld [vmem:[%s2] sm:$0x1]
  %v460 = vperm.slane %v458, 0
  %v462 = vadd.f32 %v440, %v460
  %v463 = vadd.f32 %v441, %v460
  %v464 = vadd.f32 %v442, %v460
  %v465 = vadd.f32 %v443, %v460
  %v466 = vadd.f32 %v444, %v460
  %v467 = vadd.f32 %v445, %v460
  %v468 = vadd.f32 %v446, %v460
  %v469 = vadd.f32 %v447, %v460
  %v470 = vadd.f32 %v448, %v460
  %v471 = vadd.f32 %v449, %v460
  %v472 = vadd.f32 %v450, %v460
  %v473 = vadd.f32 %v451, %v460
  %v474 = vadd.f32 %v452, %v460
  %v475 = vadd.f32 %v453, %v460
  %v476 = vadd.f32 %v454, %v460
  %v477 = vadd.f32 %v455, %v460
  %v478 = vadd.f32 %v456, %v460
  %v479 = vadd.f32 %v457, %v460
  %480 = vst.msk [vmem:[%s3] sm:$0xff] %vm32, %v462
  %481 = vst.msk [vmem:[%s3 + $0x8] sm:$0xff] %vm32, %v463
  %482 = vst.msk [vmem:[%s3 + $0x10] sm:$0xff] %vm32, %v464
  %483 = vst.msk [vmem:[%s3 + $0x18] sm:$0xff] %vm32, %v465
  %484 = vst.msk [vmem:[%s3 + $0x20] sm:$0xff] %vm32, %v466
  %485 = vst.msk [vmem:[%s3 + $0x28] sm:$0xff] %vm32, %v467
  %486 = vst.msk [vmem:[%s3 + $0x30] sm:$0xff] %vm32, %v468
  %487 = vst.msk [vmem:[%s3 + $0x38] sm:$0xff] %vm32, %v469
  %488 = vst.msk [vmem:[%s3 + $0x40] sm:$0xff] %vm32, %v470
  %489 = vst.msk [vmem:[%s3 + $0x48] sm:$0xff] %vm32, %v471
  %490 = vst.msk [vmem:[%s3 + $0x50] sm:$0xff] %vm32, %v472
  %491 = vst.msk [vmem:[%s3 + $0x58] sm:$0xff] %vm32, %v473
  %492 = vst.msk [vmem:[%s3 + $0x60] sm:$0xff] %vm32, %v474
  %493 = vst.msk [vmem:[%s3 + $0x68] sm:$0xff] %vm32, %v475
  %494 = vst.msk [vmem:[%s3 + $0x70] sm:$0xff] %vm32, %v476
  %495 = vst.msk [vmem:[%s3 + $0x78] sm:$0xff] %vm32, %v477
  %496 = vst.msk [vmem:[%s3 + $0x80] sm:$0xff] %vm32, %v478
  %497 = vst.msk [vmem:[%s3 + $0x88] sm:$0xff] %vm32, %v479
  // Predicated region
  $region14: #{cvt_forward.7} parent=0 // pred_check
    _
  $region15: #{cvt_forward.7} parent=0 // pred_check_branch
    %499 = sbr.rel (0) target = $region17
  $region16: #{cvt_forward.7} parent=0 // pred_region
    _
  $region17: #{cvt_forward.7} parent=0 // pred_fallthru
    _
  // Predicated region
  $region18: #{cvt_forward.7} parent=0 // pred_check
    _
  $region19: #{cvt_forward.7} parent=0 // pred_check_branch
    %501 = sbr.rel (0) target = $region21
  $region20: #{cvt_forward.7} parent=0 // pred_region
    _
  $region21: #{cvt_forward.7} parent=0 // pred_fallthru
    _

// kernel: cvt_forward.8
$region0: #{cvt_forward.8}
  #allocation0 [shape = 'u32[]', space=smem, size = 0x4, offset = 0x4, fixed_abs, tag = 'smem constant byte address 0x4 - core index']
  #allocation1 [shape = 'u32[72,128]{1,0:T(1,128)}', space=vmem, size = 0x9000, scoped, tag = 'internal scratch']
  %s0 = inlined_call_operand.vmem [shape: f32[2,10,10,32], index: 0, kind: input, shape index: {}]
  %s1 = inlined_call_operand.vmem [shape: f32[27,1,32], index: 1, kind: input, shape index: {}]
  %s2 = inlined_call_operand.vmem [shape: f32[3,1,32], index: 2, kind: input, shape index: {}]
  %s3 = inlined_call_operand.vmem [shape: f32[3,1,32], index: 3, kind: input, shape index: {}]
  %s4 = inlined_call_operand.vmem [shape: bf16[3,2,8,8,32], index: 4, kind: output, shape index: {}]
  %s5 = sld [smem:[#allocation0]]
  $region86: #{cvt_forward.8} parent=0
    _
  %s7 = ssub.s32 1, %s5
  %s8 = scalar_select 0, %s7, %s5
  $region1: #{cvt_forward.8} parent=0
    #allocation2 [shape = 'u8[98304]{0}', space=vmem, size = 0x18000, scoped, tag = 'output window, operand 0']
    loop: start=0, step=1, limit=4
    $region2: #{cvt_forward.8} parent=1 // loop_pre_header
      _
    $region3: #{cvt_forward.8} parent=1 // loop_header
      %s10 = sphi 0, %s14
      %p11 = scmp.ge.s32.totalorder %s10, 4
      %s20 = sphi 0, %s22
      %s23 = sphi 0, %s20
      %s24 = sphi 0, %s23
      %s40 = sphi 0, %s24
      %s44 = sphi 0, %s44
      %s46 = sphi 0, %s44
      %s47 = sphi 0, %s46
      %s61 = sphi 0, %s47
      %s65 = sphi 0, %s65
      %s67 = sphi 0, %s65
      %s68 = sphi 0, %s67
      %s82 = sphi 0, %s68
      %s86 = sphi 0, %s86
      %s88 = sphi 0, %s86
      %s89 = sphi 0, %s88
      %s103 = sphi 0, %s89
      %s109 = sphi 0, %s111
      %s112 = sphi 0, %s109
      %s113 = sphi 0, %s112
      %s129 = sphi 0, %s113
    $region4: #{cvt_forward.8} parent=1 // loop_header_branch
      %13 = sbr.rel (%p11) target = $region8
    $region5: #{cvt_forward.8} parent=1 // loop_body
      %s15 = ssub.s32 %s10, 1
      %s16 = ssub.s32 %s10, 2
      %s17 = sadd.s32 %s10, 1
      %s18 = ssub.s32 %s10, %s17
      %p19 = scmp.eq.s32.totalorder %s18, 0
      %s21 = sadd.s32 %s20, 1
      %s22 = scalar_select %p19, %s20, %s21
      %p25 = pneg %p19
      %p26 = scmp.eq.s32.totalorder %s10, 1
      %p27 = por %p25, %p26
      %p28 = scmp.ne.s32.totalorder %s20, %s23
      %p29 = scmp.eq.s32.totalorder %s10, 0
      %p30 = por %p28, %p29
      %p31 = scmp.ne.s32.totalorder %s20, %s23
      %p32 = scmp.eq.s32.totalorder %s15, 1
      %p33 = por %p31, %p32
      %p34 = scmp.ne.s32.totalorder %s23, %s24
      %p35 = scmp.eq.s32.totalorder %s15, 0
      %p36 = por %p34, %p35
      %p37 = scmp.ne.s32.totalorder %s23, %s24
      %p38 = scmp.eq.s32.totalorder %s16, 1
      %p39 = por %p37, %p38
      %p41 = scmp.ne.s32.totalorder %s24, %s40
      %p42 = scmp.eq.s32.totalorder %s16, 0
      %p43 = por %p41, %p42
      %s45 = sadd.s32 %s44, 1
      %p48 = scmp.eq.s32.totalorder %s10, 1
      %p49 = scmp.ne.s32.totalorder %s44, %s46
      %p50 = scmp.eq.s32.totalorder %s10, 0
      %p51 = por %p49, %p50
      %p52 = scmp.ne.s32.totalorder %s44, %s46
      %p53 = scmp.eq.s32.totalorder %s15, 1
      %p54 = por %p52, %p53
      %p55 = scmp.ne.s32.totalorder %s46, %s47
      %p56 = scmp.eq.s32.totalorder %s15, 0
      %p57 = por %p55, %p56
      %p58 = scmp.ne.s32.totalorder %s46, %s47
      %p59 = scmp.eq.s32.totalorder %s16, 1
      %p60 = por %p58, %p59
      %p62 = scmp.ne.s32.totalorder %s47, %s61
      %p63 = scmp.eq.s32.totalorder %s16, 0
      %p64 = por %p62, %p63
      %s66 = sadd.s32 %s65, 1
      %p69 = scmp.eq.s32.totalorder %s10, 1
      %p70 = scmp.ne.s32.totalorder %s65, %s67
      %p71 = scmp.eq.s32.totalorder %s10, 0
      %p72 = por %p70, %p71
      %p73 = scmp.ne.s32.totalorder %s65, %s67
      %p74 = scmp.eq.s32.totalorder %s15, 1
      %p75 = por %p73, %p74
      %p76 = scmp.ne.s32.totalorder %s67, %s68
      %p77 = scmp.eq.s32.totalorder %s15, 0
      %p78 = por %p76, %p77
      %p79 = scmp.ne.s32.totalorder %s67, %s68
      %p80 = scmp.eq.s32.totalorder %s16, 1
      %p81 = por %p79, %p80
      %p83 = scmp.ne.s32.totalorder %s68, %s82
      %p84 = scmp.eq.s32.totalorder %s16, 0
      %p85 = por %p83, %p84
      %s87 = sadd.s32 %s86, 1
      %p90 = scmp.eq.s32.totalorder %s10, 1
      %p91 = scmp.ne.s32.totalorder %s86, %s88
      %p92 = scmp.eq.s32.totalorder %s10, 0
      %p93 = por %p91, %p92
      %p94 = scmp.ne.s32.totalorder %s86, %s88
      %p95 = scmp.eq.s32.totalorder %s15, 1
      %p96 = por %p94, %p95
      %p97 = scmp.ne.s32.totalorder %s88, %s89
      %p98 = scmp.eq.s32.totalorder %s15, 0
      %p99 = por %p97, %p98
      %p100 = scmp.ne.s32.totalorder %s88, %s89
      %p101 = scmp.eq.s32.totalorder %s16, 1
      %p102 = por %p100, %p101
      %p104 = scmp.ne.s32.totalorder %s89, %s103
      %p105 = scmp.eq.s32.totalorder %s16, 0
      %p106 = por %p104, %p105
      %s107 = ssub.s32 %s10, %s17
      %p108 = scmp.eq.s32.totalorder %s107, 0
      %s110 = sadd.s32 %s109, 1
      %s111 = scalar_select %p108, %s109, %s110
      %p114 = pneg %p108
      %p115 = scmp.eq.s32.totalorder %s10, 1
      %p116 = por %p114, %p115
      %p117 = scmp.ne.s32.totalorder %s109, %s112
      %p118 = scmp.eq.s32.totalorder %s10, 0
      %p119 = por %p117, %p118
      %p120 = scmp.ne.s32.totalorder %s109, %s112
      %p121 = scmp.eq.s32.totalorder %s15, 1
      %p122 = por %p120, %p121
      %p123 = scmp.ne.s32.totalorder %s112, %s113
      %p124 = scmp.eq.s32.totalorder %s15, 0
      %p125 = por %p123, %p124
      %p126 = scmp.ne.s32.totalorder %s112, %s113
      %p127 = scmp.eq.s32.totalorder %s16, 1
      %p128 = por %p126, %p127
      %p130 = scmp.ne.s32.totalorder %s113, %s129
      %p131 = scmp.eq.s32.totalorder %s16, 0
      %p132 = por %p130, %p131
      %p133 = scmp.le.s32.totalorder 1, %s10
      %p134 = scmp.lt.s32.totalorder %s10, 3
      %p135 = pnand %p133, %p134
      %p136 = pneg %p135
      // Predicated region
      $region9: #{cvt_forward.8} parent=5 // pred_check
        _
      $region10: #{cvt_forward.8} parent=5 // pred_check_branch
        %138 = sbr.rel (%p135) target = $region12
      $region11: #{cvt_forward.8} parent=5 // pred_region
        %s139 = ssub.s32 %s10, 1
        // Predicated region
        $region13: #{cvt_forward.8} parent=11 // pred_check
          %p140 = pneg %p57
        $region14: #{cvt_forward.8} parent=11 // pred_check_branch
          %142 = sbr.rel (%p140) target = $region16
        $region15: #{cvt_forward.8} parent=11 // pred_region
          _
        $region16: #{cvt_forward.8} parent=11 // pred_fallthru
          _
        // Predicated region
        $region17: #{cvt_forward.8} parent=11 // pred_check
          %p143 = pneg %p78
        $region18: #{cvt_forward.8} parent=11 // pred_check_branch
          %145 = sbr.rel (%p143) target = $region20
        $region19: #{cvt_forward.8} parent=11 // pred_region
          _
        $region20: #{cvt_forward.8} parent=11 // pred_fallthru
          _
        // Predicated region
        $region21: #{cvt_forward.8} parent=11 // pred_check
          %p146 = pneg %p99
        $region22: #{cvt_forward.8} parent=11 // pred_check_branch
          %148 = sbr.rel (%p146) target = $region24
        $region23: #{cvt_forward.8} parent=11 // pred_region
          _
        $region24: #{cvt_forward.8} parent=11 // pred_fallthru
          _
      $region12: #{cvt_forward.8} parent=5 // pred_fallthru
        _
      %p149 = scmp.lt.s32.totalorder %s10, 2
      // Predicated region
      $region25: #{cvt_forward.8} parent=5 // pred_check
        %p150 = pneg %p149
      $region26: #{cvt_forward.8} parent=5 // pred_check_branch
        %152 = sbr.rel (%p150) target = $region28
      $region27: #{cvt_forward.8} parent=5 // pred_region
        // Predicated region
        $region29: #{cvt_forward.8} parent=27 // pred_check
          %p153 = pneg %p30
        $region30: #{cvt_forward.8} parent=27 // pred_check_branch
          %155 = sbr.rel (%p153) target = $region32
        $region31: #{cvt_forward.8} parent=27 // pred_region
          %p156 = scmp.lt.s32.totalorder %s10, 1
          %s157 = scalar_select %p156, %s10, 1
          %s158 = smul.addr %s157, 20
          %s159 = smul.addr %s158, 8
          %s160 = scalar_lea.vmem %s0, %s159
        $region32: #{cvt_forward.8} parent=27 // pred_fallthru
          _
      $region28: #{cvt_forward.8} parent=5 // pred_fallthru
        _
      %p161 = scmp.le.s32.totalorder 1, %s10
      %p162 = scmp.lt.s32.totalorder %s10, 3
      %p163 = pnand %p161, %p162
      %p164 = pneg %p163
      // Predicated region
      $region33: #{cvt_forward.8} parent=5 // pred_check
        _
      $region34: #{cvt_forward.8} parent=5 // pred_check_branch
        %166 = sbr.rel (%p163) target = $region36
      $region35: #{cvt_forward.8} parent=5 // pred_region
        %s167 = ssub.s32 %s10, 1
        %p168 = scmp.lt.s32.totalorder %s15, 1
        %s169 = scalar_select %p168, %s15, 1
        %s170 = smul.addr %s169, 20
        %s171 = smul.addr %s170, 8
        %s172 = scalar_lea.vmem %s0, %s171
        %p173 = pneg %p36
        %p174 = pneg %p33
        %p175 = pneg %p57
        %p176 = pneg %p54
        %p177 = pneg %p78
        %p178 = pneg %p75
        %p179 = pneg %p99
        %p180 = pneg %p96
        %p181 = pneg %p125
        %p182 = pneg %p122
        %s183 = sand.u32 %s112, 1
        %s184 = sand.u32 %s112, 1
        %s185 = smul.addr %s184, 96
        %s186 = scalar_lea.vmem [#allocation2], %s185
        %p187 = scmp.lt.s32.totalorder %s15, 1
        %s188 = scalar_select %p187, %s15, 1
        %s189 = smul.addr %s188, 20
        %s190 = smul.addr %s189, 8
        %s191 = scalar_lea.vmem %s0, %s190
        %v192 = vld [vmem:[%s191] sm:$0xff]
        %v193 = vld [vmem:[%s191 + $0x8] sm:$0x3]
        %v194 = vld [vmem:[%s191 + $0x10] sm:$0xff]
        %v195 = vld [vmem:[%s191 + $0x18] sm:$0x3]
        %v196 = vld [vmem:[%s191 + $0x20] sm:$0xff]
        %v197 = vld [vmem:[%s191 + $0x28] sm:$0x3]
        %v198 = vld [vmem:[%s191 + $0x30] sm:$0xff]
        %v199 = vld [vmem:[%s191 + $0x38] sm:$0x3]
        %v200 = vld [vmem:[%s191 + $0x40] sm:$0xff]
        %v201 = vld [vmem:[%s191 + $0x48] sm:$0x3]
        %v202 = vld [vmem:[%s191 + $0x50] sm:$0xff]
        %v203 = vld [vmem:[%s191 + $0x58] sm:$0x3]
        %v204 = vld [vmem:[%s191 + $0x60] sm:$0xff]
        %v205 = vld [vmem:[%s191 + $0x68] sm:$0x3]
        %v206 = vld [vmem:[%s191 + $0x70] sm:$0xff]
        %v207 = vld [vmem:[%s191 + $0x78] sm:$0x3]
        %v208 = vld [vmem:[%s191 + $0x80] sm:$0xff]
        %v209 = vld [vmem:[%s191 + $0x88] sm:$0x3]
        %v210 = vld [vmem:[%s191 + $0x90] sm:$0xff]
        %v211 = vld [vmem:[%s191 + $0x98] sm:$0x3]
        %v212 = vld [vmem:[%s1] sm:$0x1]
        %v214 = vperm.slane %v212, 0
        %v216 = vmul.f32 %v192, %v214
        %v217 = vmul.f32 %v194, %v214
        %v218 = vmul.f32 %v196, %v214
        %v219 = vmul.f32 %v198, %v214
        %v220 = vmul.f32 %v200, %v214
        %v221 = vmul.f32 %v202, %v214
        %v222 = vmul.f32 %v204, %v214
        %v223 = vmul.f32 %v206, %v214
        %s224 = scalar_lea.vmem %s1, 1
        %v225 = vld [vmem:[%s224] sm:$0x1]
        %v227 = vperm.slane %v225, 0
        %v229 = vmul.f32 %v192, %v227
        %v230 = vmul.f32 %v193, %v227
        %v231 = vmul.f32 %v194, %v227
        %v232 = vmul.f32 %v195, %v227
        %v233 = vmul.f32 %v196, %v227
        %v234 = vmul.f32 %v197, %v227
        %v235 = vmul.f32 %v198, %v227
        %v236 = vmul.f32 %v199, %v227
        %v237 = vmul.f32 %v200, %v227
        %v238 = vmul.f32 %v201, %v227
        %v239 = vmul.f32 %v202, %v227
        %v240 = vmul.f32 %v203, %v227
        %v241 = vmul.f32 %v204, %v227
        %v242 = vmul.f32 %v205, %v227
        %v243 = vmul.f32 %v206, %v227
        %v244 = vmul.f32 %v207, %v227
        %vm261 = vcmask 1046528
        %v262 = vrot.slane %v229, 1
        %v263 = vrot.slane %v230, 1
        %v264 = vsel %vm261, %v262, %v263
        %v265 = vrot.slane %v231, 1
        %v266 = vrot.slane %v232, 1
        %v267 = vsel %vm261, %v265, %v266
        %v268 = vrot.slane %v233, 1
        %v269 = vrot.slane %v234, 1
        %v270 = vsel %vm261, %v268, %v269
        %v271 = vrot.slane %v235, 1
        %v272 = vrot.slane %v236, 1
        %v273 = vsel %vm261, %v271, %v272
        %v274 = vrot.slane %v237, 1
        %v275 = vrot.slane %v238, 1
        %v276 = vsel %vm261, %v274, %v275
        %v277 = vrot.slane %v239, 1
        %v278 = vrot.slane %v240, 1
        %v279 = vsel %vm261, %v277, %v278
        %v280 = vrot.slane %v241, 1
        %v281 = vrot.slane %v242, 1
        %v282 = vsel %vm261, %v280, %v281
        %v283 = vrot.slane %v243, 1
        %v284 = vrot.slane %v244, 1
        %v285 = vsel %vm261, %v283, %v284
        %v294 = vadd.f32 %v216, %v264
        %v295 = vadd.f32 %v217, %v267
        %v296 = vadd.f32 %v218, %v270
        %v297 = vadd.f32 %v219, %v273
        %v298 = vadd.f32 %v220, %v276
        %v299 = vadd.f32 %v221, %v279
        %v300 = vadd.f32 %v222, %v282
        %v301 = vadd.f32 %v223, %v285
        %s302 = scalar_lea.vmem %s1, 2
        %v303 = vld [vmem:[%s302] sm:$0x1]
        %v305 = vperm.slane %v303, 0
        %v307 = vmul.f32 %v192, %v305
        %v308 = vmul.f32 %v193, %v305
        %v309 = vmul.f32 %v194, %v305
        %v310 = vmul.f32 %v195, %v305
        %v311 = vmul.f32 %v196, %v305
        %v312 = vmul.f32 %v197, %v305
        %v313 = vmul.f32 %v198, %v305
        %v314 = vmul.f32 %v199, %v305
        %v315 = vmul.f32 %v200, %v305
        %v316 = vmul.f32 %v201, %v305
        %v317 = vmul.f32 %v202, %v305
        %v318 = vmul.f32 %v203, %v305
        %v319 = vmul.f32 %v204, %v305
        %v320 = vmul.f32 %v205, %v305
        %v321 = vmul.f32 %v206, %v305
        %v322 = vmul.f32 %v207, %v305
        %vm339 = vcmask 1045504
        %v340 = vrot.slane %v307, 2
        %v341 = vrot.slane %v308, 2
        %v342 = vsel %vm339, %v340, %v341
        %v343 = vrot.slane %v309, 2
        %v344 = vrot.slane %v310, 2
        %v345 = vsel %vm339, %v343, %v344
        %v346 = vrot.slane %v311, 2
        %v347 = vrot.slane %v312, 2
        %v348 = vsel %vm339, %v346, %v347
        %v349 = vrot.slane %v313, 2
        %v350 = vrot.slane %v314, 2
        %v351 = vsel %vm339, %v349, %v350
        %v352 = vrot.slane %v315, 2
        %v353 = vrot.slane %v316, 2
        %v354 = vsel %vm339, %v352, %v353
        %v355 = vrot.slane %v317, 2
        %v356 = vrot.slane %v318, 2
        %v357 = vsel %vm339, %v355, %v356
        %v358 = vrot.slane %v319, 2
        %v359 = vrot.slane %v320, 2
        %v360 = vsel %vm339, %v358, %v359
        %v361 = vrot.slane %v321, 2
        %v362 = vrot.slane %v322, 2
        %v363 = vsel %vm339, %v361, %v362
        %v372 = vadd.f32 %v294, %v342
        %v373 = vadd.f32 %v295, %v345
        %v374 = vadd.f32 %v296, %v348
        %v375 = vadd.f32 %v297, %v351
        %v376 = vadd.f32 %v298, %v354
        %v377 = vadd.f32 %v299, %v357
        %v378 = vadd.f32 %v300, %v360
        %v379 = vadd.f32 %v301, %v363
        %s380 = scalar_lea.vmem %s1, 3
        %v381 = vld [vmem:[%s380] sm:$0x1]
        %v383 = vperm.slane %v381, 0
        %v385 = vmul.f32 %v194, %v383
        %v386 = vmul.f32 %v196, %v383
        %v387 = vmul.f32 %v198, %v383
        %v388 = vmul.f32 %v200, %v383
        %v389 = vmul.f32 %v202, %v383
        %v390 = vmul.f32 %v204, %v383
        %v391 = vmul.f32 %v206, %v383
        %v392 = vmul.f32 %v208, %v383
        %v393 = vadd.f32 %v372, %v385
        %v394 = vadd.f32 %v373, %v386
        %v395 = vadd.f32 %v374, %v387
        %v396 = vadd.f32 %v375, %v388
        %v397 = vadd.f32 %v376, %v389
        %v398 = vadd.f32 %v377, %v390
        %v399 = vadd.f32 %v378, %v391
        %v400 = vadd.f32 %v379, %v392
        %s401 = scalar_lea.vmem %s1, 4
        %v402 = vld [vmem:[%s401] sm:$0x1]
        %v404 = vperm.slane %v402, 0
        %v406 = vmul.f32 %v194, %v404
        %v407 = vmul.f32 %v195, %v404
        %v408 = vmul.f32 %v196, %v404
        %v409 = vmul.f32 %v197, %v404
        %v410 = vmul.f32 %v198, %v404
        %v411 = vmul.f32 %v199, %v404
        %v412 = vmul.f32 %v200, %v404
        %v413 = vmul.f32 %v201, %v404
        %v414 = vmul.f32 %v202, %v404
        %v415 = vmul.f32 %v203, %v404
        %v416 = vmul.f32 %v204, %v404
        %v417 = vmul.f32 %v205, %v404
        %v418 = vmul.f32 %v206, %v404
        %v419 = vmul.f32 %v207, %v404
        %v420 = vmul.f32 %v208, %v404
        %v421 = vmul.f32 %v209, %v404
        %v438 = vrot.slane %v406, 1
        %v439 = vrot.slane %v407, 1
        %v440 = vsel %vm261, %v438, %v439
        %v441 = vrot.slane %v408, 1
        %v442 = vrot.slane %v409, 1
        %v443 = vsel %vm261, %v441, %v442
        %v444 = vrot.slane %v410, 1
        %v445 = vrot.slane %v411, 1
        %v446 = vsel %vm261, %v444, %v445
        %v447 = vrot.slane %v412, 1
        %v448 = vrot.slane %v413, 1
        %v449 = vsel %vm261, %v447, %v448
        %v450 = vrot.slane %v414, 1
        %v451 = vrot.slane %v415, 1
        %v452 = vsel %vm261, %v450, %v451
        %v453 = vrot.slane %v416, 1
        %v454 = vrot.slane %v417, 1
        %v455 = vsel %vm261, %v453, %v454
        %v456 = vrot.slane %v418, 1
        %v457 = vrot.slane %v419, 1
        %v458 = vsel %vm261, %v456, %v457
        %v459 = vrot.slane %v420, 1
        %v460 = vrot.slane %v421, 1
        %v461 = vsel %vm261, %v459, %v460
        %v470 = vadd.f32 %v393, %v440
        %v471 = vadd.f32 %v394, %v443
        %v472 = vadd.f32 %v395, %v446
        %v473 = vadd.f32 %v396, %v449
        %v474 = vadd.f32 %v397, %v452
        %v475 = vadd.f32 %v398, %v455
        %v476 = vadd.f32 %v399, %v458
        %v477 = vadd.f32 %v400, %v461
        %s478 = scalar_lea.vmem %s1, 5
        %v479 = vld [vmem:[%s478] sm:$0x1]
        %v481 = vperm.slane %v479, 0
        %v483 = vmul.f32 %v194, %v481
        %v484 = vmul.f32 %v195, %v481
        %v485 = vmul.f32 %v196, %v481
        %v486 = vmul.f32 %v197, %v481
        %v487 = vmul.f32 %v198, %v481
        %v488 = vmul.f32 %v199, %v481
        %v489 = vmul.f32 %v200, %v481
        %v490 = vmul.f32 %v201, %v481
        %v491 = vmul.f32 %v202, %v481
        %v492 = vmul.f32 %v203, %v481
        %v493 = vmul.f32 %v204, %v481
        %v494 = vmul.f32 %v205, %v481
        %v495 = vmul.f32 %v206, %v481
        %v496 = vmul.f32 %v207, %v481
        %v497 = vmul.f32 %v208, %v481
        %v498 = vmul.f32 %v209, %v481
        %v515 = vrot.slane %v483, 2
        %v516 = vrot.slane %v484, 2
        %v517 = vsel %vm339, %v515, %v516
        %v518 = vrot.slane %v485, 2
        %v519 = vrot.slane %v486, 2
        %v520 = vsel %vm339, %v518, %v519
        %v521 = vrot.slane %v487, 2
        %v522 = vrot.slane %v488, 2
        %v523 = vsel %vm339, %v521, %v522
        %v524 = vrot.slane %v489, 2
        %v525 = vrot.slane %v490, 2
        %v526 = vsel %vm339, %v524, %v525
        %v527 = vrot.slane %v491, 2
        %v528 = vrot.slane %v492, 2
        %v529 = vsel %vm339, %v527, %v528
        %v530 = vrot.slane %v493, 2
        %v531 = vrot.slane %v494, 2
        %v532 = vsel %vm339, %v530, %v531
        %v533 = vrot.slane %v495, 2
        %v534 = vrot.slane %v496, 2
        %v535 = vsel %vm339, %v533, %v534
        %v536 = vrot.slane %v497, 2
        %v537 = vrot.slane %v498, 2
        %v538 = vsel %vm339, %v536, %v537
        %v547 = vadd.f32 %v470, %v517
        %v548 = vadd.f32 %v471, %v520
        %v549 = vadd.f32 %v472, %v523
        %v550 = vadd.f32 %v473, %v526
        %v551 = vadd.f32 %v474, %v529
        %v552 = vadd.f32 %v475, %v532
        %v553 = vadd.f32 %v476, %v535
        %v554 = vadd.f32 %v477, %v538
        %s555 = scalar_lea.vmem %s1, 6
        %v556 = vld [vmem:[%s555] sm:$0x1]
        %v558 = vperm.slane %v556, 0
        %v560 = vmul.f32 %v196, %v558
        %v561 = vmul.f32 %v198, %v558
        %v562 = vmul.f32 %v200, %v558
        %v563 = vmul.f32 %v202, %v558
        %v564 = vmul.f32 %v204, %v558
        %v565 = vmul.f32 %v206, %v558
        %v566 = vmul.f32 %v208, %v558
        %v567 = vmul.f32 %v210, %v558
        %v568 = vadd.f32 %v547, %v560
        %v569 = vadd.f32 %v548, %v561
        %v570 = vadd.f32 %v549, %v562
        %v571 = vadd.f32 %v550, %v563
        %v572 = vadd.f32 %v551, %v564
        %v573 = vadd.f32 %v552, %v565
        %v574 = vadd.f32 %v553, %v566
        %v575 = vadd.f32 %v554, %v567
        %s576 = scalar_lea.vmem %s1, 7
        %v577 = vld [vmem:[%s576] sm:$0x1]
        %v579 = vperm.slane %v577, 0
        %v581 = vmul.f32 %v196, %v579
        %v582 = vmul.f32 %v197, %v579
        %v583 = vmul.f32 %v198, %v579
        %v584 = vmul.f32 %v199, %v579
        %v585 = vmul.f32 %v200, %v579
        %v586 = vmul.f32 %v201, %v579
        %v587 = vmul.f32 %v202, %v579
        %v588 = vmul.f32 %v203, %v579
        %v589 = vmul.f32 %v204, %v579
        %v590 = vmul.f32 %v205, %v579
        %v591 = vmul.f32 %v206, %v579
        %v592 = vmul.f32 %v207, %v579
        %v593 = vmul.f32 %v208, %v579
        %v594 = vmul.f32 %v209, %v579
        %v595 = vmul.f32 %v210, %v579
        %v596 = vmul.f32 %v211, %v579
        %v613 = vrot.slane %v581, 1
        %v614 = vrot.slane %v582, 1
        %v615 = vsel %vm261, %v613, %v614
        %v616 = vrot.slane %v583, 1
        %v617 = vrot.slane %v584, 1
        %v618 = vsel %vm261, %v616, %v617
        %v619 = vrot.slane %v585, 1
        %v620 = vrot.slane %v586, 1
        %v621 = vsel %vm261, %v619, %v620
        %v622 = vrot.slane %v587, 1
        %v623 = vrot.slane %v588, 1
        %v624 = vsel %vm261, %v622, %v623
        %v625 = vrot.slane %v589, 1
        %v626 = vrot.slane %v590, 1
        %v627 = vsel %vm261, %v625, %v626
        %v628 = vrot.slane %v591, 1
        %v629 = vrot.slane %v592, 1
        %v630 = vsel %vm261, %v628, %v629
        %v631 = vrot.slane %v593, 1
        %v632 = vrot.slane %v594, 1
        %v633 = vsel %vm261, %v631, %v632
        %v634 = vrot.slane %v595, 1
        %v635 = vrot.slane %v596, 1
        %v636 = vsel %vm261, %v634, %v635
        %v645 = vadd.f32 %v568, %v615
        %v646 = vadd.f32 %v569, %v618
        %v647 = vadd.f32 %v570, %v621
        %v648 = vadd.f32 %v571, %v624
        %v649 = vadd.f32 %v572, %v627
        %v650 = vadd.f32 %v573, %v630
        %v651 = vadd.f32 %v574, %v633
        %v652 = vadd.f32 %v575, %v636
        %s653 = scalar_lea.vmem %s1, 8
        %v654 = vld [vmem:[%s653] sm:$0x1]
        %v656 = vperm.slane %v654, 0
        %v658 = vmul.f32 %v196, %v656
        %v659 = vmul.f32 %v197, %v656
        %v660 = vmul.f32 %v198, %v656
        %v661 = vmul.f32 %v199, %v656
        %v662 = vmul.f32 %v200, %v656
        %v663 = vmul.f32 %v201, %v656
        %v664 = vmul.f32 %v202, %v656
        %v665 = vmul.f32 %v203, %v656
        %v666 = vmul.f32 %v204, %v656
        %v667 = vmul.f32 %v205, %v656
        %v668 = vmul.f32 %v206, %v656
        %v669 = vmul.f32 %v207, %v656
        %v670 = vmul.f32 %v208, %v656
        %v671 = vmul.f32 %v209, %v656
        %v672 = vmul.f32 %v210, %v656
        %v673 = vmul.f32 %v211, %v656
        %v690 = vrot.slane %v658, 2
        %v691 = vrot.slane %v659, 2
        %v692 = vsel %vm339, %v690, %v691
        %v693 = vrot.slane %v660, 2
        %v694 = vrot.slane %v661, 2
        %v695 = vsel %vm339, %v693, %v694
        %v696 = vrot.slane %v662, 2
        %v697 = vrot.slane %v663, 2
        %v698 = vsel %vm339, %v696, %v697
        %v699 = vrot.slane %v664, 2
        %v700 = vrot.slane %v665, 2
        %v701 = vsel %vm339, %v699, %v700
        %v702 = vrot.slane %v666, 2
        %v703 = vrot.slane %v667, 2
        %v704 = vsel %vm339, %v702, %v703
        %v705 = vrot.slane %v668, 2
        %v706 = vrot.slane %v669, 2
        %v707 = vsel %vm339, %v705, %v706
        %v708 = vrot.slane %v670, 2
        %v709 = vrot.slane %v671, 2
        %v710 = vsel %vm339, %v708, %v709
        %v711 = vrot.slane %v672, 2
        %v712 = vrot.slane %v673, 2
        %v713 = vsel %vm339, %v711, %v712
        %v722 = vadd.f32 %v645, %v692
        %v723 = vadd.f32 %v646, %v695
        %v724 = vadd.f32 %v647, %v698
        %v725 = vadd.f32 %v648, %v701
        %v726 = vadd.f32 %v649, %v704
        %v727 = vadd.f32 %v650, %v707
        %v728 = vadd.f32 %v651, %v710
        %v729 = vadd.f32 %v652, %v713
        %v730 = vld [vmem:[%s2] sm:$0x1]
        %v732 = vperm.slane %v730, 0
        %v734 = vmul.f32 %v722, %v732
        %v735 = vmul.f32 %v723, %v732
        %v736 = vmul.f32 %v724, %v732
        %v737 = vmul.f32 %v725, %v732
        %v738 = vmul.f32 %v726, %v732
        %v739 = vmul.f32 %v727, %v732
        %v740 = vmul.f32 %v728, %v732
        %v741 = vmul.f32 %v729, %v732
        %v742 = vld [vmem:[%s3] sm:$0x1]
        %v744 = vperm.slane %v742, 0
        %v746 = vadd.f32 %v734, %v744
        %v747 = vadd.f32 %v735, %v744
        %v748 = vadd.f32 %v736, %v744
        %v749 = vadd.f32 %v737, %v744
        %v750 = vadd.f32 %v738, %v744
        %v751 = vadd.f32 %v739, %v744
        %v752 = vadd.f32 %v740, %v744
        %v753 = vadd.f32 %v741, %v744
        %v754 = vpack.c.bf16 %v746, %v746
        %v755 = vpack.c.bf16 %v747, %v747
        %v756 = vpack.c.bf16 %v748, %v748
        %v757 = vpack.c.bf16 %v749, %v749
        %v758 = vpack.c.bf16 %v750, %v750
        %v759 = vpack.c.bf16 %v751, %v751
        %v760 = vpack.c.bf16 %v752, %v752
        %v761 = vpack.c.bf16 %v753, %v753
        %vm762 = vcmask 257024
        %763 = vst.msk [vmem:[%s186] sm:$0xf] %vm762, %v754
        %764 = vst.msk [vmem:[%s186 + $0x4] sm:$0xf] %vm762, %v755
        %765 = vst.msk [vmem:[%s186 + $0x8] sm:$0xf] %vm762, %v756
        %766 = vst.msk [vmem:[%s186 + $0xc] sm:$0xf] %vm762, %v757
        %767 = vst.msk [vmem:[%s186 + $0x10] sm:$0xf] %vm762, %v758
        %768 = vst.msk [vmem:[%s186 + $0x14] sm:$0xf] %vm762, %v759
        %769 = vst.msk [vmem:[%s186 + $0x18] sm:$0xf] %vm762, %v760
        %770 = vst.msk [vmem:[%s186 + $0x1c] sm:$0xf] %vm762, %v761
        %s771 = scalar_lea.vmem %s1, 9
        %v772 = vld [vmem:[%s771] sm:$0x1]
        %v774 = vperm.slane %v772, 0
        %v776 = vmul.f32 %v192, %v774
        %v777 = vmul.f32 %v194, %v774
        %v778 = vmul.f32 %v196, %v774
        %v779 = vmul.f32 %v198, %v774
        %v780 = vmul.f32 %v200, %v774
        %v781 = vmul.f32 %v202, %v774
        %v782 = vmul.f32 %v204, %v774
        %v783 = vmul.f32 %v206, %v774
        %s784 = scalar_lea.vmem %s1, 10
        %v785 = vld [vmem:[%s784] sm:$0x1]
        %v787 = vperm.slane %v785, 0
        %v789 = vmul.f32 %v192, %v787
        %v790 = vmul.f32 %v193, %v787
        %v791 = vmul.f32 %v194, %v787
        %v792 = vmul.f32 %v195, %v787
        %v793 = vmul.f32 %v196, %v787
        %v794 = vmul.f32 %v197, %v787
        %v795 = vmul.f32 %v198, %v787
        %v796 = vmul.f32 %v199, %v787
        %v797 = vmul.f32 %v200, %v787
        %v798 = vmul.f32 %v201, %v787
        %v799 = vmul.f32 %v202, %v787
        %v800 = vmul.f32 %v203, %v787
        %v801 = vmul.f32 %v204, %v787
        %v802 = vmul.f32 %v205, %v787
        %v803 = vmul.f32 %v206, %v787
        %v804 = vmul.f32 %v207, %v787
        %v821 = vrot.slane %v789, 1
        %v822 = vrot.slane %v790, 1
        %v823 = vsel %vm261, %v821, %v822
        %v824 = vrot.slane %v791, 1
        %v825 = vrot.slane %v792, 1
        %v826 = vsel %vm261, %v824, %v825
        %v827 = vrot.slane %v793, 1
        %v828 = vrot.slane %v794, 1
        %v829 = vsel %vm261, %v827, %v828
        %v830 = vrot.slane %v795, 1
        %v831 = vrot.slane %v796, 1
        %v832 = vsel %vm261, %v830, %v831
        %v833 = vrot.slane %v797, 1
        %v834 = vrot.slane %v798, 1
        %v835 = vsel %vm261, %v833, %v834
        %v836 = vrot.slane %v799, 1
        %v837 = vrot.slane %v800, 1
        %v838 = vsel %vm261, %v836, %v837
        %v839 = vrot.slane %v801, 1
        %v840 = vrot.slane %v802, 1
        %v841 = vsel %vm261, %v839, %v840
        %v842 = vrot.slane %v803, 1
        %v843 = vrot.slane %v804, 1
        %v844 = vsel %vm261, %v842, %v843
        %v853 = vadd.f32 %v776, %v823
        %v854 = vadd.f32 %v777, %v826
        %v855 = vadd.f32 %v778, %v829
        %v856 = vadd.f32 %v779, %v832
        %v857 = vadd.f32 %v780, %v835
        %v858 = vadd.f32 %v781, %v838
        %v859 = vadd.f32 %v782, %v841
        %v860 = vadd.f32 %v783, %v844
        %s861 = scalar_lea.vmem %s1, 11
        %v862 = vld [vmem:[%s861] sm:$0x1]
        %v864 = vperm.slane %v862, 0
        %v866 = vmul.f32 %v192, %v864
        %v867 = vmul.f32 %v193, %v864
        %v868 = vmul.f32 %v194, %v864
        %v869 = vmul.f32 %v195, %v864
        %v870 = vmul.f32 %v196, %v864
        %v871 = vmul.f32 %v197, %v864
        %v872 = vmul.f32 %v198, %v864
        %v873 = vmul.f32 %v199, %v864
        %v874 = vmul.f32 %v200, %v864
        %v875 = vmul.f32 %v201, %v864
        %v876 = vmul.f32 %v202, %v864
        %v877 = vmul.f32 %v203, %v864
        %v878 = vmul.f32 %v204, %v864
        %v879 = vmul.f32 %v205, %v864
        %v880 = vmul.f32 %v206, %v864
        %v881 = vmul.f32 %v207, %v864
        %v898 = vrot.slane %v866, 2
        %v899 = vrot.slane %v867, 2
        %v900 = vsel %vm339, %v898, %v899
        %v901 = vrot.slane %v868, 2
        %v902 = vrot.slane %v869, 2
        %v903 = vsel %vm339, %v901, %v902
        %v904 = vrot.slane %v870, 2
        %v905 = vrot.slane %v871, 2
        %v906 = vsel %vm339, %v904, %v905
        %v907 = vrot.slane %v872, 2
        %v908 = vrot.slane %v873, 2
        %v909 = vsel %vm339, %v907, %v908
        %v910 = vrot.slane %v874, 2
        %v911 = vrot.slane %v875, 2
        %v912 = vsel %vm339, %v910, %v911
        %v913 = vrot.slane %v876, 2
        %v914 = vrot.slane %v877, 2
        %v915 = vsel %vm339, %v913, %v914
        %v916 = vrot.slane %v878, 2
        %v917 = vrot.slane %v879, 2
        %v918 = vsel %vm339, %v916, %v917
        %v919 = vrot.slane %v880, 2
        %v920 = vrot.slane %v881, 2
        %v921 = vsel %vm339, %v919, %v920
        %v930 = vadd.f32 %v853, %v900
        %v931 = vadd.f32 %v854, %v903
        %v932 = vadd.f32 %v855, %v906
        %v933 = vadd.f32 %v856, %v909
        %v934 = vadd.f32 %v857, %v912
        %v935 = vadd.f32 %v858, %v915
        %v936 = vadd.f32 %v859, %v918
        %v937 = vadd.f32 %v860, %v921
        %s938 = scalar_lea.vmem %s1, 12
        %v939 = vld [vmem:[%s938] sm:$0x1]
        %v941 = vperm.slane %v939, 0
        %v943 = vmul.f32 %v194, %v941
        %v944 = vmul.f32 %v196, %v941
        %v945 = vmul.f32 %v198, %v941
        %v946 = vmul.f32 %v200, %v941
        %v947 = vmul.f32 %v202, %v941
        %v948 = vmul.f32 %v204, %v941
        %v949 = vmul.f32 %v206, %v941
        %v950 = vmul.f32 %v208, %v941
        %v951 = vadd.f32 %v930, %v943
        %v952 = vadd.f32 %v931, %v944
        %v953 = vadd.f32 %v932, %v945
        %v954 = vadd.f32 %v933, %v946
        %v955 = vadd.f32 %v934, %v947
        %v956 = vadd.f32 %v935, %v948
        %v957 = vadd.f32 %v936, %v949
        %v958 = vadd.f32 %v937, %v950
        %s959 = scalar_lea.vmem %s1, 13
        %v960 = vld [vmem:[%s959] sm:$0x1]
        %v962 = vperm.slane %v960, 0
        %v964 = vmul.f32 %v194, %v962
        %v965 = vmul.f32 %v195, %v962
        %v966 = vmul.f32 %v196, %v962
        %v967 = vmul.f32 %v197, %v962
        %v968 = vmul.f32 %v198, %v962
        %v969 = vmul.f32 %v199, %v962
        %v970 = vmul.f32 %v200, %v962
        %v971 = vmul.f32 %v201, %v962
        %v972 = vmul.f32 %v202, %v962
        %v973 = vmul.f32 %v203, %v962
        %v974 = vmul.f32 %v204, %v962
        %v975 = vmul.f32 %v205, %v962
        %v976 = vmul.f32 %v206, %v962
        %v977 = vmul.f32 %v207, %v962
        %v978 = vmul.f32 %v208, %v962
        %v979 = vmul.f32 %v209, %v962
        %v996 = vrot.slane %v964, 1
        %v997 = vrot.slane %v965, 1
        %v998 = vsel %vm261, %v996, %v997
        %v999 = vrot.slane %v966, 1
        %v1000 = vrot.slane %v967, 1
        %v1001 = vsel %vm261, %v999, %v1000
        %v1002 = vrot.slane %v968, 1
        %v1003 = vrot.slane %v969, 1
        %v1004 = vsel %vm261, %v1002, %v1003
        %v1005 = vrot.slane %v970, 1
        %v1006 = vrot.slane %v971, 1
        %v1007 = vsel %vm261, %v1005, %v1006
        %v1008 = vrot.slane %v972, 1
        %v1009 = vrot.slane %v973, 1
        %v1010 = vsel %vm261, %v1008, %v1009
        %v1011 = vrot.slane %v974, 1
        %v1012 = vrot.slane %v975, 1
        %v1013 = vsel %vm261, %v1011, %v1012
        %v1014 = vrot.slane %v976, 1
        %v1015 = vrot.slane %v977, 1
        %v1016 = vsel %vm261, %v1014, %v1015
        %v1017 = vrot.slane %v978, 1
        %v1018 = vrot.slane %v979, 1
        %v1019 = vsel %vm261, %v1017, %v1018
        %v1028 = vadd.f32 %v951, %v998
        %v1029 = vadd.f32 %v952, %v1001
        %v1030 = vadd.f32 %v953, %v1004
        %v1031 = vadd.f32 %v954, %v1007
        %v1032 = vadd.f32 %v955, %v1010
        %v1033 = vadd.f32 %v956, %v1013
        %v1034 = vadd.f32 %v957, %v1016
        %v1035 = vadd.f32 %v958, %v1019
        %s1036 = scalar_lea.vmem %s1, 14
        %v1037 = vld [vmem:[%s1036] sm:$0x1]
        %v1039 = vperm.slane %v1037, 0
        %v1041 = vmul.f32 %v194, %v1039
        %v1042 = vmul.f32 %v195, %v1039
        %v1043 = vmul.f32 %v196, %v1039
        %v1044 = vmul.f32 %v197, %v1039
        %v1045 = vmul.f32 %v198, %v1039
        %v1046 = vmul.f32 %v199, %v1039
        %v1047 = vmul.f32 %v200, %v1039
        %v1048 = vmul.f32 %v201, %v1039
        %v1049 = vmul.f32 %v202, %v1039
        %v1050 = vmul.f32 %v203, %v1039
        %v1051 = vmul.f32 %v204, %v1039
        %v1052 = vmul.f32 %v205, %v1039
        %v1053 = vmul.f32 %v206, %v1039
        %v1054 = vmul.f32 %v207, %v1039
        %v1055 = vmul.f32 %v208, %v1039
        %v1056 = vmul.f32 %v209, %v1039
        %v1073 = vrot.slane %v1041, 2
        %v1074 = vrot.slane %v1042, 2
        %v1075 = vsel %vm339, %v1073, %v1074
        %v1076 = vrot.slane %v1043, 2
        %v1077 = vrot.slane %v1044, 2
        %v1078 = vsel %vm339, %v1076, %v1077
        %v1079 = vrot.slane %v1045, 2
        %v1080 = vrot.slane %v1046, 2
        %v1081 = vsel %vm339, %v1079, %v1080
        %v1082 = vrot.slane %v1047, 2
        %v1083 = vrot.slane %v1048, 2
        %v1084 = vsel %vm339, %v1082, %v1083
        %v1085 = vrot.slane %v1049, 2
        %v1086 = vrot.slane %v1050, 2
        %v1087 = vsel %vm339, %v1085, %v1086
        %v1088 = vrot.slane %v1051, 2
        %v1089 = vrot.slane %v1052, 2
        %v1090 = vsel %vm339, %v1088, %v1089
        %v1091 = vrot.slane %v1053, 2
        %v1092 = vrot.slane %v1054, 2
        %v1093 = vsel %vm339, %v1091, %v1092
        %v1094 = vrot.slane %v1055, 2
        %v1095 = vrot.slane %v1056, 2
        %v1096 = vsel %vm339, %v1094, %v1095
        %v1105 = vadd.f32 %v1028, %v1075
        %v1106 = vadd.f32 %v1029, %v1078
        %v1107 = vadd.f32 %v1030, %v1081
        %v1108 = vadd.f32 %v1031, %v1084
        %v1109 = vadd.f32 %v1032, %v1087
        %v1110 = vadd.f32 %v1033, %v1090
        %v1111 = vadd.f32 %v1034, %v1093
        %v1112 = vadd.f32 %v1035, %v1096
        %s1113 = scalar_lea.vmem %s1, 15
        %v1114 = vld [vmem:[%s1113] sm:$0x1]
        %v1116 = vperm.slane %v1114, 0
        %v1118 = vmul.f32 %v196, %v1116
        %v1119 = vmul.f32 %v198, %v1116
        %v1120 = vmul.f32 %v200, %v1116
        %v1121 = vmul.f32 %v202, %v1116
        %v1122 = vmul.f32 %v204, %v1116
        %v1123 = vmul.f32 %v206, %v1116
        %v1124 = vmul.f32 %v208, %v1116
        %v1125 = vmul.f32 %v210, %v1116
        %v1126 = vadd.f32 %v1105, %v1118
        %v1127 = vadd.f32 %v1106, %v1119
        %v1128 = vadd.f32 %v1107, %v1120
        %v1129 = vadd.f32 %v1108, %v1121
        %v1130 = vadd.f32 %v1109, %v1122
        %v1131 = vadd.f32 %v1110, %v1123
        %v1132 = vadd.f32 %v1111, %v1124
        %v1133 = vadd.f32 %v1112, %v1125
        %s1134 = scalar_lea.vmem %s1, 16
        %v1135 = vld [vmem:[%s1134] sm:$0x1]
        %v1137 = vperm.slane %v1135, 0
        %v1139 = vmul.f32 %v196, %v1137
        %v1140 = vmul.f32 %v197, %v1137
        %v1141 = vmul.f32 %v198, %v1137
        %v1142 = vmul.f32 %v199, %v1137
        %v1143 = vmul.f32 %v200, %v1137
        %v1144 = vmul.f32 %v201, %v1137
        %v1145 = vmul.f32 %v202, %v1137
        %v1146 = vmul.f32 %v203, %v1137
        %v1147 = vmul.f32 %v204, %v1137
        %v1148 = vmul.f32 %v205, %v1137
        %v1149 = vmul.f32 %v206, %v1137
        %v1150 = vmul.f32 %v207, %v1137
        %v1151 = vmul.f32 %v208, %v1137
        %v1152 = vmul.f32 %v209, %v1137
        %v1153 = vmul.f32 %v210, %v1137
        %v1154 = vmul.f32 %v211, %v1137
        %v1171 = vrot.slane %v1139, 1
        %v1172 = vrot.slane %v1140, 1
        %v1173 = vsel %vm261, %v1171, %v1172
        %v1174 = vrot.slane %v1141, 1
        %v1175 = vrot.slane %v1142, 1
        %v1176 = vsel %vm261, %v1174, %v1175
        %v1177 = vrot.slane %v1143, 1
        %v1178 = vrot.slane %v1144, 1
        %v1179 = vsel %vm261, %v1177, %v1178
        %v1180 = vrot.slane %v1145, 1
        %v1181 = vrot.slane %v1146, 1
        %v1182 = vsel %vm261, %v1180, %v1181
        %v1183 = vrot.slane %v1147, 1
        %v1184 = vrot.slane %v1148, 1
        %v1185 = vsel %vm261, %v1183, %v1184
        %v1186 = vrot.slane %v1149, 1
        %v1187 = vrot.slane %v1150, 1
        %v1188 = vsel %vm261, %v1186, %v1187
        %v1189 = vrot.slane %v1151, 1
        %v1190 = vrot.slane %v1152, 1
        %v1191 = vsel %vm261, %v1189, %v1190
        %v1192 = vrot.slane %v1153, 1
        %v1193 = vrot.slane %v1154, 1
        %v1194 = vsel %vm261, %v1192, %v1193
        %v1203 = vadd.f32 %v1126, %v1173
        %v1204 = vadd.f32 %v1127, %v1176
        %v1205 = vadd.f32 %v1128, %v1179
        %v1206 = vadd.f32 %v1129, %v1182
        %v1207 = vadd.f32 %v1130, %v1185
        %v1208 = vadd.f32 %v1131, %v1188
        %v1209 = vadd.f32 %v1132, %v1191
        %v1210 = vadd.f32 %v1133, %v1194
        %s1211 = scalar_lea.vmem %s1, 17
        %v1212 = vld [vmem:[%s1211] sm:$0x1]
        %v1214 = vperm.slane %v1212, 0
        %v1216 = vmul.f32 %v196, %v1214
        %v1217 = vmul.f32 %v197, %v1214
        %v1218 = vmul.f32 %v198, %v1214
        %v1219 = vmul.f32 %v199, %v1214
        %v1220 = vmul.f32 %v200, %v1214
        %v1221 = vmul.f32 %v201, %v1214
        %v1222 = vmul.f32 %v202, %v1214
        %v1223 = vmul.f32 %v203, %v1214
        %v1224 = vmul.f32 %v204, %v1214
        %v1225 = vmul.f32 %v205, %v1214
        %v1226 = vmul.f32 %v206, %v1214
        %v1227 = vmul.f32 %v207, %v1214
        %v1228 = vmul.f32 %v208, %v1214
        %v1229 = vmul.f32 %v209, %v1214
        %v1230 = vmul.f32 %v210, %v1214
        %v1231 = vmul.f32 %v211, %v1214
        %v1248 = vrot.slane %v1216, 2
        %v1249 = vrot.slane %v1217, 2
        %v1250 = vsel %vm339, %v1248, %v1249
        %v1251 = vrot.slane %v1218, 2
        %v1252 = vrot.slane %v1219, 2
        %v1253 = vsel %vm339, %v1251, %v1252
        %v1254 = vrot.slane %v1220, 2
        %v1255 = vrot.slane %v1221, 2
        %v1256 = vsel %vm339, %v1254, %v1255
        %v1257 = vrot.slane %v1222, 2
        %v1258 = vrot.slane %v1223, 2
        %v1259 = vsel %vm339, %v1257, %v1258
        %v1260 = vrot.slane %v1224, 2
        %v1261 = vrot.slane %v1225, 2
        %v1262 = vsel %vm339, %v1260, %v1261
        %v1263 = vrot.slane %v1226, 2
        %v1264 = vrot.slane %v1227, 2
        %v1265 = vsel %vm339, %v1263, %v1264
        %v1266 = vrot.slane %v1228, 2
        %v1267 = vrot.slane %v1229, 2
        %v1268 = vsel %vm339, %v1266, %v1267
        %v1269 = vrot.slane %v1230, 2
        %v1270 = vrot.slane %v1231, 2
        %v1271 = vsel %vm339, %v1269, %v1270
        %v1280 = vadd.f32 %v1203, %v1250
        %v1281 = vadd.f32 %v1204, %v1253
        %v1282 = vadd.f32 %v1205, %v1256
        %v1283 = vadd.f32 %v1206, %v1259
        %v1284 = vadd.f32 %v1207, %v1262
        %v1285 = vadd.f32 %v1208, %v1265
        %v1286 = vadd.f32 %v1209, %v1268
        %v1287 = vadd.f32 %v1210, %v1271
        %s1288 = scalar_lea.vmem %s2, 1
        %v1289 = vld [vmem:[%s1288] sm:$0x1]
        %v1291 = vperm.slane %v1289, 0
        %v1293 = vmul.f32 %v1280, %v1291
        %v1294 = vmul.f32 %v1281, %v1291
        %v1295 = vmul.f32 %v1282, %v1291
        %v1296 = vmul.f32 %v1283, %v1291
        %v1297 = vmul.f32 %v1284, %v1291
        %v1298 = vmul.f32 %v1285, %v1291
        %v1299 = vmul.f32 %v1286, %v1291
        %v1300 = vmul.f32 %v1287, %v1291
        %s1301 = scalar_lea.vmem %s3, 1
        %v1302 = vld [vmem:[%s1301] sm:$0x1]
        %v1304 = vperm.slane %v1302, 0
        %v1306 = vadd.f32 %v1293, %v1304
        %v1307 = vadd.f32 %v1294, %v1304
        %v1308 = vadd.f32 %v1295, %v1304
        %v1309 = vadd.f32 %v1296, %v1304
        %v1310 = vadd.f32 %v1297, %v1304
        %v1311 = vadd.f32 %v1298, %v1304
        %v1312 = vadd.f32 %v1299, %v1304
        %v1313 = vadd.f32 %v1300, %v1304
        %v1314 = vpack.c.bf16 %v1306, %v1306
        %v1315 = vpack.c.bf16 %v1307, %v1307
        %v1316 = vpack.c.bf16 %v1308, %v1308
        %v1317 = vpack.c.bf16 %v1309, %v1309
        %v1318 = vpack.c.bf16 %v1310, %v1310
        %v1319 = vpack.c.bf16 %v1311, %v1311
        %v1320 = vpack.c.bf16 %v1312, %v1312
        %v1321 = vpack.c.bf16 %v1313, %v1313
        %s1322 = scalar_lea.vmem %s186, 32 [#allocation2]
        %1323 = vst.msk [vmem:[%s1322] sm:$0xf] %vm762, %v1314
        %1324 = vst.msk [vmem:[%s1322 + $0x4] sm:$0xf] %vm762, %v1315
        %1325 = vst.msk [vmem:[%s1322 + $0x8] sm:$0xf] %vm762, %v1316
        %1326 = vst.msk [vmem:[%s1322 + $0xc] sm:$0xf] %vm762, %v1317
        %1327 = vst.msk [vmem:[%s1322 + $0x10] sm:$0xf] %vm762, %v1318
        %1328 = vst.msk [vmem:[%s1322 + $0x14] sm:$0xf] %vm762, %v1319
        %1329 = vst.msk [vmem:[%s1322 + $0x18] sm:$0xf] %vm762, %v1320
        %1330 = vst.msk [vmem:[%s1322 + $0x1c] sm:$0xf] %vm762, %v1321
        %s1331 = scalar_lea.vmem %s1, 18
        %v1332 = vld [vmem:[%s1331] sm:$0x1]
        %v1334 = vperm.slane %v1332, 0
        %v1336 = vmul.f32 %v192, %v1334
        %v1337 = vmul.f32 %v194, %v1334
        %v1338 = vmul.f32 %v196, %v1334
        %v1339 = vmul.f32 %v198, %v1334
        %v1340 = vmul.f32 %v200, %v1334
        %v1341 = vmul.f32 %v202, %v1334
        %v1342 = vmul.f32 %v204, %v1334
        %v1343 = vmul.f32 %v206, %v1334
        %s1344 = scalar_lea.vmem %s1, 19
        %v1345 = vld [vmem:[%s1344] sm:$0x1]
        %v1347 = vperm.slane %v1345, 0
        %v1349 = vmul.f32 %v192, %v1347
        %v1350 = vmul.f32 %v193, %v1347
        %v1351 = vmul.f32 %v194, %v1347
        %v1352 = vmul.f32 %v195, %v1347
        %v1353 = vmul.f32 %v196, %v1347
        %v1354 = vmul.f32 %v197, %v1347
        %v1355 = vmul.f32 %v198, %v1347
        %v1356 = vmul.f32 %v199, %v1347
        %v1357 = vmul.f32 %v200, %v1347
        %v1358 = vmul.f32 %v201, %v1347
        %v1359 = vmul.f32 %v202, %v1347
        %v1360 = vmul.f32 %v203, %v1347
        %v1361 = vmul.f32 %v204, %v1347
        %v1362 = vmul.f32 %v205, %v1347
        %v1363 = vmul.f32 %v206, %v1347
        %v1364 = vmul.f32 %v207, %v1347
        %v1381 = vrot.slane %v1349, 1
        %v1382 = vrot.slane %v1350, 1
        %v1383 = vsel %vm261, %v1381, %v1382
        %v1384 = vrot.slane %v1351, 1
        %v1385 = vrot.slane %v1352, 1
        %v1386 = vsel %vm261, %v1384, %v1385
        %v1387 = vrot.slane %v1353, 1
        %v1388 = vrot.slane %v1354, 1
        %v1389 = vsel %vm261, %v1387, %v1388
        %v1390 = vrot.slane %v1355, 1
        %v1391 = vrot.slane %v1356, 1
        %v1392 = vsel %vm261, %v1390, %v1391
        %v1393 = vrot.slane %v1357, 1
        %v1394 = vrot.slane %v1358, 1
        %v1395 = vsel %vm261, %v1393, %v1394
        %v1396 = vrot.slane %v1359, 1
        %v1397 = vrot.slane %v1360, 1
        %v1398 = vsel %vm261, %v1396, %v1397
        %v1399 = vrot.slane %v1361, 1
        %v1400 = vrot.slane %v1362, 1
        %v1401 = vsel %vm261, %v1399, %v1400
        %v1402 = vrot.slane %v1363, 1
        %v1403 = vrot.slane %v1364, 1
        %v1404 = vsel %vm261, %v1402, %v1403
        %v1413 = vadd.f32 %v1336, %v1383
        %v1414 = vadd.f32 %v1337, %v1386
        %v1415 = vadd.f32 %v1338, %v1389
        %v1416 = vadd.f32 %v1339, %v1392
        %v1417 = vadd.f32 %v1340, %v1395
        %v1418 = vadd.f32 %v1341, %v1398
        %v1419 = vadd.f32 %v1342, %v1401
        %v1420 = vadd.f32 %v1343, %v1404
        %s1421 = scalar_lea.vmem %s1, 20
        %v1422 = vld [vmem:[%s1421] sm:$0x1]
        %v1424 = vperm.slane %v1422, 0
        %v1426 = vmul.f32 %v192, %v1424
        %v1427 = vmul.f32 %v193, %v1424
        %v1428 = vmul.f32 %v194, %v1424
        %v1429 = vmul.f32 %v195, %v1424
        %v1430 = vmul.f32 %v196, %v1424
        %v1431 = vmul.f32 %v197, %v1424
        %v1432 = vmul.f32 %v198, %v1424
        %v1433 = vmul.f32 %v199, %v1424
        %v1434 = vmul.f32 %v200, %v1424
        %v1435 = vmul.f32 %v201, %v1424
        %v1436 = vmul.f32 %v202, %v1424
        %v1437 = vmul.f32 %v203, %v1424
        %v1438 = vmul.f32 %v204, %v1424
        %v1439 = vmul.f32 %v205, %v1424
        %v1440 = vmul.f32 %v206, %v1424
        %v1441 = vmul.f32 %v207, %v1424
        %v1458 = vrot.slane %v1426, 2
        %v1459 = vrot.slane %v1427, 2
        %v1460 = vsel %vm339, %v1458, %v1459
        %v1461 = vrot.slane %v1428, 2
        %v1462 = vrot.slane %v1429, 2
        %v1463 = vsel %vm339, %v1461, %v1462
        %v1464 = vrot.slane %v1430, 2
        %v1465 = vrot.slane %v1431, 2
        %v1466 = vsel %vm339, %v1464, %v1465
        %v1467 = vrot.slane %v1432, 2
        %v1468 = vrot.slane %v1433, 2
        %v1469 = vsel %vm339, %v1467, %v1468
        %v1470 = vrot.slane %v1434, 2
        %v1471 = vrot.slane %v1435, 2
        %v1472 = vsel %vm339, %v1470, %v1471
        %v1473 = vrot.slane %v1436, 2
        %v1474 = vrot.slane %v1437, 2
        %v1475 = vsel %vm339, %v1473, %v1474
        %v1476 = vrot.slane %v1438, 2
        %v1477 = vrot.slane %v1439, 2
        %v1478 = vsel %vm339, %v1476, %v1477
        %v1479 = vrot.slane %v1440, 2
        %v1480 = vrot.slane %v1441, 2
        %v1481 = vsel %vm339, %v1479, %v1480
        %v1490 = vadd.f32 %v1413, %v1460
        %v1491 = vadd.f32 %v1414, %v1463
        %v1492 = vadd.f32 %v1415, %v1466
        %v1493 = vadd.f32 %v1416, %v1469
        %v1494 = vadd.f32 %v1417, %v1472
        %v1495 = vadd.f32 %v1418, %v1475
        %v1496 = vadd.f32 %v1419, %v1478
        %v1497 = vadd.f32 %v1420, %v1481
        %s1498 = scalar_lea.vmem %s1, 21
        %v1499 = vld [vmem:[%s1498] sm:$0x1]
        %v1501 = vperm.slane %v1499, 0
        %v1503 = vmul.f32 %v194, %v1501
        %v1504 = vmul.f32 %v196, %v1501
        %v1505 = vmul.f32 %v198, %v1501
        %v1506 = vmul.f32 %v200, %v1501
        %v1507 = vmul.f32 %v202, %v1501
        %v1508 = vmul.f32 %v204, %v1501
        %v1509 = vmul.f32 %v206, %v1501
        %v1510 = vmul.f32 %v208, %v1501
        %v1511 = vadd.f32 %v1490, %v1503
        %v1512 = vadd.f32 %v1491, %v1504
        %v1513 = vadd.f32 %v1492, %v1505
        %v1514 = vadd.f32 %v1493, %v1506
        %v1515 = vadd.f32 %v1494, %v1507
        %v1516 = vadd.f32 %v1495, %v1508
        %v1517 = vadd.f32 %v1496, %v1509
        %v1518 = vadd.f32 %v1497, %v1510
        %s1519 = scalar_lea.vmem %s1, 22
        %v1520 = vld [vmem:[%s1519] sm:$0x1]
        %v1522 = vperm.slane %v1520, 0
        %v1524 = vmul.f32 %v194, %v1522
        %v1525 = vmul.f32 %v195, %v1522
        %v1526 = vmul.f32 %v196, %v1522
        %v1527 = vmul.f32 %v197, %v1522
        %v1528 = vmul.f32 %v198, %v1522
        %v1529 = vmul.f32 %v199, %v1522
        %v1530 = vmul.f32 %v200, %v1522
        %v1531 = vmul.f32 %v201, %v1522
        %v1532 = vmul.f32 %v202, %v1522
        %v1533 = vmul.f32 %v203, %v1522
        %v1534 = vmul.f32 %v204, %v1522
        %v1535 = vmul.f32 %v205, %v1522
        %v1536 = vmul.f32 %v206, %v1522
        %v1537 = vmul.f32 %v207, %v1522
        %v1538 = vmul.f32 %v208, %v1522
        %v1539 = vmul.f32 %v209, %v1522
        %v1556 = vrot.slane %v1524, 1
        %v1557 = vrot.slane %v1525, 1
        %v1558 = vsel %vm261, %v1556, %v1557
        %v1559 = vrot.slane %v1526, 1
        %v1560 = vrot.slane %v1527, 1
        %v1561 = vsel %vm261, %v1559, %v1560
        %v1562 = vrot.slane %v1528, 1
        %v1563 = vrot.slane %v1529, 1
        %v1564 = vsel %vm261, %v1562, %v1563
        %v1565 = vrot.slane %v1530, 1
        %v1566 = vrot.slane %v1531, 1
        %v1567 = vsel %vm261, %v1565, %v1566
        %v1568 = vrot.slane %v1532, 1
        %v1569 = vrot.slane %v1533, 1
        %v1570 = vsel %vm261, %v1568, %v1569
        %v1571 = vrot.slane %v1534, 1
        %v1572 = vrot.slane %v1535, 1
        %v1573 = vsel %vm261, %v1571, %v1572
        %v1574 = vrot.slane %v1536, 1
        %v1575 = vrot.slane %v1537, 1
        %v1576 = vsel %vm261, %v1574, %v1575
        %v1577 = vrot.slane %v1538, 1
        %v1578 = vrot.slane %v1539, 1
        %v1579 = vsel %vm261, %v1577, %v1578
        %v1588 = vadd.f32 %v1511, %v1558
        %v1589 = vadd.f32 %v1512, %v1561
        %v1590 = vadd.f32 %v1513, %v1564
        %v1591 = vadd.f32 %v1514, %v1567
        %v1592 = vadd.f32 %v1515, %v1570
        %v1593 = vadd.f32 %v1516, %v1573
        %v1594 = vadd.f32 %v1517, %v1576
        %v1595 = vadd.f32 %v1518, %v1579
        %s1596 = scalar_lea.vmem %s1, 23
        %v1597 = vld [vmem:[%s1596] sm:$0x1]
        %v1599 = vperm.slane %v1597, 0
        %v1601 = vmul.f32 %v194, %v1599
        %v1602 = vmul.f32 %v195, %v1599
        %v1603 = vmul.f32 %v196, %v1599
        %v1604 = vmul.f32 %v197, %v1599
        %v1605 = vmul.f32 %v198, %v1599
        %v1606 = vmul.f32 %v199, %v1599
        %v1607 = vmul.f32 %v200, %v1599
        %v1608 = vmul.f32 %v201, %v1599
        %v1609 = vmul.f32 %v202, %v1599
        %v1610 = vmul.f32 %v203, %v1599
        %v1611 = vmul.f32 %v204, %v1599
        %v1612 = vmul.f32 %v205, %v1599
        %v1613 = vmul.f32 %v206, %v1599
        %v1614 = vmul.f32 %v207, %v1599
        %v1615 = vmul.f32 %v208, %v1599
        %v1616 = vmul.f32 %v209, %v1599
        %v1633 = vrot.slane %v1601, 2
        %v1634 = vrot.slane %v1602, 2
        %v1635 = vsel %vm339, %v1633, %v1634
        %v1636 = vrot.slane %v1603, 2
        %v1637 = vrot.slane %v1604, 2
        %v1638 = vsel %vm339, %v1636, %v1637
        %v1639 = vrot.slane %v1605, 2
        %v1640 = vrot.slane %v1606, 2
        %v1641 = vsel %vm339, %v1639, %v1640
        %v1642 = vrot.slane %v1607, 2
        %v1643 = vrot.slane %v1608, 2
        %v1644 = vsel %vm339, %v1642, %v1643
        %v1645 = vrot.slane %v1609, 2
        %v1646 = vrot.slane %v1610, 2
        %v1647 = vsel %vm339, %v1645, %v1646
        %v1648 = vrot.slane %v1611, 2
        %v1649 = vrot.slane %v1612, 2
        %v1650 = vsel %vm339, %v1648, %v1649
        %v1651 = vrot.slane %v1613, 2
        %v1652 = vrot.slane %v1614, 2
        %v1653 = vsel %vm339, %v1651, %v1652
        %v1654 = vrot.slane %v1615, 2
        %v1655 = vrot.slane %v1616, 2
        %v1656 = vsel %vm339, %v1654, %v1655
        %v1665 = vadd.f32 %v1588, %v1635
        %v1666 = vadd.f32 %v1589, %v1638
        %v1667 = vadd.f32 %v1590, %v1641
        %v1668 = vadd.f32 %v1591, %v1644
        %v1669 = vadd.f32 %v1592, %v1647
        %v1670 = vadd.f32 %v1593, %v1650
        %v1671 = vadd.f32 %v1594, %v1653
        %v1672 = vadd.f32 %v1595, %v1656
        %s1673 = scalar_lea.vmem %s1, 24
        %v1674 = vld [vmem:[%s1673] sm:$0x1]
        %v1676 = vperm.slane %v1674, 0
        %v1678 = vmul.f32 %v196, %v1676
        %v1679 = vmul.f32 %v198, %v1676
        %v1680 = vmul.f32 %v200, %v1676
        %v1681 = vmul.f32 %v202, %v1676
        %v1682 = vmul.f32 %v204, %v1676
        %v1683 = vmul.f32 %v206, %v1676
        %v1684 = vmul.f32 %v208, %v1676
        %v1685 = vmul.f32 %v210, %v1676
        %v1686 = vadd.f32 %v1665, %v1678
        %v1687 = vadd.f32 %v1666, %v1679
        %v1688 = vadd.f32 %v1667, %v1680
        %v1689 = vadd.f32 %v1668, %v1681
        %v1690 = vadd.f32 %v1669, %v1682
        %v1691 = vadd.f32 %v1670, %v1683
        %v1692 = vadd.f32 %v1671, %v1684
        %v1693 = vadd.f32 %v1672, %v1685
        %s1694 = scalar_lea.vmem %s1, 25
        %v1695 = vld [vmem:[%s1694] sm:$0x1]
        %v1697 = vperm.slane %v1695, 0
        %v1699 = vmul.f32 %v196, %v1697
        %v1700 = vmul.f32 %v197, %v1697
        %v1701 = vmul.f32 %v198, %v1697
        %v1702 = vmul.f32 %v199, %v1697
        %v1703 = vmul.f32 %v200, %v1697
        %v1704 = vmul.f32 %v201, %v1697
        %v1705 = vmul.f32 %v202, %v1697
        %v1706 = vmul.f32 %v203, %v1697
        %v1707 = vmul.f32 %v204, %v1697
        %v1708 = vmul.f32 %v205, %v1697
        %v1709 = vmul.f32 %v206, %v1697
        %v1710 = vmul.f32 %v207, %v1697
        %v1711 = vmul.f32 %v208, %v1697
        %v1712 = vmul.f32 %v209, %v1697
        %v1713 = vmul.f32 %v210, %v1697
        %v1714 = vmul.f32 %v211, %v1697
        %v1731 = vrot.slane %v1699, 1
        %v1732 = vrot.slane %v1700, 1
        %v1733 = vsel %vm261, %v1731, %v1732
        %v1734 = vrot.slane %v1701, 1
        %v1735 = vrot.slane %v1702, 1
        %v1736 = vsel %vm261, %v1734, %v1735
        %v1737 = vrot.slane %v1703, 1
        %v1738 = vrot.slane %v1704, 1
        %v1739 = vsel %vm261, %v1737, %v1738
        %v1740 = vrot.slane %v1705, 1
        %v1741 = vrot.slane %v1706, 1
        %v1742 = vsel %vm261, %v1740, %v1741
        %v1743 = vrot.slane %v1707, 1
        %v1744 = vrot.slane %v1708, 1
        %v1745 = vsel %vm261, %v1743, %v1744
        %v1746 = vrot.slane %v1709, 1
        %v1747 = vrot.slane %v1710, 1
        %v1748 = vsel %vm261, %v1746, %v1747
        %v1749 = vrot.slane %v1711, 1
        %v1750 = vrot.slane %v1712, 1
        %v1751 = vsel %vm261, %v1749, %v1750
        %v1752 = vrot.slane %v1713, 1
        %v1753 = vrot.slane %v1714, 1
        %v1754 = vsel %vm261, %v1752, %v1753
        %v1763 = vadd.f32 %v1686, %v1733
        %v1764 = vadd.f32 %v1687, %v1736
        %v1765 = vadd.f32 %v1688, %v1739
        %v1766 = vadd.f32 %v1689, %v1742
        %v1767 = vadd.f32 %v1690, %v1745
        %v1768 = vadd.f32 %v1691, %v1748
        %v1769 = vadd.f32 %v1692, %v1751
        %v1770 = vadd.f32 %v1693, %v1754
        %s1771 = scalar_lea.vmem %s1, 26
        %v1772 = vld [vmem:[%s1771] sm:$0x1]
        %v1774 = vperm.slane %v1772, 0
        %v1776 = vmul.f32 %v196, %v1774
        %v1777 = vmul.f32 %v197, %v1774
        %v1778 = vmul.f32 %v198, %v1774
        %v1779 = vmul.f32 %v199, %v1774
        %v1780 = vmul.f32 %v200, %v1774
        %v1781 = vmul.f32 %v201, %v1774
        %v1782 = vmul.f32 %v202, %v1774
        %v1783 = vmul.f32 %v203, %v1774
        %v1784 = vmul.f32 %v204, %v1774
        %v1785 = vmul.f32 %v205, %v1774
        %v1786 = vmul.f32 %v206, %v1774
        %v1787 = vmul.f32 %v207, %v1774
        %v1788 = vmul.f32 %v208, %v1774
        %v1789 = vmul.f32 %v209, %v1774
        %v1790 = vmul.f32 %v210, %v1774
        %v1791 = vmul.f32 %v211, %v1774
        %v1808 = vrot.slane %v1776, 2
        %v1809 = vrot.slane %v1777, 2
        %v1810 = vsel %vm339, %v1808, %v1809
        %v1811 = vrot.slane %v1778, 2
        %v1812 = vrot.slane %v1779, 2
        %v1813 = vsel %vm339, %v1811, %v1812
        %v1814 = vrot.slane %v1780, 2
        %v1815 = vrot.slane %v1781, 2
        %v1816 = vsel %vm339, %v1814, %v1815
        %v1817 = vrot.slane %v1782, 2
        %v1818 = vrot.slane %v1783, 2
        %v1819 = vsel %vm339, %v1817, %v1818
        %v1820 = vrot.slane %v1784, 2
        %v1821 = vrot.slane %v1785, 2
        %v1822 = vsel %vm339, %v1820, %v1821
        %v1823 = vrot.slane %v1786, 2
        %v1824 = vrot.slane %v1787, 2
        %v1825 = vsel %vm339, %v1823, %v1824
        %v1826 = vrot.slane %v1788, 2
        %v1827 = vrot.slane %v1789, 2
        %v1828 = vsel %vm339, %v1826, %v1827
        %v1829 = vrot.slane %v1790, 2
        %v1830 = vrot.slane %v1791, 2
        %v1831 = vsel %vm339, %v1829, %v1830
        %v1840 = vadd.f32 %v1763, %v1810
        %v1841 = vadd.f32 %v1764, %v1813
        %v1842 = vadd.f32 %v1765, %v1816
        %v1843 = vadd.f32 %v1766, %v1819
        %v1844 = vadd.f32 %v1767, %v1822
        %v1845 = vadd.f32 %v1768, %v1825
        %v1846 = vadd.f32 %v1769, %v1828
        %v1847 = vadd.f32 %v1770, %v1831
        %s1848 = scalar_lea.vmem %s2, 2
        %v1849 = vld [vmem:[%s1848] sm:$0x1]
        %v1851 = vperm.slane %v1849, 0
        %v1853 = vmul.f32 %v1840, %v1851
        %v1854 = vmul.f32 %v1841, %v1851
        %v1855 = vmul.f32 %v1842, %v1851
        %v1856 = vmul.f32 %v1843, %v1851
        %v1857 = vmul.f32 %v1844, %v1851
        %v1858 = vmul.f32 %v1845, %v1851
        %v1859 = vmul.f32 %v1846, %v1851
        %v1860 = vmul.f32 %v1847, %v1851
        %s1861 = scalar_lea.vmem %s3, 2
        %v1862 = vld [vmem:[%s1861] sm:$0x1]
        %v1864 = vperm.slane %v1862, 0
        %v1866 = vadd.f32 %v1853, %v1864
        %v1867 = vadd.f32 %v1854, %v1864
        %v1868 = vadd.f32 %v1855, %v1864
        %v1869 = vadd.f32 %v1856, %v1864
        %v1870 = vadd.f32 %v1857, %v1864
        %v1871 = vadd.f32 %v1858, %v1864
        %v1872 = vadd.f32 %v1859, %v1864
        %v1873 = vadd.f32 %v1860, %v1864
        %v1874 = vpack.c.bf16 %v1866, %v1866
        %v1875 = vpack.c.bf16 %v1867, %v1867
        %v1876 = vpack.c.bf16 %v1868, %v1868
        %v1877 = vpack.c.bf16 %v1869, %v1869
        %v1878 = vpack.c.bf16 %v1870, %v1870
        %v1879 = vpack.c.bf16 %v1871, %v1871
        %v1880 = vpack.c.bf16 %v1872, %v1872
        %v1881 = vpack.c.bf16 %v1873, %v1873
        %s1882 = scalar_lea.vmem %s186, 64 [#allocation2]
        %1883 = vst.msk [vmem:[%s1882] sm:$0xf] %vm762, %v1874
        %1884 = vst.msk [vmem:[%s1882 + $0x4] sm:$0xf] %vm762, %v1875
        %1885 = vst.msk [vmem:[%s1882 + $0x8] sm:$0xf] %vm762, %v1876
        %1886 = vst.msk [vmem:[%s1882 + $0xc] sm:$0xf] %vm762, %v1877
        %1887 = vst.msk [vmem:[%s1882 + $0x10] sm:$0xf] %vm762, %v1878
        %1888 = vst.msk [vmem:[%s1882 + $0x14] sm:$0xf] %vm762, %v1879
        %1889 = vst.msk [vmem:[%s1882 + $0x18] sm:$0xf] %vm762, %v1880
        %1890 = vst.msk [vmem:[%s1882 + $0x1c] sm:$0xf] %vm762, %v1881
        %s1891 = sand.u32 %s112, 1
        %s1892 = sand.u32 %s112, 1
        %s1893 = smul.addr %s1892, 96
        %s1894 = scalar_lea.vmem [#allocation2], %s1893
        // Predicated region
        $region37: #{cvt_forward.8} parent=35 // pred_check
          %p1895 = pneg %p122
        $region38: #{cvt_forward.8} parent=35 // pred_check_branch
          %1897 = sbr.rel (%p1895) target = $region40
        $region39: #{cvt_forward.8} parent=35 // pred_region
          %s1898 = smul.addr %s15, 8
          %s1899 = smul.addr %s1898, 4
          %s1900 = scalar_lea.vmem %s4, %s1899
          // Predicated region
          $region41: #{cvt_forward.8} parent=39 // pred_check
            _
          $region42: #{cvt_forward.8} parent=39 // pred_check_branch
            %1902 = sbr.rel (0) target = $region44
          $region43: #{cvt_forward.8} parent=39 // pred_region
            // Predicated region
            $region45: #{cvt_forward.8} parent=43 // pred_check
              _
            $region46: #{cvt_forward.8} parent=43 // pred_check_branch
              %1904 = sbr.rel target = $region48
            $region47: #{cvt_forward.8} parent=43 // pred_region
              // Predicated region
              $region60: #{cvt_forward.8} parent=47 // pred_check
                _
              $region61: #{cvt_forward.8} parent=47 // pred_check_branch
                %1966 = sbr.rel (0) target = $region63
              $region62: #{cvt_forward.8} parent=47 // pred_region
                loop: start=0, step=1, limit=1
                $region64: #{cvt_forward.8} parent=62 // loop_pre_header
                  _
                $region65: #{cvt_forward.8} parent=62 // loop_header
                  %s1968 = sphi 0, %s1972
                  %p1969 = scmp.ge.s32.totalorder %s1968, 1
                  %s1973 = sphi %s1894, %s1894
                  %s1974 = sphi %s1900, %s1900
                $region66: #{cvt_forward.8} parent=62 // loop_header_branch
                  %1971 = sbr.rel (%p1969) target = $region70
                $region67: #{cvt_forward.8} parent=62 // loop_body
                  _
                $region68: #{cvt_forward.8} parent=62 // loop_footer
                  %s1972 = sadd.s32 1, %s1968
                $region69: #{cvt_forward.8} parent=62 // loop_footer_branch
                  %1967 = sbr.rel target = $region65
                $region70: #{cvt_forward.8} parent=62 // loop_exit
                  _
                %s1976 = ssub.s32 16, 1
                loop: start=0, step=1, limit=1
                $region71: #{cvt_forward.8} parent=62 // loop_pre_header
                  _
                $region72: #{cvt_forward.8} parent=62 // loop_header
                  %s1978 = sphi 0, %s1982
                  %p1979 = scmp.ge.s32.totalorder %s1978, 1
                  %s1983 = sphi %s1894, %s1894
                  %s1984 = sphi %s1900, %s1900
                $region73: #{cvt_forward.8} parent=62 // loop_header_branch
                  %1981 = sbr.rel (%p1979) target = $region77
                $region74: #{cvt_forward.8} parent=62 // loop_body
                  %v1985 = vld [vmem:[%s1983] sm:%s1976]
                  %1986 = vst [vmem:[%s1984] sm:%s1976] %v1985
                  %v1987 = vld [vmem:[%s1983 + $0x4] sm:%s1976]
                  %1988 = vst [vmem:[%s1984 + $0x4] sm:%s1976] %v1987
                  %v1989 = vld [vmem:[%s1983 + $0x8] sm:%s1976]
                  %1990 = vst [vmem:[%s1984 + $0x8] sm:%s1976] %v1989
                  %v1991 = vld [vmem:[%s1983 + $0xc] sm:%s1976]
                  %1992 = vst [vmem:[%s1984 + $0xc] sm:%s1976] %v1991
                  %v1993 = vld [vmem:[%s1983 + $0x10] sm:%s1976]
                  %1994 = vst [vmem:[%s1984 + $0x10] sm:%s1976] %v1993
                  %v1995 = vld [vmem:[%s1983 + $0x14] sm:%s1976]
                  %1996 = vst [vmem:[%s1984 + $0x14] sm:%s1976] %v1995
                  %v1997 = vld [vmem:[%s1983 + $0x18] sm:%s1976]
                  %1998 = vst [vmem:[%s1984 + $0x18] sm:%s1976] %v1997
                  %v1999 = vld [vmem:[%s1983 + $0x1c] sm:%s1976]
                  %2000 = vst [vmem:[%s1984 + $0x1c] sm:%s1976] %v1999
                  %v2001 = vld [vmem:[%s1983 + $0x20] sm:%s1976]
                  %2002 = vst [vmem:[%s1984 + $0x40] sm:%s1976] %v2001
                  %v2003 = vld [vmem:[%s1983 + $0x24] sm:%s1976]
                  %2004 = vst [vmem:[%s1984 + $0x44] sm:%s1976] %v2003
                  %v2005 = vld [vmem:[%s1983 + $0x28] sm:%s1976]
                  %2006 = vst [vmem:[%s1984 + $0x48] sm:%s1976] %v2005
                  %v2007 = vld [vmem:[%s1983 + $0x2c] sm:%s1976]
                  %2008 = vst [vmem:[%s1984 + $0x4c] sm:%s1976] %v2007
                  %v2009 = vld [vmem:[%s1983 + $0x30] sm:%s1976]
                  %2010 = vst [vmem:[%s1984 + $0x50] sm:%s1976] %v2009
                  %v2011 = vld [vmem:[%s1983 + $0x34] sm:%s1976]
                  %2012 = vst [vmem:[%s1984 + $0x54] sm:%s1976] %v2011
                  %v2013 = vld [vmem:[%s1983 + $0x38] sm:%s1976]
                  %2014 = vst [vmem:[%s1984 + $0x58] sm:%s1976] %v2013
                  %v2015 = vld [vmem:[%s1983 + $0x3c] sm:%s1976]
                  %2016 = vst [vmem:[%s1984 + $0x5c] sm:%s1976] %v2015
                  %v2017 = vld [vmem:[%s1983 + $0x40] sm:%s1976]
                  %2018 = vst [vmem:[%s1984 + $0x80] sm:%s1976] %v2017
                  %v2019 = vld [vmem:[%s1983 + $0x44] sm:%s1976]
                  %2020 = vst [vmem:[%s1984 + $0x84] sm:%s1976] %v2019
                  %v2021 = vld [vmem:[%s1983 + $0x48] sm:%s1976]
                  %2022 = vst [vmem:[%s1984 + $0x88] sm:%s1976] %v2021
                  %v2023 = vld [vmem:[%s1983 + $0x4c] sm:%s1976]
                  %2024 = vst [vmem:[%s1984 + $0x8c] sm:%s1976] %v2023
                  %v2025 = vld [vmem:[%s1983 + $0x50] sm:%s1976]
                  %2026 = vst [vmem:[%s1984 + $0x90] sm:%s1976] %v2025
                  %v2027 = vld [vmem:[%s1983 + $0x54] sm:%s1976]
                  %2028 = vst [vmem:[%s1984 + $0x94] sm:%s1976] %v2027
                  %v2029 = vld [vmem:[%s1983 + $0x58] sm:%s1976]
                  %2030 = vst [vmem:[%s1984 + $0x98] sm:%s1976] %v2029
                  %v2031 = vld [vmem:[%s1983 + $0x5c] sm:%s1976]
                  %2032 = vst [vmem:[%s1984 + $0x9c] sm:%s1976] %v2031
                $region75: #{cvt_forward.8} parent=62 // loop_footer
                  %s1982 = sadd.s32 1, %s1978
                $region76: #{cvt_forward.8} parent=62 // loop_footer_branch
                  %1977 = sbr.rel target = $region72
                $region77: #{cvt_forward.8} parent=62 // loop_exit
                  _
              $region63: #{cvt_forward.8} parent=47 // pred_fallthru
                _
            $region48: #{cvt_forward.8} parent=43 // pred_fallthru
              _
            // Predicated region
            $region49: #{cvt_forward.8} parent=43 // pred_check
              _
            $region50: #{cvt_forward.8} parent=43 // pred_check_branch
              %1906 = sbr.rel (0) target = $region52
            $region51: #{cvt_forward.8} parent=43 // pred_region
              %s1908 = ssub.s32 16, 1
              loop: start=0, step=1, limit=1
              $region53: #{cvt_forward.8} parent=51 // loop_pre_header
                _
              $region54: #{cvt_forward.8} parent=51 // loop_header
                %s1910 = sphi 0, %s1914
                %p1911 = scmp.ge.s32.totalorder %s1910, 1
                %s1915 = sphi %s1894, %s1894
                %s1916 = sphi %s1900, %s1900
              $region55: #{cvt_forward.8} parent=51 // loop_header_branch
                %1913 = sbr.rel (%p1911) target = $region59
              $region56: #{cvt_forward.8} parent=51 // loop_body
                %v1917 = vld [vmem:[%s1915] sm:%s1908]
                %1918 = vst [vmem:[%s1916] sm:%s1908] %v1917
                %v1919 = vld [vmem:[%s1915 + $0x4] sm:%s1908]
                %1920 = vst [vmem:[%s1916 + $0x4] sm:%s1908] %v1919
                %v1921 = vld [vmem:[%s1915 + $0x8] sm:%s1908]
                %1922 = vst [vmem:[%s1916 + $0x8] sm:%s1908] %v1921
                %v1923 = vld [vmem:[%s1915 + $0xc] sm:%s1908]
                %1924 = vst [vmem:[%s1916 + $0xc] sm:%s1908] %v1923
                %v1925 = vld [vmem:[%s1915 + $0x10] sm:%s1908]
                %1926 = vst [vmem:[%s1916 + $0x10] sm:%s1908] %v1925
                %v1927 = vld [vmem:[%s1915 + $0x14] sm:%s1908]
                %1928 = vst [vmem:[%s1916 + $0x14] sm:%s1908] %v1927
                %v1929 = vld [vmem:[%s1915 + $0x18] sm:%s1908]
                %1930 = vst [vmem:[%s1916 + $0x18] sm:%s1908] %v1929
                %v1931 = vld [vmem:[%s1915 + $0x1c] sm:%s1908]
                %1932 = vst [vmem:[%s1916 + $0x1c] sm:%s1908] %v1931
                %v1933 = vld [vmem:[%s1915 + $0x20] sm:%s1908]
                %1934 = vst [vmem:[%s1916 + $0x40] sm:%s1908] %v1933
                %v1935 = vld [vmem:[%s1915 + $0x24] sm:%s1908]
                %1936 = vst [vmem:[%s1916 + $0x44] sm:%s1908] %v1935
                %v1937 = vld [vmem:[%s1915 + $0x28] sm:%s1908]
                %1938 = vst [vmem:[%s1916 + $0x48] sm:%s1908] %v1937
                %v1939 = vld [vmem:[%s1915 + $0x2c] sm:%s1908]
                %1940 = vst [vmem:[%s1916 + $0x4c] sm:%s1908] %v1939
                %v1941 = vld [vmem:[%s1915 + $0x30] sm:%s1908]
                %1942 = vst [vmem:[%s1916 + $0x50] sm:%s1908] %v1941
                %v1943 = vld [vmem:[%s1915 + $0x34] sm:%s1908]
                %1944 = vst [vmem:[%s1916 + $0x54] sm:%s1908] %v1943
                %v1945 = vld [vmem:[%s1915 + $0x38] sm:%s1908]
                %1946 = vst [vmem:[%s1916 + $0x58] sm:%s1908] %v1945
                %v1947 = vld [vmem:[%s1915 + $0x3c] sm:%s1908]
                %1948 = vst [vmem:[%s1916 + $0x5c] sm:%s1908] %v1947
                %v1949 = vld [vmem:[%s1915 + $0x40] sm:%s1908]
                %1950 = vst [vmem:[%s1916 + $0x80] sm:%s1908] %v1949
                %v1951 = vld [vmem:[%s1915 + $0x44] sm:%s1908]
                %1952 = vst [vmem:[%s1916 + $0x84] sm:%s1908] %v1951
                %v1953 = vld [vmem:[%s1915 + $0x48] sm:%s1908]
                %1954 = vst [vmem:[%s1916 + $0x88] sm:%s1908] %v1953
                %v1955 = vld [vmem:[%s1915 + $0x4c] sm:%s1908]
                %1956 = vst [vmem:[%s1916 + $0x8c] sm:%s1908] %v1955
                %v1957 = vld [vmem:[%s1915 + $0x50] sm:%s1908]
                %1958 = vst [vmem:[%s1916 + $0x90] sm:%s1908] %v1957
                %v1959 = vld [vmem:[%s1915 + $0x54] sm:%s1908]
                %1960 = vst [vmem:[%s1916 + $0x94] sm:%s1908] %v1959
                %v1961 = vld [vmem:[%s1915 + $0x58] sm:%s1908]
                %1962 = vst [vmem:[%s1916 + $0x98] sm:%s1908] %v1961
                %v1963 = vld [vmem:[%s1915 + $0x5c] sm:%s1908]
                %1964 = vst [vmem:[%s1916 + $0x9c] sm:%s1908] %v1963
              $region57: #{cvt_forward.8} parent=51 // loop_footer
                %s1914 = sadd.s32 1, %s1910
              $region58: #{cvt_forward.8} parent=51 // loop_footer_branch
                %1909 = sbr.rel target = $region54
              $region59: #{cvt_forward.8} parent=51 // loop_exit
                _
            $region52: #{cvt_forward.8} parent=43 // pred_fallthru
              _
          $region44: #{cvt_forward.8} parent=39 // pred_fallthru
            _
          %2033 = vnop
        $region40: #{cvt_forward.8} parent=35 // pred_fallthru
          _
      $region36: #{cvt_forward.8} parent=5 // pred_fallthru
        _
      %p2034 = scmp.le.s32.totalorder 2, %s10
      // Predicated region
      $region78: #{cvt_forward.8} parent=5 // pred_check
        %p2035 = pneg %p2034
      $region79: #{cvt_forward.8} parent=5 // pred_check_branch
        %2037 = sbr.rel (%p2035) target = $region81
      $region80: #{cvt_forward.8} parent=5 // pred_region
        %s2038 = ssub.s32 %s10, 2
        // Predicated region
        $region82: #{cvt_forward.8} parent=80 // pred_check
          %p2039 = pneg %p128
        $region83: #{cvt_forward.8} parent=80 // pred_check_branch
          %2041 = sbr.rel (%p2039) target = $region85
        $region84: #{cvt_forward.8} parent=80 // pred_region
          %s2042 = sand.u32 %s113, 1
          %s2043 = sand.u32 %s113, 1
          %s2044 = smul.addr %s2043, 96
          %s2045 = scalar_lea.vmem [#allocation2], %s2044
        $region85: #{cvt_forward.8} parent=80 // pred_fallthru
          _
      $region81: #{cvt_forward.8} parent=5 // pred_fallthru
        _
    $region6: #{cvt_forward.8} parent=1 // loop_footer
      %s14 = sadd.s32 1, %s10
    $region7: #{cvt_forward.8} parent=1 // loop_footer_branch
      %9 = sbr.rel target = $region3
    $region8: #{cvt_forward.8} parent=1 // loop_exit
      _

// kernel: cvt_forward.9
$region0: #{cvt_forward.9}
  #allocation0 [shape = 'u32[]', space=smem, size = 0x4, offset = 0x4, fixed_abs, tag = 'smem constant byte address 0x4 - core index']
  #allocation1 [shape = 'u32[72,128]{1,0:T(1,128)}', space=vmem, size = 0x9000, scoped, tag = 'internal scratch']
  %s0 = inlined_call_operand.vmem [shape: bf16[3,2,72,32], index: 0, kind: input, shape index: {}]
  %s1 = inlined_call_operand.vmem [shape: bf16[3,32,32], index: 1, kind: input, shape index: {}]
  %s2 = inlined_call_operand.vmem [shape: bf16[2,4,72,8], index: 2, kind: output, shape index: {0}]
  %s3 = inlined_call_operand.vmem [shape: bf16[2,4,72,8], index: 3, kind: output, shape index: {1}]
  %s4 = inlined_call_operand.vmem [shape: bf16[2,4,72,8], index: 4, kind: output, shape index: {2}]
  %5 = xla_tuple %s2, %s3, %s4
  %s6 = sld [smem:[#allocation0]]
  $region98: #{cvt_forward.9} parent=0
    _
  %s8 = ssub.s32 1, %s6
  %s9 = scalar_select 0, %s8, %s6
  $region1: #{cvt_forward.9} parent=0
    #allocation2 [shape = 'u8[110592]{0}', space=vmem, size = 0x1b000, scoped, tag = 'input window, operand 0']
    loop: start=0, step=1, limit=4
    $region2: #{cvt_forward.9} parent=1 // loop_pre_header
      _
    $region3: #{cvt_forward.9} parent=1 // loop_header
      %s11 = sphi 0, %s15
      %p12 = scmp.ge.s32.totalorder %s11, 4
      %s18 = sphi 0, %s30
      %s19 = sphi 0, %s26
      %s20 = sphi 0, %s18
      %s21 = sphi 0, %s19
      %s22 = sphi 0, %s20
      %s23 = sphi 0, %s21
      %s35 = sphi 0, %s37
      %s38 = sphi 0, %s35
      %s39 = sphi 0, %s38
      %s55 = sphi 0, %s39
      %s59 = sphi 0, %s59
      %s61 = sphi 0, %s59
      %s62 = sphi 0, %s61
      %s76 = sphi 0, %s62
      %s84 = sphi 0, %s86
      %s87 = sphi 0, %s84
      %s88 = sphi 0, %s87
      %s104 = sphi 0, %s88
      %s112 = sphi 0, %s114
      %s115 = sphi 0, %s112
      %s116 = sphi 0, %s115
      %s132 = sphi 0, %s116
      %s140 = sphi 0, %s142
      %s143 = sphi 0, %s140
      %s144 = sphi 0, %s143
      %s160 = sphi 0, %s144
    $region4: #{cvt_forward.9} parent=1 // loop_header_branch
      %14 = sbr.rel (%p12) target = $region8
    $region5: #{cvt_forward.9} parent=1 // loop_body
      %s16 = ssub.s32 %s11, 1
      %s17 = ssub.s32 %s11, 2
      %s24 = sadd.s32 1, %s19
      %p25 = scmp.ge.s32.totalorder %s24, 1
      %s26 = scalar_select %p25, 0, %s24
      %s27 = sadd.s32 1, %s18
      %s28 = scalar_select %p25, %s27, %s18
      %p29 = scmp.ge.s32.totalorder %s28, 2
      %s30 = scalar_select %p29, 0, %s28
      %s31 = ssub.s32 %s18, %s30
      %s32 = ssub.s32 %s19, %s26
      %s33 = sor.u32 %s31, %s32
      %p34 = scmp.eq.s32.totalorder %s33, 0
      %s36 = sadd.s32 %s35, 1
      %s37 = scalar_select %p34, %s35, %s36
      %p40 = pneg %p34
      %p41 = scmp.eq.s32.totalorder %s11, 1
      %p42 = por %p40, %p41
      %p43 = scmp.ne.s32.totalorder %s35, %s38
      %p44 = scmp.eq.s32.totalorder %s11, 0
      %p45 = por %p43, %p44
      %p46 = scmp.ne.s32.totalorder %s35, %s38
      %p47 = scmp.eq.s32.totalorder %s16, 1
      %p48 = por %p46, %p47
      %p49 = scmp.ne.s32.totalorder %s38, %s39
      %p50 = scmp.eq.s32.totalorder %s16, 0
      %p51 = por %p49, %p50
      %p52 = scmp.ne.s32.totalorder %s38, %s39
      %p53 = scmp.eq.s32.totalorder %s17, 1
      %p54 = por %p52, %p53
      %p56 = scmp.ne.s32.totalorder %s39, %s55
      %p57 = scmp.eq.s32.totalorder %s17, 0
      %p58 = por %p56, %p57
      %s60 = sadd.s32 %s59, 1
      %p63 = scmp.eq.s32.totalorder %s11, 1
      %p64 = scmp.ne.s32.totalorder %s59, %s61
      %p65 = scmp.eq.s32.totalorder %s11, 0
      %p66 = por %p64, %p65
      %p67 = scmp.ne.s32.totalorder %s59, %s61
      %p68 = scmp.eq.s32.totalorder %s16, 1
      %p69 = por %p67, %p68
      %p70 = scmp.ne.s32.totalorder %s61, %s62
      %p71 = scmp.eq.s32.totalorder %s16, 0
      %p72 = por %p70, %p71
      %p73 = scmp.ne.s32.totalorder %s61, %s62
      %p74 = scmp.eq.s32.totalorder %s17, 1
      %p75 = por %p73, %p74
      %p77 = scmp.ne.s32.totalorder %s62, %s76
      %p78 = scmp.eq.s32.totalorder %s17, 0
      %p79 = por %p77, %p78
      %s80 = ssub.s32 %s18, %s30
      %s81 = ssub.s32 %s19, %s26
      %s82 = sor.u32 %s80, %s81
      %p83 = scmp.eq.s32.totalorder %s82, 0
      %s85 = sadd.s32 %s84, 1
      %s86 = scalar_select %p83, %s84, %s85
      %p89 = pneg %p83
      %p90 = scmp.eq.s32.totalorder %s11, 1
      %p91 = por %p89, %p90
      %p92 = scmp.ne.s32.totalorder %s84, %s87
      %p93 = scmp.eq.s32.totalorder %s11, 0
      %p94 = por %p92, %p93
      %p95 = scmp.ne.s32.totalorder %s84, %s87
      %p96 = scmp.eq.s32.totalorder %s16, 1
      %p97 = por %p95, %p96
      %p98 = scmp.ne.s32.totalorder %s87, %s88
      %p99 = scmp.eq.s32.totalorder %s16, 0
      %p100 = por %p98, %p99
      %p101 = scmp.ne.s32.totalorder %s87, %s88
      %p102 = scmp.eq.s32.totalorder %s17, 1
      %p103 = por %p101, %p102
      %p105 = scmp.ne.s32.totalorder %s88, %s104
      %p106 = scmp.eq.s32.totalorder %s17, 0
      %p107 = por %p105, %p106
      %s108 = ssub.s32 %s18, %s30
      %s109 = ssub.s32 %s19, %s26
      %s110 = sor.u32 %s108, %s109
      %p111 = scmp.eq.s32.totalorder %s110, 0
      %s113 = sadd.s32 %s112, 1
      %s114 = scalar_select %p111, %s112, %s113
      %p117 = pneg %p111
      %p118 = scmp.eq.s32.totalorder %s11, 1
      %p119 = por %p117, %p118
      %p120 = scmp.ne.s32.totalorder %s112, %s115
      %p121 = scmp.eq.s32.totalorder %s11, 0
      %p122 = por %p120, %p121
      %p123 = scmp.ne.s32.totalorder %s112, %s115
      %p124 = scmp.eq.s32.totalorder %s16, 1
      %p125 = por %p123, %p124
      %p126 = scmp.ne.s32.totalorder %s115, %s116
      %p127 = scmp.eq.s32.totalorder %s16, 0
      %p128 = por %p126, %p127
      %p129 = scmp.ne.s32.totalorder %s115, %s116
      %p130 = scmp.eq.s32.totalorder %s17, 1
      %p131 = por %p129, %p130
      %p133 = scmp.ne.s32.totalorder %s116, %s132
      %p134 = scmp.eq.s32.totalorder %s17, 0
      %p135 = por %p133, %p134
      %s136 = ssub.s32 %s18, %s30
      %s137 = ssub.s32 %s19, %s26
      %s138 = sor.u32 %s136, %s137
      %p139 = scmp.eq.s32.totalorder %s138, 0
      %s141 = sadd.s32 %s140, 1
      %s142 = scalar_select %p139, %s140, %s141
      %p145 = pneg %p139
      %p146 = scmp.eq.s32.totalorder %s11, 1
      %p147 = por %p145, %p146
      %p148 = scmp.ne.s32.totalorder %s140, %s143
      %p149 = scmp.eq.s32.totalorder %s11, 0
      %p150 = por %p148, %p149
      %p151 = scmp.ne.s32.totalorder %s140, %s143
      %p152 = scmp.eq.s32.totalorder %s16, 1
      %p153 = por %p151, %p152
      %p154 = scmp.ne.s32.totalorder %s143, %s144
      %p155 = scmp.eq.s32.totalorder %s16, 0
      %p156 = por %p154, %p155
      %p157 = scmp.ne.s32.totalorder %s143, %s144
      %p158 = scmp.eq.s32.totalorder %s17, 1
      %p159 = por %p157, %p158
      %p161 = scmp.ne.s32.totalorder %s144, %s160
      %p162 = scmp.eq.s32.totalorder %s17, 0
      %p163 = por %p161, %p162
      %p164 = scmp.le.s32.totalorder 1, %s11
      %p165 = scmp.lt.s32.totalorder %s11, 3
      %p166 = pnand %p164, %p165
      %p167 = pneg %p166
      // Predicated region
      $region9: #{cvt_forward.9} parent=5 // pred_check
        _
      $region10: #{cvt_forward.9} parent=5 // pred_check_branch
        %169 = sbr.rel (%p166) target = $region12
      $region11: #{cvt_forward.9} parent=5 // pred_region
        %s170 = ssub.s32 %s11, 1
        // Predicated region
        $region13: #{cvt_forward.9} parent=11 // pred_check
          %p171 = pneg %p72
        $region14: #{cvt_forward.9} parent=11 // pred_check_branch
          %173 = sbr.rel (%p171) target = $region16
        $region15: #{cvt_forward.9} parent=11 // pred_region
          _
        $region16: #{cvt_forward.9} parent=11 // pred_fallthru
          _
      $region12: #{cvt_forward.9} parent=5 // pred_fallthru
        _
      %p174 = scmp.lt.s32.totalorder %s11, 2
      // Predicated region
      $region17: #{cvt_forward.9} parent=5 // pred_check
        %p175 = pneg %p174
      $region18: #{cvt_forward.9} parent=5 // pred_check_branch
        %177 = sbr.rel (%p175) target = $region20
      $region19: #{cvt_forward.9} parent=5 // pred_region
        // Predicated region
        $region21: #{cvt_forward.9} parent=19 // pred_check
          %p178 = pneg %p45
        $region22: #{cvt_forward.9} parent=19 // pred_check_branch
          %180 = sbr.rel (%p178) target = $region24
        $region23: #{cvt_forward.9} parent=19 // pred_region
          %s181 = sand.u32 %s35, 1
          %s182 = sand.u32 %s35, 1
          %s183 = smul.addr %s182, 108
          %s184 = scalar_lea.vmem [#allocation2], %s183
          %s185 = smul.u32 9, %s19
          %s186 = smul.addr %s18, 9
          %s187 = sadd.s32 %s185, %s186
          %s188 = smul.addr %s187, 4
          %s189 = scalar_lea.vmem %s0, %s188
          // Predicated region
          $region25: #{cvt_forward.9} parent=23 // pred_check
            _
          $region26: #{cvt_forward.9} parent=23 // pred_check_branch
            %191 = sbr.rel (0) target = $region28
          $region27: #{cvt_forward.9} parent=23 // pred_region
            // Predicated region
            $region29: #{cvt_forward.9} parent=27 // pred_check
              _
            $region30: #{cvt_forward.9} parent=27 // pred_check_branch
              %193 = sbr.rel target = $region32
            $region31: #{cvt_forward.9} parent=27 // pred_region
              // Predicated region
              $region44: #{cvt_forward.9} parent=31 // pred_check
                _
              $region45: #{cvt_forward.9} parent=31 // pred_check_branch
                %261 = sbr.rel (0) target = $region47
              $region46: #{cvt_forward.9} parent=31 // pred_region
                loop: start=0, step=1, limit=1
                $region48: #{cvt_forward.9} parent=46 // loop_pre_header
                  _
                $region49: #{cvt_forward.9} parent=46 // loop_header
                  %s263 = sphi 0, %s267
                  %p264 = scmp.ge.s32.totalorder %s263, 1
                  %s268 = sphi %s189, %s189
                  %s269 = sphi %s184, %s184
                $region50: #{cvt_forward.9} parent=46 // loop_header_branch
                  %266 = sbr.rel (%p264) target = $region54
                $region51: #{cvt_forward.9} parent=46 // loop_body
                  _
                $region52: #{cvt_forward.9} parent=46 // loop_footer
                  %s267 = sadd.s32 1, %s263
                $region53: #{cvt_forward.9} parent=46 // loop_footer_branch
                  %262 = sbr.rel target = $region49
                $region54: #{cvt_forward.9} parent=46 // loop_exit
                  _
                %s271 = ssub.s32 16, 1
                loop: start=0, step=1, limit=1
                $region55: #{cvt_forward.9} parent=46 // loop_pre_header
                  _
                $region56: #{cvt_forward.9} parent=46 // loop_header
                  %s273 = sphi 0, %s277
                  %p274 = scmp.ge.s32.totalorder %s273, 1
                  %s278 = sphi %s189, %s189
                  %s279 = sphi %s184, %s184
                $region57: #{cvt_forward.9} parent=46 // loop_header_branch
                  %276 = sbr.rel (%p274) target = $region61
                $region58: #{cvt_forward.9} parent=46 // loop_body
                  %v280 = vld [vmem:[%s278] sm:%s271]
                  %281 = vst [vmem:[%s279] sm:%s271] %v280
                  %v282 = vld [vmem:[%s278 + $0x4] sm:%s271]
                  %283 = vst [vmem:[%s279 + $0x4] sm:%s271] %v282
                  %v284 = vld [vmem:[%s278 + $0x8] sm:%s271]
                  %285 = vst [vmem:[%s279 + $0x8] sm:%s271] %v284
                  %v286 = vld [vmem:[%s278 + $0xc] sm:%s271]
                  %287 = vst [vmem:[%s279 + $0xc] sm:%s271] %v286
                  %v288 = vld [vmem:[%s278 + $0x10] sm:%s271]
                  %289 = vst [vmem:[%s279 + $0x10] sm:%s271] %v288
                  %v290 = vld [vmem:[%s278 + $0x14] sm:%s271]
                  %291 = vst [vmem:[%s279 + $0x14] sm:%s271] %v290
                  %v292 = vld [vmem:[%s278 + $0x18] sm:%s271]
                  %293 = vst [vmem:[%s279 + $0x18] sm:%s271] %v292
                  %v294 = vld [vmem:[%s278 + $0x1c] sm:%s271]
                  %295 = vst [vmem:[%s279 + $0x1c] sm:%s271] %v294
                  %v296 = vld [vmem:[%s278 + $0x20] sm:%s271]
                  %297 = vst [vmem:[%s279 + $0x20] sm:%s271] %v296
                  %v298 = vld [vmem:[%s278 + $0x48] sm:%s271]
                  %299 = vst [vmem:[%s279 + $0x24] sm:%s271] %v298
                  %v300 = vld [vmem:[%s278 + $0x4c] sm:%s271]
                  %301 = vst [vmem:[%s279 + $0x28] sm:%s271] %v300
                  %v302 = vld [vmem:[%s278 + $0x50] sm:%s271]
                  %303 = vst [vmem:[%s279 + $0x2c] sm:%s271] %v302
                  %v304 = vld [vmem:[%s278 + $0x54] sm:%s271]
                  %305 = vst [vmem:[%s279 + $0x30] sm:%s271] %v304
                  %v306 = vld [vmem:[%s278 + $0x58] sm:%s271]
                  %307 = vst [vmem:[%s279 + $0x34] sm:%s271] %v306
                  %v308 = vld [vmem:[%s278 + $0x5c] sm:%s271]
                  %309 = vst [vmem:[%s279 + $0x38] sm:%s271] %v308
                  %v310 = vld [vmem:[%s278 + $0x60] sm:%s271]
                  %311 = vst [vmem:[%s279 + $0x3c] sm:%s271] %v310
                  %v312 = vld [vmem:[%s278 + $0x64] sm:%s271]
                  %313 = vst [vmem:[%s279 + $0x40] sm:%s271] %v312
                  %v314 = vld [vmem:[%s278 + $0x68] sm:%s271]
                  %315 = vst [vmem:[%s279 + $0x44] sm:%s271] %v314
                  %v316 = vld [vmem:[%s278 + $0x90] sm:%s271]
                  %317 = vst [vmem:[%s279 + $0x48] sm:%s271] %v316
                  %v318 = vld [vmem:[%s278 + $0x94] sm:%s271]
                  %319 = vst [vmem:[%s279 + $0x4c] sm:%s271] %v318
                  %v320 = vld [vmem:[%s278 + $0x98] sm:%s271]
                  %321 = vst [vmem:[%s279 + $0x50] sm:%s271] %v320
                  %v322 = vld [vmem:[%s278 + $0x9c] sm:%s271]
                  %323 = vst [vmem:[%s279 + $0x54] sm:%s271] %v322
                  %v324 = vld [vmem:[%s278 + $0xa0] sm:%s271]
                  %325 = vst [vmem:[%s279 + $0x58] sm:%s271] %v324
                  %v326 = vld [vmem:[%s278 + $0xa4] sm:%s271]
                  %327 = vst [vmem:[%s279 + $0x5c] sm:%s271] %v326
                  %v328 = vld [vmem:[%s278 + $0xa8] sm:%s271]
                  %329 = vst [vmem:[%s279 + $0x60] sm:%s271] %v328
                  %v330 = vld [vmem:[%s278 + $0xac] sm:%s271]
                  %331 = vst [vmem:[%s279 + $0x64] sm:%s271] %v330
                  %v332 = vld [vmem:[%s278 + $0xb0] sm:%s271]
                  %333 = vst [vmem:[%s279 + $0x68] sm:%s271] %v332
                $region59: #{cvt_forward.9} parent=46 // loop_footer
                  %s277 = sadd.s32 1, %s273
                $region60: #{cvt_forward.9} parent=46 // loop_footer_branch
                  %272 = sbr.rel target = $region56
                $region61: #{cvt_forward.9} parent=46 // loop_exit
                  _
              $region47: #{cvt_forward.9} parent=31 // pred_fallthru
                _
            $region32: #{cvt_forward.9} parent=27 // pred_fallthru
              _
            // Predicated region
            $region33: #{cvt_forward.9} parent=27 // pred_check
              _
            $region34: #{cvt_forward.9} parent=27 // pred_check_branch
              %195 = sbr.rel (0) target = $region36
            $region35: #{cvt_forward.9} parent=27 // pred_region
              %s197 = ssub.s32 16, 1
              loop: start=0, step=1, limit=1
              $region37: #{cvt_forward.9} parent=35 // loop_pre_header
                _
              $region38: #{cvt_forward.9} parent=35 // loop_header
                %s199 = sphi 0, %s203
                %p200 = scmp.ge.s32.totalorder %s199, 1
                %s204 = sphi %s189, %s189
                %s205 = sphi %s184, %s184
              $region39: #{cvt_forward.9} parent=35 // loop_header_branch
                %202 = sbr.rel (%p200) target = $region43
              $region40: #{cvt_forward.9} parent=35 // loop_body
                %v206 = vld [vmem:[%s204] sm:%s197]
                %207 = vst [vmem:[%s205] sm:%s197] %v206
                %v208 = vld [vmem:[%s204 + $0x4] sm:%s197]
                %209 = vst [vmem:[%s205 + $0x4] sm:%s197] %v208
                %v210 = vld [vmem:[%s204 + $0x8] sm:%s197]
                %211 = vst [vmem:[%s205 + $0x8] sm:%s197] %v210
                %v212 = vld [vmem:[%s204 + $0xc] sm:%s197]
                %213 = vst [vmem:[%s205 + $0xc] sm:%s197] %v212
                %v214 = vld [vmem:[%s204 + $0x10] sm:%s197]
                %215 = vst [vmem:[%s205 + $0x10] sm:%s197] %v214
                %v216 = vld [vmem:[%s204 + $0x14] sm:%s197]
                %217 = vst [vmem:[%s205 + $0x14] sm:%s197] %v216
                %v218 = vld [vmem:[%s204 + $0x18] sm:%s197]
                %219 = vst [vmem:[%s205 + $0x18] sm:%s197] %v218
                %v220 = vld [vmem:[%s204 + $0x1c] sm:%s197]
                %221 = vst [vmem:[%s205 + $0x1c] sm:%s197] %v220
                %v222 = vld [vmem:[%s204 + $0x20] sm:%s197]
                %223 = vst [vmem:[%s205 + $0x20] sm:%s197] %v222
                %v224 = vld [vmem:[%s204 + $0x48] sm:%s197]
                %225 = vst [vmem:[%s205 + $0x24] sm:%s197] %v224
                %v226 = vld [vmem:[%s204 + $0x4c] sm:%s197]
                %227 = vst [vmem:[%s205 + $0x28] sm:%s197] %v226
                %v228 = vld [vmem:[%s204 + $0x50] sm:%s197]
                %229 = vst [vmem:[%s205 + $0x2c] sm:%s197] %v228
                %v230 = vld [vmem:[%s204 + $0x54] sm:%s197]
                %231 = vst [vmem:[%s205 + $0x30] sm:%s197] %v230
                %v232 = vld [vmem:[%s204 + $0x58] sm:%s197]
                %233 = vst [vmem:[%s205 + $0x34] sm:%s197] %v232
                %v234 = vld [vmem:[%s204 + $0x5c] sm:%s197]
                %235 = vst [vmem:[%s205 + $0x38] sm:%s197] %v234
                %v236 = vld [vmem:[%s204 + $0x60] sm:%s197]
                %237 = vst [vmem:[%s205 + $0x3c] sm:%s197] %v236
                %v238 = vld [vmem:[%s204 + $0x64] sm:%s197]
                %239 = vst [vmem:[%s205 + $0x40] sm:%s197] %v238
                %v240 = vld [vmem:[%s204 + $0x68] sm:%s197]
                %241 = vst [vmem:[%s205 + $0x44] sm:%s197] %v240
                %v242 = vld [vmem:[%s204 + $0x90] sm:%s197]
                %243 = vst [vmem:[%s205 + $0x48] sm:%s197] %v242
                %v244 = vld [vmem:[%s204 + $0x94] sm:%s197]
                %245 = vst [vmem:[%s205 + $0x4c] sm:%s197] %v244
                %v246 = vld [vmem:[%s204 + $0x98] sm:%s197]
                %247 = vst [vmem:[%s205 + $0x50] sm:%s197] %v246
                %v248 = vld [vmem:[%s204 + $0x9c] sm:%s197]
                %249 = vst [vmem:[%s205 + $0x54] sm:%s197] %v248
                %v250 = vld [vmem:[%s204 + $0xa0] sm:%s197]
                %251 = vst [vmem:[%s205 + $0x58] sm:%s197] %v250
                %v252 = vld [vmem:[%s204 + $0xa4] sm:%s197]
                %253 = vst [vmem:[%s205 + $0x5c] sm:%s197] %v252
                %v254 = vld [vmem:[%s204 + $0xa8] sm:%s197]
                %255 = vst [vmem:[%s205 + $0x60] sm:%s197] %v254
                %v256 = vld [vmem:[%s204 + $0xac] sm:%s197]
                %257 = vst [vmem:[%s205 + $0x64] sm:%s197] %v256
                %v258 = vld [vmem:[%s204 + $0xb0] sm:%s197]
                %259 = vst [vmem:[%s205 + $0x68] sm:%s197] %v258
              $region41: #{cvt_forward.9} parent=35 // loop_footer
                %s203 = sadd.s32 1, %s199
              $region42: #{cvt_forward.9} parent=35 // loop_footer_branch
                %198 = sbr.rel target = $region38
              $region43: #{cvt_forward.9} parent=35 // loop_exit
                _
            $region36: #{cvt_forward.9} parent=27 // pred_fallthru
              _
          $region28: #{cvt_forward.9} parent=23 // pred_fallthru
            _
          %334 = vnop
        $region24: #{cvt_forward.9} parent=19 // pred_fallthru
          _
      $region20: #{cvt_forward.9} parent=5 // pred_fallthru
        _
      %p335 = scmp.le.s32.totalorder 1, %s11
      %p336 = scmp.lt.s32.totalorder %s11, 3
      %p337 = pnand %p335, %p336
      %p338 = pneg %p337
      // Predicated region
      $region62: #{cvt_forward.9} parent=5 // pred_check
        _
      $region63: #{cvt_forward.9} parent=5 // pred_check_branch
        %340 = sbr.rel (%p337) target = $region65
      $region64: #{cvt_forward.9} parent=5 // pred_region
        %s341 = ssub.s32 %s11, 1
        %s342 = sand.u32 %s38, 1
        %s343 = sand.u32 %s38, 1
        %s344 = smul.addr %s343, 108
        %s345 = scalar_lea.vmem [#allocation2], %s344
        // Predicated region
        $region66: #{cvt_forward.9} parent=64 // pred_check
          %p346 = pneg %p51
        $region67: #{cvt_forward.9} parent=64 // pred_check_branch
          %348 = sbr.rel (%p346) target = $region69
        $region68: #{cvt_forward.9} parent=64 // pred_region
          _
        $region69: #{cvt_forward.9} parent=64 // pred_fallthru
          _
        %s349 = sand.u32 %s38, 1
        %s350 = sand.u32 %s38, 1
        %s351 = smul.addr %s350, 108
        %s352 = scalar_lea.vmem [#allocation2], %s351
        %p353 = pneg %p51
        %p354 = pneg %p48
        %p355 = pneg %p72
        %p356 = pneg %p69
        %p357 = pneg %p100
        %p358 = pneg %p97
        %s359 = smul.u32 9, %s21
        %p360 = scmp.lt.s32.totalorder %s20, 1
        %s361 = scalar_select %p360, %s20, 1
        %p362 = scmp.lt.s32.totalorder %s359, 8
        %s363 = scalar_select %p362, %s359, 8
        %s364 = smul.addr %s361, 36
        %s365 = sadd.s32 %s363, %s364
        %s366 = smul.addr %s365, 4
        %s367 = scalar_lea.vmem %s2, %s366
        %p368 = pneg %p128
        %p369 = pneg %p125
        %s370 = smul.u32 9, %s21
        %p371 = scmp.lt.s32.totalorder %s20, 1
        %s372 = scalar_select %p371, %s20, 1
        %p373 = scmp.lt.s32.totalorder %s370, 8
        %s374 = scalar_select %p373, %s370, 8
        %s375 = smul.addr %s372, 36
        %s376 = sadd.s32 %s374, %s375
        %s377 = smul.addr %s376, 4
        %s378 = scalar_lea.vmem %s3, %s377
        %p379 = pneg %p156
        %p380 = pneg %p153
        %s381 = smul.u32 9, %s21
        %p382 = scmp.lt.s32.totalorder %s20, 1
        %s383 = scalar_select %p382, %s20, 1
        %p384 = scmp.lt.s32.totalorder %s381, 8
        %s385 = scalar_select %p384, %s381, 8
        %s386 = smul.addr %s383, 36
        %s387 = sadd.s32 %s385, %s386
        %s388 = smul.addr %s387, 4
        %s389 = scalar_lea.vmem %s4, %s388
        %s390 = smul.u32 9, %s21
        %s391 = smul.u32 9, %s21
        %p392 = scmp.lt.s32.totalorder %s20, 1
        %s393 = scalar_select %p392, %s20, 1
        %p394 = scmp.lt.s32.totalorder %s391, 8
        %s395 = scalar_select %p394, %s391, 8
        %s396 = smul.addr %s393, 36
        %s397 = sadd.s32 %s395, %s396
        %s398 = smul.addr %s397, 4
        %s399 = scalar_lea.vmem %s2, %s398
        %s400 = smul.u32 9, %s21
        %s401 = smul.u32 9, %s21
        %p402 = scmp.lt.s32.totalorder %s20, 1
        %s403 = scalar_select %p402, %s20, 1
        %p404 = scmp.lt.s32.totalorder %s401, 8
        %s405 = scalar_select %p404, %s401, 8
        %s406 = smul.addr %s403, 36
        %s407 = sadd.s32 %s405, %s406
        %s408 = smul.addr %s407, 4
        %s409 = scalar_lea.vmem %s3, %s408
        %s410 = smul.u32 9, %s21
        %s411 = smul.u32 9, %s21
        %p412 = scmp.lt.s32.totalorder %s20, 1
        %s413 = scalar_select %p412, %s20, 1
        %p414 = scmp.lt.s32.totalorder %s411, 8
        %s415 = scalar_select %p414, %s411, 8
        %s416 = smul.addr %s413, 36
        %s417 = sadd.s32 %s415, %s416
        %s418 = smul.addr %s417, 4
        %s419 = scalar_lea.vmem %s4, %s418
        %s420 = smul.u32 9, %s21
        %v422 = vld [vmem:[%s345] sm:$0xf]
        %v423 = vld [vmem:[%s345 + $0x4] sm:$0xf]
        %v424 = vld [vmem:[%s345 + $0x8] sm:$0xf]
        %v425 = vld [vmem:[%s345 + $0xc] sm:$0xf]
        %v426 = vld [vmem:[%s345 + $0x10] sm:$0xf]
        %v427 = vld [vmem:[%s345 + $0x14] sm:$0xf]
        %v428 = vld [vmem:[%s345 + $0x18] sm:$0xf]
        %v429 = vld [vmem:[%s345 + $0x1c] sm:$0xf]
        %v430 = vld [vmem:[%s345 + $0x20] sm:$0xf]
        %v431 = vld [vmem:[%s1] sm:$0xf]
        %v432 = vld [vmem:[%s1 + $0x4] sm:$0xf]
        %v433 = vld [vmem:[%s1 + $0x8] sm:$0xf]
        %v434 = vld [vmem:[%s1 + $0xc] sm:$0xf]
        %v444 = vunpack.c.l.b16 %v422
        %v445 = vunpack.c.l.b16 %v423
        %v446 = vunpack.c.l.b16 %v424
        %v447 = vunpack.c.l.b16 %v425
        %v448 = vunpack.c.l.b16 %v426
        %v449 = vunpack.c.l.b16 %v427
        %v450 = vunpack.c.l.b16 %v428
        %v451 = vunpack.c.l.b16 %v429
        %v452 = vunpack.c.l.b16 %v430
        %v453 = vpack.c.b16 %v445, %v444
        %v454 = vpack.c.b16 %v447, %v446
        %v455 = vpack.c.b16 %v449, %v448
        %v456 = vpack.c.b16 %v451, %v450
        %v457 = vpack.c.b16 %v452, %v452
        %v462 = vunpack.c.l.b16 %v431
        %v463 = vunpack.c.l.b16 %v432
        %v464 = vunpack.c.l.b16 %v433
        %v465 = vunpack.c.l.b16 %v434
        %v466 = vpack.c.b16 %v463, %v462
        %v467 = vpack.c.b16 %v465, %v464
        %vm470 = vcmask 261120
        %v472 = vsel %vm470, %v453, 0
        %v475 = vsel %vm470, %v454, 0
        %v478 = vsel %vm470, %v455, 0
        %v481 = vsel %vm470, %v456, 0
        %v484 = vsel %vm470, %v457, 0
        %486 = vmatpush.bf16.msra.mxu0 0
        %487 = vmatpush.bf16.msra.mxu0 0
        %488 = vmatpush.bf16.msra.mxu0 0
        %489 = vmatpush.bf16.msra.mxu0 0
        %490 = vmatpush.bf16.msra.mxu0 0
        %491 = vmatpush.bf16.msra.mxu0 0
        %492 = vmatpush.bf16.msra.mxu0 %v467
        %493 = vmatpush.bf16.msra.mxu0 %v466
        %494 = vmatmul.bf16.gmra.mxu0 %v472
        %v495 = vpop.f32.mrf.mxu0
        %v496 = vadd.f32 0.0, %v495
        %v497 = vpop.f32.mrf.mxu0
        %v498 = vadd.f32 0.0, %v497
        %499 = vmatmul.bf16.gmra.mxu0 %v475
        %v500 = vpop.f32.mrf.mxu0
        %v501 = vadd.f32 0.0, %v500
        %v502 = vpop.f32.mrf.mxu0
        %v503 = vadd.f32 0.0, %v502
        %504 = vmatmul.bf16.gmra.mxu0 %v478
        %v505 = vpop.f32.mrf.mxu0
        %v506 = vadd.f32 0.0, %v505
        %v507 = vpop.f32.mrf.mxu0
        %v508 = vadd.f32 0.0, %v507
        %509 = vmatmul.bf16.gmra.mxu0 %v481
        %v510 = vpop.f32.mrf.mxu0
        %v511 = vadd.f32 0.0, %v510
        %v512 = vpop.f32.mrf.mxu0
        %v513 = vadd.f32 0.0, %v512
        %514 = vmatmul.bf16.gmra.mxu0 %v484
        %v515 = vpop.f32.mrf.mxu0
        %v516 = vadd.f32 0.0, %v515
        %v517 = vpop.f32.mrf.mxu0
        %518 = vdwg.mxu0
        %v519 = vpack.c.bf16 %v496, %v496
        %v520 = vpack.c.bf16 %v498, %v498
        %v521 = vpack.c.bf16 %v501, %v501
        %v522 = vpack.c.bf16 %v503, %v503
        %v523 = vpack.c.bf16 %v506, %v506
        %v524 = vpack.c.bf16 %v508, %v508
        %v525 = vpack.c.bf16 %v511, %v511
        %v526 = vpack.c.bf16 %v513, %v513
        %v527 = vpack.c.bf16 %v516, %v516
        %vm528 = vcmask 60416
        %529 = vst.msk [vmem:[%s399] sm:$0xf] %vm528, %v519
        %530 = vst.msk [vmem:[%s399 + $0x4] sm:$0xf] %vm528, %v520
        %531 = vst.msk [vmem:[%s399 + $0x8] sm:$0xf] %vm528, %v521
        %532 = vst.msk [vmem:[%s399 + $0xc] sm:$0xf] %vm528, %v522
        %533 = vst.msk [vmem:[%s399 + $0x10] sm:$0xf] %vm528, %v523
        %534 = vst.msk [vmem:[%s399 + $0x14] sm:$0xf] %vm528, %v524
        %535 = vst.msk [vmem:[%s399 + $0x18] sm:$0xf] %vm528, %v525
        %536 = vst.msk [vmem:[%s399 + $0x1c] sm:$0xf] %vm528, %v526
        %537 = vst.msk [vmem:[%s399 + $0x20] sm:$0xf] %vm528, %v527
        %547 = vrot.lane.b32.xlu0 %v519, 120
        %v548 = vpop.permute.xlu0 %547
        %549 = vrot.lane.b32.xlu0 %v520, 120
        %v550 = vpop.permute.xlu0 %549
        %551 = vrot.lane.b32.xlu0 %v521, 120
        %v552 = vpop.permute.xlu0 %551
        %553 = vrot.lane.b32.xlu0 %v522, 120
        %v554 = vpop.permute.xlu0 %553
        %555 = vrot.lane.b32.xlu0 %v523, 120
        %v556 = vpop.permute.xlu0 %555
        %557 = vrot.lane.b32.xlu0 %v524, 120
        %v558 = vpop.permute.xlu0 %557
        %559 = vrot.lane.b32.xlu0 %v525, 120
        %v560 = vpop.permute.xlu0 %559
        %561 = vrot.lane.b32.xlu0 %v526, 120
        %v562 = vpop.permute.xlu0 %561
        %563 = vrot.lane.b32.xlu0 %v527, 120
        %v564 = vpop.permute.xlu0 %563
        %s574 = scalar_lea.vmem %s399, 36
        %575 = vst.msk [vmem:[%s574] sm:$0xf] %vm528, %v548
        %576 = vst.msk [vmem:[%s574 + $0x4] sm:$0xf] %vm528, %v550
        %577 = vst.msk [vmem:[%s574 + $0x8] sm:$0xf] %vm528, %v552
        %578 = vst.msk [vmem:[%s574 + $0xc] sm:$0xf] %vm528, %v554
        %579 = vst.msk [vmem:[%s574 + $0x10] sm:$0xf] %vm528, %v556
        %580 = vst.msk [vmem:[%s574 + $0x14] sm:$0xf] %vm528, %v558
        %581 = vst.msk [vmem:[%s574 + $0x18] sm:$0xf] %vm528, %v560
        %582 = vst.msk [vmem:[%s574 + $0x1c] sm:$0xf] %vm528, %v562
        %583 = vst.msk [vmem:[%s574 + $0x20] sm:$0xf] %vm528, %v564
        %584 = vrot.lane.b32.xlu0 %v519, 112
        %v585 = vpop.permute.xlu0 %584
        %586 = vrot.lane.b32.xlu0 %v520, 112
        %v587 = vpop.permute.xlu0 %586
        %588 = vrot.lane.b32.xlu0 %v521, 112
        %v589 = vpop.permute.xlu0 %588
        %590 = vrot.lane.b32.xlu0 %v522, 112
        %v591 = vpop.permute.xlu0 %590
        %592 = vrot.lane.b32.xlu0 %v523, 112
        %v593 = vpop.permute.xlu0 %592
        %594 = vrot.lane.b32.xlu0 %v524, 112
        %v595 = vpop.permute.xlu0 %594
        %596 = vrot.lane.b32.xlu0 %v525, 112
        %v597 = vpop.permute.xlu0 %596
        %598 = vrot.lane.b32.xlu0 %v526, 112
        %v599 = vpop.permute.xlu0 %598
        %600 = vrot.lane.b32.xlu0 %v527, 112
        %v601 = vpop.permute.xlu0 %600
        %s611 = scalar_lea.vmem %s399, 72
        %612 = vst.msk [vmem:[%s611] sm:$0xf] %vm528, %v585
        %613 = vst.msk [vmem:[%s611 + $0x4] sm:$0xf] %vm528, %v587
        %614 = vst.msk [vmem:[%s611 + $0x8] sm:$0xf] %vm528, %v589
        %615 = vst.msk [vmem:[%s611 + $0xc] sm:$0xf] %vm528, %v591
        %616 = vst.msk [vmem:[%s611 + $0x10] sm:$0xf] %vm528, %v593
        %617 = vst.msk [vmem:[%s611 + $0x14] sm:$0xf] %vm528, %v595
        %618 = vst.msk [vmem:[%s611 + $0x18] sm:$0xf] %vm528, %v597
        %619 = vst.msk [vmem:[%s611 + $0x1c] sm:$0xf] %vm528, %v599
        %620 = vst.msk [vmem:[%s611 + $0x20] sm:$0xf] %vm528, %v601
        %621 = vrot.lane.b32.xlu0 %v519, 104
        %v622 = vpop.permute.xlu0 %621
        %623 = vrot.lane.b32.xlu0 %v520, 104
        %v624 = vpop.permute.xlu0 %623
        %625 = vrot.lane.b32.xlu0 %v521, 104
        %v626 = vpop.permute.xlu0 %625
        %627 = vrot.lane.b32.xlu0 %v522, 104
        %v628 = vpop.permute.xlu0 %627
        %629 = vrot.lane.b32.xlu0 %v523, 104
        %v630 = vpop.permute.xlu0 %629
        %631 = vrot.lane.b32.xlu0 %v524, 104
        %v632 = vpop.permute.xlu0 %631
        %633 = vrot.lane.b32.xlu0 %v525, 104
        %v634 = vpop.permute.xlu0 %633
        %635 = vrot.lane.b32.xlu0 %v526, 104
        %v636 = vpop.permute.xlu0 %635
        %637 = vrot.lane.b32.xlu0 %v527, 104
        %v638 = vpop.permute.xlu0 %637
        %s648 = scalar_lea.vmem %s399, 108
        %649 = vst.msk [vmem:[%s648] sm:$0xf] %vm528, %v622
        %650 = vst.msk [vmem:[%s648 + $0x4] sm:$0xf] %vm528, %v624
        %651 = vst.msk [vmem:[%s648 + $0x8] sm:$0xf] %vm528, %v626
        %652 = vst.msk [vmem:[%s648 + $0xc] sm:$0xf] %vm528, %v628
        %653 = vst.msk [vmem:[%s648 + $0x10] sm:$0xf] %vm528, %v630
        %654 = vst.msk [vmem:[%s648 + $0x14] sm:$0xf] %vm528, %v632
        %655 = vst.msk [vmem:[%s648 + $0x18] sm:$0xf] %vm528, %v634
        %656 = vst.msk [vmem:[%s648 + $0x1c] sm:$0xf] %vm528, %v636
        %657 = vst.msk [vmem:[%s648 + $0x20] sm:$0xf] %vm528, %v638
        %s658 = scalar_lea.vmem %s345, 36 [#allocation2]
        %v659 = vld [vmem:[%s658] sm:$0xf]
        %v660 = vld [vmem:[%s658 + $0x4] sm:$0xf]
        %v661 = vld [vmem:[%s658 + $0x8] sm:$0xf]
        %v662 = vld [vmem:[%s658 + $0xc] sm:$0xf]
        %v663 = vld [vmem:[%s658 + $0x10] sm:$0xf]
        %v664 = vld [vmem:[%s658 + $0x14] sm:$0xf]
        %v665 = vld [vmem:[%s658 + $0x18] sm:$0xf]
        %v666 = vld [vmem:[%s658 + $0x1c] sm:$0xf]
        %v667 = vld [vmem:[%s658 + $0x20] sm:$0xf]
        %s668 = scalar_lea.vmem %s1, 16
        %v669 = vld [vmem:[%s668] sm:$0xf]
        %v670 = vld [vmem:[%s668 + $0x4] sm:$0xf]
        %v671 = vld [vmem:[%s668 + $0x8] sm:$0xf]
        %v672 = vld [vmem:[%s668 + $0xc] sm:$0xf]
        %v682 = vunpack.c.l.b16 %v659
        %v683 = vunpack.c.l.b16 %v660
        %v684 = vunpack.c.l.b16 %v661
        %v685 = vunpack.c.l.b16 %v662
        %v686 = vunpack.c.l.b16 %v663
        %v687 = vunpack.c.l.b16 %v664
        %v688 = vunpack.c.l.b16 %v665
        %v689 = vunpack.c.l.b16 %v666
        %v690 = vunpack.c.l.b16 %v667
        %v691 = vpack.c.b16 %v683, %v682
        %v692 = vpack.c.b16 %v685, %v684
        %v693 = vpack.c.b16 %v687, %v686
        %v694 = vpack.c.b16 %v689, %v688
        %v695 = vpack.c.b16 %v690, %v690
        %v700 = vunpack.c.l.b16 %v669
        %v701 = vunpack.c.l.b16 %v670
        %v702 = vunpack.c.l.b16 %v671
        %v703 = vunpack.c.l.b16 %v672
        %v704 = vpack.c.b16 %v701, %v700
        %v705 = vpack.c.b16 %v703, %v702
        %v709 = vsel %vm470, %v691, 0
        %v712 = vsel %vm470, %v692, 0
        %v715 = vsel %vm470, %v693, 0
        %v718 = vsel %vm470, %v694, 0
        %v721 = vsel %vm470, %v695, 0
        %723 = vmatpush.bf16.msra.mxu0 0
        %724 = vmatpush.bf16.msra.mxu0 0
        %725 = vmatpush.bf16.msra.mxu0 0
        %726 = vmatpush.bf16.msra.mxu0 0
        %727 = vmatpush.bf16.msra.mxu0 0
        %728 = vmatpush.bf16.msra.mxu0 0
        %729 = vmatpush.bf16.msra.mxu0 %v705
        %730 = vmatpush.bf16.msra.mxu0 %v704
        %731 = vmatmul.bf16.gmra.mxu0 %v709
        %v732 = vpop.f32.mrf.mxu0
        %v733 = vadd.f32 0.0, %v732
        %v734 = vpop.f32.mrf.mxu0
        %v735 = vadd.f32 0.0, %v734
        %736 = vmatmul.bf16.gmra.mxu0 %v712
        %v737 = vpop.f32.mrf.mxu0
        %v738 = vadd.f32 0.0, %v737
        %v739 = vpop.f32.mrf.mxu0
        %v740 = vadd.f32 0.0, %v739
        %741 = vmatmul.bf16.gmra.mxu0 %v715
        %v742 = vpop.f32.mrf.mxu0
        %v743 = vadd.f32 0.0, %v742
        %v744 = vpop.f32.mrf.mxu0
        %v745 = vadd.f32 0.0, %v744
        %746 = vmatmul.bf16.gmra.mxu0 %v718
        %v747 = vpop.f32.mrf.mxu0
        %v748 = vadd.f32 0.0, %v747
        %v749 = vpop.f32.mrf.mxu0
        %v750 = vadd.f32 0.0, %v749
        %751 = vmatmul.bf16.gmra.mxu0 %v721
        %v752 = vpop.f32.mrf.mxu0
        %v753 = vadd.f32 0.0, %v752
        %v754 = vpop.f32.mrf.mxu0
        %755 = vdwg.mxu0
        %v756 = vpack.c.bf16 %v733, %v733
        %v757 = vpack.c.bf16 %v735, %v735
        %v758 = vpack.c.bf16 %v738, %v738
        %v759 = vpack.c.bf16 %v740, %v740
        %v760 = vpack.c.bf16 %v743, %v743
        %v761 = vpack.c.bf16 %v745, %v745
        %v762 = vpack.c.bf16 %v748, %v748
        %v763 = vpack.c.bf16 %v750, %v750
        %v764 = vpack.c.bf16 %v753, %v753
        %765 = vst.msk [vmem:[%s409] sm:$0xf] %vm528, %v756
        %766 = vst.msk [vmem:[%s409 + $0x4] sm:$0xf] %vm528, %v757
        %767 = vst.msk [vmem:[%s409 + $0x8] sm:$0xf] %vm528, %v758
        %768 = vst.msk [vmem:[%s409 + $0xc] sm:$0xf] %vm528, %v759
        %769 = vst.msk [vmem:[%s409 + $0x10] sm:$0xf] %vm528, %v760
        %770 = vst.msk [vmem:[%s409 + $0x14] sm:$0xf] %vm528, %v761
        %771 = vst.msk [vmem:[%s409 + $0x18] sm:$0xf] %vm528, %v762
        %772 = vst.msk [vmem:[%s409 + $0x1c] sm:$0xf] %vm528, %v763
        %773 = vst.msk [vmem:[%s409 + $0x20] sm:$0xf] %vm528, %v764
        %783 = vrot.lane.b32.xlu0 %v756, 120
        %v784 = vpop.permute.xlu0 %783
        %785 = vrot.lane.b32.xlu0 %v757, 120
        %v786 = vpop.permute.xlu0 %785
        %787 = vrot.lane.b32.xlu0 %v758, 120
        %v788 = vpop.permute.xlu0 %787
        %789 = vrot.lane.b32.xlu0 %v759, 120
        %v790 = vpop.permute.xlu0 %789
        %791 = vrot.lane.b32.xlu0 %v760, 120
        %v792 = vpop.permute.xlu0 %791
        %793 = vrot.lane.b32.xlu0 %v761, 120
        %v794 = vpop.permute.xlu0 %793
        %795 = vrot.lane.b32.xlu0 %v762, 120
        %v796 = vpop.permute.xlu0 %795
        %797 = vrot.lane.b32.xlu0 %v763, 120
        %v798 = vpop.permute.xlu0 %797
        %799 = vrot.lane.b32.xlu0 %v764, 120
        %v800 = vpop.permute.xlu0 %799
        %s810 = scalar_lea.vmem %s409, 36
        %811 = vst.msk [vmem:[%s810] sm:$0xf] %vm528, %v784
        %812 = vst.msk [vmem:[%s810 + $0x4] sm:$0xf] %vm528, %v786
        %813 = vst.msk [vmem:[%s810 + $0x8] sm:$0xf] %vm528, %v788
        %814 = vst.msk [vmem:[%s810 + $0xc] sm:$0xf] %vm528, %v790
        %815 = vst.msk [vmem:[%s810 + $0x10] sm:$0xf] %vm528, %v792
        %816 = vst.msk [vmem:[%s810 + $0x14] sm:$0xf] %vm528, %v794
        %817 = vst.msk [vmem:[%s810 + $0x18] sm:$0xf] %vm528, %v796
        %818 = vst.msk [vmem:[%s810 + $0x1c] sm:$0xf] %vm528, %v798
        %819 = vst.msk [vmem:[%s810 + $0x20] sm:$0xf] %vm528, %v800
        %820 = vrot.lane.b32.xlu0 %v756, 112
        %v821 = vpop.permute.xlu0 %820
        %822 = vrot.lane.b32.xlu0 %v757, 112
        %v823 = vpop.permute.xlu0 %822
        %824 = vrot.lane.b32.xlu0 %v758, 112
        %v825 = vpop.permute.xlu0 %824
        %826 = vrot.lane.b32.xlu0 %v759, 112
        %v827 = vpop.permute.xlu0 %826
        %828 = vrot.lane.b32.xlu0 %v760, 112
        %v829 = vpop.permute.xlu0 %828
        %830 = vrot.lane.b32.xlu0 %v761, 112
        %v831 = vpop.permute.xlu0 %830
        %832 = vrot.lane.b32.xlu0 %v762, 112
        %v833 = vpop.permute.xlu0 %832
        %834 = vrot.lane.b32.xlu0 %v763, 112
        %v835 = vpop.permute.xlu0 %834
        %836 = vrot.lane.b32.xlu0 %v764, 112
        %v837 = vpop.permute.xlu0 %836
        %s847 = scalar_lea.vmem %s409, 72
        %848 = vst.msk [vmem:[%s847] sm:$0xf] %vm528, %v821
        %849 = vst.msk [vmem:[%s847 + $0x4] sm:$0xf] %vm528, %v823
        %850 = vst.msk [vmem:[%s847 + $0x8] sm:$0xf] %vm528, %v825
        %851 = vst.msk [vmem:[%s847 + $0xc] sm:$0xf] %vm528, %v827
        %852 = vst.msk [vmem:[%s847 + $0x10] sm:$0xf] %vm528, %v829
        %853 = vst.msk [vmem:[%s847 + $0x14] sm:$0xf] %vm528, %v831
        %854 = vst.msk [vmem:[%s847 + $0x18] sm:$0xf] %vm528, %v833
        %855 = vst.msk [vmem:[%s847 + $0x1c] sm:$0xf] %vm528, %v835
        %856 = vst.msk [vmem:[%s847 + $0x20] sm:$0xf] %vm528, %v837
        %857 = vrot.lane.b32.xlu0 %v756, 104
        %v858 = vpop.permute.xlu0 %857
        %859 = vrot.lane.b32.xlu0 %v757, 104
        %v860 = vpop.permute.xlu0 %859
        %861 = vrot.lane.b32.xlu0 %v758, 104
        %v862 = vpop.permute.xlu0 %861
        %863 = vrot.lane.b32.xlu0 %v759, 104
        %v864 = vpop.permute.xlu0 %863
        %865 = vrot.lane.b32.xlu0 %v760, 104
        %v866 = vpop.permute.xlu0 %865
        %867 = vrot.lane.b32.xlu0 %v761, 104
        %v868 = vpop.permute.xlu0 %867
        %869 = vrot.lane.b32.xlu0 %v762, 104
        %v870 = vpop.permute.xlu0 %869
        %871 = vrot.lane.b32.xlu0 %v763, 104
        %v872 = vpop.permute.xlu0 %871
        %873 = vrot.lane.b32.xlu0 %v764, 104
        %v874 = vpop.permute.xlu0 %873
        %s884 = scalar_lea.vmem %s409, 108
        %885 = vst.msk [vmem:[%s884] sm:$0xf] %vm528, %v858
        %886 = vst.msk [vmem:[%s884 + $0x4] sm:$0xf] %vm528, %v860
        %887 = vst.msk [vmem:[%s884 + $0x8] sm:$0xf] %vm528, %v862
        %888 = vst.msk [vmem:[%s884 + $0xc] sm:$0xf] %vm528, %v864
        %889 = vst.msk [vmem:[%s884 + $0x10] sm:$0xf] %vm528, %v866
        %890 = vst.msk [vmem:[%s884 + $0x14] sm:$0xf] %vm528, %v868
        %891 = vst.msk [vmem:[%s884 + $0x18] sm:$0xf] %vm528, %v870
        %892 = vst.msk [vmem:[%s884 + $0x1c] sm:$0xf] %vm528, %v872
        %893 = vst.msk [vmem:[%s884 + $0x20] sm:$0xf] %vm528, %v874
        %s894 = scalar_lea.vmem %s345, 72 [#allocation2]
        %v895 = vld [vmem:[%s894] sm:$0xf]
        %v896 = vld [vmem:[%s894 + $0x4] sm:$0xf]
        %v897 = vld [vmem:[%s894 + $0x8] sm:$0xf]
        %v898 = vld [vmem:[%s894 + $0xc] sm:$0xf]
        %v899 = vld [vmem:[%s894 + $0x10] sm:$0xf]
        %v900 = vld [vmem:[%s894 + $0x14] sm:$0xf]
        %v901 = vld [vmem:[%s894 + $0x18] sm:$0xf]
        %v902 = vld [vmem:[%s894 + $0x1c] sm:$0xf]
        %v903 = vld [vmem:[%s894 + $0x20] sm:$0xf]
        %s904 = scalar_lea.vmem %s1, 32
        %v905 = vld [vmem:[%s904] sm:$0xf]
        %v906 = vld [vmem:[%s904 + $0x4] sm:$0xf]
        %v907 = vld [vmem:[%s904 + $0x8] sm:$0xf]
        %v908 = vld [vmem:[%s904 + $0xc] sm:$0xf]
        %v918 = vunpack.c.l.b16 %v895
        %v919 = vunpack.c.l.b16 %v896
        %v920 = vunpack.c.l.b16 %v897
        %v921 = vunpack.c.l.b16 %v898
        %v922 = vunpack.c.l.b16 %v899
        %v923 = vunpack.c.l.b16 %v900
        %v924 = vunpack.c.l.b16 %v901
        %v925 = vunpack.c.l.b16 %v902
        %v926 = vunpack.c.l.b16 %v903
        %v927 = vpack.c.b16 %v919, %v918
        %v928 = vpack.c.b16 %v921, %v920
        %v929 = vpack.c.b16 %v923, %v922
        %v930 = vpack.c.b16 %v925, %v924
        %v931 = vpack.c.b16 %v926, %v926
        %v936 = vunpack.c.l.b16 %v905
        %v937 = vunpack.c.l.b16 %v906
        %v938 = vunpack.c.l.b16 %v907
        %v939 = vunpack.c.l.b16 %v908
        %v940 = vpack.c.b16 %v937, %v936
        %v941 = vpack.c.b16 %v939, %v938
        %v945 = vsel %vm470, %v927, 0
        %v948 = vsel %vm470, %v928, 0
        %v951 = vsel %vm470, %v929, 0
        %v954 = vsel %vm470, %v930, 0
        %v957 = vsel %vm470, %v931, 0
        %959 = vmatpush.bf16.msra.mxu0 0
        %960 = vmatpush.bf16.msra.mxu0 0
        %961 = vmatpush.bf16.msra.mxu0 0
        %962 = vmatpush.bf16.msra.mxu0 0
        %963 = vmatpush.bf16.msra.mxu0 0
        %964 = vmatpush.bf16.msra.mxu0 0
        %965 = vmatpush.bf16.msra.mxu0 %v941
        %966 = vmatpush.bf16.msra.mxu0 %v940
        %967 = vmatmul.bf16.gmra.mxu0 %v945
        %v968 = vpop.f32.mrf.mxu0
        %v969 = vadd.f32 0.0, %v968
        %v970 = vpop.f32.mrf.mxu0
        %v971 = vadd.f32 0.0, %v970
        %972 = vmatmul.bf16.gmra.mxu0 %v948
        %v973 = vpop.f32.mrf.mxu0
        %v974 = vadd.f32 0.0, %v973
        %v975 = vpop.f32.mrf.mxu0
        %v976 = vadd.f32 0.0, %v975
        %977 = vmatmul.bf16.gmra.mxu0 %v951
        %v978 = vpop.f32.mrf.mxu0
        %v979 = vadd.f32 0.0, %v978
        %v980 = vpop.f32.mrf.mxu0
        %v981 = vadd.f32 0.0, %v980
        %982 = vmatmul.bf16.gmra.mxu0 %v954
        %v983 = vpop.f32.mrf.mxu0
        %v984 = vadd.f32 0.0, %v983
        %v985 = vpop.f32.mrf.mxu0
        %v986 = vadd.f32 0.0, %v985
        %987 = vmatmul.bf16.gmra.mxu0 %v957
        %v988 = vpop.f32.mrf.mxu0
        %v989 = vadd.f32 0.0, %v988
        %v990 = vpop.f32.mrf.mxu0
        %991 = vdwg.mxu0
        %v992 = vpack.c.bf16 %v969, %v969
        %v993 = vpack.c.bf16 %v971, %v971
        %v994 = vpack.c.bf16 %v974, %v974
        %v995 = vpack.c.bf16 %v976, %v976
        %v996 = vpack.c.bf16 %v979, %v979
        %v997 = vpack.c.bf16 %v981, %v981
        %v998 = vpack.c.bf16 %v984, %v984
        %v999 = vpack.c.bf16 %v986, %v986
        %v1000 = vpack.c.bf16 %v989, %v989
        %1001 = vst.msk [vmem:[%s419] sm:$0xf] %vm528, %v992
        %1002 = vst.msk [vmem:[%s419 + $0x4] sm:$0xf] %vm528, %v993
        %1003 = vst.msk [vmem:[%s419 + $0x8] sm:$0xf] %vm528, %v994
        %1004 = vst.msk [vmem:[%s419 + $0xc] sm:$0xf] %vm528, %v995
        %1005 = vst.msk [vmem:[%s419 + $0x10] sm:$0xf] %vm528, %v996
        %1006 = vst.msk [vmem:[%s419 + $0x14] sm:$0xf] %vm528, %v997
        %1007 = vst.msk [vmem:[%s419 + $0x18] sm:$0xf] %vm528, %v998
        %1008 = vst.msk [vmem:[%s419 + $0x1c] sm:$0xf] %vm528, %v999
        %1009 = vst.msk [vmem:[%s419 + $0x20] sm:$0xf] %vm528, %v1000
        %1019 = vrot.lane.b32.xlu0 %v992, 120
        %v1020 = vpop.permute.xlu0 %1019
        %1021 = vrot.lane.b32.xlu0 %v993, 120
        %v1022 = vpop.permute.xlu0 %1021
        %1023 = vrot.lane.b32.xlu0 %v994, 120
        %v1024 = vpop.permute.xlu0 %1023
        %1025 = vrot.lane.b32.xlu0 %v995, 120
        %v1026 = vpop.permute.xlu0 %1025
        %1027 = vrot.lane.b32.xlu0 %v996, 120
        %v1028 = vpop.permute.xlu0 %1027
        %1029 = vrot.lane.b32.xlu0 %v997, 120
        %v1030 = vpop.permute.xlu0 %1029
        %1031 = vrot.lane.b32.xlu0 %v998, 120
        %v1032 = vpop.permute.xlu0 %1031
        %1033 = vrot.lane.b32.xlu0 %v999, 120
        %v1034 = vpop.permute.xlu0 %1033
        %1035 = vrot.lane.b32.xlu0 %v1000, 120
        %v1036 = vpop.permute.xlu0 %1035
        %s1046 = scalar_lea.vmem %s419, 36
        %1047 = vst.msk [vmem:[%s1046] sm:$0xf] %vm528, %v1020
        %1048 = vst.msk [vmem:[%s1046 + $0x4] sm:$0xf] %vm528, %v1022
        %1049 = vst.msk [vmem:[%s1046 + $0x8] sm:$0xf] %vm528, %v1024
        %1050 = vst.msk [vmem:[%s1046 + $0xc] sm:$0xf] %vm528, %v1026
        %1051 = vst.msk [vmem:[%s1046 + $0x10] sm:$0xf] %vm528, %v1028
        %1052 = vst.msk [vmem:[%s1046 + $0x14] sm:$0xf] %vm528, %v1030
        %1053 = vst.msk [vmem:[%s1046 + $0x18] sm:$0xf] %vm528, %v1032
        %1054 = vst.msk [vmem:[%s1046 + $0x1c] sm:$0xf] %vm528, %v1034
        %1055 = vst.msk [vmem:[%s1046 + $0x20] sm:$0xf] %vm528, %v1036
        %1056 = vrot.lane.b32.xlu0 %v992, 112
        %v1057 = vpop.permute.xlu0 %1056
        %1058 = vrot.lane.b32.xlu0 %v993, 112
        %v1059 = vpop.permute.xlu0 %1058
        %1060 = vrot.lane.b32.xlu0 %v994, 112
        %v1061 = vpop.permute.xlu0 %1060
        %1062 = vrot.lane.b32.xlu0 %v995, 112
        %v1063 = vpop.permute.xlu0 %1062
        %1064 = vrot.lane.b32.xlu0 %v996, 112
        %v1065 = vpop.permute.xlu0 %1064
        %1066 = vrot.lane.b32.xlu0 %v997, 112
        %v1067 = vpop.permute.xlu0 %1066
        %1068 = vrot.lane.b32.xlu0 %v998, 112
        %v1069 = vpop.permute.xlu0 %1068
        %1070 = vrot.lane.b32.xlu0 %v999, 112
        %v1071 = vpop.permute.xlu0 %1070
        %1072 = vrot.lane.b32.xlu0 %v1000, 112
        %v1073 = vpop.permute.xlu0 %1072
        %s1083 = scalar_lea.vmem %s419, 72
        %1084 = vst.msk [vmem:[%s1083] sm:$0xf] %vm528, %v1057
        %1085 = vst.msk [vmem:[%s1083 + $0x4] sm:$0xf] %vm528, %v1059
        %1086 = vst.msk [vmem:[%s1083 + $0x8] sm:$0xf] %vm528, %v1061
        %1087 = vst.msk [vmem:[%s1083 + $0xc] sm:$0xf] %vm528, %v1063
        %1088 = vst.msk [vmem:[%s1083 + $0x10] sm:$0xf] %vm528, %v1065
        %1089 = vst.msk [vmem:[%s1083 + $0x14] sm:$0xf] %vm528, %v1067
        %1090 = vst.msk [vmem:[%s1083 + $0x18] sm:$0xf] %vm528, %v1069
        %1091 = vst.msk [vmem:[%s1083 + $0x1c] sm:$0xf] %vm528, %v1071
        %1092 = vst.msk [vmem:[%s1083 + $0x20] sm:$0xf] %vm528, %v1073
        %1093 = vrot.lane.b32.xlu0 %v992, 104
        %v1094 = vpop.permute.xlu0 %1093
        %1095 = vrot.lane.b32.xlu0 %v993, 104
        %v1096 = vpop.permute.xlu0 %1095
        %1097 = vrot.lane.b32.xlu0 %v994, 104
        %v1098 = vpop.permute.xlu0 %1097
        %1099 = vrot.lane.b32.xlu0 %v995, 104
        %v1100 = vpop.permute.xlu0 %1099
        %1101 = vrot.lane.b32.xlu0 %v996, 104
        %v1102 = vpop.permute.xlu0 %1101
        %1103 = vrot.lane.b32.xlu0 %v997, 104
        %v1104 = vpop.permute.xlu0 %1103
        %1105 = vrot.lane.b32.xlu0 %v998, 104
        %v1106 = vpop.permute.xlu0 %1105
        %1107 = vrot.lane.b32.xlu0 %v999, 104
        %v1108 = vpop.permute.xlu0 %1107
        %1109 = vrot.lane.b32.xlu0 %v1000, 104
        %v1110 = vpop.permute.xlu0 %1109
        %s1120 = scalar_lea.vmem %s419, 108
        %1121 = vst.msk [vmem:[%s1120] sm:$0xf] %vm528, %v1094
        %1122 = vst.msk [vmem:[%s1120 + $0x4] sm:$0xf] %vm528, %v1096
        %1123 = vst.msk [vmem:[%s1120 + $0x8] sm:$0xf] %vm528, %v1098
        %1124 = vst.msk [vmem:[%s1120 + $0xc] sm:$0xf] %vm528, %v1100
        %1125 = vst.msk [vmem:[%s1120 + $0x10] sm:$0xf] %vm528, %v1102
        %1126 = vst.msk [vmem:[%s1120 + $0x14] sm:$0xf] %vm528, %v1104
        %1127 = vst.msk [vmem:[%s1120 + $0x18] sm:$0xf] %vm528, %v1106
        %1128 = vst.msk [vmem:[%s1120 + $0x1c] sm:$0xf] %vm528, %v1108
        %1129 = vst.msk [vmem:[%s1120 + $0x20] sm:$0xf] %vm528, %v1110
        %s1130 = smul.u32 9, %s21
        %p1131 = scmp.lt.s32.totalorder %s20, 1
        %s1132 = scalar_select %p1131, %s20, 1
        %p1133 = scmp.lt.s32.totalorder %s1130, 8
        %s1134 = scalar_select %p1133, %s1130, 8
        %s1135 = smul.addr %s1132, 36
        %s1136 = sadd.s32 %s1134, %s1135
        %s1137 = smul.addr %s1136, 4
        %s1138 = scalar_lea.vmem %s2, %s1137
        %s1139 = smul.u32 9, %s21
        %p1140 = scmp.lt.s32.totalorder %s20, 1
        %s1141 = scalar_select %p1140, %s20, 1
        %p1142 = scmp.lt.s32.totalorder %s1139, 8
        %s1143 = scalar_select %p1142, %s1139, 8
        %s1144 = smul.addr %s1141, 36
        %s1145 = sadd.s32 %s1143, %s1144
        %s1146 = smul.addr %s1145, 4
        %s1147 = scalar_lea.vmem %s3, %s1146
        %s1148 = smul.u32 9, %s21
        %p1149 = scmp.lt.s32.totalorder %s20, 1
        %s1150 = scalar_select %p1149, %s20, 1
        %p1151 = scmp.lt.s32.totalorder %s1148, 8
        %s1152 = scalar_select %p1151, %s1148, 8
        %s1153 = smul.addr %s1150, 36
        %s1154 = sadd.s32 %s1152, %s1153
        %s1155 = smul.addr %s1154, 4
        %s1156 = scalar_lea.vmem %s4, %s1155
        // Predicated region
        $region70: #{cvt_forward.9} parent=64 // pred_check
          %p1157 = pneg %p97
        $region71: #{cvt_forward.9} parent=64 // pred_check_branch
          %1159 = sbr.rel (%p1157) target = $region73
        $region72: #{cvt_forward.9} parent=64 // pred_region
          %s1160 = smul.u32 9, %s21
        $region73: #{cvt_forward.9} parent=64 // pred_fallthru
          _
        // Predicated region
        $region74: #{cvt_forward.9} parent=64 // pred_check
          %p1161 = pneg %p125
        $region75: #{cvt_forward.9} parent=64 // pred_check_branch
          %1163 = sbr.rel (%p1161) target = $region77
        $region76: #{cvt_forward.9} parent=64 // pred_region
          %s1164 = smul.u32 9, %s21
        $region77: #{cvt_forward.9} parent=64 // pred_fallthru
          _
        // Predicated region
        $region78: #{cvt_forward.9} parent=64 // pred_check
          %p1165 = pneg %p153
        $region79: #{cvt_forward.9} parent=64 // pred_check_branch
          %1167 = sbr.rel (%p1165) target = $region81
        $region80: #{cvt_forward.9} parent=64 // pred_region
          %s1168 = smul.u32 9, %s21
        $region81: #{cvt_forward.9} parent=64 // pred_fallthru
          _
      $region65: #{cvt_forward.9} parent=5 // pred_fallthru
        _
      %p1169 = scmp.le.s32.totalorder 2, %s11
      // Predicated region
      $region82: #{cvt_forward.9} parent=5 // pred_check
        %p1170 = pneg %p1169
      $region83: #{cvt_forward.9} parent=5 // pred_check_branch
        %1172 = sbr.rel (%p1170) target = $region85
      $region84: #{cvt_forward.9} parent=5 // pred_region
        %s1173 = ssub.s32 %s11, 2
        // Predicated region
        $region86: #{cvt_forward.9} parent=84 // pred_check
          %p1174 = pneg %p103
        $region87: #{cvt_forward.9} parent=84 // pred_check_branch
          %1176 = sbr.rel (%p1174) target = $region89
        $region88: #{cvt_forward.9} parent=84 // pred_region
          %s1177 = smul.u32 9, %s23
          %p1178 = scmp.lt.s32.totalorder %s22, 1
          %s1179 = scalar_select %p1178, %s22, 1
          %p1180 = scmp.lt.s32.totalorder %s1177, 8
          %s1181 = scalar_select %p1180, %s1177, 8
          %s1182 = smul.addr %s1179, 36
          %s1183 = sadd.s32 %s1181, %s1182
          %s1184 = smul.addr %s1183, 4
          %s1185 = scalar_lea.vmem %s2, %s1184
        $region89: #{cvt_forward.9} parent=84 // pred_fallthru
          _
        // Predicated region
        $region90: #{cvt_forward.9} parent=84 // pred_check
          %p1186 = pneg %p131
        $region91: #{cvt_forward.9} parent=84 // pred_check_branch
          %1188 = sbr.rel (%p1186) target = $region93
        $region92: #{cvt_forward.9} parent=84 // pred_region
          %s1189 = smul.u32 9, %s23
          %p1190 = scmp.lt.s32.totalorder %s22, 1
          %s1191 = scalar_select %p1190, %s22, 1
          %p1192 = scmp.lt.s32.totalorder %s1189, 8
          %s1193 = scalar_select %p1192, %s1189, 8
          %s1194 = smul.addr %s1191, 36
          %s1195 = sadd.s32 %s1193, %s1194
          %s1196 = smul.addr %s1195, 4
          %s1197 = scalar_lea.vmem %s3, %s1196
        $region93: #{cvt_forward.9} parent=84 // pred_fallthru
          _
        // Predicated region
        $region94: #{cvt_forward.9} parent=84 // pred_check
          %p1198 = pneg %p159
        $region95: #{cvt_forward.9} parent=84 // pred_check_branch
          %1200 = sbr.rel (%p1198) target = $region97
        $region96: #{cvt_forward.9} parent=84 // pred_region
          %s1201 = smul.u32 9, %s23
          %p1202 = scmp.lt.s32.totalorder %s22, 1
          %s1203 = scalar_select %p1202, %s22, 1
          %p1204 = scmp.lt.s32.totalorder %s1201, 8
          %s1205 = scalar_select %p1204, %s1201, 8
          %s1206 = smul.addr %s1203, 36
          %s1207 = sadd.s32 %s1205, %s1206
          %s1208 = smul.addr %s1207, 4
          %s1209 = scalar_lea.vmem %s4, %s1208
        $region97: #{cvt_forward.9} parent=84 // pred_fallthru
          _
      $region85: #{cvt_forward.9} parent=5 // pred_fallthru
        _
    $region6: #{cvt_forward.9} parent=1 // loop_footer
      %s15 = sadd.s32 1, %s11
    $region7: #{cvt_forward.9} parent=1 // loop_footer_branch
      %10 = sbr.rel target = $region3
    $region8: #{cvt_forward.9} parent=1 // loop_exit
      _

// kernel: cvt_forward.10
$region0: #{cvt_forward.10}
  #allocation0 [shape = 'u32[]', space=smem, size = 0x4, offset = 0x4, fixed_abs, tag = 'smem constant byte address 0x4 - core index']
  #allocation1 [shape = 'u32[72,128]{1,0:T(1,128)}', space=vmem, size = 0x9000, scoped, tag = 'internal scratch']
  #allocation2 [shape = 'f32[72,1]{1,0:T(8,128)}', space=vmem, size = 0x9000, scoped, tag = 'scratch operand']
  #allocation3 [shape = 'f32[72,1]{1,0:T(8,128)}', space=vmem, size = 0x9000, scoped, tag = 'scratch operand']
  #allocation4 [shape = 'f32[72,8]{1,0:T(8,128)}', space=vmem, size = 0x9000, scoped, tag = 'scratch operand']
  %s0 = inlined_call_operand.vmem [shape: bf16[2,4,72,8], index: 0, kind: input, shape index: {}]
  %s1 = inlined_call_operand.vmem [shape: bf16[2,4,72,8], index: 1, kind: input, shape index: {}]
  %s2 = inlined_call_operand.vmem [shape: bf16[2,4,72,8], index: 2, kind: input, shape index: {}]
  %s3 = inlined_call_operand.vmem [shape: f32[1,72], index: 3, kind: input, shape index: {}]
  %s4 = inlined_call_operand.vmem [shape: bf16[2,4,72,8], index: 4, kind: output, shape index: {}]
  %s5 = sld [smem:[#allocation0]]
  $region57: #{cvt_forward.10} parent=0
    _
  %s7 = ssub.s32 1, %s5
  %s8 = scalar_select 0, %s7, %s5
  loop: start=0, step=1, limit=10
  $region2: #{cvt_forward.10} parent=0 // loop_pre_header
    _
  $region3: #{cvt_forward.10} parent=0 // loop_header
    %s10 = sphi 0, %s14
    %p11 = scmp.ge.s32.totalorder %s10, 10
    %s17 = sphi 0, %s43
    %s18 = sphi 0, %s39
    %s19 = sphi 0, %s35
    %s20 = sphi 0, %s31
    %s21 = sphi 0, %s17
    %s22 = sphi 0, %s18
    %s23 = sphi 0, %s19
    %s24 = sphi 0, %s20
    %s25 = sphi 0, %s21
    %s26 = sphi 0, %s22
    %s27 = sphi 0, %s23
    %s28 = sphi 0, %s24
    %s50 = sphi 0, %s52
    %s53 = sphi 0, %s50
    %s54 = sphi 0, %s53
    %s70 = sphi 0, %s54
    %s80 = sphi 0, %s82
    %s83 = sphi 0, %s80
    %s84 = sphi 0, %s83
    %s100 = sphi 0, %s84
    %s110 = sphi 0, %s112
    %s113 = sphi 0, %s110
    %s114 = sphi 0, %s113
    %s130 = sphi 0, %s114
    %s136 = sphi 0, %s138
    %s139 = sphi 0, %s136
    %s140 = sphi 0, %s139
    %s156 = sphi 0, %s140
    %s166 = sphi 0, %s168
    %s169 = sphi 0, %s166
    %s170 = sphi 0, %s169
    %s186 = sphi 0, %s170
  $region4: #{cvt_forward.10} parent=0 // loop_header_branch
    %13 = sbr.rel (%p11) target = $region8
  $region5: #{cvt_forward.10} parent=0 // loop_body
    %s15 = ssub.s32 %s10, 1
    %s16 = ssub.s32 %s10, 2
    %s29 = sadd.s32 1, %s20
    %p30 = scmp.ge.s32.totalorder %s29, 1
    %s31 = scalar_select %p30, 0, %s29
    %s32 = sadd.s32 1, %s19
    %s33 = scalar_select %p30, %s32, %s19
    %p34 = scmp.ge.s32.totalorder %s33, 1
    %s35 = scalar_select %p34, 0, %s33
    %s36 = sadd.s32 1, %s18
    %s37 = scalar_select %p34, %s36, %s18
    %p38 = scmp.ge.s32.totalorder %s37, 4
    %s39 = scalar_select %p38, 0, %s37
    %s40 = sadd.s32 1, %s17
    %s41 = scalar_select %p38, %s40, %s17
    %p42 = scmp.ge.s32.totalorder %s41, 2
    %s43 = scalar_select %p42, 0, %s41
    %s44 = ssub.s32 %s17, %s43
    %s45 = ssub.s32 %s18, %s39
    %s46 = sor.u32 %s44, %s45
    %s47 = ssub.s32 %s19, %s35
    %s48 = sor.u32 %s46, %s47
    %p49 = scmp.eq.s32.totalorder %s48, 0
    %s51 = sadd.s32 %s50, 1
    %s52 = scalar_select %p49, %s50, %s51
    %p55 = pneg %p49
    %p56 = scmp.eq.s32.totalorder %s10, 7
    %p57 = por %p55, %p56
    %p58 = scmp.ne.s32.totalorder %s50, %s53
    %p59 = scmp.eq.s32.totalorder %s10, 0
    %p60 = por %p58, %p59
    %p61 = scmp.ne.s32.totalorder %s50, %s53
    %p62 = scmp.eq.s32.totalorder %s15, 7
    %p63 = por %p61, %p62
    %p64 = scmp.ne.s32.totalorder %s53, %s54
    %p65 = scmp.eq.s32.totalorder %s15, 0
    %p66 = por %p64, %p65
    %p67 = scmp.ne.s32.totalorder %s53, %s54
    %p68 = scmp.eq.s32.totalorder %s16, 7
    %p69 = por %p67, %p68
    %p71 = scmp.ne.s32.totalorder %s54, %s70
    %p72 = scmp.eq.s32.totalorder %s16, 0
    %p73 = por %p71, %p72
    %s74 = ssub.s32 %s17, %s43
    %s75 = ssub.s32 %s18, %s39
    %s76 = sor.u32 %s74, %s75
    %s77 = ssub.s32 %s20, %s31
    %s78 = sor.u32 %s76, %s77
    %p79 = scmp.eq.s32.totalorder %s78, 0
    %s81 = sadd.s32 %s80, 1
    %s82 = scalar_select %p79, %s80, %s81
    %p85 = pneg %p79
    %p86 = scmp.eq.s32.totalorder %s10, 7
    %p87 = por %p85, %p86
    %p88 = scmp.ne.s32.totalorder %s80, %s83
    %p89 = scmp.eq.s32.totalorder %s10, 0
    %p90 = por %p88, %p89
    %p91 = scmp.ne.s32.totalorder %s80, %s83
    %p92 = scmp.eq.s32.totalorder %s15, 7
    %p93 = por %p91, %p92
    %p94 = scmp.ne.s32.totalorder %s83, %s84
    %p95 = scmp.eq.s32.totalorder %s15, 0
    %p96 = por %p94, %p95
    %p97 = scmp.ne.s32.totalorder %s83, %s84
    %p98 = scmp.eq.s32.totalorder %s16, 7
    %p99 = por %p97, %p98
    %p101 = scmp.ne.s32.totalorder %s84, %s100
    %p102 = scmp.eq.s32.totalorder %s16, 0
    %p103 = por %p101, %p102
    %s104 = ssub.s32 %s17, %s43
    %s105 = ssub.s32 %s18, %s39
    %s106 = sor.u32 %s104, %s105
    %s107 = ssub.s32 %s20, %s31
    %s108 = sor.u32 %s106, %s107
    %p109 = scmp.eq.s32.totalorder %s108, 0
    %s111 = sadd.s32 %s110, 1
    %s112 = scalar_select %p109, %s110, %s111
    %p115 = pneg %p109
    %p116 = scmp.eq.s32.totalorder %s10, 7
    %p117 = por %p115, %p116
    %p118 = scmp.ne.s32.totalorder %s110, %s113
    %p119 = scmp.eq.s32.totalorder %s10, 0
    %p120 = por %p118, %p119
    %p121 = scmp.ne.s32.totalorder %s110, %s113
    %p122 = scmp.eq.s32.totalorder %s15, 7
    %p123 = por %p121, %p122
    %p124 = scmp.ne.s32.totalorder %s113, %s114
    %p125 = scmp.eq.s32.totalorder %s15, 0
    %p126 = por %p124, %p125
    %p127 = scmp.ne.s32.totalorder %s113, %s114
    %p128 = scmp.eq.s32.totalorder %s16, 7
    %p129 = por %p127, %p128
    %p131 = scmp.ne.s32.totalorder %s114, %s130
    %p132 = scmp.eq.s32.totalorder %s16, 0
    %p133 = por %p131, %p132
    %s134 = ssub.s32 %s20, %s31
    %p135 = scmp.eq.s32.totalorder %s134, 0
    %s137 = sadd.s32 %s136, 1
    %s138 = scalar_select %p135, %s136, %s137
    %p141 = pneg %p135
    %p142 = scmp.eq.s32.totalorder %s10, 7
    %p143 = por %p141, %p142
    %p144 = scmp.ne.s32.totalorder %s136, %s139
    %p145 = scmp.eq.s32.totalorder %s10, 0
    %p146 = por %p144, %p145
    %p147 = scmp.ne.s32.totalorder %s136, %s139
    %p148 = scmp.eq.s32.totalorder %s15, 7
    %p149 = por %p147, %p148
    %p150 = scmp.ne.s32.totalorder %s139, %s140
    %p151 = scmp.eq.s32.totalorder %s15, 0
    %p152 = por %p150, %p151
    %p153 = scmp.ne.s32.totalorder %s139, %s140
    %p154 = scmp.eq.s32.totalorder %s16, 7
    %p155 = por %p153, %p154
    %p157 = scmp.ne.s32.totalorder %s140, %s156
    %p158 = scmp.eq.s32.totalorder %s16, 0
    %p159 = por %p157, %p158
    %s160 = ssub.s32 %s17, %s43
    %s161 = ssub.s32 %s18, %s39
    %s162 = sor.u32 %s160, %s161
    %s163 = ssub.s32 %s19, %s35
    %s164 = sor.u32 %s162, %s163
    %p165 = scmp.eq.s32.totalorder %s164, 0
    %s167 = sadd.s32 %s166, 1
    %s168 = scalar_select %p165, %s166, %s167
    %p171 = pneg %p165
    %p172 = scmp.eq.s32.totalorder %s10, 7
    %p173 = por %p171, %p172
    %p174 = scmp.ne.s32.totalorder %s166, %s169
    %p175 = scmp.eq.s32.totalorder %s10, 0
    %p176 = por %p174, %p175
    %p177 = scmp.ne.s32.totalorder %s166, %s169
    %p178 = scmp.eq.s32.totalorder %s15, 7
    %p179 = por %p177, %p178
    %p180 = scmp.ne.s32.totalorder %s169, %s170
    %p181 = scmp.eq.s32.totalorder %s15, 0
    %p182 = por %p180, %p181
    %p183 = scmp.ne.s32.totalorder %s169, %s170
    %p184 = scmp.eq.s32.totalorder %s16, 7
    %p185 = por %p183, %p184
    %p187 = scmp.ne.s32.totalorder %s170, %s186
    %p188 = scmp.eq.s32.totalorder %s16, 0
    %p189 = por %p187, %p188
    %p190 = scmp.le.s32.totalorder 1, %s10
    %p191 = scmp.lt.s32.totalorder %s10, 9
    %p192 = pnand %p190, %p191
    %p193 = pneg %p192
    // Predicated region
    $region9: #{cvt_forward.10} parent=5 // pred_check
      _
    $region10: #{cvt_forward.10} parent=5 // pred_check_branch
      %195 = sbr.rel (%p192) target = $region12
    $region11: #{cvt_forward.10} parent=5 // pred_region
      %s196 = ssub.s32 %s10, 1
      // Predicated region
      $region13: #{cvt_forward.10} parent=11 // pred_check
        %p197 = pneg %p152
      $region14: #{cvt_forward.10} parent=11 // pred_check_branch
        %199 = sbr.rel (%p197) target = $region16
      $region15: #{cvt_forward.10} parent=11 // pred_region
        %p200 = scmp.lt.s32.totalorder %s24, 0
        %s201 = scalar_select %p200, %s24, 0
        %s202 = scalar_lea.vmem %s3, %s201
      $region16: #{cvt_forward.10} parent=11 // pred_fallthru
        _
    $region12: #{cvt_forward.10} parent=5 // pred_fallthru
      _
    %p203 = scmp.lt.s32.totalorder %s10, 8
    // Predicated region
    $region17: #{cvt_forward.10} parent=5 // pred_check
      %p204 = pneg %p203
    $region18: #{cvt_forward.10} parent=5 // pred_check_branch
      %206 = sbr.rel (%p204) target = $region20
    $region19: #{cvt_forward.10} parent=5 // pred_region
      // Predicated region
      $region21: #{cvt_forward.10} parent=19 // pred_check
        %p207 = pneg %p60
      $region22: #{cvt_forward.10} parent=19 // pred_check_branch
        %209 = sbr.rel (%p207) target = $region24
      $region23: #{cvt_forward.10} parent=19 // pred_region
        %s210 = smul.u32 9, %s19
        %p211 = scmp.lt.s32.totalorder %s17, 1
        %s212 = scalar_select %p211, %s17, 1
        %p213 = scmp.lt.s32.totalorder %s18, 3
        %s214 = scalar_select %p213, %s18, 3
        %p215 = scmp.lt.s32.totalorder %s210, 8
        %s216 = scalar_select %p215, %s210, 8
        %s217 = smul.addr %s214, 9
        %s218 = sadd.s32 %s216, %s217
        %s219 = smul.addr %s212, 36
        %s220 = sadd.s32 %s218, %s219
        %s221 = smul.addr %s220, 4
        %s222 = scalar_lea.vmem %s0, %s221
        %s223 = smul.u32 9, %s19
      $region24: #{cvt_forward.10} parent=19 // pred_fallthru
        _
      // Predicated region
      $region25: #{cvt_forward.10} parent=19 // pred_check
        %p224 = pneg %p90
      $region26: #{cvt_forward.10} parent=19 // pred_check_branch
        %226 = sbr.rel (%p224) target = $region28
      $region27: #{cvt_forward.10} parent=19 // pred_region
        %s227 = smul.u32 9, %s20
        %p228 = scmp.lt.s32.totalorder %s17, 1
        %s229 = scalar_select %p228, %s17, 1
        %p230 = scmp.lt.s32.totalorder %s18, 3
        %s231 = scalar_select %p230, %s18, 3
        %p232 = scmp.lt.s32.totalorder %s227, 8
        %s233 = scalar_select %p232, %s227, 8
        %s234 = smul.addr %s231, 9
        %s235 = sadd.s32 %s233, %s234
        %s236 = smul.addr %s229, 36
        %s237 = sadd.s32 %s235, %s236
        %s238 = smul.addr %s237, 4
        %s239 = scalar_lea.vmem %s1, %s238
        %s240 = smul.u32 9, %s20
      $region28: #{cvt_forward.10} parent=19 // pred_fallthru
        _
      // Predicated region
      $region29: #{cvt_forward.10} parent=19 // pred_check
        %p241 = pneg %p120
      $region30: #{cvt_forward.10} parent=19 // pred_check_branch
        %243 = sbr.rel (%p241) target = $region32
      $region31: #{cvt_forward.10} parent=19 // pred_region
        %s244 = smul.u32 9, %s20
        %p245 = scmp.lt.s32.totalorder %s17, 1
        %s246 = scalar_select %p245, %s17, 1
        %p247 = scmp.lt.s32.totalorder %s18, 3
        %s248 = scalar_select %p247, %s18, 3
        %p249 = scmp.lt.s32.totalorder %s244, 8
        %s250 = scalar_select %p249, %s244, 8
        %s251 = smul.addr %s248, 9
        %s252 = sadd.s32 %s250, %s251
        %s253 = smul.addr %s246, 36
        %s254 = sadd.s32 %s252, %s253
        %s255 = smul.addr %s254, 4
        %s256 = scalar_lea.vmem %s2, %s255
        %s257 = smul.u32 9, %s20
      $region32: #{cvt_forward.10} parent=19 // pred_fallthru
        _
    $region20: #{cvt_forward.10} parent=5 // pred_fallthru
      _
    %p258 = scmp.le.s32.totalorder 1, %s10
    %p259 = scmp.lt.s32.totalorder %s10, 9
    %p260 = pnand %p258, %p259
    %p261 = pneg %p260
    // Predicated region
    $region33: #{cvt_forward.10} parent=5 // pred_check
      _
    $region34: #{cvt_forward.10} parent=5 // pred_check_branch
      %263 = sbr.rel (%p260) target = $region36
    $region35: #{cvt_forward.10} parent=5 // pred_region
      %s264 = ssub.s32 %s10, 1
      %s265 = smul.u32 9, %s23
      %p266 = scmp.lt.s32.totalorder %s21, 1
      %s267 = scalar_select %p266, %s21, 1
      %p268 = scmp.lt.s32.totalorder %s22, 3
      %s269 = scalar_select %p268, %s22, 3
      %p270 = scmp.lt.s32.totalorder %s265, 8
      %s271 = scalar_select %p270, %s265, 8
      %s272 = smul.addr %s269, 9
      %s273 = sadd.s32 %s271, %s272
      %s274 = smul.addr %s267, 36
      %s275 = sadd.s32 %s273, %s274
      %s276 = smul.addr %s275, 4
      %s277 = scalar_lea.vmem %s0, %s276
      %p278 = pneg %p66
      %p279 = pneg %p63
      %s280 = smul.u32 9, %s24
      %p281 = scmp.lt.s32.totalorder %s21, 1
      %s282 = scalar_select %p281, %s21, 1
      %p283 = scmp.lt.s32.totalorder %s22, 3
      %s284 = scalar_select %p283, %s22, 3
      %p285 = scmp.lt.s32.totalorder %s280, 8
      %s286 = scalar_select %p285, %s280, 8
      %s287 = smul.addr %s284, 9
      %s288 = sadd.s32 %s286, %s287
      %s289 = smul.addr %s282, 36
      %s290 = sadd.s32 %s288, %s289
      %s291 = smul.addr %s290, 4
      %s292 = scalar_lea.vmem %s1, %s291
      %p293 = pneg %p96
      %p294 = pneg %p93
      %s295 = smul.u32 9, %s24
      %p296 = scmp.lt.s32.totalorder %s21, 1
      %s297 = scalar_select %p296, %s21, 1
      %p298 = scmp.lt.s32.totalorder %s22, 3
      %s299 = scalar_select %p298, %s22, 3
      %p300 = scmp.lt.s32.totalorder %s295, 8
      %s301 = scalar_select %p300, %s295, 8
      %s302 = smul.addr %s299, 9
      %s303 = sadd.s32 %s301, %s302
      %s304 = smul.addr %s297, 36
      %s305 = sadd.s32 %s303, %s304
      %s306 = smul.addr %s305, 4
      %s307 = scalar_lea.vmem %s2, %s306
      %p308 = pneg %p126
      %p309 = pneg %p123
      %p310 = scmp.lt.s32.totalorder %s24, 0
      %s311 = scalar_select %p310, %s24, 0
      %s312 = scalar_lea.vmem %s3, %s311
      %p313 = pneg %p152
      %p314 = pneg %p149
      %p315 = pneg %p182
      %p316 = pneg %p179
      %s317 = smul.u32 9, %s23
      %p318 = scmp.lt.s32.totalorder %s21, 1
      %s319 = scalar_select %p318, %s21, 1
      %p320 = scmp.lt.s32.totalorder %s22, 3
      %s321 = scalar_select %p320, %s22, 3
      %p322 = scmp.lt.s32.totalorder %s317, 8
      %s323 = scalar_select %p322, %s317, 8
      %s324 = smul.addr %s321, 9
      %s325 = sadd.s32 %s323, %s324
      %s326 = smul.addr %s319, 36
      %s327 = sadd.s32 %s325, %s326
      %s328 = smul.addr %s327, 4
      %s329 = scalar_lea.vmem %s4, %s328
      %s330 = smul.u32 9, %s23
      %p331 = scmp.lt.s32.totalorder %s21, 1
      %s332 = scalar_select %p331, %s21, 1
      %p333 = scmp.lt.s32.totalorder %s22, 3
      %s334 = scalar_select %p333, %s22, 3
      %p335 = scmp.lt.s32.totalorder %s330, 8
      %s336 = scalar_select %p335, %s330, 8
      %s337 = smul.addr %s334, 9
      %s338 = sadd.s32 %s336, %s337
      %s339 = smul.addr %s332, 36
      %s340 = sadd.s32 %s338, %s339
      %s341 = smul.addr %s340, 4
      %s342 = scalar_lea.vmem %s0, %s341
      %s343 = smul.u32 9, %s23
      %s344 = smul.u32 9, %s24
      %p345 = scmp.lt.s32.totalorder %s21, 1
      %s346 = scalar_select %p345, %s21, 1
      %p347 = scmp.lt.s32.totalorder %s22, 3
      %s348 = scalar_select %p347, %s22, 3
      %p349 = scmp.lt.s32.totalorder %s344, 8
      %s350 = scalar_select %p349, %s344, 8
      %s351 = smul.addr %s348, 9
      %s352 = sadd.s32 %s350, %s351
      %s353 = smul.addr %s346, 36
      %s354 = sadd.s32 %s352, %s353
      %s355 = smul.addr %s354, 4
      %s356 = scalar_lea.vmem %s1, %s355
      %s357 = smul.u32 9, %s24
      %s358 = smul.u32 9, %s24
      %p359 = scmp.lt.s32.totalorder %s21, 1
      %s360 = scalar_select %p359, %s21, 1
      %p361 = scmp.lt.s32.totalorder %s22, 3
      %s362 = scalar_select %p361, %s22, 3
      %p363 = scmp.lt.s32.totalorder %s358, 8
      %s364 = scalar_select %p363, %s358, 8
      %s365 = smul.addr %s362, 9
      %s366 = sadd.s32 %s364, %s365
      %s367 = smul.addr %s360, 36
      %s368 = sadd.s32 %s366, %s367
      %s369 = smul.addr %s368, 4
      %s370 = scalar_lea.vmem %s2, %s369
      %s371 = smul.u32 9, %s24
      %p372 = scmp.lt.s32.totalorder %s24, 0
      %s373 = scalar_select %p372, %s24, 0
      %s374 = scalar_lea.vmem %s3, %s373
      %s375 = smul.u32 9, %s23
      %p376 = scmp.lt.s32.totalorder %s21, 1
      %s377 = scalar_select %p376, %s21, 1
      %p378 = scmp.lt.s32.totalorder %s22, 3
      %s379 = scalar_select %p378, %s22, 3
      %p380 = scmp.lt.s32.totalorder %s375, 8
      %s381 = scalar_select %p380, %s375, 8
      %s382 = smul.addr %s379, 9
      %s383 = sadd.s32 %s381, %s382
      %s384 = smul.addr %s377, 36
      %s385 = sadd.s32 %s383, %s384
      %s386 = smul.addr %s385, 4
      %s387 = scalar_lea.vmem %s4, %s386
      %s388 = smul.u32 9, %s23
      %p390 = scmp.eq.s32.totalorder %s24, 0
      // Predicated region
      $region37: #{cvt_forward.10} parent=35 // pred_check
        %p391 = pneg %p390
      $region38: #{cvt_forward.10} parent=35 // pred_check_branch
        %393 = sbr.rel (%p391) target = $region40
      $region39: #{cvt_forward.10} parent=35 // pred_region
        %vm394 = vcmask 7168
        %395 = vst.msk [vmem:[#allocation2] sm:$0xff] %vm394, -inf
        %396 = vst.msk [vmem:[#allocation2 + $0x8] sm:$0xff] %vm394, -inf
        %397 = vst.msk [vmem:[#allocation2 + $0x10] sm:$0xff] %vm394, -inf
        %398 = vst.msk [vmem:[#allocation2 + $0x18] sm:$0xff] %vm394, -inf
        %399 = vst.msk [vmem:[#allocation2 + $0x20] sm:$0xff] %vm394, -inf
        %400 = vst.msk [vmem:[#allocation2 + $0x28] sm:$0xff] %vm394, -inf
        %401 = vst.msk [vmem:[#allocation2 + $0x30] sm:$0xff] %vm394, -inf
        %402 = vst.msk [vmem:[#allocation2 + $0x38] sm:$0xff] %vm394, -inf
        %403 = vst.msk [vmem:[#allocation2 + $0x40] sm:$0xff] %vm394, -inf
        %404 = vst.msk [vmem:[#allocation3] sm:$0xff] %vm394, 0.0
        %405 = vst.msk [vmem:[#allocation3 + $0x8] sm:$0xff] %vm394, 0.0
        %406 = vst.msk [vmem:[#allocation3 + $0x10] sm:$0xff] %vm394, 0.0
        %407 = vst.msk [vmem:[#allocation3 + $0x18] sm:$0xff] %vm394, 0.0
        %408 = vst.msk [vmem:[#allocation3 + $0x20] sm:$0xff] %vm394, 0.0
        %409 = vst.msk [vmem:[#allocation3 + $0x28] sm:$0xff] %vm394, 0.0
        %410 = vst.msk [vmem:[#allocation3 + $0x30] sm:$0xff] %vm394, 0.0
        %411 = vst.msk [vmem:[#allocation3 + $0x38] sm:$0xff] %vm394, 0.0
        %412 = vst.msk [vmem:[#allocation3 + $0x40] sm:$0xff] %vm394, 0.0
        %vm413 = vcmask 64512
        %414 = vst.msk [vmem:[#allocation4] sm:$0xff] %vm413, 0.0
        %415 = vst.msk [vmem:[#allocation4 + $0x8] sm:$0xff] %vm413, 0.0
        %416 = vst.msk [vmem:[#allocation4 + $0x10] sm:$0xff] %vm413, 0.0
        %417 = vst.msk [vmem:[#allocation4 + $0x18] sm:$0xff] %vm413, 0.0
        %418 = vst.msk [vmem:[#allocation4 + $0x20] sm:$0xff] %vm413, 0.0
        %419 = vst.msk [vmem:[#allocation4 + $0x28] sm:$0xff] %vm413, 0.0
        %420 = vst.msk [vmem:[#allocation4 + $0x30] sm:$0xff] %vm413, 0.0
        %421 = vst.msk [vmem:[#allocation4 + $0x38] sm:$0xff] %vm413, 0.0
        %422 = vst.msk [vmem:[#allocation4 + $0x40] sm:$0xff] %vm413, 0.0
      $region40: #{cvt_forward.10} parent=35 // pred_fallthru
        _
      %v423 = vld [vmem:[%s342] sm:$0xf]
      %v424 = vld [vmem:[%s342 + $0x4] sm:$0xf]
      %v425 = vld [vmem:[%s342 + $0x8] sm:$0xf]
      %v426 = vld [vmem:[%s342 + $0xc] sm:$0xf]
      %v427 = vld [vmem:[%s342 + $0x10] sm:$0xf]
      %v428 = vld [vmem:[%s342 + $0x14] sm:$0xf]
      %v429 = vld [vmem:[%s342 + $0x18] sm:$0xf]
      %v430 = vld [vmem:[%s342 + $0x1c] sm:$0xf]
      %v431 = vld [vmem:[%s342 + $0x20] sm:$0xf]
      %v432 = vld [vmem:[%s356] sm:$0xf]
      %v433 = vld [vmem:[%s356 + $0x4] sm:$0xf]
      %v434 = vld [vmem:[%s356 + $0x8] sm:$0xf]
      %v435 = vld [vmem:[%s356 + $0xc] sm:$0xf]
      %v436 = vld [vmem:[%s356 + $0x10] sm:$0xf]
      %v437 = vld [vmem:[%s356 + $0x14] sm:$0xf]
      %v438 = vld [vmem:[%s356 + $0x18] sm:$0xf]
      %v439 = vld [vmem:[%s356 + $0x1c] sm:$0xf]
      %v440 = vld [vmem:[%s356 + $0x20] sm:$0xf]
      %v441 = vld [vmem:[%s370] sm:$0xf]
      %v442 = vld [vmem:[%s370 + $0x4] sm:$0xf]
      %v443 = vld [vmem:[%s370 + $0x8] sm:$0xf]
      %v444 = vld [vmem:[%s370 + $0xc] sm:$0xf]
      %v445 = vld [vmem:[%s370 + $0x10] sm:$0xf]
      %v446 = vld [vmem:[%s370 + $0x14] sm:$0xf]
      %v447 = vld [vmem:[%s370 + $0x18] sm:$0xf]
      %v448 = vld [vmem:[%s370 + $0x1c] sm:$0xf]
      %v449 = vld [vmem:[%s370 + $0x20] sm:$0xf]
      %v450 = vld [vmem:[%s374] sm:$0x1]
      %v452 = vperm.slane %v450, 0
      %v463 = vunpack.c.l.b16 %v423
      %v464 = vunpack.c.l.b16 %v424
      %v465 = vunpack.c.l.b16 %v425
      %v466 = vunpack.c.l.b16 %v426
      %v467 = vunpack.c.l.b16 %v427
      %v468 = vunpack.c.l.b16 %v428
      %v469 = vunpack.c.l.b16 %v429
      %v470 = vunpack.c.l.b16 %v430
      %v471 = vunpack.c.l.b16 %v431
      %v472 = vpack.c.b16 %v464, %v463
      %v473 = vpack.c.b16 %v466, %v465
      %v474 = vpack.c.b16 %v468, %v467
      %v475 = vpack.c.b16 %v470, %v469
      %v476 = vpack.c.b16 %v471, %v471
      %v486 = vunpack.c.l.b16 %v432
      %v487 = vunpack.c.l.b16 %v433
      %v488 = vunpack.c.l.b16 %v434
      %v489 = vunpack.c.l.b16 %v435
      %v490 = vunpack.c.l.b16 %v436
      %v491 = vunpack.c.l.b16 %v437
      %v492 = vunpack.c.l.b16 %v438
      %v493 = vunpack.c.l.b16 %v439
      %v494 = vunpack.c.l.b16 %v440
      %v495 = vpack.c.b16 %v487, %v486
      %v496 = vpack.c.b16 %v489, %v488
      %v497 = vpack.c.b16 %v491, %v490
      %v498 = vpack.c.b16 %v493, %v492
      %v499 = vpack.c.b16 %v494, %v494
      %vm500 = vcmask 64512
      %v502 = vsel %vm500, %v472, 0
      %v505 = vsel %vm500, %v473, 0
      %v508 = vsel %vm500, %v474, 0
      %v511 = vsel %vm500, %v475, 0
      %v514 = vsel %vm500, %v476, 0
      %v517 = vsel %vm500, %v495, 0
      %v520 = vsel %vm500, %v496, 0
      %v523 = vsel %vm500, %v497, 0
      %v526 = vsel %vm500, %v498, 0
      %v529 = vsel %vm500, %v499, 0
      %531 = vmatpush.bf16.xpose.msra.mxu0 0
      %532 = vmatpush.bf16.xpose.msra.mxu0 0
      %533 = vmatpush.bf16.xpose.msra.mxu0 0
      %534 = vmatpush.bf16.xpose.msra.mxu0 %v529
      %535 = vmatpush.bf16.xpose.msra.mxu0 %v526
      %536 = vmatpush.bf16.xpose.msra.mxu0 %v523
      %537 = vmatpush.bf16.xpose.msra.mxu0 %v520
      %538 = vmatpush.bf16.xpose.msra.mxu0 %v517
      %539 = vmatmul.bf16.gmra.mxu0 %v502
      %v540 = vpop.f32.mrf.mxu0
      %v541 = vadd.f32 %v452, %v540
      %v542 = vpop.f32.mrf.mxu0
      %v543 = vadd.f32 %v452, %v542
      %544 = vmatmul.bf16.gmra.mxu0 %v505
      %v545 = vpop.f32.mrf.mxu0
      %v546 = vadd.f32 %v452, %v545
      %v547 = vpop.f32.mrf.mxu0
      %v548 = vadd.f32 %v452, %v547
      %549 = vmatmul.bf16.gmra.mxu0 %v508
      %v550 = vpop.f32.mrf.mxu0
      %v551 = vadd.f32 %v452, %v550
      %v552 = vpop.f32.mrf.mxu0
      %v553 = vadd.f32 %v452, %v552
      %554 = vmatmul.bf16.gmra.mxu0 %v511
      %v555 = vpop.f32.mrf.mxu0
      %v556 = vadd.f32 %v452, %v555
      %v557 = vpop.f32.mrf.mxu0
      %v558 = vadd.f32 %v452, %v557
      %559 = vmatmul.bf16.gmra.mxu0 %v514
      %v560 = vpop.f32.mrf.mxu0
      %v561 = vadd.f32 %v452, %v560
      %v562 = vpop.f32.mrf.mxu0
      %563 = vdwg.mxu0
      %v564 = vld [vmem:[#allocation2] sm:$0xff]
      %v565 = vld [vmem:[#allocation2 + $0x8] sm:$0xff]
      %v566 = vld [vmem:[#allocation2 + $0x10] sm:$0xff]
      %v567 = vld [vmem:[#allocation2 + $0x18] sm:$0xff]
      %v568 = vld [vmem:[#allocation2 + $0x20] sm:$0xff]
      %v569 = vld [vmem:[#allocation2 + $0x28] sm:$0xff]
      %v570 = vld [vmem:[#allocation2 + $0x30] sm:$0xff]
      %v571 = vld [vmem:[#allocation2 + $0x38] sm:$0xff]
      %v572 = vld [vmem:[#allocation2 + $0x40] sm:$0xff]
      %vm573 = vcmask 588800
      %v574 = vsel %vm573, %v541, -inf
      %575 = vmax.xlane.f32.xlu0 %v574
      %v576 = vpop.xlane.xlu0 %575
      %v577 = vsel %vm573, %v543, -inf
      %578 = vmax.xlane.f32.xlu0 %v577
      %v579 = vpop.xlane.xlu0 %578
      %v580 = vsel %vm573, %v546, -inf
      %581 = vmax.xlane.f32.xlu0 %v580
      %v582 = vpop.xlane.xlu0 %581
      %v583 = vsel %vm573, %v548, -inf
      %584 = vmax.xlane.f32.xlu0 %v583
      %v585 = vpop.xlane.xlu0 %584
      %v586 = vsel %vm573, %v551, -inf
      %587 = vmax.xlane.f32.xlu0 %v586
      %v588 = vpop.xlane.xlu0 %587
      %v589 = vsel %vm573, %v553, -inf
      %590 = vmax.xlane.f32.xlu0 %v589
      %v591 = vpop.xlane.xlu0 %590
      %v592 = vsel %vm573, %v556, -inf
      %593 = vmax.xlane.f32.xlu0 %v592
      %v594 = vpop.xlane.xlu0 %593
      %v595 = vsel %vm573, %v558, -inf
      %596 = vmax.xlane.f32.xlu0 %v595
      %v597 = vpop.xlane.xlu0 %596
      %v598 = vsel %vm573, %v561, -inf
      %599 = vmax.xlane.f32.xlu0 %v598
      %v600 = vpop.xlane.xlu0 %599
      %v601 = vmax.f32 %v564, %v576
      %v602 = vmax.f32 %v565, %v579
      %v603 = vmax.f32 %v566, %v582
      %v604 = vmax.f32 %v567, %v585
      %v605 = vmax.f32 %v568, %v588
      %v606 = vmax.f32 %v569, %v591
      %v607 = vmax.f32 %v570, %v594
      %v608 = vmax.f32 %v571, %v597
      %v609 = vmax.f32 %v572, %v600
      %v610 = vsub.f32 %v564, %v601
      %v611 = vsub.f32 %v565, %v602
      %v612 = vsub.f32 %v566, %v603
      %v613 = vsub.f32 %v567, %v604
      %v614 = vsub.f32 %v568, %v605
      %v615 = vsub.f32 %v569, %v606
      %v616 = vsub.f32 %v570, %v607
      %v617 = vsub.f32 %v571, %v608
      %v618 = vsub.f32 %v572, %v609
      %v619 = vmul.f32 %v610, 1.442695
      %v620 = vpow.pop %v619
      %v621 = vmul.f32 %v611, 1.442695
      %v622 = vpow.pop %v621
      %v623 = vmul.f32 %v612, 1.442695
      %v624 = vpow.pop %v623
      %v625 = vmul.f32 %v613, 1.442695
      %v626 = vpow.pop %v625
      %v627 = vmul.f32 %v614, 1.442695
      %v628 = vpow.pop %v627
      %v629 = vmul.f32 %v615, 1.442695
      %v630 = vpow.pop %v629
      %v631 = vmul.f32 %v616, 1.442695
      %v632 = vpow.pop %v631
      %v633 = vmul.f32 %v617, 1.442695
      %v634 = vpow.pop %v633
      %v635 = vmul.f32 %v618, 1.442695
      %v636 = vpow.pop %v635
      %638 = vset.pattern.permute.xlu0 0
      %639 = vperm.xlu0 %638, %v601
      %v640 = vpop.permute.xlu0 %639
      %643 = vset.pattern.permute.xlu0 0
      %644 = vperm.xlu0 %643, %v602
      %v645 = vpop.permute.xlu0 %644
      %648 = vset.pattern.permute.xlu0 0
      %649 = vperm.xlu0 %648, %v603
      %v650 = vpop.permute.xlu0 %649
      %653 = vset.pattern.permute.xlu0 0
      %654 = vperm.xlu0 %653, %v604
      %v655 = vpop.permute.xlu0 %654
      %658 = vset.pattern.permute.xlu0 0
      %659 = vperm.xlu0 %658, %v605
      %v660 = vpop.permute.xlu0 %659
      %663 = vset.pattern.permute.xlu0 0
      %664 = vperm.xlu0 %663, %v606
      %v665 = vpop.permute.xlu0 %664
      %668 = vset.pattern.permute.xlu0 0
      %669 = vperm.xlu0 %668, %v607
      %v670 = vpop.permute.xlu0 %669
      %673 = vset.pattern.permute.xlu0 0
      %674 = vperm.xlu0 %673, %v608
      %v675 = vpop.permute.xlu0 %674
      %678 = vset.pattern.permute.xlu0 0
      %679 = vperm.xlu0 %678, %v609
      %v680 = vpop.permute.xlu0 %679
      %v682 = vsub.f32 %v541, %v640
      %v683 = vsub.f32 %v543, %v645
      %v684 = vsub.f32 %v546, %v650
      %v685 = vsub.f32 %v548, %v655
      %v686 = vsub.f32 %v551, %v660
      %v687 = vsub.f32 %v553, %v665
      %v688 = vsub.f32 %v556, %v670
      %v689 = vsub.f32 %v558, %v675
      %v690 = vsub.f32 %v561, %v680
      %v691 = vmul.f32 %v682, 1.442695
      %v692 = vpow.pop %v691
      %v693 = vmul.f32 %v683, 1.442695
      %v694 = vpow.pop %v693
      %v695 = vmul.f32 %v684, 1.442695
      %v696 = vpow.pop %v695
      %v697 = vmul.f32 %v685, 1.442695
      %v698 = vpow.pop %v697
      %v699 = vmul.f32 %v686, 1.442695
      %v700 = vpow.pop %v699
      %v701 = vmul.f32 %v687, 1.442695
      %v702 = vpow.pop %v701
      %v703 = vmul.f32 %v688, 1.442695
      %v704 = vpow.pop %v703
      %v705 = vmul.f32 %v689, 1.442695
      %v706 = vpow.pop %v705
      %v707 = vmul.f32 %v690, 1.442695
      %v708 = vpow.pop %v707
      %v709 = vld [vmem:[#allocation3] sm:$0xff]
      %v710 = vld [vmem:[#allocation3 + $0x8] sm:$0xff]
      %v711 = vld [vmem:[#allocation3 + $0x10] sm:$0xff]
      %v712 = vld [vmem:[#allocation3 + $0x18] sm:$0xff]
      %v713 = vld [vmem:[#allocation3 + $0x20] sm:$0xff]
      %v714 = vld [vmem:[#allocation3 + $0x28] sm:$0xff]
      %v715 = vld [vmem:[#allocation3 + $0x30] sm:$0xff]
      %v716 = vld [vmem:[#allocation3 + $0x38] sm:$0xff]
      %v717 = vld [vmem:[#allocation3 + $0x40] sm:$0xff]
      %v718 = vmul.f32 %v620, %v709
      %v719 = vmul.f32 %v622, %v710
      %v720 = vmul.f32 %v624, %v711
      %v721 = vmul.f32 %v626, %v712
      %v722 = vmul.f32 %v628, %v713
      %v723 = vmul.f32 %v630, %v714
      %v724 = vmul.f32 %v632, %v715
      %v725 = vmul.f32 %v634, %v716
      %v726 = vmul.f32 %v636, %v717
      %v727 = vsel %vm573, %v692, 0.0
      %728 = vadd.xlane.f32.xlu0 %v727
      %v729 = vpop.xlane.xlu0 %728
      %v730 = vsel %vm573, %v694, 0.0
      %731 = vadd.xlane.f32.xlu0 %v730
      %v732 = vpop.xlane.xlu0 %731
      %v733 = vsel %vm573, %v696, 0.0
      %734 = vadd.xlane.f32.xlu0 %v733
      %v735 = vpop.xlane.xlu0 %734
      %v736 = vsel %vm573, %v698, 0.0
      %737 = vadd.xlane.f32.xlu0 %v736
      %v738 = vpop.xlane.xlu0 %737
      %v739 = vsel %vm573, %v700, 0.0
      %740 = vadd.xlane.f32.xlu0 %v739
      %v741 = vpop.xlane.xlu0 %740
      %v742 = vsel %vm573, %v702, 0.0
      %743 = vadd.xlane.f32.xlu0 %v742
      %v744 = vpop.xlane.xlu0 %743
      %v745 = vsel %vm573, %v704, 0.0
      %746 = vadd.xlane.f32.xlu0 %v745
      %v747 = vpop.xlane.xlu0 %746
      %v748 = vsel %vm573, %v706, 0.0
      %749 = vadd.xlane.f32.xlu0 %v748
      %v750 = vpop.xlane.xlu0 %749
      %v751 = vsel %vm573, %v708, 0.0
      %752 = vadd.xlane.f32.xlu0 %v751
      %v753 = vpop.xlane.xlu0 %752
      %v754 = vadd.f32 %v718, %v729
      %v755 = vadd.f32 %v719, %v732
      %v756 = vadd.f32 %v720, %v735
      %v757 = vadd.f32 %v721, %v738
      %v758 = vadd.f32 %v722, %v741
      %v759 = vadd.f32 %v723, %v744
      %v760 = vadd.f32 %v724, %v747
      %v761 = vadd.f32 %v725, %v750
      %v762 = vadd.f32 %v726, %v753
      %vm763 = vcmask 7168
      %764 = vst.msk [vmem:[#allocation3] sm:$0xff] %vm763, %v754
      %765 = vst.msk [vmem:[#allocation3 + $0x8] sm:$0xff] %vm763, %v755
      %766 = vst.msk [vmem:[#allocation3 + $0x10] sm:$0xff] %vm763, %v756
      %767 = vst.msk [vmem:[#allocation3 + $0x18] sm:$0xff] %vm763, %v757
      %768 = vst.msk [vmem:[#allocation3 + $0x20] sm:$0xff] %vm763, %v758
      %769 = vst.msk [vmem:[#allocation3 + $0x28] sm:$0xff] %vm763, %v759
      %770 = vst.msk [vmem:[#allocation3 + $0x30] sm:$0xff] %vm763, %v760
      %771 = vst.msk [vmem:[#allocation3 + $0x38] sm:$0xff] %vm763, %v761
      %772 = vst.msk [vmem:[#allocation3 + $0x40] sm:$0xff] %vm763, %v762
      %v773 = vld [vmem:[#allocation4] sm:$0xff]
      %v774 = vld [vmem:[#allocation4 + $0x8] sm:$0xff]
      %v775 = vld [vmem:[#allocation4 + $0x10] sm:$0xff]
      %v776 = vld [vmem:[#allocation4 + $0x18] sm:$0xff]
      %v777 = vld [vmem:[#allocation4 + $0x20] sm:$0xff]
      %v778 = vld [vmem:[#allocation4 + $0x28] sm:$0xff]
      %v779 = vld [vmem:[#allocation4 + $0x30] sm:$0xff]
      %v780 = vld [vmem:[#allocation4 + $0x38] sm:$0xff]
      %v781 = vld [vmem:[#allocation4 + $0x40] sm:$0xff]
      %783 = vset.pattern.permute.xlu0 0
      %784 = vperm.xlu0 %783, %v620
      %v785 = vpop.permute.xlu0 %784
      %788 = vset.pattern.permute.xlu0 0
      %789 = vperm.xlu0 %788, %v622
      %v790 = vpop.permute.xlu0 %789
      %793 = vset.pattern.permute.xlu0 0
      %794 = vperm.xlu0 %793, %v624
      %v795 = vpop.permute.xlu0 %794
      %798 = vset.pattern.permute.xlu0 0
      %799 = vperm.xlu0 %798, %v626
      %v800 = vpop.permute.xlu0 %799
      %803 = vset.pattern.permute.xlu0 0
      %804 = vperm.xlu0 %803, %v628
      %v805 = vpop.permute.xlu0 %804
      %808 = vset.pattern.permute.xlu0 0
      %809 = vperm.xlu0 %808, %v630
      %v810 = vpop.permute.xlu0 %809
      %813 = vset.pattern.permute.xlu0 0
      %814 = vperm.xlu0 %813, %v632
      %v815 = vpop.permute.xlu0 %814
      %818 = vset.pattern.permute.xlu0 0
      %819 = vperm.xlu0 %818, %v634
      %v820 = vpop.permute.xlu0 %819
      %823 = vset.pattern.permute.xlu0 0
      %824 = vperm.xlu0 %823, %v636
      %v825 = vpop.permute.xlu0 %824
      %v827 = vmul.f32 %v785, %v773
      %v828 = vmul.f32 %v790, %v774
      %v829 = vmul.f32 %v795, %v775
      %v830 = vmul.f32 %v800, %v776
      %v831 = vmul.f32 %v805, %v777
      %v832 = vmul.f32 %v810, %v778
      %v833 = vmul.f32 %v815, %v779
      %v834 = vmul.f32 %v820, %v780
      %v835 = vmul.f32 %v825, %v781
      %v836 = vpack.c.bf16 %v694, %v692
      %v837 = vpack.c.bf16 %v698, %v696
      %v838 = vpack.c.bf16 %v702, %v700
      %v839 = vpack.c.bf16 %v706, %v704
      %v840 = vpack.c.bf16 %v708, %v708
      %v850 = vunpack.c.l.b16 %v441
      %v851 = vunpack.c.l.b16 %v442
      %v852 = vunpack.c.l.b16 %v443
      %v853 = vunpack.c.l.b16 %v444
      %v854 = vunpack.c.l.b16 %v445
      %v855 = vunpack.c.l.b16 %v446
      %v856 = vunpack.c.l.b16 %v447
      %v857 = vunpack.c.l.b16 %v448
      %v858 = vunpack.c.l.b16 %v449
      %v859 = vpack.c.b16 %v851, %v850
      %v860 = vpack.c.b16 %v853, %v852
      %v861 = vpack.c.b16 %v855, %v854
      %v862 = vpack.c.b16 %v857, %v856
      %v863 = vpack.c.b16 %v858, %v858
      %v869 = vsel %vm573, %v836, 0
      %v872 = vsel %vm573, %v837, 0
      %v875 = vsel %vm573, %v838, 0
      %v878 = vsel %vm573, %v839, 0
      %v881 = vsel %vm573, %v840, 0
      %vm883 = vcmask 1043456
      %v885 = vsel %vm883, %v863, 0
      %887 = vmatpush.bf16.msra.mxu0 0
      %888 = vmatpush.bf16.msra.mxu0 0
      %889 = vmatpush.bf16.msra.mxu0 0
      %890 = vmatpush.bf16.msra.mxu0 %v885
      %891 = vmatpush.bf16.msra.mxu0 %v862
      %892 = vmatpush.bf16.msra.mxu0 %v861
      %893 = vmatpush.bf16.msra.mxu0 %v860
      %894 = vmatpush.bf16.msra.mxu0 %v859
      %895 = vmatmul.bf16.gmra.mxu0 %v869
      %v896 = vpop.f32.mrf.mxu0
      %v897 = vadd.f32 0.0, %v896
      %v898 = vpop.f32.mrf.mxu0
      %v899 = vadd.f32 0.0, %v898
      %900 = vmatmul.bf16.gmra.mxu0 %v872
      %v901 = vpop.f32.mrf.mxu0
      %v902 = vadd.f32 0.0, %v901
      %v903 = vpop.f32.mrf.mxu0
      %v904 = vadd.f32 0.0, %v903
      %905 = vmatmul.bf16.gmra.mxu0 %v875
      %v906 = vpop.f32.mrf.mxu0
      %v907 = vadd.f32 0.0, %v906
      %v908 = vpop.f32.mrf.mxu0
      %v909 = vadd.f32 0.0, %v908
      %910 = vmatmul.bf16.gmra.mxu0 %v878
      %v911 = vpop.f32.mrf.mxu0
      %v912 = vadd.f32 0.0, %v911
      %v913 = vpop.f32.mrf.mxu0
      %v914 = vadd.f32 0.0, %v913
      %915 = vmatmul.bf16.gmra.mxu0 %v881
      %v916 = vpop.f32.mrf.mxu0
      %v917 = vadd.f32 0.0, %v916
      %v918 = vpop.f32.mrf.mxu0
      %919 = vdwg.mxu0
      %v920 = vadd.f32 %v827, %v897
      %v921 = vadd.f32 %v828, %v899
      %v922 = vadd.f32 %v829, %v902
      %v923 = vadd.f32 %v830, %v904
      %v924 = vadd.f32 %v831, %v907
      %v925 = vadd.f32 %v832, %v909
      %v926 = vadd.f32 %v833, %v912
      %v927 = vadd.f32 %v834, %v914
      %v928 = vadd.f32 %v835, %v917
      %929 = vst.msk [vmem:[#allocation4] sm:$0xff] %vm500, %v920
      %930 = vst.msk [vmem:[#allocation4 + $0x8] sm:$0xff] %vm500, %v921
      %931 = vst.msk [vmem:[#allocation4 + $0x10] sm:$0xff] %vm500, %v922
      %932 = vst.msk [vmem:[#allocation4 + $0x18] sm:$0xff] %vm500, %v923
      %933 = vst.msk [vmem:[#allocation4 + $0x20] sm:$0xff] %vm500, %v924
      %934 = vst.msk [vmem:[#allocation4 + $0x28] sm:$0xff] %vm500, %v925
      %935 = vst.msk [vmem:[#allocation4 + $0x30] sm:$0xff] %vm500, %v926
      %936 = vst.msk [vmem:[#allocation4 + $0x38] sm:$0xff] %vm500, %v927
      %937 = vst.msk [vmem:[#allocation4 + $0x40] sm:$0xff] %vm500, %v928
      %938 = vst.msk [vmem:[#allocation2] sm:$0xff] %vm763, %v601
      %939 = vst.msk [vmem:[#allocation2 + $0x8] sm:$0xff] %vm763, %v602
      %940 = vst.msk [vmem:[#allocation2 + $0x10] sm:$0xff] %vm763, %v603
      %941 = vst.msk [vmem:[#allocation2 + $0x18] sm:$0xff] %vm763, %v604
      %942 = vst.msk [vmem:[#allocation2 + $0x20] sm:$0xff] %vm763, %v605
      %943 = vst.msk [vmem:[#allocation2 + $0x28] sm:$0xff] %vm763, %v606
      %944 = vst.msk [vmem:[#allocation2 + $0x30] sm:$0xff] %vm763, %v607
      %945 = vst.msk [vmem:[#allocation2 + $0x38] sm:$0xff] %vm763, %v608
      %946 = vst.msk [vmem:[#allocation2 + $0x40] sm:$0xff] %vm763, %v609
      // Predicated region
      $region41: #{cvt_forward.10} parent=35 // pred_check
        %p947 = pneg %p390
      $region42: #{cvt_forward.10} parent=35 // pred_check_branch
        %949 = sbr.rel (%p947) target = $region44
      $region43: #{cvt_forward.10} parent=35 // pred_region
        %v950 = vld [vmem:[#allocation3] sm:$0xff]
        %v951 = vld [vmem:[#allocation3 + $0x8] sm:$0xff]
        %v952 = vld [vmem:[#allocation3 + $0x10] sm:$0xff]
        %v953 = vld [vmem:[#allocation3 + $0x18] sm:$0xff]
        %v954 = vld [vmem:[#allocation3 + $0x20] sm:$0xff]
        %v955 = vld [vmem:[#allocation3 + $0x28] sm:$0xff]
        %v956 = vld [vmem:[#allocation3 + $0x30] sm:$0xff]
        %v957 = vld [vmem:[#allocation3 + $0x38] sm:$0xff]
        %v958 = vld [vmem:[#allocation3 + $0x40] sm:$0xff]
        %v959 = vrcp.pop %v950
        %v960 = vrcp.pop %v951
        %v961 = vrcp.pop %v952
        %v962 = vrcp.pop %v953
        %v963 = vrcp.pop %v954
        %v964 = vrcp.pop %v955
        %v965 = vrcp.pop %v956
        %v966 = vrcp.pop %v957
        %v967 = vrcp.pop %v958
        %v968 = vld [vmem:[#allocation4] sm:$0xff]
        %v969 = vld [vmem:[#allocation4 + $0x8] sm:$0xff]
        %v970 = vld [vmem:[#allocation4 + $0x10] sm:$0xff]
        %v971 = vld [vmem:[#allocation4 + $0x18] sm:$0xff]
        %v972 = vld [vmem:[#allocation4 + $0x20] sm:$0xff]
        %v973 = vld [vmem:[#allocation4 + $0x28] sm:$0xff]
        %v974 = vld [vmem:[#allocation4 + $0x30] sm:$0xff]
        %v975 = vld [vmem:[#allocation4 + $0x38] sm:$0xff]
        %v976 = vld [vmem:[#allocation4 + $0x40] sm:$0xff]
        %978 = vset.pattern.permute.xlu0 0
        %979 = vperm.xlu0 %978, %v959
        %v980 = vpop.permute.xlu0 %979
        %983 = vset.pattern.permute.xlu0 0
        %984 = vperm.xlu0 %983, %v960
        %v985 = vpop.permute.xlu0 %984
        %988 = vset.pattern.permute.xlu0 0
        %989 = vperm.xlu0 %988, %v961
        %v990 = vpop.permute.xlu0 %989
        %993 = vset.pattern.permute.xlu0 0
        %994 = vperm.xlu0 %993, %v962
        %v995 = vpop.permute.xlu0 %994
        %998 = vset.pattern.permute.xlu0 0
        %999 = vperm.xlu0 %998, %v963
        %v1000 = vpop.permute.xlu0 %999
        %1003 = vset.pattern.permute.xlu0 0
        %1004 = vperm.xlu0 %1003, %v964
        %v1005 = vpop.permute.xlu0 %1004
        %1008 = vset.pattern.permute.xlu0 0
        %1009 = vperm.xlu0 %1008, %v965
        %v1010 = vpop.permute.xlu0 %1009
        %1013 = vset.pattern.permute.xlu0 0
        %1014 = vperm.xlu0 %1013, %v966
        %v1015 = vpop.permute.xlu0 %1014
        %1018 = vset.pattern.permute.xlu0 0
        %1019 = vperm.xlu0 %1018, %v967
        %v1020 = vpop.permute.xlu0 %1019
        %v1022 = vmul.f32 %v968, %v980
        %v1023 = vmul.f32 %v969, %v985
        %v1024 = vmul.f32 %v970, %v990
        %v1025 = vmul.f32 %v971, %v995
        %v1026 = vmul.f32 %v972, %v1000
        %v1027 = vmul.f32 %v973, %v1005
        %v1028 = vmul.f32 %v974, %v1010
        %v1029 = vmul.f32 %v975, %v1015
        %v1030 = vmul.f32 %v976, %v1020
        %v1031 = vpack.c.bf16 %v1022, %v1022
        %v1032 = vpack.c.bf16 %v1023, %v1023
        %v1033 = vpack.c.bf16 %v1024, %v1024
        %v1034 = vpack.c.bf16 %v1025, %v1025
        %v1035 = vpack.c.bf16 %v1026, %v1026
        %v1036 = vpack.c.bf16 %v1027, %v1027
        %v1037 = vpack.c.bf16 %v1028, %v1028
        %v1038 = vpack.c.bf16 %v1029, %v1029
        %v1039 = vpack.c.bf16 %v1030, %v1030
        %vm1040 = vcmask 60416
        %1041 = vst.msk [vmem:[%s387] sm:$0xf] %vm1040, %v1031
        %1042 = vst.msk [vmem:[%s387 + $0x4] sm:$0xf] %vm1040, %v1032
        %1043 = vst.msk [vmem:[%s387 + $0x8] sm:$0xf] %vm1040, %v1033
        %1044 = vst.msk [vmem:[%s387 + $0xc] sm:$0xf] %vm1040, %v1034
        %1045 = vst.msk [vmem:[%s387 + $0x10] sm:$0xf] %vm1040, %v1035
        %1046 = vst.msk [vmem:[%s387 + $0x14] sm:$0xf] %vm1040, %v1036
        %1047 = vst.msk [vmem:[%s387 + $0x18] sm:$0xf] %vm1040, %v1037
        %1048 = vst.msk [vmem:[%s387 + $0x1c] sm:$0xf] %vm1040, %v1038
        %1049 = vst.msk [vmem:[%s387 + $0x20] sm:$0xf] %vm1040, %v1039
      $region44: #{cvt_forward.10} parent=35 // pred_fallthru
        _
      %s1050 = smul.u32 9, %s23
      %p1051 = scmp.lt.s32.totalorder %s21, 1
      %s1052 = scalar_select %p1051, %s21, 1
      %p1053 = scmp.lt.s32.totalorder %s22, 3
      %s1054 = scalar_select %p1053, %s22, 3
      %p1055 = scmp.lt.s32.totalorder %s1050, 8
      %s1056 = scalar_select %p1055, %s1050, 8
      %s1057 = smul.addr %s1054, 9
      %s1058 = sadd.s32 %s1056, %s1057
      %s1059 = smul.addr %s1052, 36
      %s1060 = sadd.s32 %s1058, %s1059
      %s1061 = smul.addr %s1060, 4
      %s1062 = scalar_lea.vmem %s4, %s1061
      // Predicated region
      $region45: #{cvt_forward.10} parent=35 // pred_check
        %p1063 = pneg %p179
      $region46: #{cvt_forward.10} parent=35 // pred_check_branch
        %1065 = sbr.rel (%p1063) target = $region48
      $region47: #{cvt_forward.10} parent=35 // pred_region
        %s1066 = smul.u32 9, %s23
      $region48: #{cvt_forward.10} parent=35 // pred_fallthru
        _
    $region36: #{cvt_forward.10} parent=5 // pred_fallthru
      _
    %p1067 = scmp.le.s32.totalorder 2, %s10
    // Predicated region
    $region49: #{cvt_forward.10} parent=5 // pred_check
      %p1068 = pneg %p1067
    $region50: #{cvt_forward.10} parent=5 // pred_check_branch
      %1070 = sbr.rel (%p1068) target = $region52
    $region51: #{cvt_forward.10} parent=5 // pred_region
      %s1071 = ssub.s32 %s10, 2
      // Predicated region
      $region53: #{cvt_forward.10} parent=51 // pred_check
        %p1072 = pneg %p185
      $region54: #{cvt_forward.10} parent=51 // pred_check_branch
        %1074 = sbr.rel (%p1072) target = $region56
      $region55: #{cvt_forward.10} parent=51 // pred_region
        %s1075 = smul.u32 9, %s27
        %p1076 = scmp.lt.s32.totalorder %s25, 1
        %s1077 = scalar_select %p1076, %s25, 1
        %p1078 = scmp.lt.s32.totalorder %s26, 3
        %s1079 = scalar_select %p1078, %s26, 3
        %p1080 = scmp.lt.s32.totalorder %s1075, 8
        %s1081 = scalar_select %p1080, %s1075, 8
        %s1082 = smul.addr %s1079, 9
        %s1083 = sadd.s32 %s1081, %s1082
        %s1084 = smul.addr %s1077, 36
        %s1085 = sadd.s32 %s1083, %s1084
        %s1086 = smul.addr %s1085, 4
        %s1087 = scalar_lea.vmem %s4, %s1086
      $region56: #{cvt_forward.10} parent=51 // pred_fallthru
        _
    $region52: #{cvt_forward.10} parent=5 // pred_fallthru
      _
  $region6: #{cvt_forward.10} parent=0 // loop_footer
    %s14 = sadd.s32 1, %s10
  $region7: #{cvt_forward.10} parent=0 // loop_footer_branch
    %9 = sbr.rel target = $region3
  $region8: #{cvt_forward.10} parent=0 // loop_exit
    _

// kernel: cvt_forward.11
$region0: #{cvt_forward.11}
  #allocation0 [shape = 'u32[]', space=smem, size = 0x4, offset = 0x4, fixed_abs, tag = 'smem constant byte address 0x4 - core index']
  #allocation1 [shape = 'u32[72,128]{1,0:T(1,128)}', space=vmem, size = 0x9000, scoped, tag = 'internal scratch']
  #allocation2 [shape = 'f32[72,32]{1,0:T(8,128)}', space=vmem, size = 0x9000, scoped, tag = 'scratch operand']
  %s0 = inlined_call_operand.vmem [shape: bf16[2,4,72,8], index: 0, kind: input, shape index: {}]
  %s1 = inlined_call_operand.vmem [shape: bf16[4,8,32], index: 1, kind: input, shape index: {}]
  %s2 = inlined_call_operand.vmem [shape: f32[1,32], index: 2, kind: input, shape index: {}]
  %s3 = inlined_call_operand.vmem [shape: f32[2,72,32], index: 3, kind: input, shape index: {}]
  %s4 = inlined_call_operand.vmem [shape: f32[2,72,32], index: 4, kind: output, shape index: {}]
  %s5 = sld [smem:[#allocation0]]
  $region57: #{cvt_forward.11} parent=0
    _
  %s7 = ssub.s32 1, %s5
  %s8 = scalar_select 0, %s7, %s5
  loop: start=0, step=1, limit=10
  $region2: #{cvt_forward.11} parent=0 // loop_pre_header
    _
  $region3: #{cvt_forward.11} parent=0 // loop_header
    %s10 = sphi 0, %s14
    %p11 = scmp.ge.s32.totalorder %s10, 10
    %s17 = sphi 0, %s36
    %s18 = sphi 0, %s32
    %s19 = sphi 0, %s28
    %s20 = sphi 0, %s17
    %s21 = sphi 0, %s18
    %s22 = sphi 0, %s19
    %s23 = sphi 0, %s20
    %s24 = sphi 0, %s21
    %s25 = sphi 0, %s22
    %s43 = sphi 0, %s45
    %s46 = sphi 0, %s43
    %s47 = sphi 0, %s46
    %s63 = sphi 0, %s47
    %s69 = sphi 0, %s71
    %s72 = sphi 0, %s69
    %s73 = sphi 0, %s72
    %s89 = sphi 0, %s73
    %s93 = sphi 0, %s93
    %s95 = sphi 0, %s93
    %s96 = sphi 0, %s95
    %s110 = sphi 0, %s96
    %s118 = sphi 0, %s120
    %s121 = sphi 0, %s118
    %s122 = sphi 0, %s121
    %s138 = sphi 0, %s122
    %s146 = sphi 0, %s148
    %s149 = sphi 0, %s146
    %s150 = sphi 0, %s149
    %s166 = sphi 0, %s150
  $region4: #{cvt_forward.11} parent=0 // loop_header_branch
    %13 = sbr.rel (%p11) target = $region8
  $region5: #{cvt_forward.11} parent=0 // loop_body
    %s15 = ssub.s32 %s10, 1
    %s16 = ssub.s32 %s10, 2
    %s26 = sadd.s32 1, %s19
    %p27 = scmp.ge.s32.totalorder %s26, 4
    %s28 = scalar_select %p27, 0, %s26
    %s29 = sadd.s32 1, %s18
    %s30 = scalar_select %p27, %s29, %s18
    %p31 = scmp.ge.s32.totalorder %s30, 1
    %s32 = scalar_select %p31, 0, %s30
    %s33 = sadd.s32 1, %s17
    %s34 = scalar_select %p31, %s33, %s17
    %p35 = scmp.ge.s32.totalorder %s34, 2
    %s36 = scalar_select %p35, 0, %s34
    %s37 = ssub.s32 %s17, %s36
    %s38 = ssub.s32 %s19, %s28
    %s39 = sor.u32 %s37, %s38
    %s40 = ssub.s32 %s18, %s32
    %s41 = sor.u32 %s39, %s40
    %p42 = scmp.eq.s32.totalorder %s41, 0
    %s44 = sadd.s32 %s43, 1
    %s45 = scalar_select %p42, %s43, %s44
    %p48 = pneg %p42
    %p49 = scmp.eq.s32.totalorder %s10, 7
    %p50 = por %p48, %p49
    %p51 = scmp.ne.s32.totalorder %s43, %s46
    %p52 = scmp.eq.s32.totalorder %s10, 0
    %p53 = por %p51, %p52
    %p54 = scmp.ne.s32.totalorder %s43, %s46
    %p55 = scmp.eq.s32.totalorder %s15, 7
    %p56 = por %p54, %p55
    %p57 = scmp.ne.s32.totalorder %s46, %s47
    %p58 = scmp.eq.s32.totalorder %s15, 0
    %p59 = por %p57, %p58
    %p60 = scmp.ne.s32.totalorder %s46, %s47
    %p61 = scmp.eq.s32.totalorder %s16, 7
    %p62 = por %p60, %p61
    %p64 = scmp.ne.s32.totalorder %s47, %s63
    %p65 = scmp.eq.s32.totalorder %s16, 0
    %p66 = por %p64, %p65
    %s67 = ssub.s32 %s19, %s28
    %p68 = scmp.eq.s32.totalorder %s67, 0
    %s70 = sadd.s32 %s69, 1
    %s71 = scalar_select %p68, %s69, %s70
    %p74 = pneg %p68
    %p75 = scmp.eq.s32.totalorder %s10, 7
    %p76 = por %p74, %p75
    %p77 = scmp.ne.s32.totalorder %s69, %s72
    %p78 = scmp.eq.s32.totalorder %s10, 0
    %p79 = por %p77, %p78
    %p80 = scmp.ne.s32.totalorder %s69, %s72
    %p81 = scmp.eq.s32.totalorder %s15, 7
    %p82 = por %p80, %p81
    %p83 = scmp.ne.s32.totalorder %s72, %s73
    %p84 = scmp.eq.s32.totalorder %s15, 0
    %p85 = por %p83, %p84
    %p86 = scmp.ne.s32.totalorder %s72, %s73
    %p87 = scmp.eq.s32.totalorder %s16, 7
    %p88 = por %p86, %p87
    %p90 = scmp.ne.s32.totalorder %s73, %s89
    %p91 = scmp.eq.s32.totalorder %s16, 0
    %p92 = por %p90, %p91
    %s94 = sadd.s32 %s93, 1
    %p97 = scmp.eq.s32.totalorder %s10, 7
    %p98 = scmp.ne.s32.totalorder %s93, %s95
    %p99 = scmp.eq.s32.totalorder %s10, 0
    %p100 = por %p98, %p99
    %p101 = scmp.ne.s32.totalorder %s93, %s95
    %p102 = scmp.eq.s32.totalorder %s15, 7
    %p103 = por %p101, %p102
    %p104 = scmp.ne.s32.totalorder %s95, %s96
    %p105 = scmp.eq.s32.totalorder %s15, 0
    %p106 = por %p104, %p105
    %p107 = scmp.ne.s32.totalorder %s95, %s96
    %p108 = scmp.eq.s32.totalorder %s16, 7
    %p109 = por %p107, %p108
    %p111 = scmp.ne.s32.totalorder %s96, %s110
    %p112 = scmp.eq.s32.totalorder %s16, 0
    %p113 = por %p111, %p112
    %s114 = ssub.s32 %s17, %s36
    %s115 = ssub.s32 %s18, %s32
    %s116 = sor.u32 %s114, %s115
    %p117 = scmp.eq.s32.totalorder %s116, 0
    %s119 = sadd.s32 %s118, 1
    %s120 = scalar_select %p117, %s118, %s119
    %p123 = pneg %p117
    %p124 = scmp.eq.s32.totalorder %s10, 7
    %p125 = por %p123, %p124
    %p126 = scmp.ne.s32.totalorder %s118, %s121
    %p127 = scmp.eq.s32.totalorder %s10, 0
    %p128 = por %p126, %p127
    %p129 = scmp.ne.s32.totalorder %s118, %s121
    %p130 = scmp.eq.s32.totalorder %s15, 7
    %p131 = por %p129, %p130
    %p132 = scmp.ne.s32.totalorder %s121, %s122
    %p133 = scmp.eq.s32.totalorder %s15, 0
    %p134 = por %p132, %p133
    %p135 = scmp.ne.s32.totalorder %s121, %s122
    %p136 = scmp.eq.s32.totalorder %s16, 7
    %p137 = por %p135, %p136
    %p139 = scmp.ne.s32.totalorder %s122, %s138
    %p140 = scmp.eq.s32.totalorder %s16, 0
    %p141 = por %p139, %p140
    %s142 = ssub.s32 %s17, %s36
    %s143 = ssub.s32 %s18, %s32
    %s144 = sor.u32 %s142, %s143
    %p145 = scmp.eq.s32.totalorder %s144, 0
    %s147 = sadd.s32 %s146, 1
    %s148 = scalar_select %p145, %s146, %s147
    %p151 = pneg %p145
    %p152 = scmp.eq.s32.totalorder %s10, 7
    %p153 = por %p151, %p152
    %p154 = scmp.ne.s32.totalorder %s146, %s149
    %p155 = scmp.eq.s32.totalorder %s10, 0
    %p156 = por %p154, %p155
    %p157 = scmp.ne.s32.totalorder %s146, %s149
    %p158 = scmp.eq.s32.totalorder %s15, 7
    %p159 = por %p157, %p158
    %p160 = scmp.ne.s32.totalorder %s149, %s150
    %p161 = scmp.eq.s32.totalorder %s15, 0
    %p162 = por %p160, %p161
    %p163 = scmp.ne.s32.totalorder %s149, %s150
    %p164 = scmp.eq.s32.totalorder %s16, 7
    %p165 = por %p163, %p164
    %p167 = scmp.ne.s32.totalorder %s150, %s166
    %p168 = scmp.eq.s32.totalorder %s16, 0
    %p169 = por %p167, %p168
    %p170 = scmp.le.s32.totalorder 1, %s10
    %p171 = scmp.lt.s32.totalorder %s10, 9
    %p172 = pnand %p170, %p171
    %p173 = pneg %p172
    // Predicated region
    $region9: #{cvt_forward.11} parent=5 // pred_check
      _
    $region10: #{cvt_forward.11} parent=5 // pred_check_branch
      %175 = sbr.rel (%p172) target = $region12
    $region11: #{cvt_forward.11} parent=5 // pred_region
      %s176 = ssub.s32 %s10, 1
      // Predicated region
      $region13: #{cvt_forward.11} parent=11 // pred_check
        %p177 = pneg %p106
      $region14: #{cvt_forward.11} parent=11 // pred_check_branch
        %179 = sbr.rel (%p177) target = $region16
      $region15: #{cvt_forward.11} parent=11 // pred_region
        _
      $region16: #{cvt_forward.11} parent=11 // pred_fallthru
        _
    $region12: #{cvt_forward.11} parent=5 // pred_fallthru
      _
    %p180 = scmp.lt.s32.totalorder %s10, 8
    // Predicated region
    $region17: #{cvt_forward.11} parent=5 // pred_check
      %p181 = pneg %p180
    $region18: #{cvt_forward.11} parent=5 // pred_check_branch
      %183 = sbr.rel (%p181) target = $region20
    $region19: #{cvt_forward.11} parent=5 // pred_region
      // Predicated region
      $region21: #{cvt_forward.11} parent=19 // pred_check
        %p184 = pneg %p53
      $region22: #{cvt_forward.11} parent=19 // pred_check_branch
        %186 = sbr.rel (%p184) target = $region24
      $region23: #{cvt_forward.11} parent=19 // pred_region
        %s187 = smul.u32 9, %s18
        %p188 = scmp.lt.s32.totalorder %s17, 1
        %s189 = scalar_select %p188, %s17, 1
        %p190 = scmp.lt.s32.totalorder %s19, 3
        %s191 = scalar_select %p190, %s19, 3
        %p192 = scmp.lt.s32.totalorder %s187, 8
        %s193 = scalar_select %p192, %s187, 8
        %s194 = smul.addr %s191, 9
        %s195 = sadd.s32 %s193, %s194
        %s196 = smul.addr %s189, 36
        %s197 = sadd.s32 %s195, %s196
        %s198 = smul.addr %s197, 4
        %s199 = scalar_lea.vmem %s0, %s198
        %s200 = smul.u32 9, %s18
      $region24: #{cvt_forward.11} parent=19 // pred_fallthru
        _
      // Predicated region
      $region25: #{cvt_forward.11} parent=19 // pred_check
        %p201 = pneg %p79
      $region26: #{cvt_forward.11} parent=19 // pred_check_branch
        %203 = sbr.rel (%p201) target = $region28
      $region27: #{cvt_forward.11} parent=19 // pred_region
        %p204 = scmp.lt.s32.totalorder %s19, 3
        %s205 = scalar_select %p204, %s19, 3
        %s206 = smul.addr %s205, 4
        %s207 = scalar_lea.vmem %s1, %s206
      $region28: #{cvt_forward.11} parent=19 // pred_fallthru
        _
      // Predicated region
      $region29: #{cvt_forward.11} parent=19 // pred_check
        %p208 = pneg %p128
      $region30: #{cvt_forward.11} parent=19 // pred_check_branch
        %210 = sbr.rel (%p208) target = $region32
      $region31: #{cvt_forward.11} parent=19 // pred_region
        %s211 = smul.u32 9, %s18
        %p212 = scmp.lt.s32.totalorder %s17, 1
        %s213 = scalar_select %p212, %s17, 1
        %p214 = scmp.lt.s32.totalorder %s211, 8
        %s215 = scalar_select %p214, %s211, 8
        %s216 = smul.addr %s213, 9
        %s217 = sadd.s32 %s215, %s216
        %s218 = smul.addr %s217, 8
        %s219 = scalar_lea.vmem %s3, %s218
        %s220 = smul.u32 9, %s18
      $region32: #{cvt_forward.11} parent=19 // pred_fallthru
        _
    $region20: #{cvt_forward.11} parent=5 // pred_fallthru
      _
    %p221 = scmp.le.s32.totalorder 1, %s10
    %p222 = scmp.lt.s32.totalorder %s10, 9
    %p223 = pnand %p221, %p222
    %p224 = pneg %p223
    // Predicated region
    $region33: #{cvt_forward.11} parent=5 // pred_check
      _
    $region34: #{cvt_forward.11} parent=5 // pred_check_branch
      %226 = sbr.rel (%p223) target = $region36
    $region35: #{cvt_forward.11} parent=5 // pred_region
      %s227 = ssub.s32 %s10, 1
      %s228 = smul.u32 9, %s21
      %p229 = scmp.lt.s32.totalorder %s20, 1
      %s230 = scalar_select %p229, %s20, 1
      %p231 = scmp.lt.s32.totalorder %s22, 3
      %s232 = scalar_select %p231, %s22, 3
      %p233 = scmp.lt.s32.totalorder %s228, 8
      %s234 = scalar_select %p233, %s228, 8
      %s235 = smul.addr %s232, 9
      %s236 = sadd.s32 %s234, %s235
      %s237 = smul.addr %s230, 36
      %s238 = sadd.s32 %s236, %s237
      %s239 = smul.addr %s238, 4
      %s240 = scalar_lea.vmem %s0, %s239
      %p241 = pneg %p59
      %p242 = pneg %p56
      %p243 = scmp.lt.s32.totalorder %s22, 3
      %s244 = scalar_select %p243, %s22, 3
      %s245 = smul.addr %s244, 4
      %s246 = scalar_lea.vmem %s1, %s245
      %p247 = pneg %p85
      %p248 = pneg %p82
      %p249 = pneg %p106
      %p250 = pneg %p103
      %s251 = smul.u32 9, %s21
      %p252 = scmp.lt.s32.totalorder %s20, 1
      %s253 = scalar_select %p252, %s20, 1
      %p254 = scmp.lt.s32.totalorder %s251, 8
      %s255 = scalar_select %p254, %s251, 8
      %s256 = smul.addr %s253, 9
      %s257 = sadd.s32 %s255, %s256
      %s258 = smul.addr %s257, 8
      %s259 = scalar_lea.vmem %s3, %s258
      %p260 = pneg %p134
      %p261 = pneg %p131
      %p262 = pneg %p162
      %p263 = pneg %p159
      %s264 = smul.u32 9, %s21
      %p265 = scmp.lt.s32.totalorder %s20, 1
      %s266 = scalar_select %p265, %s20, 1
      %p267 = scmp.lt.s32.totalorder %s264, 8
      %s268 = scalar_select %p267, %s264, 8
      %s269 = smul.addr %s266, 9
      %s270 = sadd.s32 %s268, %s269
      %s271 = smul.addr %s270, 8
      %s272 = scalar_lea.vmem %s4, %s271
      %s273 = smul.u32 9, %s21
      %p274 = scmp.lt.s32.totalorder %s20, 1
      %s275 = scalar_select %p274, %s20, 1
      %p276 = scmp.lt.s32.totalorder %s22, 3
      %s277 = scalar_select %p276, %s22, 3
      %p278 = scmp.lt.s32.totalorder %s273, 8
      %s279 = scalar_select %p278, %s273, 8
      %s280 = smul.addr %s277, 9
      %s281 = sadd.s32 %s279, %s280
      %s282 = smul.addr %s275, 36
      %s283 = sadd.s32 %s281, %s282
      %s284 = smul.addr %s283, 4
      %s285 = scalar_lea.vmem %s0, %s284
      %s286 = smul.u32 9, %s21
      %p287 = scmp.lt.s32.totalorder %s22, 3
      %s288 = scalar_select %p287, %s22, 3
      %s289 = smul.addr %s288, 4
      %s290 = scalar_lea.vmem %s1, %s289
      %s291 = smul.u32 9, %s21
      %p292 = scmp.lt.s32.totalorder %s20, 1
      %s293 = scalar_select %p292, %s20, 1
      %p294 = scmp.lt.s32.totalorder %s291, 8
      %s295 = scalar_select %p294, %s291, 8
      %s296 = smul.addr %s293, 9
      %s297 = sadd.s32 %s295, %s296
      %s298 = smul.addr %s297, 8
      %s299 = scalar_lea.vmem %s3, %s298
      %s300 = smul.u32 9, %s21
      %s301 = smul.u32 9, %s21
      %p302 = scmp.lt.s32.totalorder %s20, 1
      %s303 = scalar_select %p302, %s20, 1
      %p304 = scmp.lt.s32.totalorder %s301, 8
      %s305 = scalar_select %p304, %s301, 8
      %s306 = smul.addr %s303, 9
      %s307 = sadd.s32 %s305, %s306
      %s308 = smul.addr %s307, 8
      %s309 = scalar_lea.vmem %s4, %s308
      %s310 = smul.u32 9, %s21
      %p312 = scmp.eq.s32.totalorder %s22, 0
      // Predicated region
      $region37: #{cvt_forward.11} parent=35 // pred_check
        %p313 = pneg %p312
      $region38: #{cvt_forward.11} parent=35 // pred_check_branch
        %315 = sbr.rel (%p313) target = $region40
      $region39: #{cvt_forward.11} parent=35 // pred_region
        %vm316 = vcmask 261120
        %317 = vst.msk [vmem:[#allocation2] sm:$0xff] %vm316, 0.0
        %318 = vst.msk [vmem:[#allocation2 + $0x8] sm:$0xff] %vm316, 0.0
        %319 = vst.msk [vmem:[#allocation2 + $0x10] sm:$0xff] %vm316, 0.0
        %320 = vst.msk [vmem:[#allocation2 + $0x18] sm:$0xff] %vm316, 0.0
        %321 = vst.msk [vmem:[#allocation2 + $0x20] sm:$0xff] %vm316, 0.0
        %322 = vst.msk [vmem:[#allocation2 + $0x28] sm:$0xff] %vm316, 0.0
        %323 = vst.msk [vmem:[#allocation2 + $0x30] sm:$0xff] %vm316, 0.0
        %324 = vst.msk [vmem:[#allocation2 + $0x38] sm:$0xff] %vm316, 0.0
        %325 = vst.msk [vmem:[#allocation2 + $0x40] sm:$0xff] %vm316, 0.0
      $region40: #{cvt_forward.11} parent=35 // pred_fallthru
        _
      %v326 = vld [vmem:[%s285] sm:$0xf]
      %v327 = vld [vmem:[%s285 + $0x4] sm:$0xf]
      %v328 = vld [vmem:[%s285 + $0x8] sm:$0xf]
      %v329 = vld [vmem:[%s285 + $0xc] sm:$0xf]
      %v330 = vld [vmem:[%s285 + $0x10] sm:$0xf]
      %v331 = vld [vmem:[%s285 + $0x14] sm:$0xf]
      %v332 = vld [vmem:[%s285 + $0x18] sm:$0xf]
      %v333 = vld [vmem:[%s285 + $0x1c] sm:$0xf]
      %v334 = vld [vmem:[%s285 + $0x20] sm:$0xf]
      %v335 = vld [vmem:[%s290] sm:$0xf]
      %v336 = vld [vmem:[#allocation2] sm:$0xff]
      %v337 = vld [vmem:[#allocation2 + $0x8] sm:$0xff]
      %v338 = vld [vmem:[#allocation2 + $0x10] sm:$0xff]
      %v339 = vld [vmem:[#allocation2 + $0x18] sm:$0xff]
      %v340 = vld [vmem:[#allocation2 + $0x20] sm:$0xff]
      %v341 = vld [vmem:[#allocation2 + $0x28] sm:$0xff]
      %v342 = vld [vmem:[#allocation2 + $0x30] sm:$0xff]
      %v343 = vld [vmem:[#allocation2 + $0x38] sm:$0xff]
      %v344 = vld [vmem:[#allocation2 + $0x40] sm:$0xff]
      %v354 = vunpack.c.l.b16 %v326
      %v355 = vunpack.c.l.b16 %v327
      %v356 = vunpack.c.l.b16 %v328
      %v357 = vunpack.c.l.b16 %v329
      %v358 = vunpack.c.l.b16 %v330
      %v359 = vunpack.c.l.b16 %v331
      %v360 = vunpack.c.l.b16 %v332
      %v361 = vunpack.c.l.b16 %v333
      %v362 = vunpack.c.l.b16 %v334
      %v363 = vpack.c.b16 %v355, %v354
      %v364 = vpack.c.b16 %v357, %v356
      %v365 = vpack.c.b16 %v359, %v358
      %v366 = vpack.c.b16 %v361, %v360
      %v367 = vpack.c.b16 %v362, %v362
      %vm368 = vcmask 64512
      %v370 = vsel %vm368, %v363, 0
      %v373 = vsel %vm368, %v364, 0
      %v376 = vsel %vm368, %v365, 0
      %v379 = vsel %vm368, %v366, 0
      %v382 = vsel %vm368, %v367, 0
      %vm384 = vcmask 1043456
      %v386 = vsel %vm384, %v335, 0
      %388 = vmatpush.bf16.msra.mxu0 0
      %389 = vmatpush.bf16.msra.mxu0 0
      %390 = vmatpush.bf16.msra.mxu0 0
      %391 = vmatpush.bf16.msra.mxu0 0
      %392 = vmatpush.bf16.msra.mxu0 0
      %393 = vmatpush.bf16.msra.mxu0 0
      %394 = vmatpush.bf16.msra.mxu0 0
      %395 = vmatpush.bf16.msra.mxu0 %v386
      %396 = vmatmul.bf16.gmra.mxu0 %v370
      %v397 = vpop.f32.mrf.mxu0
      %v398 = vadd.f32 0.0, %v397
      %v399 = vpop.f32.mrf.mxu0
      %v400 = vadd.f32 0.0, %v399
      %401 = vmatmul.bf16.gmra.mxu0 %v373
      %v402 = vpop.f32.mrf.mxu0
      %v403 = vadd.f32 0.0, %v402
      %v404 = vpop.f32.mrf.mxu0
      %v405 = vadd.f32 0.0, %v404
      %406 = vmatmul.bf16.gmra.mxu0 %v376
      %v407 = vpop.f32.mrf.mxu0
      %v408 = vadd.f32 0.0, %v407
      %v409 = vpop.f32.mrf.mxu0
      %v410 = vadd.f32 0.0, %v409
      %411 = vmatmul.bf16.gmra.mxu0 %v379
      %v412 = vpop.f32.mrf.mxu0
      %v413 = vadd.f32 0.0, %v412
      %v414 = vpop.f32.mrf.mxu0
      %v415 = vadd.f32 0.0, %v414
      %416 = vmatmul.bf16.gmra.mxu0 %v382
      %v417 = vpop.f32.mrf.mxu0
      %v418 = vadd.f32 0.0, %v417
      %v419 = vpop.f32.mrf.mxu0
      %420 = vdwg.mxu0
      %v421 = vadd.f32 %v336, %v398
      %v422 = vadd.f32 %v337, %v400
      %v423 = vadd.f32 %v338, %v403
      %v424 = vadd.f32 %v339, %v405
      %v425 = vadd.f32 %v340, %v408
      %v426 = vadd.f32 %v341, %v410
      %v427 = vadd.f32 %v342, %v413
      %v428 = vadd.f32 %v343, %v415
      %v429 = vadd.f32 %v344, %v418
      %vm430 = vcmask 261120
      %431 = vst.msk [vmem:[#allocation2] sm:$0xff] %vm430, %v421
      %432 = vst.msk [vmem:[#allocation2 + $0x8] sm:$0xff] %vm430, %v422
      %433 = vst.msk [vmem:[#allocation2 + $0x10] sm:$0xff] %vm430, %v423
      %434 = vst.msk [vmem:[#allocation2 + $0x18] sm:$0xff] %vm430, %v424
      %435 = vst.msk [vmem:[#allocation2 + $0x20] sm:$0xff] %vm430, %v425
      %436 = vst.msk [vmem:[#allocation2 + $0x28] sm:$0xff] %vm430, %v426
      %437 = vst.msk [vmem:[#allocation2 + $0x30] sm:$0xff] %vm430, %v427
      %438 = vst.msk [vmem:[#allocation2 + $0x38] sm:$0xff] %vm430, %v428
      %439 = vst.msk [vmem:[#allocation2 + $0x40] sm:$0xff] %vm430, %v429
      %p440 = scmp.eq.s32.totalorder %s22, 3
      // Predicated region
      $region41: #{cvt_forward.11} parent=35 // pred_check
        %p441 = pneg %p440
      $region42: #{cvt_forward.11} parent=35 // pred_check_branch
        %443 = sbr.rel (%p441) target = $region44
      $region43: #{cvt_forward.11} parent=35 // pred_region
        %v444 = vld [vmem:[#allocation2] sm:$0xff]
        %v445 = vld [vmem:[#allocation2 + $0x8] sm:$0xff]
        %v446 = vld [vmem:[#allocation2 + $0x10] sm:$0xff]
        %v447 = vld [vmem:[#allocation2 + $0x18] sm:$0xff]
        %v448 = vld [vmem:[#allocation2 + $0x20] sm:$0xff]
        %v449 = vld [vmem:[#allocation2 + $0x28] sm:$0xff]
        %v450 = vld [vmem:[#allocation2 + $0x30] sm:$0xff]
        %v451 = vld [vmem:[#allocation2 + $0x38] sm:$0xff]
        %v452 = vld [vmem:[#allocation2 + $0x40] sm:$0xff]
        %v453 = vld [vmem:[%s2] sm:$0x1]
        %v455 = vperm.slane %v453, 0
        %v457 = vadd.f32 %v444, %v455
        %v458 = vadd.f32 %v445, %v455
        %v459 = vadd.f32 %v446, %v455
        %v460 = vadd.f32 %v447, %v455
        %v461 = vadd.f32 %v448, %v455
        %v462 = vadd.f32 %v449, %v455
        %v463 = vadd.f32 %v450, %v455
        %v464 = vadd.f32 %v451, %v455
        %v465 = vadd.f32 %v452, %v455
        %v466 = vld [vmem:[%s299] sm:$0xff]
        %v467 = vld [vmem:[%s299 + $0x8] sm:$0xff]
        %v468 = vld [vmem:[%s299 + $0x10] sm:$0xff]
        %v469 = vld [vmem:[%s299 + $0x18] sm:$0xff]
        %v470 = vld [vmem:[%s299 + $0x20] sm:$0xff]
        %v471 = vld [vmem:[%s299 + $0x28] sm:$0xff]
        %v472 = vld [vmem:[%s299 + $0x30] sm:$0xff]
        %v473 = vld [vmem:[%s299 + $0x38] sm:$0xff]
        %v474 = vld [vmem:[%s299 + $0x40] sm:$0xff]
        %v475 = vadd.f32 %v457, %v466
        %v476 = vadd.f32 %v458, %v467
        %v477 = vadd.f32 %v459, %v468
        %v478 = vadd.f32 %v460, %v469
        %v479 = vadd.f32 %v461, %v470
        %v480 = vadd.f32 %v462, %v471
        %v481 = vadd.f32 %v463, %v472
        %v482 = vadd.f32 %v464, %v473
        %v483 = vadd.f32 %v465, %v474
        %484 = vst.msk [vmem:[%s309] sm:$0xff] %vm430, %v475
        %485 = vst.msk [vmem:[%s309 + $0x8] sm:$0xff] %vm430, %v476
        %486 = vst.msk [vmem:[%s309 + $0x10] sm:$0xff] %vm430, %v477
        %487 = vst.msk [vmem:[%s309 + $0x18] sm:$0xff] %vm430, %v478
        %488 = vst.msk [vmem:[%s309 + $0x20] sm:$0xff] %vm430, %v479
        %489 = vst.msk [vmem:[%s309 + $0x28] sm:$0xff] %vm430, %v480
        %490 = vst.msk [vmem:[%s309 + $0x30] sm:$0xff] %vm430, %v481
        %491 = vst.msk [vmem:[%s309 + $0x38] sm:$0xff] %vm430, %v482
        %492 = vst.msk [vmem:[%s309 + $0x40] sm:$0xff] %vm430, %v483
      $region44: #{cvt_forward.11} parent=35 // pred_fallthru
        _
      %s493 = smul.u32 9, %s21
      %p494 = scmp.lt.s32.totalorder %s20, 1
      %s495 = scalar_select %p494, %s20, 1
      %p496 = scmp.lt.s32.totalorder %s493, 8
      %s497 = scalar_select %p496, %s493, 8
      %s498 = smul.addr %s495, 9
      %s499 = sadd.s32 %s497, %s498
      %s500 = smul.addr %s499, 8
      %s501 = scalar_lea.vmem %s4, %s500
      // Predicated region
      $region45: #{cvt_forward.11} parent=35 // pred_check
        %p502 = pneg %p159
      $region46: #{cvt_forward.11} parent=35 // pred_check_branch
        %504 = sbr.rel (%p502) target = $region48
      $region47: #{cvt_forward.11} parent=35 // pred_region
        %s505 = smul.u32 9, %s21
      $region48: #{cvt_forward.11} parent=35 // pred_fallthru
        _
    $region36: #{cvt_forward.11} parent=5 // pred_fallthru
      _
    %p506 = scmp.le.s32.totalorder 2, %s10
    // Predicated region
    $region49: #{cvt_forward.11} parent=5 // pred_check
      %p507 = pneg %p506
    $region50: #{cvt_forward.11} parent=5 // pred_check_branch
      %509 = sbr.rel (%p507) target = $region52
    $region51: #{cvt_forward.11} parent=5 // pred_region
      %s510 = ssub.s32 %s10, 2
      // Predicated region
      $region53: #{cvt_forward.11} parent=51 // pred_check
        %p511 = pneg %p165
      $region54: #{cvt_forward.11} parent=51 // pred_check_branch
        %513 = sbr.rel (%p511) target = $region56
      $region55: #{cvt_forward.11} parent=51 // pred_region
        %s514 = smul.u32 9, %s24
        %p515 = scmp.lt.s32.totalorder %s23, 1
        %s516 = scalar_select %p515, %s23, 1
        %p517 = scmp.lt.s32.totalorder %s514, 8
        %s518 = scalar_select %p517, %s514, 8
        %s519 = smul.addr %s516, 9
        %s520 = sadd.s32 %s518, %s519
        %s521 = smul.addr %s520, 8
        %s522 = scalar_lea.vmem %s4, %s521
      $region56: #{cvt_forward.11} parent=51 // pred_fallthru
        _
    $region52: #{cvt_forward.11} parent=5 // pred_fallthru
      _
  $region6: #{cvt_forward.11} parent=0 // loop_footer
    %s14 = sadd.s32 1, %s10
  $region7: #{cvt_forward.11} parent=0 // loop_footer_branch
    %9 = sbr.rel target = $region3
  $region8: #{cvt_forward.11} parent=0 // loop_exit
    _

// kernel: cvt_forward.13
$region0: #{cvt_forward.13}
  #allocation0 [shape = 'u32[]', space=smem, size = 0x4, offset = 0x4, fixed_abs, tag = 'smem constant byte address 0x4 - core index']
  #allocation1 [shape = 'u32[72,128]{1,0:T(1,128)}', space=vmem, size = 0x9000, scoped, tag = 'internal scratch']
  %s0 = inlined_call_operand.vmem [shape: bf16[144,128], index: 0, kind: input, shape index: {}]
  %s1 = inlined_call_operand.vmem [shape: bf16[128,32], index: 1, kind: input, shape index: {}]
  %s2 = inlined_call_operand.vmem [shape: f32[1,32], index: 2, kind: input, shape index: {}]
  %s3 = inlined_call_operand.vmem [shape: f32[144,32], index: 3, kind: input, shape index: {}]
  %s4 = inlined_call_operand.vmem [shape: f32[144,32], index: 4, kind: output, shape index: {}]
  %s5 = sld [smem:[#allocation0]]
  $region26: #{cvt_forward.13} parent=0
    _
  %s7 = ssub.s32 1, %s5
  %s8 = scalar_select 0, %s7, %s5
  // Predicated region
  $region2: #{cvt_forward.13} parent=0 // pred_check
    _
  $region3: #{cvt_forward.13} parent=0 // pred_check_branch
    %10 = sbr.rel (0) target = $region5
  $region4: #{cvt_forward.13} parent=0 // pred_region
    _
  $region5: #{cvt_forward.13} parent=0 // pred_fallthru
    _
  // Predicated region
  $region6: #{cvt_forward.13} parent=0 // pred_check
    _
  $region7: #{cvt_forward.13} parent=0 // pred_check_branch
    %12 = sbr.rel (0) target = $region9
  $region8: #{cvt_forward.13} parent=0 // pred_region
    _
  $region9: #{cvt_forward.13} parent=0 // pred_fallthru
    _
  // Predicated region
  $region10: #{cvt_forward.13} parent=0 // pred_check
    _
  $region11: #{cvt_forward.13} parent=0 // pred_check_branch
    %14 = sbr.rel (0) target = $region13
  $region12: #{cvt_forward.13} parent=0 // pred_region
    _
  $region13: #{cvt_forward.13} parent=0 // pred_fallthru
    _
  // Predicated region
  $region14: #{cvt_forward.13} parent=0 // pred_check
    _
  $region15: #{cvt_forward.13} parent=0 // pred_check_branch
    %16 = sbr.rel (0) target = $region17
  $region16: #{cvt_forward.13} parent=0 // pred_region
    _
  $region17: #{cvt_forward.13} parent=0 // pred_fallthru
    _
  %v17 = vld [vmem:[%s0] sm:$0xf]
  %v18 = vld [vmem:[%s0 + $0x4] sm:$0xf]
  %v19 = vld [vmem:[%s0 + $0x8] sm:$0xf]
  %v20 = vld [vmem:[%s0 + $0xc] sm:$0xf]
  %v21 = vld [vmem:[%s0 + $0x10] sm:$0xf]
  %v22 = vld [vmem:[%s0 + $0x14] sm:$0xf]
  %v23 = vld [vmem:[%s0 + $0x18] sm:$0xf]
  %v24 = vld [vmem:[%s0 + $0x1c] sm:$0xf]
  %v25 = vld [vmem:[%s0 + $0x20] sm:$0xf]
  %v26 = vld [vmem:[%s0 + $0x24] sm:$0xf]
  %v27 = vld [vmem:[%s0 + $0x28] sm:$0xf]
  %v28 = vld [vmem:[%s0 + $0x2c] sm:$0xf]
  %v29 = vld [vmem:[%s0 + $0x30] sm:$0xf]
  %v30 = vld [vmem:[%s0 + $0x34] sm:$0xf]
  %v31 = vld [vmem:[%s0 + $0x38] sm:$0xf]
  %v32 = vld [vmem:[%s0 + $0x3c] sm:$0xf]
  %v33 = vld [vmem:[%s0 + $0x40] sm:$0xf]
  %v34 = vld [vmem:[%s0 + $0x44] sm:$0xf]
  %v35 = vld [vmem:[%s1] sm:$0xf]
  %v36 = vld [vmem:[%s1 + $0x4] sm:$0xf]
  %v37 = vld [vmem:[%s1 + $0x8] sm:$0xf]
  %v38 = vld [vmem:[%s1 + $0xc] sm:$0xf]
  %v39 = vld [vmem:[%s1 + $0x10] sm:$0xf]
  %v40 = vld [vmem:[%s1 + $0x14] sm:$0xf]
  %v41 = vld [vmem:[%s1 + $0x18] sm:$0xf]
  %v42 = vld [vmem:[%s1 + $0x1c] sm:$0xf]
  %v43 = vld [vmem:[%s1 + $0x20] sm:$0xf]
  %v44 = vld [vmem:[%s1 + $0x24] sm:$0xf]
  %v45 = vld [vmem:[%s1 + $0x28] sm:$0xf]
  %v46 = vld [vmem:[%s1 + $0x2c] sm:$0xf]
  %v47 = vld [vmem:[%s1 + $0x30] sm:$0xf]
  %v48 = vld [vmem:[%s1 + $0x34] sm:$0xf]
  %v49 = vld [vmem:[%s1 + $0x38] sm:$0xf]
  %v50 = vld [vmem:[%s1 + $0x3c] sm:$0xf]
  %v51 = vld [vmem:[%s2] sm:$0x1]
  %v53 = vperm.slane %v51, 0
  %v73 = vunpack.c.l.b16 %v17
  %v74 = vunpack.c.l.b16 %v18
  %v75 = vunpack.c.l.b16 %v19
  %v76 = vunpack.c.l.b16 %v20
  %v77 = vunpack.c.l.b16 %v21
  %v78 = vunpack.c.l.b16 %v22
  %v79 = vunpack.c.l.b16 %v23
  %v80 = vunpack.c.l.b16 %v24
  %v81 = vunpack.c.l.b16 %v25
  %v82 = vunpack.c.l.b16 %v26
  %v83 = vunpack.c.l.b16 %v27
  %v84 = vunpack.c.l.b16 %v28
  %v85 = vunpack.c.l.b16 %v29
  %v86 = vunpack.c.l.b16 %v30
  %v87 = vunpack.c.l.b16 %v31
  %v88 = vunpack.c.l.b16 %v32
  %v89 = vunpack.c.l.b16 %v33
  %v90 = vunpack.c.l.b16 %v34
  %v91 = vpack.c.b16 %v74, %v73
  %v92 = vpack.c.b16 %v76, %v75
  %v93 = vpack.c.b16 %v78, %v77
  %v94 = vpack.c.b16 %v80, %v79
  %v95 = vpack.c.b16 %v82, %v81
  %v96 = vpack.c.b16 %v84, %v83
  %v97 = vpack.c.b16 %v86, %v85
  %v98 = vpack.c.b16 %v88, %v87
  %v99 = vpack.c.b16 %v90, %v89
  %v125 = vunpack.c.l.b16 %v35
  %v126 = vunpack.c.l.b16 %v36
  %v127 = vunpack.c.l.b16 %v37
  %v128 = vunpack.c.l.b16 %v38
  %v129 = vunpack.c.l.b16 %v39
  %v130 = vunpack.c.l.b16 %v40
  %v131 = vunpack.c.l.b16 %v41
  %v132 = vunpack.c.l.b16 %v42
  %v133 = vunpack.c.l.b16 %v43
  %v134 = vunpack.c.l.b16 %v44
  %v135 = vunpack.c.l.b16 %v45
  %v136 = vunpack.c.l.b16 %v46
  %v137 = vunpack.c.l.b16 %v47
  %v138 = vunpack.c.l.b16 %v48
  %v139 = vunpack.c.l.b16 %v49
  %v140 = vunpack.c.l.b16 %v50
  %v141 = vpack.c.b16 %v126, %v125
  %v142 = vpack.c.b16 %v128, %v127
  %v143 = vpack.c.b16 %v130, %v129
  %v144 = vpack.c.b16 %v132, %v131
  %v145 = vpack.c.b16 %v134, %v133
  %v146 = vpack.c.b16 %v136, %v135
  %v147 = vpack.c.b16 %v138, %v137
  %v148 = vpack.c.b16 %v140, %v139
  %157 = vmatpush.bf16.msra.mxu0 %v148
  %158 = vmatpush.bf16.msra.mxu0 %v147
  %159 = vmatpush.bf16.msra.mxu0 %v146
  %160 = vmatpush.bf16.msra.mxu0 %v145
  %161 = vmatpush.bf16.msra.mxu0 %v144
  %162 = vmatpush.bf16.msra.mxu0 %v143
  %163 = vmatpush.bf16.msra.mxu0 %v142
  %164 = vmatpush.bf16.msra.mxu0 %v141
  %165 = vmatmul.bf16.gmra.mxu0 %v91
  %v166 = vpop.f32.mrf.mxu0
  %v167 = vadd.f32 %v53, %v166
  %v168 = vpop.f32.mrf.mxu0
  %v169 = vadd.f32 %v53, %v168
  %170 = vmatmul.bf16.gmra.mxu0 %v92
  %v171 = vpop.f32.mrf.mxu0
  %v172 = vadd.f32 %v53, %v171
  %v173 = vpop.f32.mrf.mxu0
  %v174 = vadd.f32 %v53, %v173
  %175 = vmatmul.bf16.gmra.mxu0 %v93
  %v176 = vpop.f32.mrf.mxu0
  %v177 = vadd.f32 %v53, %v176
  %v178 = vpop.f32.mrf.mxu0
  %v179 = vadd.f32 %v53, %v178
  %180 = vmatmul.bf16.gmra.mxu0 %v94
  %v181 = vpop.f32.mrf.mxu0
  %v182 = vadd.f32 %v53, %v181
  %v183 = vpop.f32.mrf.mxu0
  %v184 = vadd.f32 %v53, %v183
  %185 = vmatmul.bf16.gmra.mxu0 %v95
  %v186 = vpop.f32.mrf.mxu0
  %v187 = vadd.f32 %v53, %v186
  %v188 = vpop.f32.mrf.mxu0
  %v189 = vadd.f32 %v53, %v188
  %190 = vmatmul.bf16.gmra.mxu0 %v96
  %v191 = vpop.f32.mrf.mxu0
  %v192 = vadd.f32 %v53, %v191
  %v193 = vpop.f32.mrf.mxu0
  %v194 = vadd.f32 %v53, %v193
  %195 = vmatmul.bf16.gmra.mxu0 %v97
  %v196 = vpop.f32.mrf.mxu0
  %v197 = vadd.f32 %v53, %v196
  %v198 = vpop.f32.mrf.mxu0
  %v199 = vadd.f32 %v53, %v198
  %200 = vmatmul.bf16.gmra.mxu0 %v98
  %v201 = vpop.f32.mrf.mxu0
  %v202 = vadd.f32 %v53, %v201
  %v203 = vpop.f32.mrf.mxu0
  %v204 = vadd.f32 %v53, %v203
  %205 = vmatmul.bf16.gmra.mxu0 %v99
  %v206 = vpop.f32.mrf.mxu0
  %v207 = vadd.f32 %v53, %v206
  %v208 = vpop.f32.mrf.mxu0
  %v209 = vadd.f32 %v53, %v208
  %210 = vdwg.mxu0
  %v211 = vld [vmem:[%s3] sm:$0xff]
  %v212 = vld [vmem:[%s3 + $0x8] sm:$0xff]
  %v213 = vld [vmem:[%s3 + $0x10] sm:$0xff]
  %v214 = vld [vmem:[%s3 + $0x18] sm:$0xff]
  %v215 = vld [vmem:[%s3 + $0x20] sm:$0xff]
  %v216 = vld [vmem:[%s3 + $0x28] sm:$0xff]
  %v217 = vld [vmem:[%s3 + $0x30] sm:$0xff]
  %v218 = vld [vmem:[%s3 + $0x38] sm:$0xff]
  %v219 = vld [vmem:[%s3 + $0x40] sm:$0xff]
  %v220 = vld [vmem:[%s3 + $0x48] sm:$0xff]
  %v221 = vld [vmem:[%s3 + $0x50] sm:$0xff]
  %v222 = vld [vmem:[%s3 + $0x58] sm:$0xff]
  %v223 = vld [vmem:[%s3 + $0x60] sm:$0xff]
  %v224 = vld [vmem:[%s3 + $0x68] sm:$0xff]
  %v225 = vld [vmem:[%s3 + $0x70] sm:$0xff]
  %v226 = vld [vmem:[%s3 + $0x78] sm:$0xff]
  %v227 = vld [vmem:[%s3 + $0x80] sm:$0xff]
  %v228 = vld [vmem:[%s3 + $0x88] sm:$0xff]
  %v229 = vadd.f32 %v167, %v211
  %v230 = vadd.f32 %v169, %v212
  %v231 = vadd.f32 %v172, %v213
  %v232 = vadd.f32 %v174, %v214
  %v233 = vadd.f32 %v177, %v215
  %v234 = vadd.f32 %v179, %v216
  %v235 = vadd.f32 %v182, %v217
  %v236 = vadd.f32 %v184, %v218
  %v237 = vadd.f32 %v187, %v219
  %v238 = vadd.f32 %v189, %v220
  %v239 = vadd.f32 %v192, %v221
  %v240 = vadd.f32 %v194, %v222
  %v241 = vadd.f32 %v197, %v223
  %v242 = vadd.f32 %v199, %v224
  %v243 = vadd.f32 %v202, %v225
  %v244 = vadd.f32 %v204, %v226
  %v245 = vadd.f32 %v207, %v227
  %v246 = vadd.f32 %v209, %v228
  %vm247 = vcmask 261120
  %248 = vst.msk [vmem:[%s4] sm:$0xff] %vm247, %v229
  %249 = vst.msk [vmem:[%s4 + $0x8] sm:$0xff] %vm247, %v230
  %250 = vst.msk [vmem:[%s4 + $0x10] sm:$0xff] %vm247, %v231
  %251 = vst.msk [vmem:[%s4 + $0x18] sm:$0xff] %vm247, %v232
  %252 = vst.msk [vmem:[%s4 + $0x20] sm:$0xff] %vm247, %v233
  %253 = vst.msk [vmem:[%s4 + $0x28] sm:$0xff] %vm247, %v234
  %254 = vst.msk [vmem:[%s4 + $0x30] sm:$0xff] %vm247, %v235
  %255 = vst.msk [vmem:[%s4 + $0x38] sm:$0xff] %vm247, %v236
  %256 = vst.msk [vmem:[%s4 + $0x40] sm:$0xff] %vm247, %v237
  %257 = vst.msk [vmem:[%s4 + $0x48] sm:$0xff] %vm247, %v238
  %258 = vst.msk [vmem:[%s4 + $0x50] sm:$0xff] %vm247, %v239
  %259 = vst.msk [vmem:[%s4 + $0x58] sm:$0xff] %vm247, %v240
  %260 = vst.msk [vmem:[%s4 + $0x60] sm:$0xff] %vm247, %v241
  %261 = vst.msk [vmem:[%s4 + $0x68] sm:$0xff] %vm247, %v242
  %262 = vst.msk [vmem:[%s4 + $0x70] sm:$0xff] %vm247, %v243
  %263 = vst.msk [vmem:[%s4 + $0x78] sm:$0xff] %vm247, %v244
  %264 = vst.msk [vmem:[%s4 + $0x80] sm:$0xff] %vm247, %v245
  %265 = vst.msk [vmem:[%s4 + $0x88] sm:$0xff] %vm247, %v246
  // Predicated region
  $region18: #{cvt_forward.13} parent=0 // pred_check
    _
  $region19: #{cvt_forward.13} parent=0 // pred_check_branch
    %267 = sbr.rel (0) target = $region21
  $region20: #{cvt_forward.13} parent=0 // pred_region
    _
  $region21: #{cvt_forward.13} parent=0 // pred_fallthru
    _
  // Predicated region
  $region22: #{cvt_forward.13} parent=0 // pred_check
    _
  $region23: #{cvt_forward.13} parent=0 // pred_check_branch
    %269 = sbr.rel (0) target = $region25
  $region24: #{cvt_forward.13} parent=0 // pred_region
    _
  $region25: #{cvt_forward.13} parent=0 // pred_fallthru
    _

// kernel: cvt_forward.12
$region0: #{cvt_forward.12}
  #allocation0 [shape = 'u32[]', space=smem, size = 0x4, offset = 0x4, fixed_abs, tag = 'smem constant byte address 0x4 - core index']
  #allocation1 [shape = 'u32[72,128]{1,0:T(1,128)}', space=vmem, size = 0x9000, scoped, tag = 'internal scratch']
  %s0 = inlined_call_operand.vmem [shape: f32[144,32], index: 0, kind: input, shape index: {}]
  %s1 = inlined_call_operand.vmem [shape: bf16[32,128], index: 1, kind: input, shape index: {}]
  %s2 = inlined_call_operand.vmem [shape: f32[1,32], index: 2, kind: input, shape index: {}]
  %s3 = inlined_call_operand.vmem [shape: f32[1,32], index: 3, kind: input, shape index: {}]
  %s4 = inlined_call_operand.vmem [shape: f32[1,128], index: 4, kind: input, shape index: {}]
  %s5 = inlined_call_operand.vmem [shape: bf16[144,128], index: 5, kind: output, shape index: {}]
  %s6 = sld [smem:[#allocation0]]
  $region30: #{cvt_forward.12} parent=0
    _
  %s8 = ssub.s32 1, %s6
  %s9 = scalar_select 0, %s8, %s6
  // Predicated region
  $region2: #{cvt_forward.12} parent=0 // pred_check
    _
  $region3: #{cvt_forward.12} parent=0 // pred_check_branch
    %11 = sbr.rel (0) target = $region5
  $region4: #{cvt_forward.12} parent=0 // pred_region
    _
  $region5: #{cvt_forward.12} parent=0 // pred_fallthru
    _
  // Predicated region
  $region6: #{cvt_forward.12} parent=0 // pred_check
    _
  $region7: #{cvt_forward.12} parent=0 // pred_check_branch
    %13 = sbr.rel (0) target = $region9
  $region8: #{cvt_forward.12} parent=0 // pred_region
    _
  $region9: #{cvt_forward.12} parent=0 // pred_fallthru
    _
  // Predicated region
  $region10: #{cvt_forward.12} parent=0 // pred_check
    _
  $region11: #{cvt_forward.12} parent=0 // pred_check_branch
    %15 = sbr.rel (0) target = $region13
  $region12: #{cvt_forward.12} parent=0 // pred_region
    _
  $region13: #{cvt_forward.12} parent=0 // pred_fallthru
    _
  // Predicated region
  $region14: #{cvt_forward.12} parent=0 // pred_check
    _
  $region15: #{cvt_forward.12} parent=0 // pred_check_branch
    %17 = sbr.rel (0) target = $region17
  $region16: #{cvt_forward.12} parent=0 // pred_region
    _
  $region17: #{cvt_forward.12} parent=0 // pred_fallthru
    _
  // Predicated region
  $region18: #{cvt_forward.12} parent=0 // pred_check
    _
  $region19: #{cvt_forward.12} parent=0 // pred_check_branch
    %19 = sbr.rel (0) target = $region21
  $region20: #{cvt_forward.12} parent=0 // pred_region
    _
  $region21: #{cvt_forward.12} parent=0 // pred_fallthru
    _
  %v21 = vld [vmem:[%s0] sm:$0xff]
  %v22 = vld [vmem:[%s0 + $0x8] sm:$0xff]
  %v23 = vld [vmem:[%s0 + $0x10] sm:$0xff]
  %v24 = vld [vmem:[%s0 + $0x18] sm:$0xff]
  %v25 = vld [vmem:[%s0 + $0x20] sm:$0xff]
  %v26 = vld [vmem:[%s0 + $0x28] sm:$0xff]
  %v27 = vld [vmem:[%s0 + $0x30] sm:$0xff]
  %v28 = vld [vmem:[%s0 + $0x38] sm:$0xff]
  %v29 = vld [vmem:[%s0 + $0x40] sm:$0xff]
  %v30 = vld [vmem:[%s0 + $0x48] sm:$0xff]
  %v31 = vld [vmem:[%s0 + $0x50] sm:$0xff]
  %v32 = vld [vmem:[%s0 + $0x58] sm:$0xff]
  %v33 = vld [vmem:[%s0 + $0x60] sm:$0xff]
  %v34 = vld [vmem:[%s0 + $0x68] sm:$0xff]
  %v35 = vld [vmem:[%s0 + $0x70] sm:$0xff]
  %v36 = vld [vmem:[%s0 + $0x78] sm:$0xff]
  %v37 = vld [vmem:[%s0 + $0x80] sm:$0xff]
  %v38 = vld [vmem:[%s0 + $0x88] sm:$0xff]
  %vm39 = vcmask 261120
  %v40 = vsel %vm39, %v21, 0.0
  %41 = vadd.xlane.f32.xlu0 %v40
  %v42 = vpop.xlane.xlu0 %41
  %v43 = vsel %vm39, %v22, 0.0
  %44 = vadd.xlane.f32.xlu0 %v43
  %v45 = vpop.xlane.xlu0 %44
  %v46 = vsel %vm39, %v23, 0.0
  %47 = vadd.xlane.f32.xlu0 %v46
  %v48 = vpop.xlane.xlu0 %47
  %v49 = vsel %vm39, %v24, 0.0
  %50 = vadd.xlane.f32.xlu0 %v49
  %v51 = vpop.xlane.xlu0 %50
  %v52 = vsel %vm39, %v25, 0.0
  %53 = vadd.xlane.f32.xlu0 %v52
  %v54 = vpop.xlane.xlu0 %53
  %v55 = vsel %vm39, %v26, 0.0
  %56 = vadd.xlane.f32.xlu0 %v55
  %v57 = vpop.xlane.xlu0 %56
  %v58 = vsel %vm39, %v27, 0.0
  %59 = vadd.xlane.f32.xlu0 %v58
  %v60 = vpop.xlane.xlu0 %59
  %v61 = vsel %vm39, %v28, 0.0
  %62 = vadd.xlane.f32.xlu0 %v61
  %v63 = vpop.xlane.xlu0 %62
  %v64 = vsel %vm39, %v29, 0.0
  %65 = vadd.xlane.f32.xlu0 %v64
  %v66 = vpop.xlane.xlu0 %65
  %v67 = vsel %vm39, %v30, 0.0
  %68 = vadd.xlane.f32.xlu0 %v67
  %v69 = vpop.xlane.xlu0 %68
  %v70 = vsel %vm39, %v31, 0.0
  %71 = vadd.xlane.f32.xlu0 %v70
  %v72 = vpop.xlane.xlu0 %71
  %v73 = vsel %vm39, %v32, 0.0
  %74 = vadd.xlane.f32.xlu0 %v73
  %v75 = vpop.xlane.xlu0 %74
  %v76 = vsel %vm39, %v33, 0.0
  %77 = vadd.xlane.f32.xlu0 %v76
  %v78 = vpop.xlane.xlu0 %77
  %v79 = vsel %vm39, %v34, 0.0
  %80 = vadd.xlane.f32.xlu0 %v79
  %v81 = vpop.xlane.xlu0 %80
  %v82 = vsel %vm39, %v35, 0.0
  %83 = vadd.xlane.f32.xlu0 %v82
  %v84 = vpop.xlane.xlu0 %83
  %v85 = vsel %vm39, %v36, 0.0
  %86 = vadd.xlane.f32.xlu0 %v85
  %v87 = vpop.xlane.xlu0 %86
  %v88 = vsel %vm39, %v37, 0.0
  %89 = vadd.xlane.f32.xlu0 %v88
  %v90 = vpop.xlane.xlu0 %89
  %v91 = vsel %vm39, %v38, 0.0
  %92 = vadd.xlane.f32.xlu0 %v91
  %v93 = vpop.xlane.xlu0 %92
  %v94 = vrcp.pop 32.0
  %v95 = vmul.f32 32.0, %v94
  %v96 = vsub.f32 1.0, %v95
  %v97 = vmul.f32 %v94, %v96
  %v98 = vadd.f32 %v94, %v97
  %vm99 = vweird.f32 %v94
  %v100 = vsel %vm99, %v94, %v98
  %v101 = vmul.f32 %v42, %v100
  %v102 = vmul.f32 %v45, %v100
  %v103 = vmul.f32 %v48, %v100
  %v104 = vmul.f32 %v51, %v100
  %v105 = vmul.f32 %v54, %v100
  %v106 = vmul.f32 %v57, %v100
  %v107 = vmul.f32 %v60, %v100
  %v108 = vmul.f32 %v63, %v100
  %v109 = vmul.f32 %v66, %v100
  %v110 = vmul.f32 %v69, %v100
  %v111 = vmul.f32 %v72, %v100
  %v112 = vmul.f32 %v75, %v100
  %v113 = vmul.f32 %v78, %v100
  %v114 = vmul.f32 %v81, %v100
  %v115 = vmul.f32 %v84, %v100
  %v116 = vmul.f32 %v87, %v100
  %v117 = vmul.f32 %v90, %v100
  %v118 = vmul.f32 %v93, %v100
  %v119 = vsub.f32 %v21, %v101
  %v120 = vsub.f32 %v22, %v102
  %v121 = vsub.f32 %v23, %v103
  %v122 = vsub.f32 %v24, %v104
  %v123 = vsub.f32 %v25, %v105
  %v124 = vsub.f32 %v26, %v106
  %v125 = vsub.f32 %v27, %v107
  %v126 = vsub.f32 %v28, %v108
  %v127 = vsub.f32 %v29, %v109
  %v128 = vsub.f32 %v30, %v110
  %v129 = vsub.f32 %v31, %v111
  %v130 = vsub.f32 %v32, %v112
  %v131 = vsub.f32 %v33, %v113
  %v132 = vsub.f32 %v34, %v114
  %v133 = vsub.f32 %v35, %v115
  %v134 = vsub.f32 %v36, %v116
  %v135 = vsub.f32 %v37, %v117
  %v136 = vsub.f32 %v38, %v118
  %v137 = vmul.f32 %v119, %v119
  %v138 = vmul.f32 %v120, %v120
  %v139 = vmul.f32 %v121, %v121
  %v140 = vmul.f32 %v122, %v122
  %v141 = vmul.f32 %v123, %v123
  %v142 = vmul.f32 %v124, %v124
  %v143 = vmul.f32 %v125, %v125
  %v144 = vmul.f32 %v126, %v126
  %v145 = vmul.f32 %v127, %v127
  %v146 = vmul.f32 %v128, %v128
  %v147 = vmul.f32 %v129, %v129
  %v148 = vmul.f32 %v130, %v130
  %v149 = vmul.f32 %v131, %v131
  %v150 = vmul.f32 %v132, %v132
  %v151 = vmul.f32 %v133, %v133
  %v152 = vmul.f32 %v134, %v134
  %v153 = vmul.f32 %v135, %v135
  %v154 = vmul.f32 %v136, %v136
  %v155 = vsel %vm39, %v137, 0.0
  %156 = vadd.xlane.f32.xlu0 %v155
  %v157 = vpop.xlane.xlu0 %156
  %v158 = vsel %vm39, %v138, 0.0
  %159 = vadd.xlane.f32.xlu0 %v158
  %v160 = vpop.xlane.xlu0 %159
  %v161 = vsel %vm39, %v139, 0.0
  %162 = vadd.xlane.f32.xlu0 %v161
  %v163 = vpop.xlane.xlu0 %162
  %v164 = vsel %vm39, %v140, 0.0
  %165 = vadd.xlane.f32.xlu0 %v164
  %v166 = vpop.xlane.xlu0 %165
  %v167 = vsel %vm39, %v141, 0.0
  %168 = vadd.xlane.f32.xlu0 %v167
  %v169 = vpop.xlane.xlu0 %168
  %v170 = vsel %vm39, %v142, 0.0
  %171 = vadd.xlane.f32.xlu0 %v170
  %v172 = vpop.xlane.xlu0 %171
  %v173 = vsel %vm39, %v143, 0.0
  %174 = vadd.xlane.f32.xlu0 %v173
  %v175 = vpop.xlane.xlu0 %174
  %v176 = vsel %vm39, %v144, 0.0
  %177 = vadd.xlane.f32.xlu0 %v176
  %v178 = vpop.xlane.xlu0 %177
  %v179 = vsel %vm39, %v145, 0.0
  %180 = vadd.xlane.f32.xlu0 %v179
  %v181 = vpop.xlane.xlu0 %180
  %v182 = vsel %vm39, %v146, 0.0
  %183 = vadd.xlane.f32.xlu0 %v182
  %v184 = vpop.xlane.xlu0 %183
  %v185 = vsel %vm39, %v147, 0.0
  %186 = vadd.xlane.f32.xlu0 %v185
  %v187 = vpop.xlane.xlu0 %186
  %v188 = vsel %vm39, %v148, 0.0
  %189 = vadd.xlane.f32.xlu0 %v188
  %v190 = vpop.xlane.xlu0 %189
  %v191 = vsel %vm39, %v149, 0.0
  %192 = vadd.xlane.f32.xlu0 %v191
  %v193 = vpop.xlane.xlu0 %192
  %v194 = vsel %vm39, %v150, 0.0
  %195 = vadd.xlane.f32.xlu0 %v194
  %v196 = vpop.xlane.xlu0 %195
  %v197 = vsel %vm39, %v151, 0.0
  %198 = vadd.xlane.f32.xlu0 %v197
  %v199 = vpop.xlane.xlu0 %198
  %v200 = vsel %vm39, %v152, 0.0
  %201 = vadd.xlane.f32.xlu0 %v200
  %v202 = vpop.xlane.xlu0 %201
  %v203 = vsel %vm39, %v153, 0.0
  %204 = vadd.xlane.f32.xlu0 %v203
  %v205 = vpop.xlane.xlu0 %204
  %v206 = vsel %vm39, %v154, 0.0
  %207 = vadd.xlane.f32.xlu0 %v206
  %v208 = vpop.xlane.xlu0 %207
  %v209 = vmul.f32 %v157, %v100
  %v210 = vmul.f32 %v160, %v100
  %v211 = vmul.f32 %v163, %v100
  %v212 = vmul.f32 %v166, %v100
  %v213 = vmul.f32 %v169, %v100
  %v214 = vmul.f32 %v172, %v100
  %v215 = vmul.f32 %v175, %v100
  %v216 = vmul.f32 %v178, %v100
  %v217 = vmul.f32 %v181, %v100
  %v218 = vmul.f32 %v184, %v100
  %v219 = vmul.f32 %v187, %v100
  %v220 = vmul.f32 %v190, %v100
  %v221 = vmul.f32 %v193, %v100
  %v222 = vmul.f32 %v196, %v100
  %v223 = vmul.f32 %v199, %v100
  %v224 = vmul.f32 %v202, %v100
  %v225 = vmul.f32 %v205, %v100
  %v226 = vmul.f32 %v208, %v100
  %v227 = vadd.f32 %v209, 1e-05
  %v228 = vadd.f32 %v210, 1e-05
  %v229 = vadd.f32 %v211, 1e-05
  %v230 = vadd.f32 %v212, 1e-05
  %v231 = vadd.f32 %v213, 1e-05
  %v232 = vadd.f32 %v214, 1e-05
  %v233 = vadd.f32 %v215, 1e-05
  %v234 = vadd.f32 %v216, 1e-05
  %v235 = vadd.f32 %v217, 1e-05
  %v236 = vadd.f32 %v218, 1e-05
  %v237 = vadd.f32 %v219, 1e-05
  %v238 = vadd.f32 %v220, 1e-05
  %v239 = vadd.f32 %v221, 1e-05
  %v240 = vadd.f32 %v222, 1e-05
  %v241 = vadd.f32 %v223, 1e-05
  %v242 = vadd.f32 %v224, 1e-05
  %v243 = vadd.f32 %v225, 1e-05
  %v244 = vadd.f32 %v226, 1e-05
  %v245 = vrsqrt.pop %v227
  %v246 = vmul.f32 %v245, %v227
  %v247 = vmul.f32 %v246, %v245
  %v248 = vmul.f32 0.5, %v247
  %v249 = vsub.f32 1.5, %v248
  %v250 = vmul.f32 %v245, %v249
  %vm251 = vweird.f32 %v227
  %vm252 = vweird.f32 %v245
  %vm253 = vmor %vm251, %vm252
  %v254 = vsel %vm253, %v245, %v250
  %v255 = vrsqrt.pop %v228
  %v256 = vmul.f32 %v255, %v228
  %v257 = vmul.f32 %v256, %v255
  %v258 = vmul.f32 0.5, %v257
  %v259 = vsub.f32 1.5, %v258
  %v260 = vmul.f32 %v255, %v259
  %vm261 = vweird.f32 %v228
  %vm262 = vweird.f32 %v255
  %vm263 = vmor %vm261, %vm262
  %v264 = vsel %vm263, %v255, %v260
  %v265 = vrsqrt.pop %v229
  %v266 = vmul.f32 %v265, %v229
  %v267 = vmul.f32 %v266, %v265
  %v268 = vmul.f32 0.5, %v267
  %v269 = vsub.f32 1.5, %v268
  %v270 = vmul.f32 %v265, %v269
  %vm271 = vweird.f32 %v229
  %vm272 = vweird.f32 %v265
  %vm273 = vmor %vm271, %vm272
  %v274 = vsel %vm273, %v265, %v270
  %v275 = vrsqrt.pop %v230
  %v276 = vmul.f32 %v275, %v230
  %v277 = vmul.f32 %v276, %v275
  %v278 = vmul.f32 0.5, %v277
  %v279 = vsub.f32 1.5, %v278
  %v280 = vmul.f32 %v275, %v279
  %vm281 = vweird.f32 %v230
  %vm282 = vweird.f32 %v275
  %vm283 = vmor %vm281, %vm282
  %v284 = vsel %vm283, %v275, %v280
  %v285 = vrsqrt.pop %v231
  %v286 = vmul.f32 %v285, %v231
  %v287 = vmul.f32 %v286, %v285
  %v288 = vmul.f32 0.5, %v287
  %v289 = vsub.f32 1.5, %v288
  %v290 = vmul.f32 %v285, %v289
  %vm291 = vweird.f32 %v231
  %vm292 = vweird.f32 %v285
  %vm293 = vmor %vm291, %vm292
  %v294 = vsel %vm293, %v285, %v290
  %v295 = vrsqrt.pop %v232
  %v296 = vmul.f32 %v295, %v232
  %v297 = vmul.f32 %v296, %v295
  %v298 = vmul.f32 0.5, %v297
  %v299 = vsub.f32 1.5, %v298
  %v300 = vmul.f32 %v295, %v299
  %vm301 = vweird.f32 %v232
  %vm302 = vweird.f32 %v295
  %vm303 = vmor %vm301, %vm302
  %v304 = vsel %vm303, %v295, %v300
  %v305 = vrsqrt.pop %v233
  %v306 = vmul.f32 %v305, %v233
  %v307 = vmul.f32 %v306, %v305
  %v308 = vmul.f32 0.5, %v307
  %v309 = vsub.f32 1.5, %v308
  %v310 = vmul.f32 %v305, %v309
  %vm311 = vweird.f32 %v233
  %vm312 = vweird.f32 %v305
  %vm313 = vmor %vm311, %vm312
  %v314 = vsel %vm313, %v305, %v310
  %v315 = vrsqrt.pop %v234
  %v316 = vmul.f32 %v315, %v234
  %v317 = vmul.f32 %v316, %v315
  %v318 = vmul.f32 0.5, %v317
  %v319 = vsub.f32 1.5, %v318
  %v320 = vmul.f32 %v315, %v319
  %vm321 = vweird.f32 %v234
  %vm322 = vweird.f32 %v315
  %vm323 = vmor %vm321, %vm322
  %v324 = vsel %vm323, %v315, %v320
  %v325 = vrsqrt.pop %v235
  %v326 = vmul.f32 %v325, %v235
  %v327 = vmul.f32 %v326, %v325
  %v328 = vmul.f32 0.5, %v327
  %v329 = vsub.f32 1.5, %v328
  %v330 = vmul.f32 %v325, %v329
  %vm331 = vweird.f32 %v235
  %vm332 = vweird.f32 %v325
  %vm333 = vmor %vm331, %vm332
  %v334 = vsel %vm333, %v325, %v330
  %v335 = vrsqrt.pop %v236
  %v336 = vmul.f32 %v335, %v236
  %v337 = vmul.f32 %v336, %v335
  %v338 = vmul.f32 0.5, %v337
  %v339 = vsub.f32 1.5, %v338
  %v340 = vmul.f32 %v335, %v339
  %vm341 = vweird.f32 %v236
  %vm342 = vweird.f32 %v335
  %vm343 = vmor %vm341, %vm342
  %v344 = vsel %vm343, %v335, %v340
  %v345 = vrsqrt.pop %v237
  %v346 = vmul.f32 %v345, %v237
  %v347 = vmul.f32 %v346, %v345
  %v348 = vmul.f32 0.5, %v347
  %v349 = vsub.f32 1.5, %v348
  %v350 = vmul.f32 %v345, %v349
  %vm351 = vweird.f32 %v237
  %vm352 = vweird.f32 %v345
  %vm353 = vmor %vm351, %vm352
  %v354 = vsel %vm353, %v345, %v350
  %v355 = vrsqrt.pop %v238
  %v356 = vmul.f32 %v355, %v238
  %v357 = vmul.f32 %v356, %v355
  %v358 = vmul.f32 0.5, %v357
  %v359 = vsub.f32 1.5, %v358
  %v360 = vmul.f32 %v355, %v359
  %vm361 = vweird.f32 %v238
  %vm362 = vweird.f32 %v355
  %vm363 = vmor %vm361, %vm362
  %v364 = vsel %vm363, %v355, %v360
  %v365 = vrsqrt.pop %v239
  %v366 = vmul.f32 %v365, %v239
  %v367 = vmul.f32 %v366, %v365
  %v368 = vmul.f32 0.5, %v367
  %v369 = vsub.f32 1.5, %v368
  %v370 = vmul.f32 %v365, %v369
  %vm371 = vweird.f32 %v239
  %vm372 = vweird.f32 %v365
  %vm373 = vmor %vm371, %vm372
  %v374 = vsel %vm373, %v365, %v370
  %v375 = vrsqrt.pop %v240
  %v376 = vmul.f32 %v375, %v240
  %v377 = vmul.f32 %v376, %v375
  %v378 = vmul.f32 0.5, %v377
  %v379 = vsub.f32 1.5, %v378
  %v380 = vmul.f32 %v375, %v379
  %vm381 = vweird.f32 %v240
  %vm382 = vweird.f32 %v375
  %vm383 = vmor %vm381, %vm382
  %v384 = vsel %vm383, %v375, %v380
  %v385 = vrsqrt.pop %v241
  %v386 = vmul.f32 %v385, %v241
  %v387 = vmul.f32 %v386, %v385
  %v388 = vmul.f32 0.5, %v387
  %v389 = vsub.f32 1.5, %v388
  %v390 = vmul.f32 %v385, %v389
  %vm391 = vweird.f32 %v241
  %vm392 = vweird.f32 %v385
  %vm393 = vmor %vm391, %vm392
  %v394 = vsel %vm393, %v385, %v390
  %v395 = vrsqrt.pop %v242
  %v396 = vmul.f32 %v395, %v242
  %v397 = vmul.f32 %v396, %v395
  %v398 = vmul.f32 0.5, %v397
  %v399 = vsub.f32 1.5, %v398
  %v400 = vmul.f32 %v395, %v399
  %vm401 = vweird.f32 %v242
  %vm402 = vweird.f32 %v395
  %vm403 = vmor %vm401, %vm402
  %v404 = vsel %vm403, %v395, %v400
  %v405 = vrsqrt.pop %v243
  %v406 = vmul.f32 %v405, %v243
  %v407 = vmul.f32 %v406, %v405
  %v408 = vmul.f32 0.5, %v407
  %v409 = vsub.f32 1.5, %v408
  %v410 = vmul.f32 %v405, %v409
  %vm411 = vweird.f32 %v243
  %vm412 = vweird.f32 %v405
  %vm413 = vmor %vm411, %vm412
  %v414 = vsel %vm413, %v405, %v410
  %v415 = vrsqrt.pop %v244
  %v416 = vmul.f32 %v415, %v244
  %v417 = vmul.f32 %v416, %v415
  %v418 = vmul.f32 0.5, %v417
  %v419 = vsub.f32 1.5, %v418
  %v420 = vmul.f32 %v415, %v419
  %vm421 = vweird.f32 %v244
  %vm422 = vweird.f32 %v415
  %vm423 = vmor %vm421, %vm422
  %v424 = vsel %vm423, %v415, %v420
  %v425 = vmul.f32 %v119, %v254
  %v426 = vmul.f32 %v120, %v264
  %v427 = vmul.f32 %v121, %v274
  %v428 = vmul.f32 %v122, %v284
  %v429 = vmul.f32 %v123, %v294
  %v430 = vmul.f32 %v124, %v304
  %v431 = vmul.f32 %v125, %v314
  %v432 = vmul.f32 %v126, %v324
  %v433 = vmul.f32 %v127, %v334
  %v434 = vmul.f32 %v128, %v344
  %v435 = vmul.f32 %v129, %v354
  %v436 = vmul.f32 %v130, %v364
  %v437 = vmul.f32 %v131, %v374
  %v438 = vmul.f32 %v132, %v384
  %v439 = vmul.f32 %v133, %v394
  %v440 = vmul.f32 %v134, %v404
  %v441 = vmul.f32 %v135, %v414
  %v442 = vmul.f32 %v136, %v424
  %v443 = vld [vmem:[%s2] sm:$0x1]
  %v445 = vperm.slane %v443, 0
  %v447 = vmul.f32 %v425, %v445
  %v448 = vmul.f32 %v426, %v445
  %v449 = vmul.f32 %v427, %v445
  %v450 = vmul.f32 %v428, %v445
  %v451 = vmul.f32 %v429, %v445
  %v452 = vmul.f32 %v430, %v445
  %v453 = vmul.f32 %v431, %v445
  %v454 = vmul.f32 %v432, %v445
  %v455 = vmul.f32 %v433, %v445
  %v456 = vmul.f32 %v434, %v445
  %v457 = vmul.f32 %v435, %v445
  %v458 = vmul.f32 %v436, %v445
  %v459 = vmul.f32 %v437, %v445
  %v460 = vmul.f32 %v438, %v445
  %v461 = vmul.f32 %v439, %v445
  %v462 = vmul.f32 %v440, %v445
  %v463 = vmul.f32 %v441, %v445
  %v464 = vmul.f32 %v442, %v445
  %v465 = vld [vmem:[%s3] sm:$0x1]
  %v467 = vperm.slane %v465, 0
  %v469 = vadd.f32 %v447, %v467
  %v470 = vadd.f32 %v448, %v467
  %v471 = vadd.f32 %v449, %v467
  %v472 = vadd.f32 %v450, %v467
  %v473 = vadd.f32 %v451, %v467
  %v474 = vadd.f32 %v452, %v467
  %v475 = vadd.f32 %v453, %v467
  %v476 = vadd.f32 %v454, %v467
  %v477 = vadd.f32 %v455, %v467
  %v478 = vadd.f32 %v456, %v467
  %v479 = vadd.f32 %v457, %v467
  %v480 = vadd.f32 %v458, %v467
  %v481 = vadd.f32 %v459, %v467
  %v482 = vadd.f32 %v460, %v467
  %v483 = vadd.f32 %v461, %v467
  %v484 = vadd.f32 %v462, %v467
  %v485 = vadd.f32 %v463, %v467
  %v486 = vadd.f32 %v464, %v467
  %v487 = vld [vmem:[%s1] sm:$0xf]
  %v488 = vld [vmem:[%s1 + $0x4] sm:$0xf]
  %v489 = vld [vmem:[%s1 + $0x8] sm:$0xf]
  %v490 = vld [vmem:[%s1 + $0xc] sm:$0xf]
  %v491 = vpack.c.bf16 %v470, %v469
  %v492 = vpack.c.bf16 %v472, %v471
  %v493 = vpack.c.bf16 %v474, %v473
  %v494 = vpack.c.bf16 %v476, %v475
  %v495 = vpack.c.bf16 %v478, %v477
  %v496 = vpack.c.bf16 %v480, %v479
  %v497 = vpack.c.bf16 %v482, %v481
  %v498 = vpack.c.bf16 %v484, %v483
  %v499 = vpack.c.bf16 %v486, %v485
  %v500 = vld [vmem:[%s4] sm:$0x1]
  %v502 = vperm.slane %v500, 0
  %v508 = vunpack.c.l.b16 %v487
  %v509 = vunpack.c.l.b16 %v488
  %v510 = vunpack.c.l.b16 %v489
  %v511 = vunpack.c.l.b16 %v490
  %v512 = vpack.c.b16 %v509, %v508
  %v513 = vpack.c.b16 %v511, %v510
  %v517 = vsel %vm39, %v491, 0
  %v520 = vsel %vm39, %v492, 0
  %v523 = vsel %vm39, %v493, 0
  %v526 = vsel %vm39, %v494, 0
  %v529 = vsel %vm39, %v495, 0
  %v532 = vsel %vm39, %v496, 0
  %v535 = vsel %vm39, %v497, 0
  %v538 = vsel %vm39, %v498, 0
  %v541 = vsel %vm39, %v499, 0
  %543 = vmatpush.bf16.msra.mxu0 0
  %544 = vmatpush.bf16.msra.mxu0 0
  %545 = vmatpush.bf16.msra.mxu0 0
  %546 = vmatpush.bf16.msra.mxu0 0
  %547 = vmatpush.bf16.msra.mxu0 0
  %548 = vmatpush.bf16.msra.mxu0 0
  %549 = vmatpush.bf16.msra.mxu0 %v513
  %550 = vmatpush.bf16.msra.mxu0 %v512
  %551 = vmatmul.bf16.gmra.mxu0 %v517
  %v552 = vpop.f32.mrf.mxu0
  %v553 = vadd.f32 %v502, %v552
  %v554 = vpop.f32.mrf.mxu0
  %v555 = vadd.f32 %v502, %v554
  %556 = vmatmul.bf16.gmra.mxu0 %v520
  %v557 = vpop.f32.mrf.mxu0
  %v558 = vadd.f32 %v502, %v557
  %v559 = vpop.f32.mrf.mxu0
  %v560 = vadd.f32 %v502, %v559
  %561 = vmatmul.bf16.gmra.mxu0 %v523
  %v562 = vpop.f32.mrf.mxu0
  %v563 = vadd.f32 %v502, %v562
  %v564 = vpop.f32.mrf.mxu0
  %v565 = vadd.f32 %v502, %v564
  %566 = vmatmul.bf16.gmra.mxu0 %v526
  %v567 = vpop.f32.mrf.mxu0
  %v568 = vadd.f32 %v502, %v567
  %v569 = vpop.f32.mrf.mxu0
  %v570 = vadd.f32 %v502, %v569
  %571 = vmatmul.bf16.gmra.mxu0 %v529
  %v572 = vpop.f32.mrf.mxu0
  %v573 = vadd.f32 %v502, %v572
  %v574 = vpop.f32.mrf.mxu0
  %v575 = vadd.f32 %v502, %v574
  %576 = vmatmul.bf16.gmra.mxu0 %v532
  %v577 = vpop.f32.mrf.mxu0
  %v578 = vadd.f32 %v502, %v577
  %v579 = vpop.f32.mrf.mxu0
  %v580 = vadd.f32 %v502, %v579
  %581 = vmatmul.bf16.gmra.mxu0 %v535
  %v582 = vpop.f32.mrf.mxu0
  %v583 = vadd.f32 %v502, %v582
  %v584 = vpop.f32.mrf.mxu0
  %v585 = vadd.f32 %v502, %v584
  %586 = vmatmul.bf16.gmra.mxu0 %v538
  %v587 = vpop.f32.mrf.mxu0
  %v588 = vadd.f32 %v502, %v587
  %v589 = vpop.f32.mrf.mxu0
  %v590 = vadd.f32 %v502, %v589
  %591 = vmatmul.bf16.gmra.mxu0 %v541
  %v592 = vpop.f32.mrf.mxu0
  %v593 = vadd.f32 %v502, %v592
  %v594 = vpop.f32.mrf.mxu0
  %v595 = vadd.f32 %v502, %v594
  %596 = vdwg.mxu0
  %v597 = vmul.f32 %v553, 0.5
  %v598 = vmul.f32 %v555, 0.5
  %v599 = vmul.f32 %v558, 0.5
  %v600 = vmul.f32 %v560, 0.5
  %v601 = vmul.f32 %v563, 0.5
  %v602 = vmul.f32 %v565, 0.5
  %v603 = vmul.f32 %v568, 0.5
  %v604 = vmul.f32 %v570, 0.5
  %v605 = vmul.f32 %v573, 0.5
  %v606 = vmul.f32 %v575, 0.5
  %v607 = vmul.f32 %v578, 0.5
  %v608 = vmul.f32 %v580, 0.5
  %v609 = vmul.f32 %v583, 0.5
  %v610 = vmul.f32 %v585, 0.5
  %v611 = vmul.f32 %v588, 0.5
  %v612 = vmul.f32 %v590, 0.5
  %v613 = vmul.f32 %v593, 0.5
  %v614 = vmul.f32 %v595, 0.5
  %v615 = vmul.f32 %v553, 0.70710677
  %v616 = vmul.f32 %v555, 0.70710677
  %v617 = vmul.f32 %v558, 0.70710677
  %v618 = vmul.f32 %v560, 0.70710677
  %v619 = vmul.f32 %v563, 0.70710677
  %v620 = vmul.f32 %v565, 0.70710677
  %v621 = vmul.f32 %v568, 0.70710677
  %v622 = vmul.f32 %v570, 0.70710677
  %v623 = vmul.f32 %v573, 0.70710677
  %v624 = vmul.f32 %v575, 0.70710677
  %v625 = vmul.f32 %v578, 0.70710677
  %v626 = vmul.f32 %v580, 0.70710677
  %v627 = vmul.f32 %v583, 0.70710677
  %v628 = vmul.f32 %v585, 0.70710677
  %v629 = vmul.f32 %v588, 0.70710677
  %v630 = vmul.f32 %v590, 0.70710677
  %v631 = vmul.f32 %v593, 0.70710677
  %v632 = vmul.f32 %v595, 0.70710677
  %vm633 = vcmp.ge.f32.partialorder %v615, 0.0
  %vm634 = vcmp.ge.f32.partialorder %v616, 0.0
  %vm635 = vcmp.ge.f32.partialorder %v617, 0.0
  %vm636 = vcmp.ge.f32.partialorder %v618, 0.0
  %vm637 = vcmp.ge.f32.partialorder %v619, 0.0
  %vm638 = vcmp.ge.f32.partialorder %v620, 0.0
  %vm639 = vcmp.ge.f32.partialorder %v621, 0.0
  %vm640 = vcmp.ge.f32.partialorder %v622, 0.0
  %vm641 = vcmp.ge.f32.partialorder %v623, 0.0
  %vm642 = vcmp.ge.f32.partialorder %v624, 0.0
  %vm643 = vcmp.ge.f32.partialorder %v625, 0.0
  %vm644 = vcmp.ge.f32.partialorder %v626, 0.0
  %vm645 = vcmp.ge.f32.partialorder %v627, 0.0
  %vm646 = vcmp.ge.f32.partialorder %v628, 0.0
  %vm647 = vcmp.ge.f32.partialorder %v629, 0.0
  %vm648 = vcmp.ge.f32.partialorder %v630, 0.0
  %vm649 = vcmp.ge.f32.partialorder %v631, 0.0
  %vm650 = vcmp.ge.f32.partialorder %v632, 0.0
  %v651 = vsel %vm633, 1.0, -1.0
  %v652 = vsel %vm634, 1.0, -1.0
  %v653 = vsel %vm635, 1.0, -1.0
  %v654 = vsel %vm636, 1.0, -1.0
  %v655 = vsel %vm637, 1.0, -1.0
  %v656 = vsel %vm638, 1.0, -1.0
  %v657 = vsel %vm639, 1.0, -1.0
  %v658 = vsel %vm640, 1.0, -1.0
  %v659 = vsel %vm641, 1.0, -1.0
  %v660 = vsel %vm642, 1.0, -1.0
  %v661 = vsel %vm643, 1.0, -1.0
  %v662 = vsel %vm644, 1.0, -1.0
  %v663 = vsel %vm645, 1.0, -1.0
  %v664 = vsel %vm646, 1.0, -1.0
  %v665 = vsel %vm647, 1.0, -1.0
  %v666 = vsel %vm648, 1.0, -1.0
  %v667 = vsel %vm649, 1.0, -1.0
  %v668 = vsel %vm650, 1.0, -1.0
  %v669 = vand.u32 2147483647, %v615
  %v670 = vand.u32 2147483647, %v616
  %v671 = vand.u32 2147483647, %v617
  %v672 = vand.u32 2147483647, %v618
  %v673 = vand.u32 2147483647, %v619
  %v674 = vand.u32 2147483647, %v620
  %v675 = vand.u32 2147483647, %v621
  %v676 = vand.u32 2147483647, %v622
  %v677 = vand.u32 2147483647, %v623
  %v678 = vand.u32 2147483647, %v624
  %v679 = vand.u32 2147483647, %v625
  %v680 = vand.u32 2147483647, %v626
  %v681 = vand.u32 2147483647, %v627
  %v682 = vand.u32 2147483647, %v628
  %v683 = vand.u32 2147483647, %v629
  %v684 = vand.u32 2147483647, %v630
  %v685 = vand.u32 2147483647, %v631
  %v686 = vand.u32 2147483647, %v632
  %v687 = vmul.f32 %v669, 0.3275911
  %v688 = vmul.f32 %v670, 0.3275911
  %v689 = vmul.f32 %v671, 0.3275911
  %v690 = vmul.f32 %v672, 0.3275911
  %v691 = vmul.f32 %v673, 0.3275911
  %v692 = vmul.f32 %v674, 0.3275911
  %v693 = vmul.f32 %v675, 0.3275911
  %v694 = vmul.f32 %v676, 0.3275911
  %v695 = vmul.f32 %v677, 0.3275911
  %v696 = vmul.f32 %v678, 0.3275911
  %v697 = vmul.f32 %v679, 0.3275911
  %v698 = vmul.f32 %v680, 0.3275911
  %v699 = vmul.f32 %v681, 0.3275911
  %v700 = vmul.f32 %v682, 0.3275911
  %v701 = vmul.f32 %v683, 0.3275911
  %v702 = vmul.f32 %v684, 0.3275911
  %v703 = vmul.f32 %v685, 0.3275911
  %v704 = vmul.f32 %v686, 0.3275911
  %v705 = vadd.f32 %v687, 1.0
  %v706 = vadd.f32 %v688, 1.0
  %v707 = vadd.f32 %v689, 1.0
  %v708 = vadd.f32 %v690, 1.0
  %v709 = vadd.f32 %v691, 1.0
  %v710 = vadd.f32 %v692, 1.0
  %v711 = vadd.f32 %v693, 1.0
  %v712 = vadd.f32 %v694, 1.0
  %v713 = vadd.f32 %v695, 1.0
  %v714 = vadd.f32 %v696, 1.0
  %v715 = vadd.f32 %v697, 1.0
  %v716 = vadd.f32 %v698, 1.0
  %v717 = vadd.f32 %v699, 1.0
  %v718 = vadd.f32 %v700, 1.0
  %v719 = vadd.f32 %v701, 1.0
  %v720 = vadd.f32 %v702, 1.0
  %v721 = vadd.f32 %v703, 1.0
  %v722 = vadd.f32 %v704, 1.0
  %v723 = vrcp.pop %v705
  %v724 = vmul.f32 %v705, %v723
  %v725 = vsub.f32 1.0, %v724
  %v726 = vmul.f32 %v723, %v725
  %v727 = vadd.f32 %v723, %v726
  %vm728 = vweird.f32 %v705
  %vm729 = vweird.f32 %v723
  %vm730 = vmor %vm728, %vm729
  %v731 = vsel %vm730, %v723, %v727
  %v732 = vand.u32 2147483647, %v705
  %vm733 = vcmp.eq.f32.partialorder %v732, 8.507059e+37
  %v734 = vand.u32 %v705, 2147483648
  %v735 = vor.u32 1.1754944e-38, %v734
  %v736 = vsel %vm733, %v735, %v731
  %v737 = vmul.f32 1.0, %v736
  %v738 = vrcp.pop %v706
  %v739 = vmul.f32 %v706, %v738
  %v740 = vsub.f32 1.0, %v739
  %v741 = vmul.f32 %v738, %v740
  %v742 = vadd.f32 %v738, %v741
  %vm743 = vweird.f32 %v706
  %vm744 = vweird.f32 %v738
  %vm745 = vmor %vm743, %vm744
  %v746 = vsel %vm745, %v738, %v742
  %v747 = vand.u32 2147483647, %v706
  %vm748 = vcmp.eq.f32.partialorder %v747, 8.507059e+37
  %v749 = vand.u32 %v706, 2147483648
  %v750 = vor.u32 1.1754944e-38, %v749
  %v751 = vsel %vm748, %v750, %v746
  %v752 = vmul.f32 1.0, %v751
  %v753 = vrcp.pop %v707
  %v754 = vmul.f32 %v707, %v753
  %v755 = vsub.f32 1.0, %v754
  %v756 = vmul.f32 %v753, %v755
  %v757 = vadd.f32 %v753, %v756
  %vm758 = vweird.f32 %v707
  %vm759 = vweird.f32 %v753
  %vm760 = vmor %vm758, %vm759
  %v761 = vsel %vm760, %v753, %v757
  %v762 = vand.u32 2147483647, %v707
  %vm763 = vcmp.eq.f32.partialorder %v762, 8.507059e+37
  %v764 = vand.u32 %v707, 2147483648
  %v765 = vor.u32 1.1754944e-38, %v764
  %v766 = vsel %vm763, %v765, %v761
  %v767 = vmul.f32 1.0, %v766
  %v768 = vrcp.pop %v708
  %v769 = vmul.f32 %v708, %v768
  %v770 = vsub.f32 1.0, %v769
  %v771 = vmul.f32 %v768, %v770
  %v772 = vadd.f32 %v768, %v771
  %vm773 = vweird.f32 %v708
  %vm774 = vweird.f32 %v768
  %vm775 = vmor %vm773, %vm774
  %v776 = vsel %vm775, %v768, %v772
  %v777 = vand.u32 2147483647, %v708
  %vm778 = vcmp.eq.f32.partialorder %v777, 8.507059e+37
  %v779 = vand.u32 %v708, 2147483648
  %v780 = vor.u32 1.1754944e-38, %v779
  %v781 = vsel %vm778, %v780, %v776
  %v782 = vmul.f32 1.0, %v781
  %v783 = vrcp.pop %v709
  %v784 = vmul.f32 %v709, %v783
  %v785 = vsub.f32 1.0, %v784
  %v786 = vmul.f32 %v783, %v785
  %v787 = vadd.f32 %v783, %v786
  %vm788 = vweird.f32 %v709
  %vm789 = vweird.f32 %v783
  %vm790 = vmor %vm788, %vm789
  %v791 = vsel %vm790, %v783, %v787
  %v792 = vand.u32 2147483647, %v709
  %vm793 = vcmp.eq.f32.partialorder %v792, 8.507059e+37
  %v794 = vand.u32 %v709, 2147483648
  %v795 = vor.u32 1.1754944e-38, %v794
  %v796 = vsel %vm793, %v795, %v791
  %v797 = vmul.f32 1.0, %v796
  %v798 = vrcp.pop %v710
  %v799 = vmul.f32 %v710, %v798
  %v800 = vsub.f32 1.0, %v799
  %v801 = vmul.f32 %v798, %v800
  %v802 = vadd.f32 %v798, %v801
  %vm803 = vweird.f32 %v710
  %vm804 = vweird.f32 %v798
  %vm805 = vmor %vm803, %vm804
  %v806 = vsel %vm805, %v798, %v802
  %v807 = vand.u32 2147483647, %v710
  %vm808 = vcmp.eq.f32.partialorder %v807, 8.507059e+37
  %v809 = vand.u32 %v710, 2147483648
  %v810 = vor.u32 1.1754944e-38, %v809
  %v811 = vsel %vm808, %v810, %v806
  %v812 = vmul.f32 1.0, %v811
  %v813 = vrcp.pop %v711
  %v814 = vmul.f32 %v711, %v813
  %v815 = vsub.f32 1.0, %v814
  %v816 = vmul.f32 %v813, %v815
  %v817 = vadd.f32 %v813, %v816
  %vm818 = vweird.f32 %v711
  %vm819 = vweird.f32 %v813
  %vm820 = vmor %vm818, %vm819
  %v821 = vsel %vm820, %v813, %v817
  %v822 = vand.u32 2147483647, %v711
  %vm823 = vcmp.eq.f32.partialorder %v822, 8.507059e+37
  %v824 = vand.u32 %v711, 2147483648
  %v825 = vor.u32 1.1754944e-38, %v824
  %v826 = vsel %vm823, %v825, %v821
  %v827 = vmul.f32 1.0, %v826
  %v828 = vrcp.pop %v712
  %v829 = vmul.f32 %v712, %v828
  %v830 = vsub.f32 1.0, %v829
  %v831 = vmul.f32 %v828, %v830
  %v832 = vadd.f32 %v828, %v831
  %vm833 = vweird.f32 %v712
  %vm834 = vweird.f32 %v828
  %vm835 = vmor %vm833, %vm834
  %v836 = vsel %vm835, %v828, %v832
  %v837 = vand.u32 2147483647, %v712
  %vm838 = vcmp.eq.f32.partialorder %v837, 8.507059e+37
  %v839 = vand.u32 %v712, 2147483648
  %v840 = vor.u32 1.1754944e-38, %v839
  %v841 = vsel %vm838, %v840, %v836
  %v842 = vmul.f32 1.0, %v841
  %v843 = vrcp.pop %v713
  %v844 = vmul.f32 %v713, %v843
  %v845 = vsub.f32 1.0, %v844
  %v846 = vmul.f32 %v843, %v845
  %v847 = vadd.f32 %v843, %v846
  %vm848 = vweird.f32 %v713
  %vm849 = vweird.f32 %v843
  %vm850 = vmor %vm848, %vm849
  %v851 = vsel %vm850, %v843, %v847
  %v852 = vand.u32 2147483647, %v713
  %vm853 = vcmp.eq.f32.partialorder %v852, 8.507059e+37
  %v854 = vand.u32 %v713, 2147483648
  %v855 = vor.u32 1.1754944e-38, %v854
  %v856 = vsel %vm853, %v855, %v851
  %v857 = vmul.f32 1.0, %v856
  %v858 = vrcp.pop %v714
  %v859 = vmul.f32 %v714, %v858
  %v860 = vsub.f32 1.0, %v859
  %v861 = vmul.f32 %v858, %v860
  %v862 = vadd.f32 %v858, %v861
  %vm863 = vweird.f32 %v714
  %vm864 = vweird.f32 %v858
  %vm865 = vmor %vm863, %vm864
  %v866 = vsel %vm865, %v858, %v862
  %v867 = vand.u32 2147483647, %v714
  %vm868 = vcmp.eq.f32.partialorder %v867, 8.507059e+37
  %v869 = vand.u32 %v714, 2147483648
  %v870 = vor.u32 1.1754944e-38, %v869
  %v871 = vsel %vm868, %v870, %v866
  %v872 = vmul.f32 1.0, %v871
  %v873 = vrcp.pop %v715
  %v874 = vmul.f32 %v715, %v873
  %v875 = vsub.f32 1.0, %v874
  %v876 = vmul.f32 %v873, %v875
  %v877 = vadd.f32 %v873, %v876
  %vm878 = vweird.f32 %v715
  %vm879 = vweird.f32 %v873
  %vm880 = vmor %vm878, %vm879
  %v881 = vsel %vm880, %v873, %v877
  %v882 = vand.u32 2147483647, %v715
  %vm883 = vcmp.eq.f32.partialorder %v882, 8.507059e+37
  %v884 = vand.u32 %v715, 2147483648
  %v885 = vor.u32 1.1754944e-38, %v884
  %v886 = vsel %vm883, %v885, %v881
  %v887 = vmul.f32 1.0, %v886
  %v888 = vrcp.pop %v716
  %v889 = vmul.f32 %v716, %v888
  %v890 = vsub.f32 1.0, %v889
  %v891 = vmul.f32 %v888, %v890
  %v892 = vadd.f32 %v888, %v891
  %vm893 = vweird.f32 %v716
  %vm894 = vweird.f32 %v888
  %vm895 = vmor %vm893, %vm894
  %v896 = vsel %vm895, %v888, %v892
  %v897 = vand.u32 2147483647, %v716
  %vm898 = vcmp.eq.f32.partialorder %v897, 8.507059e+37
  %v899 = vand.u32 %v716, 2147483648
  %v900 = vor.u32 1.1754944e-38, %v899
  %v901 = vsel %vm898, %v900, %v896
  %v902 = vmul.f32 1.0, %v901
  %v903 = vrcp.pop %v717
  %v904 = vmul.f32 %v717, %v903
  %v905 = vsub.f32 1.0, %v904
  %v906 = vmul.f32 %v903, %v905
  %v907 = vadd.f32 %v903, %v906
  %vm908 = vweird.f32 %v717
  %vm909 = vweird.f32 %v903
  %vm910 = vmor %vm908, %vm909
  %v911 = vsel %vm910, %v903, %v907
  %v912 = vand.u32 2147483647, %v717
  %vm913 = vcmp.eq.f32.partialorder %v912, 8.507059e+37
  %v914 = vand.u32 %v717, 2147483648
  %v915 = vor.u32 1.1754944e-38, %v914
  %v916 = vsel %vm913, %v915, %v911
  %v917 = vmul.f32 1.0, %v916
  %v918 = vrcp.pop %v718
  %v919 = vmul.f32 %v718, %v918
  %v920 = vsub.f32 1.0, %v919
  %v921 = vmul.f32 %v918, %v920
  %v922 = vadd.f32 %v918, %v921
  %vm923 = vweird.f32 %v718
  %vm924 = vweird.f32 %v918
  %vm925 = vmor %vm923, %vm924
  %v926 = vsel %vm925, %v918, %v922
  %v927 = vand.u32 2147483647, %v718
  %vm928 = vcmp.eq.f32.partialorder %v927, 8.507059e+37
  %v929 = vand.u32 %v718, 2147483648
  %v930 = vor.u32 1.1754944e-38, %v929
  %v931 = vsel %vm928, %v930, %v926
  %v932 = vmul.f32 1.0, %v931
  %v933 = vrcp.pop %v719
  %v934 = vmul.f32 %v719, %v933
  %v935 = vsub.f32 1.0, %v934
  %v936 = vmul.f32 %v933, %v935
  %v937 = vadd.f32 %v933, %v936
  %vm938 = vweird.f32 %v719
  %vm939 = vweird.f32 %v933
  %vm940 = vmor %vm938, %vm939
  %v941 = vsel %vm940, %v933, %v937
  %v942 = vand.u32 2147483647, %v719
  %vm943 = vcmp.eq.f32.partialorder %v942, 8.507059e+37
  %v944 = vand.u32 %v719, 2147483648
  %v945 = vor.u32 1.1754944e-38, %v944
  %v946 = vsel %vm943, %v945, %v941
  %v947 = vmul.f32 1.0, %v946
  %v948 = vrcp.pop %v720
  %v949 = vmul.f32 %v720, %v948
  %v950 = vsub.f32 1.0, %v949
  %v951 = vmul.f32 %v948, %v950
  %v952 = vadd.f32 %v948, %v951
  %vm953 = vweird.f32 %v720
  %vm954 = vweird.f32 %v948
  %vm955 = vmor %vm953, %vm954
  %v956 = vsel %vm955, %v948, %v952
  %v957 = vand.u32 2147483647, %v720
  %vm958 = vcmp.eq.f32.partialorder %v957, 8.507059e+37
  %v959 = vand.u32 %v720, 2147483648
  %v960 = vor.u32 1.1754944e-38, %v959
  %v961 = vsel %vm958, %v960, %v956
  %v962 = vmul.f32 1.0, %v961
  %v963 = vrcp.pop %v721
  %v964 = vmul.f32 %v721, %v963
  %v965 = vsub.f32 1.0, %v964
  %v966 = vmul.f32 %v963, %v965
  %v967 = vadd.f32 %v963, %v966
  %vm968 = vweird.f32 %v721
  %vm969 = vweird.f32 %v963
  %vm970 = vmor %vm968, %vm969
  %v971 = vsel %vm970, %v963, %v967
  %v972 = vand.u32 2147483647, %v721
  %vm973 = vcmp.eq.f32.partialorder %v972, 8.507059e+37
  %v974 = vand.u32 %v721, 2147483648
  %v975 = vor.u32 1.1754944e-38, %v974
  %v976 = vsel %vm973, %v975, %v971
  %v977 = vmul.f32 1.0, %v976
  %v978 = vrcp.pop %v722
  %v979 = vmul.f32 %v722, %v978
  %v980 = vsub.f32 1.0, %v979
  %v981 = vmul.f32 %v978, %v980
  %v982 = vadd.f32 %v978, %v981
  %vm983 = vweird.f32 %v722
  %vm984 = vweird.f32 %v978
  %vm985 = vmor %vm983, %vm984
  %v986 = vsel %vm985, %v978, %v982
  %v987 = vand.u32 2147483647, %v722
  %vm988 = vcmp.eq.f32.partialorder %v987, 8.507059e+37
  %v989 = vand.u32 %v722, 2147483648
  %v990 = vor.u32 1.1754944e-38, %v989
  %v991 = vsel %vm988, %v990, %v986
  %v992 = vmul.f32 1.0, %v991
  %v993 = vmul.f32 %v737, 1.0614054
  %v994 = vmul.f32 %v752, 1.0614054
  %v995 = vmul.f32 %v767, 1.0614054
  %v996 = vmul.f32 %v782, 1.0614054
  %v997 = vmul.f32 %v797, 1.0614054
  %v998 = vmul.f32 %v812, 1.0614054
  %v999 = vmul.f32 %v827, 1.0614054
  %v1000 = vmul.f32 %v842, 1.0614054
  %v1001 = vmul.f32 %v857, 1.0614054
  %v1002 = vmul.f32 %v872, 1.0614054
  %v1003 = vmul.f32 %v887, 1.0614054
  %v1004 = vmul.f32 %v902, 1.0614054
  %v1005 = vmul.f32 %v917, 1.0614054
  %v1006 = vmul.f32 %v932, 1.0614054
  %v1007 = vmul.f32 %v947, 1.0614054
  %v1008 = vmul.f32 %v962, 1.0614054
  %v1009 = vmul.f32 %v977, 1.0614054
  %v1010 = vmul.f32 %v992, 1.0614054
  %v1011 = vadd.f32 %v993, -1.4531521
  %v1012 = vadd.f32 %v994, -1.4531521
  %v1013 = vadd.f32 %v995, -1.4531521
  %v1014 = vadd.f32 %v996, -1.4531521
  %v1015 = vadd.f32 %v997, -1.4531521
  %v1016 = vadd.f32 %v998, -1.4531521
  %v1017 = vadd.f32 %v999, -1.4531521
  %v1018 = vadd.f32 %v1000, -1.4531521
  %v1019 = vadd.f32 %v1001, -1.4531521
  %v1020 = vadd.f32 %v1002, -1.4531521
  %v1021 = vadd.f32 %v1003, -1.4531521
  %v1022 = vadd.f32 %v1004, -1.4531521
  %v1023 = vadd.f32 %v1005, -1.4531521
  %v1024 = vadd.f32 %v1006, -1.4531521
  %v1025 = vadd.f32 %v1007, -1.4531521
  %v1026 = vadd.f32 %v1008, -1.4531521
  %v1027 = vadd.f32 %v1009, -1.4531521
  %v1028 = vadd.f32 %v1010, -1.4531521
  %v1029 = vmul.f32 %v1011, %v737
  %v1030 = vmul.f32 %v1012, %v752
  %v1031 = vmul.f32 %v1013, %v767
  %v1032 = vmul.f32 %v1014, %v782
  %v1033 = vmul.f32 %v1015, %v797
  %v1034 = vmul.f32 %v1016, %v812
  %v1035 = vmul.f32 %v1017, %v827
  %v1036 = vmul.f32 %v1018, %v842
  %v1037 = vmul.f32 %v1019, %v857
  %v1038 = vmul.f32 %v1020, %v872
  %v1039 = vmul.f32 %v1021, %v887
  %v1040 = vmul.f32 %v1022, %v902
  %v1041 = vmul.f32 %v1023, %v917
  %v1042 = vmul.f32 %v1024, %v932
  %v1043 = vmul.f32 %v1025, %v947
  %v1044 = vmul.f32 %v1026, %v962
  %v1045 = vmul.f32 %v1027, %v977
  %v1046 = vmul.f32 %v1028, %v992
  %v1047 = vadd.f32 %v1029, 1.4214138
  %v1048 = vadd.f32 %v1030, 1.4214138
  %v1049 = vadd.f32 %v1031, 1.4214138
  %v1050 = vadd.f32 %v1032, 1.4214138
  %v1051 = vadd.f32 %v1033, 1.4214138
  %v1052 = vadd.f32 %v1034, 1.4214138
  %v1053 = vadd.f32 %v1035, 1.4214138
  %v1054 = vadd.f32 %v1036, 1.4214138
  %v1055 = vadd.f32 %v1037, 1.4214138
  %v1056 = vadd.f32 %v1038, 1.4214138
  %v1057 = vadd.f32 %v1039, 1.4214138
  %v1058 = vadd.f32 %v1040, 1.4214138
  %v1059 = vadd.f32 %v1041, 1.4214138
  %v1060 = vadd.f32 %v1042, 1.4214138
  %v1061 = vadd.f32 %v1043, 1.4214138
  %v1062 = vadd.f32 %v1044, 1.4214138
  %v1063 = vadd.f32 %v1045, 1.4214138
  %v1064 = vadd.f32 %v1046, 1.4214138
  %v1065 = vmul.f32 %v1047, %v737
  %v1066 = vmul.f32 %v1048, %v752
  %v1067 = vmul.f32 %v1049, %v767
  %v1068 = vmul.f32 %v1050, %v782
  %v1069 = vmul.f32 %v1051, %v797
  %v1070 = vmul.f32 %v1052, %v812
  %v1071 = vmul.f32 %v1053, %v827
  %v1072 = vmul.f32 %v1054, %v842
  %v1073 = vmul.f32 %v1055, %v857
  %v1074 = vmul.f32 %v1056, %v872
  %v1075 = vmul.f32 %v1057, %v887
  %v1076 = vmul.f32 %v1058, %v902
  %v1077 = vmul.f32 %v1059, %v917
  %v1078 = vmul.f32 %v1060, %v932
  %v1079 = vmul.f32 %v1061, %v947
  %v1080 = vmul.f32 %v1062, %v962
  %v1081 = vmul.f32 %v1063, %v977
  %v1082 = vmul.f32 %v1064, %v992
  %v1083 = vadd.f32 %v1065, -0.28449672
  %v1084 = vadd.f32 %v1066, -0.28449672
  %v1085 = vadd.f32 %v1067, -0.28449672
  %v1086 = vadd.f32 %v1068, -0.28449672
  %v1087 = vadd.f32 %v1069, -0.28449672
  %v1088 = vadd.f32 %v1070, -0.28449672
  %v1089 = vadd.f32 %v1071, -0.28449672
  %v1090 = vadd.f32 %v1072, -0.28449672
  %v1091 = vadd.f32 %v1073, -0.28449672
  %v1092 = vadd.f32 %v1074, -0.28449672
  %v1093 = vadd.f32 %v1075, -0.28449672
  %v1094 = vadd.f32 %v1076, -0.28449672
  %v1095 = vadd.f32 %v1077, -0.28449672
  %v1096 = vadd.f32 %v1078, -0.28449672
  %v1097 = vadd.f32 %v1079, -0.28449672
  %v1098 = vadd.f32 %v1080, -0.28449672
  %v1099 = vadd.f32 %v1081, -0.28449672
  %v1100 = vadd.f32 %v1082, -0.28449672
  %v1101 = vmul.f32 %v1083, %v737
  %v1102 = vmul.f32 %v1084, %v752
  %v1103 = vmul.f32 %v1085, %v767
  %v1104 = vmul.f32 %v1086, %v782
  %v1105 = vmul.f32 %v1087, %v797
  %v1106 = vmul.f32 %v1088, %v812
  %v1107 = vmul.f32 %v1089, %v827
  %v1108 = vmul.f32 %v1090, %v842
  %v1109 = vmul.f32 %v1091, %v857
  %v1110 = vmul.f32 %v1092, %v872
  %v1111 = vmul.f32 %v1093, %v887
  %v1112 = vmul.f32 %v1094, %v902
  %v1113 = vmul.f32 %v1095, %v917
  %v1114 = vmul.f32 %v1096, %v932
  %v1115 = vmul.f32 %v1097, %v947
  %v1116 = vmul.f32 %v1098, %v962
  %v1117 = vmul.f32 %v1099, %v977
  %v1118 = vmul.f32 %v1100, %v992
  %v1119 = vadd.f32 %v1101, 0.2548296
  %v1120 = vadd.f32 %v1102, 0.2548296
  %v1121 = vadd.f32 %v1103, 0.2548296
  %v1122 = vadd.f32 %v1104, 0.2548296
  %v1123 = vadd.f32 %v1105, 0.2548296
  %v1124 = vadd.f32 %v1106, 0.2548296
  %v1125 = vadd.f32 %v1107, 0.2548296
  %v1126 = vadd.f32 %v1108, 0.2548296
  %v1127 = vadd.f32 %v1109, 0.2548296
  %v1128 = vadd.f32 %v1110, 0.2548296
  %v1129 = vadd.f32 %v1111, 0.2548296
  %v1130 = vadd.f32 %v1112, 0.2548296
  %v1131 = vadd.f32 %v1113, 0.2548296
  %v1132 = vadd.f32 %v1114, 0.2548296
  %v1133 = vadd.f32 %v1115, 0.2548296
  %v1134 = vadd.f32 %v1116, 0.2548296
  %v1135 = vadd.f32 %v1117, 0.2548296
  %v1136 = vadd.f32 %v1118, 0.2548296
  %v1137 = vmul.f32 %v1119, %v737
  %v1138 = vmul.f32 %v1120, %v752
  %v1139 = vmul.f32 %v1121, %v767
  %v1140 = vmul.f32 %v1122, %v782
  %v1141 = vmul.f32 %v1123, %v797
  %v1142 = vmul.f32 %v1124, %v812
  %v1143 = vmul.f32 %v1125, %v827
  %v1144 = vmul.f32 %v1126, %v842
  %v1145 = vmul.f32 %v1127, %v857
  %v1146 = vmul.f32 %v1128, %v872
  %v1147 = vmul.f32 %v1129, %v887
  %v1148 = vmul.f32 %v1130, %v902
  %v1149 = vmul.f32 %v1131, %v917
  %v1150 = vmul.f32 %v1132, %v932
  %v1151 = vmul.f32 %v1133, %v947
  %v1152 = vmul.f32 %v1134, %v962
  %v1153 = vmul.f32 %v1135, %v977
  %v1154 = vmul.f32 %v1136, %v992
  %v1155 = vsub.f32 0.0, %v669
  %v1156 = vsub.f32 0.0, %v670
  %v1157 = vsub.f32 0.0, %v671
  %v1158 = vsub.f32 0.0, %v672
  %v1159 = vsub.f32 0.0, %v673
  %v1160 = vsub.f32 0.0, %v674
  %v1161 = vsub.f32 0.0, %v675
  %v1162 = vsub.f32 0.0, %v676
  %v1163 = vsub.f32 0.0, %v677
  %v1164 = vsub.f32 0.0, %v678
  %v1165 = vsub.f32 0.0, %v679
  %v1166 = vsub.f32 0.0, %v680
  %v1167 = vsub.f32 0.0, %v681
  %v1168 = vsub.f32 0.0, %v682
  %v1169 = vsub.f32 0.0, %v683
  %v1170 = vsub.f32 0.0, %v684
  %v1171 = vsub.f32 0.0, %v685
  %v1172 = vsub.f32 0.0, %v686
  %v1173 = vmul.f32 %v1155, %v669
  %v1174 = vmul.f32 %v1156, %v670
  %v1175 = vmul.f32 %v1157, %v671
  %v1176 = vmul.f32 %v1158, %v672
  %v1177 = vmul.f32 %v1159, %v673
  %v1178 = vmul.f32 %v1160, %v674
  %v1179 = vmul.f32 %v1161, %v675
  %v1180 = vmul.f32 %v1162, %v676
  %v1181 = vmul.f32 %v1163, %v677
  %v1182 = vmul.f32 %v1164, %v678
  %v1183 = vmul.f32 %v1165, %v679
  %v1184 = vmul.f32 %v1166, %v680
  %v1185 = vmul.f32 %v1167, %v681
  %v1186 = vmul.f32 %v1168, %v682
  %v1187 = vmul.f32 %v1169, %v683
  %v1188 = vmul.f32 %v1170, %v684
  %v1189 = vmul.f32 %v1171, %v685
  %v1190 = vmul.f32 %v1172, %v686
  %v1191 = vmul.f32 %v1173, 1.442695
  %v1192 = vpow.pop %v1191
  %v1193 = vmul.f32 %v1174, 1.442695
  %v1194 = vpow.pop %v1193
  %v1195 = vmul.f32 %v1175, 1.442695
  %v1196 = vpow.pop %v1195
  %v1197 = vmul.f32 %v1176, 1.442695
  %v1198 = vpow.pop %v1197
  %v1199 = vmul.f32 %v1177, 1.442695
  %v1200 = vpow.pop %v1199
  %v1201 = vmul.f32 %v1178, 1.442695
  %v1202 = vpow.pop %v1201
  %v1203 = vmul.f32 %v1179, 1.442695
  %v1204 = vpow.pop %v1203
  %v1205 = vmul.f32 %v1180, 1.442695
  %v1206 = vpow.pop %v1205
  %v1207 = vmul.f32 %v1181, 1.442695
  %v1208 = vpow.pop %v1207
  %v1209 = vmul.f32 %v1182, 1.442695
  %v1210 = vpow.pop %v1209
  %v1211 = vmul.f32 %v1183, 1.442695
  %v1212 = vpow.pop %v1211
  %v1213 = vmul.f32 %v1184, 1.442695
  %v1214 = vpow.pop %v1213
  %v1215 = vmul.f32 %v1185, 1.442695
  %v1216 = vpow.pop %v1215
  %v1217 = vmul.f32 %v1186, 1.442695
  %v1218 = vpow.pop %v1217
  %v1219 = vmul.f32 %v1187, 1.442695
  %v1220 = vpow.pop %v1219
  %v1221 = vmul.f32 %v1188, 1.442695
  %v1222 = vpow.pop %v1221
  %v1223 = vmul.f32 %v1189, 1.442695
  %v1224 = vpow.pop %v1223
  %v1225 = vmul.f32 %v1190, 1.442695
  %v1226 = vpow.pop %v1225
  %v1227 = vmul.f32 %v1137, %v1192
  %v1228 = vmul.f32 %v1138, %v1194
  %v1229 = vmul.f32 %v1139, %v1196
  %v1230 = vmul.f32 %v1140, %v1198
  %v1231 = vmul.f32 %v1141, %v1200
  %v1232 = vmul.f32 %v1142, %v1202
  %v1233 = vmul.f32 %v1143, %v1204
  %v1234 = vmul.f32 %v1144, %v1206
  %v1235 = vmul.f32 %v1145, %v1208
  %v1236 = vmul.f32 %v1146, %v1210
  %v1237 = vmul.f32 %v1147, %v1212
  %v1238 = vmul.f32 %v1148, %v1214
  %v1239 = vmul.f32 %v1149, %v1216
  %v1240 = vmul.f32 %v1150, %v1218
  %v1241 = vmul.f32 %v1151, %v1220
  %v1242 = vmul.f32 %v1152, %v1222
  %v1243 = vmul.f32 %v1153, %v1224
  %v1244 = vmul.f32 %v1154, %v1226
  %v1245 = vsub.f32 1.0, %v1227
  %v1246 = vsub.f32 1.0, %v1228
  %v1247 = vsub.f32 1.0, %v1229
  %v1248 = vsub.f32 1.0, %v1230
  %v1249 = vsub.f32 1.0, %v1231
  %v1250 = vsub.f32 1.0, %v1232
  %v1251 = vsub.f32 1.0, %v1233
  %v1252 = vsub.f32 1.0, %v1234
  %v1253 = vsub.f32 1.0, %v1235
  %v1254 = vsub.f32 1.0, %v1236
  %v1255 = vsub.f32 1.0, %v1237
  %v1256 = vsub.f32 1.0, %v1238
  %v1257 = vsub.f32 1.0, %v1239
  %v1258 = vsub.f32 1.0, %v1240
  %v1259 = vsub.f32 1.0, %v1241
  %v1260 = vsub.f32 1.0, %v1242
  %v1261 = vsub.f32 1.0, %v1243
  %v1262 = vsub.f32 1.0, %v1244
  %v1263 = vmul.f32 %v651, %v1245
  %v1264 = vmul.f32 %v652, %v1246
  %v1265 = vmul.f32 %v653, %v1247
  %v1266 = vmul.f32 %v654, %v1248
  %v1267 = vmul.f32 %v655, %v1249
  %v1268 = vmul.f32 %v656, %v1250
  %v1269 = vmul.f32 %v657, %v1251
  %v1270 = vmul.f32 %v658, %v1252
  %v1271 = vmul.f32 %v659, %v1253
  %v1272 = vmul.f32 %v660, %v1254
  %v1273 = vmul.f32 %v661, %v1255
  %v1274 = vmul.f32 %v662, %v1256
  %v1275 = vmul.f32 %v663, %v1257
  %v1276 = vmul.f32 %v664, %v1258
  %v1277 = vmul.f32 %v665, %v1259
  %v1278 = vmul.f32 %v666, %v1260
  %v1279 = vmul.f32 %v667, %v1261
  %v1280 = vmul.f32 %v668, %v1262
  %v1281 = vadd.f32 %v1263, 1.0
  %v1282 = vadd.f32 %v1264, 1.0
  %v1283 = vadd.f32 %v1265, 1.0
  %v1284 = vadd.f32 %v1266, 1.0
  %v1285 = vadd.f32 %v1267, 1.0
  %v1286 = vadd.f32 %v1268, 1.0
  %v1287 = vadd.f32 %v1269, 1.0
  %v1288 = vadd.f32 %v1270, 1.0
  %v1289 = vadd.f32 %v1271, 1.0
  %v1290 = vadd.f32 %v1272, 1.0
  %v1291 = vadd.f32 %v1273, 1.0
  %v1292 = vadd.f32 %v1274, 1.0
  %v1293 = vadd.f32 %v1275, 1.0
  %v1294 = vadd.f32 %v1276, 1.0
  %v1295 = vadd.f32 %v1277, 1.0
  %v1296 = vadd.f32 %v1278, 1.0
  %v1297 = vadd.f32 %v1279, 1.0
  %v1298 = vadd.f32 %v1280, 1.0
  %v1299 = vmul.f32 %v597, %v1281
  %v1300 = vmul.f32 %v598, %v1282
  %v1301 = vmul.f32 %v599, %v1283
  %v1302 = vmul.f32 %v600, %v1284
  %v1303 = vmul.f32 %v601, %v1285
  %v1304 = vmul.f32 %v602, %v1286
  %v1305 = vmul.f32 %v603, %v1287
  %v1306 = vmul.f32 %v604, %v1288
  %v1307 = vmul.f32 %v605, %v1289
  %v1308 = vmul.f32 %v606, %v1290
  %v1309 = vmul.f32 %v607, %v1291
  %v1310 = vmul.f32 %v608, %v1292
  %v1311 = vmul.f32 %v609, %v1293
  %v1312 = vmul.f32 %v610, %v1294
  %v1313 = vmul.f32 %v611, %v1295
  %v1314 = vmul.f32 %v612, %v1296
  %v1315 = vmul.f32 %v613, %v1297
  %v1316 = vmul.f32 %v614, %v1298
  %v1317 = vpack.c.bf16 %v1299, %v1299
  %v1318 = vpack.c.bf16 %v1300, %v1300
  %v1319 = vpack.c.bf16 %v1301, %v1301
  %v1320 = vpack.c.bf16 %v1302, %v1302
  %v1321 = vpack.c.bf16 %v1303, %v1303
  %v1322 = vpack.c.bf16 %v1304, %v1304
  %v1323 = vpack.c.bf16 %v1305, %v1305
  %v1324 = vpack.c.bf16 %v1306, %v1306
  %v1325 = vpack.c.bf16 %v1307, %v1307
  %v1326 = vpack.c.bf16 %v1308, %v1308
  %v1327 = vpack.c.bf16 %v1309, %v1309
  %v1328 = vpack.c.bf16 %v1310, %v1310
  %v1329 = vpack.c.bf16 %v1311, %v1311
  %v1330 = vpack.c.bf16 %v1312, %v1312
  %v1331 = vpack.c.bf16 %v1313, %v1313
  %v1332 = vpack.c.bf16 %v1314, %v1314
  %v1333 = vpack.c.bf16 %v1315, %v1315
  %v1334 = vpack.c.bf16 %v1316, %v1316
  %1335 = vst [vmem:[%s5] sm:$0xf] %v1317
  %1336 = vst [vmem:[%s5 + $0x4] sm:$0xf] %v1318
  %1337 = vst [vmem:[%s5 + $0x8] sm:$0xf] %v1319
  %1338 = vst [vmem:[%s5 + $0xc] sm:$0xf] %v1320
  %1339 = vst [vmem:[%s5 + $0x10] sm:$0xf] %v1321
  %1340 = vst [vmem:[%s5 + $0x14] sm:$0xf] %v1322
  %1341 = vst [vmem:[%s5 + $0x18] sm:$0xf] %v1323
  %1342 = vst [vmem:[%s5 + $0x1c] sm:$0xf] %v1324
  %1343 = vst [vmem:[%s5 + $0x20] sm:$0xf] %v1325
  %1344 = vst [vmem:[%s5 + $0x24] sm:$0xf] %v1326
  %1345 = vst [vmem:[%s5 + $0x28] sm:$0xf] %v1327
  %1346 = vst [vmem:[%s5 + $0x2c] sm:$0xf] %v1328
  %1347 = vst [vmem:[%s5 + $0x30] sm:$0xf] %v1329
  %1348 = vst [vmem:[%s5 + $0x34] sm:$0xf] %v1330
  %1349 = vst [vmem:[%s5 + $0x38] sm:$0xf] %v1331
  %1350 = vst [vmem:[%s5 + $0x3c] sm:$0xf] %v1332
  %1351 = vst [vmem:[%s5 + $0x40] sm:$0xf] %v1333
  %1352 = vst [vmem:[%s5 + $0x44] sm:$0xf] %v1334
  // Predicated region
  $region22: #{cvt_forward.12} parent=0 // pred_check
    _
  $region23: #{cvt_forward.12} parent=0 // pred_check_branch
    %1354 = sbr.rel (0) target = $region25
  $region24: #{cvt_forward.12} parent=0 // pred_region
    _
  $region25: #{cvt_forward.12} parent=0 // pred_fallthru
    _
  // Predicated region
  $region26: #{cvt_forward.12} parent=0 // pred_check
    _
  $region27: #{cvt_forward.12} parent=0 // pred_check_branch
    %1356 = sbr.rel (0) target = $region29
  $region28: #{cvt_forward.12} parent=0 // pred_region
    _
  $region29: #{cvt_forward.12} parent=0 // pred_fallthru
    _

</llo_original>
